<compile_context>
chip_gen: v7x
topology: tpu7x:2x2x1
jax: 0.10.0
libtpu: 0.0.40
codegen_flags: <defaults>
</compile_context>

<pallas_src>
import functools

import jax
import jax.numpy as jnp
import numpy as np
from jax.experimental import pallas as pl
from jax.experimental.pallas import tpu as pltpu

# ---- module hyper-parameters (as in NeRF.__init__) -------------------------
D = 8
W = 256
INPUT_CH = 3
INPUT_CH_VIEWS = 3
OUTPUT_CH = 4
SKIPS = (4,)
IN_TOTAL = INPUT_CH + INPUT_CH_VIEWS   # 6
HEAD_N = 128                           # lane-dense head width (== W // 2)


def _round_up(a, b):
    return (a + b - 1) // b * b


# ---- deterministic parameter init (torch.nn.Linear-style uniform) ----------
def _init_linear(key, fan_in, fan_out):
    kw, kb = jax.random.split(key)
    bound = 1.0 / np.sqrt(fan_in)
    w = jax.random.uniform(kw, (fan_in, fan_out), jnp.float32, -bound, bound)
    b = jax.random.uniform(kb, (1, fan_out), jnp.float32, -bound, bound)
    return w, b


def init_nerf_params(key, use_viewdirs):
    keys = jax.random.split(key, D + 6)
    params = {}
    pts = []
    for i in range(D):
        if i == 0:
            fan_in = INPUT_CH
        elif (i - 1) in SKIPS:
            fan_in = W + INPUT_CH
        else:
            fan_in = W
        pts.append(_init_linear(keys[i], fan_in, W))
    params["pts"] = pts
    if use_viewdirs:
        params["feature"] = _init_linear(keys[D + 0], W, W)
        params["alpha"] = _init_linear(keys[D + 1], W, 1)
        params["views"] = _init_linear(keys[D + 2], INPUT_CH_VIEWS + W, W // 2)
        params["rgb"] = _init_linear(keys[D + 3], W // 2, 3)
    else:
        params["output"] = _init_linear(keys[D + 4], W, OUTPUT_CH)
    return params


# ---- Pallas kernel ----------------------------------------------------------
def _nerf_kernel(x_ref, *refs, use_viewdirs):
    f32, bf16 = jnp.float32, jnp.bfloat16
    out_ref = refs[-1]
    if use_viewdirs:
        x_w_ref, pts_w_ref, head_w_ref, rgb_w_ref, pts_b_ref, head_b_ref = refs[:-1]
    else:
        x_w_ref, pts_w_ref, out_w_ref, pts_b_ref, out_b_ref = refs[:-1]

    x_bf = x_ref[...].astype(bf16)   # (tb, 6): lanes 0-2 xyz, 3-5 view dirs

    # One merged K=6 dot: xyz contribution to layer 0, xyz contribution to the
    # skip layer, and (if viewdirs) view-dir contribution to the views layer.
    # All slice boundaries are multiples of 128 -> no relayout copies.
    x_proj = jnp.dot(x_bf, x_w_ref[...], preferred_element_type=f32)

    # layer 0: pre-activation is just the xyz projection
    h = jnp.maximum(x_proj[:, :W] + pts_b_ref[0:1, :], 0.0)

    # layers 1..D-1: stacked (7, 256, 256) weights, static per-layer slice
    for i in range(1, D):
        pre = jnp.dot(h.astype(bf16), pts_w_ref[i - 1],
                      preferred_element_type=f32)
        if (i - 1) in SKIPS:
            # layer input is cat([input_pts, h]) -> add the precomputed xyz part
            pre = pre + x_proj[:, W:2 * W]
        h = jnp.maximum(pre + pts_b_ref[i:i + 1, :], 0.0)

    if use_viewdirs:
        # head_w = [ fw @ vw[:W] | alpha_block ]  ->  one (256, 256) matmul
        fa = jnp.dot(h.astype(bf16), head_w_ref[...], preferred_element_type=f32)
        hv = jnp.maximum(fa[:, :HEAD_N]
                         + x_proj[:, 2 * W:2 * W + HEAD_N]
                         + head_b_ref[0:1, :], 0.0)
        # outputs = cat([rgb, alpha]) via zero-padded 128-lane head (dense store)
        out = (jnp.dot(hv.astype(bf16), rgb_w_ref[...],
                       preferred_element_type=f32)
               + fa[:, HEAD_N:] + head_b_ref[1:2, :])
    else:
        out = (jnp.dot(h.astype(bf16), out_w_ref[...],
                       preferred_element_type=f32)
               + out_b_ref[...])
    out_ref[...] = out.astype(out_ref.dtype)   # bf16 lane-dense store


# ---- wrapper-side weight packing (call ONCE per parameter set) --------------
def pack_nerf_params(params, use_viewdirs):
    """Packs NeRF params into the kernel's fused/padded operand layout."""
    w0, b0 = params["pts"][0]                       # (3, W)
    wskip = params["pts"][SKIPS[0] + 1][0]          # (W+3, W)

    # merged K=6 projection weight; view-dir / xyz lanes hit zero rows
    xw_cols = [
        jnp.zeros((IN_TOTAL, W), jnp.float32).at[:INPUT_CH].set(w0),
        jnp.zeros((IN_TOTAL, W), jnp.float32).at[:INPUT_CH].set(wskip[:INPUT_CH]),
    ]

    # stacked 256x256 pts layers (skip layer contributes only its h-part rows)
    pts_w, pts_b = [], [b0]
    for i in range(1, D):
        w, b = params["pts"][i]
        pts_b.append(b)
        pts_w.append(w[INPUT_CH:, :] if (i - 1) in SKIPS else w)
    pts_w = jnp.stack(pts_w, axis=0)                # (7, W, W)
    pts_b = jnp.concatenate(pts_b, axis=0)          # (D, W)

    if use_viewdirs:
        fw, fb = params["feature"]
        aw, ab = params["alpha"]
        vw, vb = params["views"]
        rw, rb = params["rgb"]

        xw_cols.append(
            jnp.zeros((IN_TOTAL, HEAD_N), jnp.float32).at[INPUT_CH:].set(vw[W:]))
        x_w = jnp.concatenate(xw_cols, axis=1)      # (6, 2W + 128) = (6, 640)

        # exact fusion: feature_linear folded into views_linear (f32, then bf16)
        fused_w = fw @ vw[:W]                       # (W, 128)
        fused_b = fb @ vw[:W] + vb                  # (1, 128)
        alpha_block = jnp.zeros((W, HEAD_N), jnp.float32).at[:, 3:4].set(aw)
        head_w = jnp.concatenate([fused_w, alpha_block], axis=1)     # (W, 2*128)
        rgb_w = jnp.zeros((W // 2, HEAD_N), jnp.float32).at[:, :3].set(rw)
        head_row = (jnp.zeros((1, HEAD_N), jnp.float32)
                    .at[:, :3].set(rb).at[:, 3:4].set(ab))
        head_b = jnp.concatenate([fused_b, head_row], axis=0)        # (2, 128)

        mats = [x_w, pts_w, head_w, rgb_w]
        biases = [pts_b, head_b]
    else:
        ow, ob = params["output"]
        x_w = jnp.concatenate(xw_cols, axis=1)      # (6, 2W) = (6, 512)
        out_w = jnp.zeros((W, HEAD_N), jnp.float32).at[:, :OUTPUT_CH].set(ow)
        out_b = jnp.zeros((1, HEAD_N), jnp.float32).at[:, :OUTPUT_CH].set(ob)
        mats = [x_w, pts_w, out_w]
        biases = [pts_b, out_b]

    # weights bf16 (MXU-native), biases stay f32 (VPU epilogue)
    return tuple(m.astype(jnp.bfloat16) for m in mats) + tuple(biases)


def nerf_forward_pallas(x, flat, use_viewdirs, tb=1024):
    """x: (n, 6) f32; flat: output of pack_nerf_params."""
    n = x.shape[0]
    out_dim = 4 if use_viewdirs else OUTPUT_CH

    # row tile: big enough to amortize per-step overhead, but keep the grid at
    # >= 2 steps when the batch allows so the "parallel" axis shards across
    # both v7x TensorCores; pad ragged tails with zero rows.
    n_min = _round_up(n, 128)
    tb_eff = min(tb, n_min)
    if n_min // tb_eff < 2 and n_min >= 256:
        tb_eff = _round_up(n_min // 2, 128)
    n_pad = _round_up(n, tb_eff)
    if n_pad != n:
        x = jnp.pad(x, ((0, n_pad - n), (0, 0)))

    kernel = functools.partial(_nerf_kernel, use_viewdirs=use_viewdirs)
    # Weights/biases: whole-array blocks with constant index_map -> DMA'd once
    # and kept resident in VMEM across grid steps (~1.2 MiB total in bf16).
    w_specs = [pl.BlockSpec(f.shape, lambda i, nd=f.ndim: (0,) * nd)
               for f in flat]

    out = pl.pallas_call(
        kernel,
        out_shape=jax.ShapeDtypeStruct((n_pad, HEAD_N), jnp.bfloat16),
        grid_spec=pltpu.PrefetchScalarGridSpec(
            num_scalar_prefetch=0,
            grid=(n_pad // tb_eff,),
            in_specs=[pl.BlockSpec((tb_eff, IN_TOTAL), lambda i: (i, 0))]
                     + w_specs,
            out_specs=pl.BlockSpec((tb_eff, HEAD_N), lambda i: (i, 0)),
        ),
        compiler_params=pltpu.CompilerParams(
            dimension_semantics=("parallel",),
            # headroom for tb up to 2048 in f32 intermediates; still well under
            # v7x's 64 MiB physical VMEM per TensorCore.
            vmem_limit_bytes=48 * 1024 * 1024,
        ),
    )(x, *flat)
    # kernel stores a lane-dense bf16 (n_pad, 128) block; real outputs are
    # lanes [0, out_dim) of the first n rows.
    return out[:n, :out_dim].astype(jnp.float32)


# ---- pure-JAX f32 reference (exact torch forward semantics) -----------------
def nerf_reference(x, params, use_viewdirs):
    input_pts = x[:, :INPUT_CH]
    input_views = x[:, INPUT_CH:INPUT_CH + INPUT_CH_VIEWS]
    h = input_pts
    for i in range(D):
        w, b = params["pts"][i]
        h = jnp.maximum(h @ w + b, 0.0)
        if i in SKIPS:
            h = jnp.concatenate([input_pts, h], -1)
    if use_viewdirs:
        aw, ab = params["alpha"]
        alpha = h @ aw + ab
        fw, fb = params["feature"]
        feature = h @ fw + fb
        hv = jnp.concatenate([feature, input_views], -1)
        vw, vb = params["views"]
        hv = jnp.maximum(hv @ vw + vb, 0.0)
        rw, rb = params["rgb"]
        rgb = hv @ rw + rb
        return jnp.concatenate([rgb, alpha], -1)
    ow, ob = params["output"]
    return h @ ow + ob


if __name__ == "__main__":
    key = jax.random.PRNGKey(0)
    kx, kp1, kp2 = jax.random.split(key, 3)

    # small, non-tile-multiple batch to exercise ragged-tail padding and a
    # >= 2-step grid (v7x megacore sharding)
    n = 1000
    x = jax.random.normal(kx, (n, IN_TOTAL), jnp.float32)

    ok = True
    for use_viewdirs, kp in ((True, kp1), (False, kp2)):
        params = init_nerf_params(kp, use_viewdirs)
        flat = pack_nerf_params(params, use_viewdirs)   # pack once, reuse per chunk
        out = nerf_forward_pallas(x, flat, use_viewdirs, tb=1024)
        out = jax.block_until_ready(out)
        ref = nerf_reference(x, params, use_viewdirs)
        # bf16 matmuls / bf16 output store vs f32 reference -> loose tolerance
        if not np.allclose(np.asarray(out), np.asarray(ref), rtol=3e-2, atol=3e-2):
            ok = False
            print(f"mismatch (use_viewdirs={use_viewdirs}): "
                  f"max err = {np.max(np.abs(np.asarray(out) - np.asarray(ref)))}")

    if ok:
        print("KERNEL_OK")
</pallas_src>

<mosaic_0001>
module attributes {stable_mosaic.version = 11 : i64} {
  func.func @_nerf_kernel(%arg0: i32, %arg1: memref<512x6xf32, #tpu.memory_space<vmem>>, %arg2: memref<6x640xbf16, #tpu.memory_space<vmem>>, %arg3: memref<7x256x256xbf16, #tpu.memory_space<vmem>>, %arg4: memref<256x256xbf16, #tpu.memory_space<vmem>>, %arg5: memref<128x128xbf16, #tpu.memory_space<vmem>>, %arg6: memref<8x256xf32, #tpu.memory_space<vmem>>, %arg7: memref<2x128xf32, #tpu.memory_space<vmem>>, %arg8: memref<512x128xbf16, #tpu.memory_space<vmem>>) attributes {dimension_semantics = [#tpu.dimension_semantics<parallel>], iteration_bounds = array<i64: 2>, scalar_prefetch = 0 : i64, scratch_operands = 0 : i64, tpu.core_type = #tpu.core_type<tc>, window_params = [{transform_indices = @transform_0, window_bounds = array<i64: 512, 6>}, {pipeline_mode = #tpu.pipeline_mode<synchronous>, transform_indices = @transform_1, window_bounds = array<i64: 6, 640>}, {pipeline_mode = #tpu.pipeline_mode<synchronous>, transform_indices = @transform_2, window_bounds = array<i64: 7, 256, 256>}, {pipeline_mode = #tpu.pipeline_mode<synchronous>, transform_indices = @transform_3, window_bounds = array<i64: 256, 256>}, {pipeline_mode = #tpu.pipeline_mode<synchronous>, transform_indices = @transform_4, window_bounds = array<i64: 128, 128>}, {pipeline_mode = #tpu.pipeline_mode<synchronous>, transform_indices = @transform_5, window_bounds = array<i64: 8, 256>}, {pipeline_mode = #tpu.pipeline_mode<synchronous>, transform_indices = @transform_6, window_bounds = array<i64: 2, 128>}, {transform_indices = @transform_7, window_bounds = array<i64: 512, 128>}]} {
    %c0 = arith.constant 0 : index
    %c0_0 = arith.constant 0 : index
    %0 = vector.load %arg1[%c0, %c0_0] : memref<512x6xf32, #tpu.memory_space<vmem>>, vector<512x6xf32>
    %1 = arith.truncf %0 : vector<512x6xf32> to vector<512x6xbf16>
    %c0_1 = arith.constant 0 : index
    %c0_2 = arith.constant 0 : index
    %2 = vector.load %arg2[%c0_1, %c0_2] : memref<6x640xbf16, #tpu.memory_space<vmem>>, vector<6x640xbf16>
    %cst = arith.constant dense<0.000000e+00> : vector<512x640xf32>
    %3 = tpu.matmul %1, %2, %cst {dimension_numbers = #tpu.dot_dimension_numbers<[1], [0], [0], [1], [0, 0, 1, 1], [], []>} : vector<512x6xbf16>, vector<6x640xbf16>, vector<512x640xf32> -> vector<512x640xf32>
    %4 = vector.extract_strided_slice %3 {offsets = [0, 0], sizes = [512, 256], strides = [1, 1]} : vector<512x640xf32> to vector<512x256xf32>
    %c0_3 = arith.constant 0 : index
    %c0_4 = arith.constant 0 : index
    %5 = vector.load %arg6[%c0_3, %c0_4] : memref<8x256xf32, #tpu.memory_space<vmem>>, vector<1x256xf32>
    %6 = vector.broadcast %5 : vector<1x256xf32> to vector<512x256xf32>
    %7 = arith.addf %4, %6 : vector<512x256xf32>
    %cst_5 = arith.constant 0.000000e+00 : f32
    %8 = vector.broadcast %cst_5 : f32 to vector<512x256xf32>
    %9 = arith.maximumf %7, %8 : vector<512x256xf32>
    %10 = arith.truncf %9 : vector<512x256xf32> to vector<512x256xbf16>
    %c0_6 = arith.constant 0 : index
    %c0_7 = arith.constant 0 : index
    %c0_8 = arith.constant 0 : index
    %11 = vector.load %arg3[%c0_6, %c0_7, %c0_8] : memref<7x256x256xbf16, #tpu.memory_space<vmem>>, vector<1x256x256xbf16>
    %12 = vector.shape_cast %11 : vector<1x256x256xbf16> to vector<256x256xbf16>
    %cst_9 = arith.constant dense<0.000000e+00> : vector<512x256xf32>
    %13 = tpu.matmul %10, %12, %cst_9 {dimension_numbers = #tpu.dot_dimension_numbers<[1], [0], [0], [1], [0, 0, 1, 1], [], []>} : vector<512x256xbf16>, vector<256x256xbf16>, vector<512x256xf32> -> vector<512x256xf32>
    %c1 = arith.constant 1 : index
    %c0_10 = arith.constant 0 : index
    %14 = vector.load %arg6[%c1, %c0_10] : memref<8x256xf32, #tpu.memory_space<vmem>>, vector<1x256xf32>
    %15 = vector.broadcast %14 : vector<1x256xf32> to vector<512x256xf32>
    %16 = arith.addf %13, %15 : vector<512x256xf32>
    %cst_11 = arith.constant 0.000000e+00 : f32
    %17 = vector.broadcast %cst_11 : f32 to vector<512x256xf32>
    %18 = arith.maximumf %16, %17 : vector<512x256xf32>
    %19 = arith.truncf %18 : vector<512x256xf32> to vector<512x256xbf16>
    %c1_12 = arith.constant 1 : index
    %c0_13 = arith.constant 0 : index
    %c0_14 = arith.constant 0 : index
    %20 = vector.load %arg3[%c1_12, %c0_13, %c0_14] : memref<7x256x256xbf16, #tpu.memory_space<vmem>>, vector<1x256x256xbf16>
    %21 = vector.shape_cast %20 : vector<1x256x256xbf16> to vector<256x256xbf16>
    %cst_15 = arith.constant dense<0.000000e+00> : vector<512x256xf32>
    %22 = tpu.matmul %19, %21, %cst_15 {dimension_numbers = #tpu.dot_dimension_numbers<[1], [0], [0], [1], [0, 0, 1, 1], [], []>} : vector<512x256xbf16>, vector<256x256xbf16>, vector<512x256xf32> -> vector<512x256xf32>
    %c2 = arith.constant 2 : index
    %c0_16 = arith.constant 0 : index
    %23 = vector.load %arg6[%c2, %c0_16] : memref<8x256xf32, #tpu.memory_space<vmem>>, vector<1x256xf32>
    %24 = vector.broadcast %23 : vector<1x256xf32> to vector<512x256xf32>
    %25 = arith.addf %22, %24 : vector<512x256xf32>
    %cst_17 = arith.constant 0.000000e+00 : f32
    %26 = vector.broadcast %cst_17 : f32 to vector<512x256xf32>
    %27 = arith.maximumf %25, %26 : vector<512x256xf32>
    %28 = arith.truncf %27 : vector<512x256xf32> to vector<512x256xbf16>
    %c2_18 = arith.constant 2 : index
    %c0_19 = arith.constant 0 : index
    %c0_20 = arith.constant 0 : index
    %29 = vector.load %arg3[%c2_18, %c0_19, %c0_20] : memref<7x256x256xbf16, #tpu.memory_space<vmem>>, vector<1x256x256xbf16>
    %30 = vector.shape_cast %29 : vector<1x256x256xbf16> to vector<256x256xbf16>
    %cst_21 = arith.constant dense<0.000000e+00> : vector<512x256xf32>
    %31 = tpu.matmul %28, %30, %cst_21 {dimension_numbers = #tpu.dot_dimension_numbers<[1], [0], [0], [1], [0, 0, 1, 1], [], []>} : vector<512x256xbf16>, vector<256x256xbf16>, vector<512x256xf32> -> vector<512x256xf32>
    %c3 = arith.constant 3 : index
    %c0_22 = arith.constant 0 : index
    %32 = vector.load %arg6[%c3, %c0_22] : memref<8x256xf32, #tpu.memory_space<vmem>>, vector<1x256xf32>
    %33 = vector.broadcast %32 : vector<1x256xf32> to vector<512x256xf32>
    %34 = arith.addf %31, %33 : vector<512x256xf32>
    %cst_23 = arith.constant 0.000000e+00 : f32
    %35 = vector.broadcast %cst_23 : f32 to vector<512x256xf32>
    %36 = arith.maximumf %34, %35 : vector<512x256xf32>
    %37 = arith.truncf %36 : vector<512x256xf32> to vector<512x256xbf16>
    %c3_24 = arith.constant 3 : index
    %c0_25 = arith.constant 0 : index
    %c0_26 = arith.constant 0 : index
    %38 = vector.load %arg3[%c3_24, %c0_25, %c0_26] : memref<7x256x256xbf16, #tpu.memory_space<vmem>>, vector<1x256x256xbf16>
    %39 = vector.shape_cast %38 : vector<1x256x256xbf16> to vector<256x256xbf16>
    %cst_27 = arith.constant dense<0.000000e+00> : vector<512x256xf32>
    %40 = tpu.matmul %37, %39, %cst_27 {dimension_numbers = #tpu.dot_dimension_numbers<[1], [0], [0], [1], [0, 0, 1, 1], [], []>} : vector<512x256xbf16>, vector<256x256xbf16>, vector<512x256xf32> -> vector<512x256xf32>
    %c4 = arith.constant 4 : index
    %c0_28 = arith.constant 0 : index
    %41 = vector.load %arg6[%c4, %c0_28] : memref<8x256xf32, #tpu.memory_space<vmem>>, vector<1x256xf32>
    %42 = vector.broadcast %41 : vector<1x256xf32> to vector<512x256xf32>
    %43 = arith.addf %40, %42 : vector<512x256xf32>
    %cst_29 = arith.constant 0.000000e+00 : f32
    %44 = vector.broadcast %cst_29 : f32 to vector<512x256xf32>
    %45 = arith.maximumf %43, %44 : vector<512x256xf32>
    %46 = arith.truncf %45 : vector<512x256xf32> to vector<512x256xbf16>
    %c4_30 = arith.constant 4 : index
    %c0_31 = arith.constant 0 : index
    %c0_32 = arith.constant 0 : index
    %47 = vector.load %arg3[%c4_30, %c0_31, %c0_32] : memref<7x256x256xbf16, #tpu.memory_space<vmem>>, vector<1x256x256xbf16>
    %48 = vector.shape_cast %47 : vector<1x256x256xbf16> to vector<256x256xbf16>
    %cst_33 = arith.constant dense<0.000000e+00> : vector<512x256xf32>
    %49 = tpu.matmul %46, %48, %cst_33 {dimension_numbers = #tpu.dot_dimension_numbers<[1], [0], [0], [1], [0, 0, 1, 1], [], []>} : vector<512x256xbf16>, vector<256x256xbf16>, vector<512x256xf32> -> vector<512x256xf32>
    %50 = vector.extract_strided_slice %3 {offsets = [0, 256], sizes = [512, 256], strides = [1, 1]} : vector<512x640xf32> to vector<512x256xf32>
    %51 = arith.addf %49, %50 : vector<512x256xf32>
    %c5 = arith.constant 5 : index
    %c0_34 = arith.constant 0 : index
    %52 = vector.load %arg6[%c5, %c0_34] : memref<8x256xf32, #tpu.memory_space<vmem>>, vector<1x256xf32>
    %53 = vector.broadcast %52 : vector<1x256xf32> to vector<512x256xf32>
    %54 = arith.addf %51, %53 : vector<512x256xf32>
    %cst_35 = arith.constant 0.000000e+00 : f32
    %55 = vector.broadcast %cst_35 : f32 to vector<512x256xf32>
    %56 = arith.maximumf %54, %55 : vector<512x256xf32>
    %57 = arith.truncf %56 : vector<512x256xf32> to vector<512x256xbf16>
    %c5_36 = arith.constant 5 : index
    %c0_37 = arith.constant 0 : index
    %c0_38 = arith.constant 0 : index
    %58 = vector.load %arg3[%c5_36, %c0_37, %c0_38] : memref<7x256x256xbf16, #tpu.memory_space<vmem>>, vector<1x256x256xbf16>
    %59 = vector.shape_cast %58 : vector<1x256x256xbf16> to vector<256x256xbf16>
    %cst_39 = arith.constant dense<0.000000e+00> : vector<512x256xf32>
    %60 = tpu.matmul %57, %59, %cst_39 {dimension_numbers = #tpu.dot_dimension_numbers<[1], [0], [0], [1], [0, 0, 1, 1], [], []>} : vector<512x256xbf16>, vector<256x256xbf16>, vector<512x256xf32> -> vector<512x256xf32>
    %c6 = arith.constant 6 : index
    %c0_40 = arith.constant 0 : index
    %61 = vector.load %arg6[%c6, %c0_40] : memref<8x256xf32, #tpu.memory_space<vmem>>, vector<1x256xf32>
    %62 = vector.broadcast %61 : vector<1x256xf32> to vector<512x256xf32>
    %63 = arith.addf %60, %62 : vector<512x256xf32>
    %cst_41 = arith.constant 0.000000e+00 : f32
    %64 = vector.broadcast %cst_41 : f32 to vector<512x256xf32>
    %65 = arith.maximumf %63, %64 : vector<512x256xf32>
    %66 = arith.truncf %65 : vector<512x256xf32> to vector<512x256xbf16>
    %c6_42 = arith.constant 6 : index
    %c0_43 = arith.constant 0 : index
    %c0_44 = arith.constant 0 : index
    %67 = vector.load %arg3[%c6_42, %c0_43, %c0_44] : memref<7x256x256xbf16, #tpu.memory_space<vmem>>, vector<1x256x256xbf16>
    %68 = vector.shape_cast %67 : vector<1x256x256xbf16> to vector<256x256xbf16>
    %cst_45 = arith.constant dense<0.000000e+00> : vector<512x256xf32>
    %69 = tpu.matmul %66, %68, %cst_45 {dimension_numbers = #tpu.dot_dimension_numbers<[1], [0], [0], [1], [0, 0, 1, 1], [], []>} : vector<512x256xbf16>, vector<256x256xbf16>, vector<512x256xf32> -> vector<512x256xf32>
    %c7 = arith.constant 7 : index
    %c0_46 = arith.constant 0 : index
    %70 = vector.load %arg6[%c7, %c0_46] : memref<8x256xf32, #tpu.memory_space<vmem>>, vector<1x256xf32>
    %71 = vector.broadcast %70 : vector<1x256xf32> to vector<512x256xf32>
    %72 = arith.addf %69, %71 : vector<512x256xf32>
    %cst_47 = arith.constant 0.000000e+00 : f32
    %73 = vector.broadcast %cst_47 : f32 to vector<512x256xf32>
    %74 = arith.maximumf %72, %73 : vector<512x256xf32>
    %75 = arith.truncf %74 : vector<512x256xf32> to vector<512x256xbf16>
    %c0_48 = arith.constant 0 : index
    %c0_49 = arith.constant 0 : index
    %76 = vector.load %arg4[%c0_48, %c0_49] : memref<256x256xbf16, #tpu.memory_space<vmem>>, vector<256x256xbf16>
    %cst_50 = arith.constant dense<0.000000e+00> : vector<512x256xf32>
    %77 = tpu.matmul %75, %76, %cst_50 {dimension_numbers = #tpu.dot_dimension_numbers<[1], [0], [0], [1], [0, 0, 1, 1], [], []>} : vector<512x256xbf16>, vector<256x256xbf16>, vector<512x256xf32> -> vector<512x256xf32>
    %78 = vector.extract_strided_slice %77 {offsets = [0, 0], sizes = [512, 128], strides = [1, 1]} : vector<512x256xf32> to vector<512x128xf32>
    %79 = vector.extract_strided_slice %3 {offsets = [0, 512], sizes = [512, 128], strides = [1, 1]} : vector<512x640xf32> to vector<512x128xf32>
    %80 = arith.addf %78, %79 : vector<512x128xf32>
    %c0_51 = arith.constant 0 : index
    %c0_52 = arith.constant 0 : index
    %81 = vector.load %arg7[%c0_51, %c0_52] : memref<2x128xf32, #tpu.memory_space<vmem>>, vector<1x128xf32>
    %82 = vector.broadcast %81 : vector<1x128xf32> to vector<512x128xf32>
    %83 = arith.addf %80, %82 : vector<512x128xf32>
    %cst_53 = arith.constant 0.000000e+00 : f32
    %84 = vector.broadcast %cst_53 : f32 to vector<512x128xf32>
    %85 = arith.maximumf %83, %84 : vector<512x128xf32>
    %86 = arith.truncf %85 : vector<512x128xf32> to vector<512x128xbf16>
    %c0_54 = arith.constant 0 : index
    %c0_55 = arith.constant 0 : index
    %87 = vector.load %arg5[%c0_54, %c0_55] : memref<128x128xbf16, #tpu.memory_space<vmem>>, vector<128x128xbf16>
    %cst_56 = arith.constant dense<0.000000e+00> : vector<512x128xf32>
    %88 = tpu.matmul %86, %87, %cst_56 {dimension_numbers = #tpu.dot_dimension_numbers<[1], [0], [0], [1], [0, 0, 1, 1], [], []>} : vector<512x128xbf16>, vector<128x128xbf16>, vector<512x128xf32> -> vector<512x128xf32>
    %89 = vector.extract_strided_slice %77 {offsets = [0, 128], sizes = [512, 128], strides = [1, 1]} : vector<512x256xf32> to vector<512x128xf32>
    %90 = arith.addf %88, %89 : vector<512x128xf32>
    %c1_57 = arith.constant 1 : index
    %c0_58 = arith.constant 0 : index
    %91 = vector.load %arg7[%c1_57, %c0_58] : memref<2x128xf32, #tpu.memory_space<vmem>>, vector<1x128xf32>
    %92 = vector.broadcast %91 : vector<1x128xf32> to vector<512x128xf32>
    %93 = arith.addf %90, %92 : vector<512x128xf32>
    %94 = arith.truncf %93 : vector<512x128xf32> to vector<512x128xbf16>
    %c0_59 = arith.constant 0 : index
    %c0_60 = arith.constant 0 : index
    %95 = vector.load %arg8[%c0_59, %c0_60] : memref<512x128xbf16, #tpu.memory_space<vmem>>, vector<512x128xbf16>
    tpu.vector_store %arg8[%c0_59, %c0_60], %94 {strides = array<i32>} : memref<512x128xbf16, #tpu.memory_space<vmem>>, vector<512x128xbf16>,
    return
  }
  func.func @transform_0(%arg0: i32) -> (i32, i32) {
    %c0_i32 = arith.constant 0 : i32
    %c0_i32_0 = arith.constant 0 : i32
    return %arg0, %c0_i32 : i32, i32
  }
  func.func @transform_1(%arg0: i32) -> (i32, i32) {
    %c0_i32 = arith.constant 0 : i32
    %c0_i32_0 = arith.constant 0 : i32
    %c0_i32_1 = arith.constant 0 : i32
    return %c0_i32, %c0_i32_0 : i32, i32
  }
  func.func @transform_2(%arg0: i32) -> (i32, i32, i32) {
    %c0_i32 = arith.constant 0 : i32
    %c0_i32_0 = arith.constant 0 : i32
    %c0_i32_1 = arith.constant 0 : i32
    %c0_i32_2 = arith.constant 0 : i32
    return %c0_i32, %c0_i32_0, %c0_i32_1 : i32, i32, i32
  }
  func.func @transform_3(%arg0: i32) -> (i32, i32) {
    %c0_i32 = arith.constant 0 : i32
    %c0_i32_0 = arith.constant 0 : i32
    %c0_i32_1 = arith.constant 0 : i32
    return %c0_i32, %c0_i32_0 : i32, i32
  }
  func.func @transform_4(%arg0: i32) -> (i32, i32) {
    %c0_i32 = arith.constant 0 : i32
    %c0_i32_0 = arith.constant 0 : i32
    %c0_i32_1 = arith.constant 0 : i32
    return %c0_i32, %c0_i32_0 : i32, i32
  }
  func.func @transform_5(%arg0: i32) -> (i32, i32) {
    %c0_i32 = arith.constant 0 : i32
    %c0_i32_0 = arith.constant 0 : i32
    %c0_i32_1 = arith.constant 0 : i32
    return %c0_i32, %c0_i32_0 : i32, i32
  }
  func.func @transform_6(%arg0: i32) -> (i32, i32) {
    %c0_i32 = arith.constant 0 : i32
    %c0_i32_0 = arith.constant 0 : i32
    %c0_i32_1 = arith.constant 0 : i32
    return %c0_i32, %c0_i32_0 : i32, i32
  }
  func.func @transform_7(%arg0: i32) -> (i32, i32) {
    %c0_i32 = arith.constant 0 : i32
    %c0_i32_0 = arith.constant 0 : i32
    return %arg0, %c0_i32 : i32, i32
  }
}

</mosaic_0001>

<llo_original>
// kernel: tpu_custom_call.1
$region0: #{tpu_custom_call.1}
  #allocation0 [shape = 'u32[]', space=smem, size = 0x4, offset = 0x4, fixed_abs, tag = 'smem constant byte address 0x4 - core index']
  #allocation1 [shape = 'u32[144,128]{1,0:T(1,128)}', space=vmem, size = 0x12000, scoped, tag = 'internal scratch']
  %s0 = inlined_call_operand.vmem [shape: f32[1024,6], index: 0, kind: input, shape index: {}]
  %s1 = inlined_call_operand.vmem [shape: bf16[6,640], index: 1, kind: input, shape index: {}]
  %s2 = inlined_call_operand.hbm [shape: bf16[7,256,256], index: 2, kind: input, shape index: {}]
  %s3 = inlined_call_operand.vmem [shape: bf16[256,256], index: 3, kind: input, shape index: {}]
  %s4 = inlined_call_operand.vmem [shape: bf16[128,128], index: 4, kind: input, shape index: {}]
  %s5 = inlined_call_operand.vmem [shape: f32[8,256], index: 5, kind: input, shape index: {}]
  %s6 = inlined_call_operand.vmem [shape: f32[2,128], index: 6, kind: input, shape index: {}]
  %s7 = inlined_call_operand.hbm [shape: bf16[1024,128], index: 7, kind: output, shape index: {}]
  %s8 = sld [smem:[#allocation0]]
  $region65: #{tpu_custom_call.1} parent=0
    _
  %s10 = ssub.s32 1, %s8
  %s11 = scalar_select 0, %s10, %s8
  $region1: #{tpu_custom_call.1} parent=0
    #allocation2 [shape = 'u8[917504]{0}', space=vmem, size = 0xe0000, scoped, tag = 'input window, operand 2, single buffered']
    #allocation3 [shape = 's32[2]{0}', space=sflag, size = 0x8, scoped, tag = 'scoped memory for tpu_custom_call.1']
    #allocation4 [shape = 's32[2]{0}', space=sflag, size = 0x8, scoped, tag = 'scoped memory for tpu_custom_call.1']
    #allocation5 [shape = 'u8[262144]{0}', space=vmem, size = 0x40000, scoped, tag = 'output window, operand 0']
    %12 = vsyncpa [#allocation3], 0
    %13 = vsyncpa [#allocation4], 0
    %s14 = scalar_lea.sflag [#allocation4], 1
    %15 = vsyncpa %s14, 0
    loop: start=0, step=1, limit=4
    $region2: #{tpu_custom_call.1} parent=1 // loop_pre_header
      _
    $region3: #{tpu_custom_call.1} parent=1 // loop_header
      %s17 = sphi 0, %s21
      %p18 = scmp.ge.s32.totalorder %s17, 4
      %s27 = sphi 0, %s29
      %s30 = sphi 0, %s27
      %s31 = sphi 0, %s30
      %s47 = sphi 0, %s31
      %s51 = sphi 0, %s51
      %s53 = sphi 0, %s51
      %s54 = sphi 0, %s53
      %s68 = sphi 0, %s54
      %s72 = sphi 0, %s72
      %s74 = sphi 0, %s72
      %s75 = sphi 0, %s74
      %s89 = sphi 0, %s75
      %s93 = sphi 0, %s93
      %s95 = sphi 0, %s93
      %s96 = sphi 0, %s95
      %s110 = sphi 0, %s96
      %s114 = sphi 0, %s114
      %s116 = sphi 0, %s114
      %s117 = sphi 0, %s116
      %s131 = sphi 0, %s117
      %s135 = sphi 0, %s135
      %s137 = sphi 0, %s135
      %s138 = sphi 0, %s137
      %s152 = sphi 0, %s138
      %s156 = sphi 0, %s156
      %s158 = sphi 0, %s156
      %s159 = sphi 0, %s158
      %s173 = sphi 0, %s159
      %s179 = sphi 0, %s181
      %s182 = sphi 0, %s179
      %s183 = sphi 0, %s182
      %s199 = sphi 0, %s183
    $region4: #{tpu_custom_call.1} parent=1 // loop_header_branch
      %20 = sbr.rel (%p18) target = $region8
    $region5: #{tpu_custom_call.1} parent=1 // loop_body
      %s22 = ssub.s32 %s17, 1
      %s23 = ssub.s32 %s17, 2
      %s24 = sadd.s32 %s17, 1
      %s25 = ssub.s32 %s17, %s24
      %p26 = scmp.eq.s32.totalorder %s25, 0
      %s28 = sadd.s32 %s27, 1
      %s29 = scalar_select %p26, %s27, %s28
      %p32 = pneg %p26
      %p33 = scmp.eq.s32.totalorder %s17, 1
      %p34 = por %p32, %p33
      %p35 = scmp.ne.s32.totalorder %s27, %s30
      %p36 = scmp.eq.s32.totalorder %s17, 0
      %p37 = por %p35, %p36
      %p38 = scmp.ne.s32.totalorder %s27, %s30
      %p39 = scmp.eq.s32.totalorder %s22, 1
      %p40 = por %p38, %p39
      %p41 = scmp.ne.s32.totalorder %s30, %s31
      %p42 = scmp.eq.s32.totalorder %s22, 0
      %p43 = por %p41, %p42
      %p44 = scmp.ne.s32.totalorder %s30, %s31
      %p45 = scmp.eq.s32.totalorder %s23, 1
      %p46 = por %p44, %p45
      %p48 = scmp.ne.s32.totalorder %s31, %s47
      %p49 = scmp.eq.s32.totalorder %s23, 0
      %p50 = por %p48, %p49
      %s52 = sadd.s32 %s51, 1
      %p55 = scmp.eq.s32.totalorder %s17, 1
      %p56 = scmp.ne.s32.totalorder %s51, %s53
      %p57 = scmp.eq.s32.totalorder %s17, 0
      %p58 = por %p56, %p57
      %p59 = scmp.ne.s32.totalorder %s51, %s53
      %p60 = scmp.eq.s32.totalorder %s22, 1
      %p61 = por %p59, %p60
      %p62 = scmp.ne.s32.totalorder %s53, %s54
      %p63 = scmp.eq.s32.totalorder %s22, 0
      %p64 = por %p62, %p63
      %p65 = scmp.ne.s32.totalorder %s53, %s54
      %p66 = scmp.eq.s32.totalorder %s23, 1
      %p67 = por %p65, %p66
      %p69 = scmp.ne.s32.totalorder %s54, %s68
      %p70 = scmp.eq.s32.totalorder %s23, 0
      %p71 = por %p69, %p70
      %s73 = sadd.s32 %s72, 1
      %p76 = scmp.eq.s32.totalorder %s17, 1
      %p77 = scmp.ne.s32.totalorder %s72, %s74
      %p78 = scmp.eq.s32.totalorder %s17, 0
      %p79 = por %p77, %p78
      %p80 = scmp.ne.s32.totalorder %s72, %s74
      %p81 = scmp.eq.s32.totalorder %s22, 1
      %p82 = por %p80, %p81
      %p83 = scmp.ne.s32.totalorder %s74, %s75
      %p84 = scmp.eq.s32.totalorder %s22, 0
      %p85 = por %p83, %p84
      %p86 = scmp.ne.s32.totalorder %s74, %s75
      %p87 = scmp.eq.s32.totalorder %s23, 1
      %p88 = por %p86, %p87
      %p90 = scmp.ne.s32.totalorder %s75, %s89
      %p91 = scmp.eq.s32.totalorder %s23, 0
      %p92 = por %p90, %p91
      %s94 = sadd.s32 %s93, 1
      %p97 = scmp.eq.s32.totalorder %s17, 1
      %p98 = scmp.ne.s32.totalorder %s93, %s95
      %p99 = scmp.eq.s32.totalorder %s17, 0
      %p100 = por %p98, %p99
      %p101 = scmp.ne.s32.totalorder %s93, %s95
      %p102 = scmp.eq.s32.totalorder %s22, 1
      %p103 = por %p101, %p102
      %p104 = scmp.ne.s32.totalorder %s95, %s96
      %p105 = scmp.eq.s32.totalorder %s22, 0
      %p106 = por %p104, %p105
      %p107 = scmp.ne.s32.totalorder %s95, %s96
      %p108 = scmp.eq.s32.totalorder %s23, 1
      %p109 = por %p107, %p108
      %p111 = scmp.ne.s32.totalorder %s96, %s110
      %p112 = scmp.eq.s32.totalorder %s23, 0
      %p113 = por %p111, %p112
      %s115 = sadd.s32 %s114, 1
      %p118 = scmp.eq.s32.totalorder %s17, 1
      %p119 = scmp.ne.s32.totalorder %s114, %s116
      %p120 = scmp.eq.s32.totalorder %s17, 0
      %p121 = por %p119, %p120
      %p122 = scmp.ne.s32.totalorder %s114, %s116
      %p123 = scmp.eq.s32.totalorder %s22, 1
      %p124 = por %p122, %p123
      %p125 = scmp.ne.s32.totalorder %s116, %s117
      %p126 = scmp.eq.s32.totalorder %s22, 0
      %p127 = por %p125, %p126
      %p128 = scmp.ne.s32.totalorder %s116, %s117
      %p129 = scmp.eq.s32.totalorder %s23, 1
      %p130 = por %p128, %p129
      %p132 = scmp.ne.s32.totalorder %s117, %s131
      %p133 = scmp.eq.s32.totalorder %s23, 0
      %p134 = por %p132, %p133
      %s136 = sadd.s32 %s135, 1
      %p139 = scmp.eq.s32.totalorder %s17, 1
      %p140 = scmp.ne.s32.totalorder %s135, %s137
      %p141 = scmp.eq.s32.totalorder %s17, 0
      %p142 = por %p140, %p141
      %p143 = scmp.ne.s32.totalorder %s135, %s137
      %p144 = scmp.eq.s32.totalorder %s22, 1
      %p145 = por %p143, %p144
      %p146 = scmp.ne.s32.totalorder %s137, %s138
      %p147 = scmp.eq.s32.totalorder %s22, 0
      %p148 = por %p146, %p147
      %p149 = scmp.ne.s32.totalorder %s137, %s138
      %p150 = scmp.eq.s32.totalorder %s23, 1
      %p151 = por %p149, %p150
      %p153 = scmp.ne.s32.totalorder %s138, %s152
      %p154 = scmp.eq.s32.totalorder %s23, 0
      %p155 = por %p153, %p154
      %s157 = sadd.s32 %s156, 1
      %p160 = scmp.eq.s32.totalorder %s17, 1
      %p161 = scmp.ne.s32.totalorder %s156, %s158
      %p162 = scmp.eq.s32.totalorder %s17, 0
      %p163 = por %p161, %p162
      %p164 = scmp.ne.s32.totalorder %s156, %s158
      %p165 = scmp.eq.s32.totalorder %s22, 1
      %p166 = por %p164, %p165
      %p167 = scmp.ne.s32.totalorder %s158, %s159
      %p168 = scmp.eq.s32.totalorder %s22, 0
      %p169 = por %p167, %p168
      %p170 = scmp.ne.s32.totalorder %s158, %s159
      %p171 = scmp.eq.s32.totalorder %s23, 1
      %p172 = por %p170, %p171
      %p174 = scmp.ne.s32.totalorder %s159, %s173
      %p175 = scmp.eq.s32.totalorder %s23, 0
      %p176 = por %p174, %p175
      %s177 = ssub.s32 %s17, %s24
      %p178 = scmp.eq.s32.totalorder %s177, 0
      %s180 = sadd.s32 %s179, 1
      %s181 = scalar_select %p178, %s179, %s180
      %p184 = pneg %p178
      %p185 = scmp.eq.s32.totalorder %s17, 1
      %p186 = por %p184, %p185
      %p187 = scmp.ne.s32.totalorder %s179, %s182
      %p188 = scmp.eq.s32.totalorder %s17, 0
      %p189 = por %p187, %p188
      %p190 = scmp.ne.s32.totalorder %s179, %s182
      %p191 = scmp.eq.s32.totalorder %s22, 1
      %p192 = por %p190, %p191
      %p193 = scmp.ne.s32.totalorder %s182, %s183
      %p194 = scmp.eq.s32.totalorder %s22, 0
      %p195 = por %p193, %p194
      %p196 = scmp.ne.s32.totalorder %s182, %s183
      %p197 = scmp.eq.s32.totalorder %s23, 1
      %p198 = por %p196, %p197
      %p200 = scmp.ne.s32.totalorder %s183, %s199
      %p201 = scmp.eq.s32.totalorder %s23, 0
      %p202 = por %p200, %p201
      %p203 = scmp.le.s32.totalorder 1, %s17
      %p204 = scmp.lt.s32.totalorder %s17, 3
      %p205 = pnand %p203, %p204
      %p206 = pneg %p205
      // Predicated region
      $region9: #{tpu_custom_call.1} parent=5 // pred_check
        _
      $region10: #{tpu_custom_call.1} parent=5 // pred_check_branch
        %208 = sbr.rel (%p205) target = $region12
      $region11: #{tpu_custom_call.1} parent=5 // pred_region
        %s209 = ssub.s32 %s17, 1
        // Predicated region
        $region13: #{tpu_custom_call.1} parent=11 // pred_check
          %p210 = pneg %p64
        $region14: #{tpu_custom_call.1} parent=11 // pred_check_branch
          %212 = sbr.rel (%p210) target = $region16
        $region15: #{tpu_custom_call.1} parent=11 // pred_region
          _
        $region16: #{tpu_custom_call.1} parent=11 // pred_fallthru
          _
        // Predicated region
        $region17: #{tpu_custom_call.1} parent=11 // pred_check
          %p213 = pneg %p85
        $region18: #{tpu_custom_call.1} parent=11 // pred_check_branch
          %215 = sbr.rel (%p213) target = $region20
        $region19: #{tpu_custom_call.1} parent=11 // pred_region
          %s217 = ssub.s32 28672, 28672
          %218 = vsyncadd [#allocation3], %s217
          %s219 = sshll.u32 [#allocation2], 4
          %s220 = int_to_ptr.vmem [resolvable:$true] %s219
          %225 = dma.hbm_to_vmem [thread:$0]  %s2, 28672, %s220, [#allocation3], 128, 128, 8
        $region20: #{tpu_custom_call.1} parent=11 // pred_fallthru
          _
        // Predicated region
        $region21: #{tpu_custom_call.1} parent=11 // pred_check
          %p226 = pneg %p106
        $region22: #{tpu_custom_call.1} parent=11 // pred_check_branch
          %228 = sbr.rel (%p226) target = $region24
        $region23: #{tpu_custom_call.1} parent=11 // pred_region
          _
        $region24: #{tpu_custom_call.1} parent=11 // pred_fallthru
          _
        // Predicated region
        $region25: #{tpu_custom_call.1} parent=11 // pred_check
          %p229 = pneg %p127
        $region26: #{tpu_custom_call.1} parent=11 // pred_check_branch
          %231 = sbr.rel (%p229) target = $region28
        $region27: #{tpu_custom_call.1} parent=11 // pred_region
          _
        $region28: #{tpu_custom_call.1} parent=11 // pred_fallthru
          _
        // Predicated region
        $region29: #{tpu_custom_call.1} parent=11 // pred_check
          %p232 = pneg %p148
        $region30: #{tpu_custom_call.1} parent=11 // pred_check_branch
          %234 = sbr.rel (%p232) target = $region32
        $region31: #{tpu_custom_call.1} parent=11 // pred_region
          _
        $region32: #{tpu_custom_call.1} parent=11 // pred_fallthru
          _
        // Predicated region
        $region33: #{tpu_custom_call.1} parent=11 // pred_check
          %p235 = pneg %p169
        $region34: #{tpu_custom_call.1} parent=11 // pred_check_branch
          %237 = sbr.rel (%p235) target = $region36
        $region35: #{tpu_custom_call.1} parent=11 // pred_region
          _
        $region36: #{tpu_custom_call.1} parent=11 // pred_fallthru
          _
      $region12: #{tpu_custom_call.1} parent=5 // pred_fallthru
        _
      %p238 = scmp.lt.s32.totalorder %s17, 2
      // Predicated region
      $region37: #{tpu_custom_call.1} parent=5 // pred_check
        %p239 = pneg %p238
      $region38: #{tpu_custom_call.1} parent=5 // pred_check_branch
        %241 = sbr.rel (%p239) target = $region40
      $region39: #{tpu_custom_call.1} parent=5 // pred_region
        // Predicated region
        $region41: #{tpu_custom_call.1} parent=39 // pred_check
          %p242 = pneg %p37
        $region42: #{tpu_custom_call.1} parent=39 // pred_check_branch
          %244 = sbr.rel (%p242) target = $region44
        $region43: #{tpu_custom_call.1} parent=39 // pred_region
          %s245 = smul.u32 64, %s17
          %p246 = scmp.lt.s32.totalorder %s245, 127
          %s247 = scalar_select %p246, %s245, 127
          %s248 = smul.addr %s247, 8
          %s249 = scalar_lea.vmem %s0, %s248
          %s250 = smul.u32 64, %s17
        $region44: #{tpu_custom_call.1} parent=39 // pred_fallthru
          _
      $region40: #{tpu_custom_call.1} parent=5 // pred_fallthru
        _
      %p251 = scmp.le.s32.totalorder 1, %s17
      %p252 = scmp.lt.s32.totalorder %s17, 3
      %p253 = pnand %p251, %p252
      %p254 = pneg %p253
      // Predicated region
      $region45: #{tpu_custom_call.1} parent=5 // pred_check
        _
      $region46: #{tpu_custom_call.1} parent=5 // pred_check_branch
        %256 = sbr.rel (%p253) target = $region48
      $region47: #{tpu_custom_call.1} parent=5 // pred_region
        %s257 = ssub.s32 %s17, 1
        // Predicated region
        $region49: #{tpu_custom_call.1} parent=47 // pred_check
          %p258 = pneg %p85
        $region50: #{tpu_custom_call.1} parent=47 // pred_check_branch
          %260 = sbr.rel (%p258) target = $region52
        $region51: #{tpu_custom_call.1} parent=47 // pred_region
          %261 = dma.done [#allocation3], 28672
        $region52: #{tpu_custom_call.1} parent=47 // pred_fallthru
          _
        %s262 = smul.u32 64, %s22
        %p263 = scmp.lt.s32.totalorder %s262, 127
        %s264 = scalar_select %p263, %s262, 127
        %s265 = smul.addr %s264, 8
        %s266 = scalar_lea.vmem %s0, %s265
        %p267 = pneg %p43
        %p268 = pneg %p40
        %p269 = pneg %p64
        %p270 = pneg %p61
        %p271 = pneg %p85
        %p272 = pneg %p82
        %p273 = pneg %p106
        %p274 = pneg %p103
        %p275 = pneg %p127
        %p276 = pneg %p124
        %p277 = pneg %p148
        %p278 = pneg %p145
        %p279 = pneg %p169
        %p280 = pneg %p166
        %p281 = pneg %p195
        %p282 = pneg %p192
        %s283 = sand.u32 %s182, 1
        %s284 = scalar_lea.sflag [#allocation4], %s283
        %s285 = sand.u32 %s182, 1
        %s286 = smul.addr %s285, 256
        %s287 = scalar_lea.vmem [#allocation5], %s286
        %s288 = smul.u32 64, %s22
        %p289 = scmp.lt.s32.totalorder %s288, 127
        %s290 = scalar_select %p289, %s288, 127
        %s291 = smul.addr %s290, 8
        %s292 = scalar_lea.vmem %s0, %s291
        %s293 = smul.u32 64, %s22
        %s294 = smul.u32 64, %s22
        %v296 = vld [vmem:[%s292] sm:$0xff]
        %v297 = vld [vmem:[%s292 + $0x8] sm:$0xff]
        %v298 = vld [vmem:[%s292 + $0x10] sm:$0xff]
        %v299 = vld [vmem:[%s292 + $0x18] sm:$0xff]
        %v300 = vld [vmem:[%s292 + $0x20] sm:$0xff]
        %v301 = vld [vmem:[%s292 + $0x28] sm:$0xff]
        %v302 = vld [vmem:[%s292 + $0x30] sm:$0xff]
        %v303 = vld [vmem:[%s292 + $0x38] sm:$0xff]
        %v304 = vld [vmem:[%s292 + $0x40] sm:$0xff]
        %v305 = vld [vmem:[%s292 + $0x48] sm:$0xff]
        %v306 = vld [vmem:[%s292 + $0x50] sm:$0xff]
        %v307 = vld [vmem:[%s292 + $0x58] sm:$0xff]
        %v308 = vld [vmem:[%s292 + $0x60] sm:$0xff]
        %v309 = vld [vmem:[%s292 + $0x68] sm:$0xff]
        %v310 = vld [vmem:[%s292 + $0x70] sm:$0xff]
        %v311 = vld [vmem:[%s292 + $0x78] sm:$0xff]
        %v312 = vld [vmem:[%s292 + $0x80] sm:$0xff]
        %v313 = vld [vmem:[%s292 + $0x88] sm:$0xff]
        %v314 = vld [vmem:[%s292 + $0x90] sm:$0xff]
        %v315 = vld [vmem:[%s292 + $0x98] sm:$0xff]
        %v316 = vld [vmem:[%s292 + $0xa0] sm:$0xff]
        %v317 = vld [vmem:[%s292 + $0xa8] sm:$0xff]
        %v318 = vld [vmem:[%s292 + $0xb0] sm:$0xff]
        %v319 = vld [vmem:[%s292 + $0xb8] sm:$0xff]
        %v320 = vld [vmem:[%s292 + $0xc0] sm:$0xff]
        %v321 = vld [vmem:[%s292 + $0xc8] sm:$0xff]
        %v322 = vld [vmem:[%s292 + $0xd0] sm:$0xff]
        %v323 = vld [vmem:[%s292 + $0xd8] sm:$0xff]
        %v324 = vld [vmem:[%s292 + $0xe0] sm:$0xff]
        %v325 = vld [vmem:[%s292 + $0xe8] sm:$0xff]
        %v326 = vld [vmem:[%s292 + $0xf0] sm:$0xff]
        %v327 = vld [vmem:[%s292 + $0xf8] sm:$0xff]
        %v328 = vld [vmem:[%s292 + $0x100] sm:$0xff]
        %v329 = vld [vmem:[%s292 + $0x108] sm:$0xff]
        %v330 = vld [vmem:[%s292 + $0x110] sm:$0xff]
        %v331 = vld [vmem:[%s292 + $0x118] sm:$0xff]
        %v332 = vld [vmem:[%s292 + $0x120] sm:$0xff]
        %v333 = vld [vmem:[%s292 + $0x128] sm:$0xff]
        %v334 = vld [vmem:[%s292 + $0x130] sm:$0xff]
        %v335 = vld [vmem:[%s292 + $0x138] sm:$0xff]
        %v336 = vld [vmem:[%s292 + $0x140] sm:$0xff]
        %v337 = vld [vmem:[%s292 + $0x148] sm:$0xff]
        %v338 = vld [vmem:[%s292 + $0x150] sm:$0xff]
        %v339 = vld [vmem:[%s292 + $0x158] sm:$0xff]
        %v340 = vld [vmem:[%s292 + $0x160] sm:$0xff]
        %v341 = vld [vmem:[%s292 + $0x168] sm:$0xff]
        %v342 = vld [vmem:[%s292 + $0x170] sm:$0xff]
        %v343 = vld [vmem:[%s292 + $0x178] sm:$0xff]
        %v344 = vld [vmem:[%s292 + $0x180] sm:$0xff]
        %v345 = vld [vmem:[%s292 + $0x188] sm:$0xff]
        %v346 = vld [vmem:[%s292 + $0x190] sm:$0xff]
        %v347 = vld [vmem:[%s292 + $0x198] sm:$0xff]
        %v348 = vld [vmem:[%s292 + $0x1a0] sm:$0xff]
        %v349 = vld [vmem:[%s292 + $0x1a8] sm:$0xff]
        %v350 = vld [vmem:[%s292 + $0x1b0] sm:$0xff]
        %v351 = vld [vmem:[%s292 + $0x1b8] sm:$0xff]
        %v352 = vld [vmem:[%s292 + $0x1c0] sm:$0xff]
        %v353 = vld [vmem:[%s292 + $0x1c8] sm:$0xff]
        %v354 = vld [vmem:[%s292 + $0x1d0] sm:$0xff]
        %v355 = vld [vmem:[%s292 + $0x1d8] sm:$0xff]
        %v356 = vld [vmem:[%s292 + $0x1e0] sm:$0xff]
        %v357 = vld [vmem:[%s292 + $0x1e8] sm:$0xff]
        %v358 = vld [vmem:[%s292 + $0x1f0] sm:$0xff]
        %v359 = vld [vmem:[%s292 + $0x1f8] sm:$0xff]
        %v360 = vpack.c.bf16 %v297, %v296
        %v361 = vpack.c.bf16 %v299, %v298
        %v362 = vpack.c.bf16 %v301, %v300
        %v363 = vpack.c.bf16 %v303, %v302
        %v364 = vpack.c.bf16 %v305, %v304
        %v365 = vpack.c.bf16 %v307, %v306
        %v366 = vpack.c.bf16 %v309, %v308
        %v367 = vpack.c.bf16 %v311, %v310
        %v368 = vpack.c.bf16 %v313, %v312
        %v369 = vpack.c.bf16 %v315, %v314
        %v370 = vpack.c.bf16 %v317, %v316
        %v371 = vpack.c.bf16 %v319, %v318
        %v372 = vpack.c.bf16 %v321, %v320
        %v373 = vpack.c.bf16 %v323, %v322
        %v374 = vpack.c.bf16 %v325, %v324
        %v375 = vpack.c.bf16 %v327, %v326
        %v376 = vpack.c.bf16 %v329, %v328
        %v377 = vpack.c.bf16 %v331, %v330
        %v378 = vpack.c.bf16 %v333, %v332
        %v379 = vpack.c.bf16 %v335, %v334
        %v380 = vpack.c.bf16 %v337, %v336
        %v381 = vpack.c.bf16 %v339, %v338
        %v382 = vpack.c.bf16 %v341, %v340
        %v383 = vpack.c.bf16 %v343, %v342
        %v384 = vpack.c.bf16 %v345, %v344
        %v385 = vpack.c.bf16 %v347, %v346
        %v386 = vpack.c.bf16 %v349, %v348
        %v387 = vpack.c.bf16 %v351, %v350
        %v388 = vpack.c.bf16 %v353, %v352
        %v389 = vpack.c.bf16 %v355, %v354
        %v390 = vpack.c.bf16 %v357, %v356
        %v391 = vpack.c.bf16 %v359, %v358
        %v392 = vld [vmem:[%s1] sm:$0x77]
        %v393 = vld [vmem:[%s1 + $0x8] sm:$0x77]
        %v394 = vld [vmem:[%s1 + $0x10] sm:$0x7]
        %v398 = vunpack.c.l.b16 %v392
        %v399 = vunpack.c.h.b16 %v392
        %v400 = vunpack.c.l.b16 %v393
        %v401 = vunpack.c.h.b16 %v393
        %v402 = vunpack.c.l.b16 %v394
        %v403 = vpack.c.b16 %v398, %v398
        %v404 = vpack.c.b16 %v399, %v399
        %v405 = vpack.c.b16 %v400, %v400
        %v406 = vpack.c.b16 %v401, %v401
        %v407 = vpack.c.b16 %v402, %v402
        %vm408 = vcmask 48128
        %v410 = vsel %vm408, %v360, 0
        %v413 = vsel %vm408, %v361, 0
        %v416 = vsel %vm408, %v362, 0
        %v419 = vsel %vm408, %v363, 0
        %v422 = vsel %vm408, %v364, 0
        %v425 = vsel %vm408, %v365, 0
        %v428 = vsel %vm408, %v366, 0
        %v431 = vsel %vm408, %v367, 0
        %v434 = vsel %vm408, %v368, 0
        %v437 = vsel %vm408, %v369, 0
        %v440 = vsel %vm408, %v370, 0
        %v443 = vsel %vm408, %v371, 0
        %v446 = vsel %vm408, %v372, 0
        %v449 = vsel %vm408, %v373, 0
        %v452 = vsel %vm408, %v374, 0
        %v455 = vsel %vm408, %v375, 0
        %v458 = vsel %vm408, %v376, 0
        %v461 = vsel %vm408, %v377, 0
        %v464 = vsel %vm408, %v378, 0
        %v467 = vsel %vm408, %v379, 0
        %v470 = vsel %vm408, %v380, 0
        %v473 = vsel %vm408, %v381, 0
        %v476 = vsel %vm408, %v382, 0
        %v479 = vsel %vm408, %v383, 0
        %v482 = vsel %vm408, %v384, 0
        %v485 = vsel %vm408, %v385, 0
        %v488 = vsel %vm408, %v386, 0
        %v491 = vsel %vm408, %v387, 0
        %v494 = vsel %vm408, %v388, 0
        %v497 = vsel %vm408, %v389, 0
        %v500 = vsel %vm408, %v390, 0
        %v503 = vsel %vm408, %v391, 0
        %vm505 = vcmask 1042432
        %v507 = vsel %vm505, %v403, 0
        %v510 = vsel %vm505, %v404, 0
        %v513 = vsel %vm505, %v405, 0
        %v516 = vsel %vm505, %v406, 0
        %v519 = vsel %vm505, %v407, 0
        %521 = vmatprep.subr.bf16.mxu0 %v510
        %522 = vmatpush1.bf16.msra.mxu0 %v507
        %523 = vmatprep.subr.bf16.mxu0 0
        %524 = vmatpush1.bf16.msra.mxu0 0
        %525 = vmatprep.subr.bf16.mxu0 0
        %526 = vmatpush1.bf16.msra.mxu0 0
        %527 = vmatprep.subr.bf16.mxu0 0
        %528 = vmatpush1.bf16.msra.mxu0 0
        %529 = vmatprep.subr.bf16.mxu0 0
        %530 = vmatpush1.bf16.msra.mxu0 0
        %531 = vmatprep.subr.bf16.mxu0 0
        %532 = vmatpush1.bf16.msra.mxu0 0
        %533 = vmatprep.subr.bf16.mxu0 0
        %534 = vmatpush1.bf16.msra.mxu0 0
        %535 = vmatprep.subr.bf16.mxu0 0
        %536 = vmatpush1.bf16.msra.mxu0 0
        %537 = vmatprep.subr.bf16.mxu0 0
        %538 = vmatpush1.bf16.msra.mxu0 0
        %539 = vmatprep.subr.bf16.mxu0 0
        %540 = vmatpush1.bf16.msra.mxu0 0
        %541 = vmatprep.subr.bf16.mxu0 0
        %542 = vmatpush1.bf16.msra.mxu0 0
        %543 = vmatprep.subr.bf16.mxu0 0
        %544 = vmatpush1.bf16.msra.mxu0 0
        %545 = vmatprep.subr.bf16.mxu0 0
        %546 = vmatpush1.bf16.msra.mxu0 0
        %547 = vmatprep.subr.bf16.mxu0 0
        %548 = vmatpush1.bf16.msra.mxu0 0
        %549 = vmatprep.subr.bf16.mxu0 0
        %550 = vmatpush1.bf16.msra.mxu0 0
        %551 = vmatprep.subr.bf16.mxu0 0
        %552 = vmatpush1.bf16.msra.mxu0 0
        %553 = vmatprep.mubr.bf16.mxu0 0
        %554 = vmatmul.mubr.bf16.gmra.mrb[0].mxu0 %v410
        %v555 = vpop.f32.mrb[0].mxu0
        %v556 = vadd.f32 0.0, %v555
        %v557 = vpop.f32.mrb[0].mxu0
        %v558 = vadd.f32 0.0, %v557
        %v559 = vpop.f32.mrb[0].mxu0
        %v560 = vadd.f32 0.0, %v559
        %v561 = vpop.f32.mrb[0].mxu0
        %v562 = vadd.f32 0.0, %v561
        %563 = vmatprep.mubr.bf16.mxu0 0
        %564 = vmatmul.mubr.bf16.gmra.mrb[0].mxu0 %v413
        %v565 = vpop.f32.mrb[0].mxu0
        %v566 = vadd.f32 0.0, %v565
        %v567 = vpop.f32.mrb[0].mxu0
        %v568 = vadd.f32 0.0, %v567
        %v569 = vpop.f32.mrb[0].mxu0
        %v570 = vadd.f32 0.0, %v569
        %v571 = vpop.f32.mrb[0].mxu0
        %v572 = vadd.f32 0.0, %v571
        %573 = vmatprep.mubr.bf16.mxu0 0
        %574 = vmatmul.mubr.bf16.gmra.mrb[0].mxu0 %v416
        %v575 = vpop.f32.mrb[0].mxu0
        %v576 = vadd.f32 0.0, %v575
        %v577 = vpop.f32.mrb[0].mxu0
        %v578 = vadd.f32 0.0, %v577
        %v579 = vpop.f32.mrb[0].mxu0
        %v580 = vadd.f32 0.0, %v579
        %v581 = vpop.f32.mrb[0].mxu0
        %v582 = vadd.f32 0.0, %v581
        %583 = vmatprep.mubr.bf16.mxu0 0
        %584 = vmatmul.mubr.bf16.gmra.mrb[0].mxu0 %v419
        %v585 = vpop.f32.mrb[0].mxu0
        %v586 = vadd.f32 0.0, %v585
        %v587 = vpop.f32.mrb[0].mxu0
        %v588 = vadd.f32 0.0, %v587
        %v589 = vpop.f32.mrb[0].mxu0
        %v590 = vadd.f32 0.0, %v589
        %v591 = vpop.f32.mrb[0].mxu0
        %v592 = vadd.f32 0.0, %v591
        %593 = vmatprep.mubr.bf16.mxu0 0
        %594 = vmatmul.mubr.bf16.gmra.mrb[0].mxu0 %v422
        %v595 = vpop.f32.mrb[0].mxu0
        %v596 = vadd.f32 0.0, %v595
        %v597 = vpop.f32.mrb[0].mxu0
        %v598 = vadd.f32 0.0, %v597
        %v599 = vpop.f32.mrb[0].mxu0
        %v600 = vadd.f32 0.0, %v599
        %v601 = vpop.f32.mrb[0].mxu0
        %v602 = vadd.f32 0.0, %v601
        %603 = vmatprep.mubr.bf16.mxu0 0
        %604 = vmatmul.mubr.bf16.gmra.mrb[0].mxu0 %v425
        %v605 = vpop.f32.mrb[0].mxu0
        %v606 = vadd.f32 0.0, %v605
        %v607 = vpop.f32.mrb[0].mxu0
        %v608 = vadd.f32 0.0, %v607
        %v609 = vpop.f32.mrb[0].mxu0
        %v610 = vadd.f32 0.0, %v609
        %v611 = vpop.f32.mrb[0].mxu0
        %v612 = vadd.f32 0.0, %v611
        %613 = vmatprep.mubr.bf16.mxu0 0
        %614 = vmatmul.mubr.bf16.gmra.mrb[0].mxu0 %v428
        %v615 = vpop.f32.mrb[0].mxu0
        %v616 = vadd.f32 0.0, %v615
        %v617 = vpop.f32.mrb[0].mxu0
        %v618 = vadd.f32 0.0, %v617
        %v619 = vpop.f32.mrb[0].mxu0
        %v620 = vadd.f32 0.0, %v619
        %v621 = vpop.f32.mrb[0].mxu0
        %v622 = vadd.f32 0.0, %v621
        %623 = vmatprep.mubr.bf16.mxu0 0
        %624 = vmatmul.mubr.bf16.gmra.mrb[0].mxu0 %v431
        %v625 = vpop.f32.mrb[0].mxu0
        %v626 = vadd.f32 0.0, %v625
        %v627 = vpop.f32.mrb[0].mxu0
        %v628 = vadd.f32 0.0, %v627
        %v629 = vpop.f32.mrb[0].mxu0
        %v630 = vadd.f32 0.0, %v629
        %v631 = vpop.f32.mrb[0].mxu0
        %v632 = vadd.f32 0.0, %v631
        %633 = vmatprep.mubr.bf16.mxu0 0
        %634 = vmatmul.mubr.bf16.gmra.mrb[0].mxu0 %v434
        %v635 = vpop.f32.mrb[0].mxu0
        %v636 = vadd.f32 0.0, %v635
        %v637 = vpop.f32.mrb[0].mxu0
        %v638 = vadd.f32 0.0, %v637
        %v639 = vpop.f32.mrb[0].mxu0
        %v640 = vadd.f32 0.0, %v639
        %v641 = vpop.f32.mrb[0].mxu0
        %v642 = vadd.f32 0.0, %v641
        %643 = vmatprep.mubr.bf16.mxu0 0
        %644 = vmatmul.mubr.bf16.gmra.mrb[0].mxu0 %v437
        %v645 = vpop.f32.mrb[0].mxu0
        %v646 = vadd.f32 0.0, %v645
        %v647 = vpop.f32.mrb[0].mxu0
        %v648 = vadd.f32 0.0, %v647
        %v649 = vpop.f32.mrb[0].mxu0
        %v650 = vadd.f32 0.0, %v649
        %v651 = vpop.f32.mrb[0].mxu0
        %v652 = vadd.f32 0.0, %v651
        %653 = vmatprep.mubr.bf16.mxu0 0
        %654 = vmatmul.mubr.bf16.gmra.mrb[0].mxu0 %v440
        %v655 = vpop.f32.mrb[0].mxu0
        %v656 = vadd.f32 0.0, %v655
        %v657 = vpop.f32.mrb[0].mxu0
        %v658 = vadd.f32 0.0, %v657
        %v659 = vpop.f32.mrb[0].mxu0
        %v660 = vadd.f32 0.0, %v659
        %v661 = vpop.f32.mrb[0].mxu0
        %v662 = vadd.f32 0.0, %v661
        %663 = vmatprep.mubr.bf16.mxu0 0
        %664 = vmatmul.mubr.bf16.gmra.mrb[0].mxu0 %v443
        %v665 = vpop.f32.mrb[0].mxu0
        %v666 = vadd.f32 0.0, %v665
        %v667 = vpop.f32.mrb[0].mxu0
        %v668 = vadd.f32 0.0, %v667
        %v669 = vpop.f32.mrb[0].mxu0
        %v670 = vadd.f32 0.0, %v669
        %v671 = vpop.f32.mrb[0].mxu0
        %v672 = vadd.f32 0.0, %v671
        %673 = vmatprep.mubr.bf16.mxu0 0
        %674 = vmatmul.mubr.bf16.gmra.mrb[0].mxu0 %v446
        %v675 = vpop.f32.mrb[0].mxu0
        %v676 = vadd.f32 0.0, %v675
        %v677 = vpop.f32.mrb[0].mxu0
        %v678 = vadd.f32 0.0, %v677
        %v679 = vpop.f32.mrb[0].mxu0
        %v680 = vadd.f32 0.0, %v679
        %v681 = vpop.f32.mrb[0].mxu0
        %v682 = vadd.f32 0.0, %v681
        %683 = vmatprep.mubr.bf16.mxu0 0
        %684 = vmatmul.mubr.bf16.gmra.mrb[0].mxu0 %v449
        %v685 = vpop.f32.mrb[0].mxu0
        %v686 = vadd.f32 0.0, %v685
        %v687 = vpop.f32.mrb[0].mxu0
        %v688 = vadd.f32 0.0, %v687
        %v689 = vpop.f32.mrb[0].mxu0
        %v690 = vadd.f32 0.0, %v689
        %v691 = vpop.f32.mrb[0].mxu0
        %v692 = vadd.f32 0.0, %v691
        %693 = vmatprep.mubr.bf16.mxu0 0
        %694 = vmatmul.mubr.bf16.gmra.mrb[0].mxu0 %v452
        %v695 = vpop.f32.mrb[0].mxu0
        %v696 = vadd.f32 0.0, %v695
        %v697 = vpop.f32.mrb[0].mxu0
        %v698 = vadd.f32 0.0, %v697
        %v699 = vpop.f32.mrb[0].mxu0
        %v700 = vadd.f32 0.0, %v699
        %v701 = vpop.f32.mrb[0].mxu0
        %v702 = vadd.f32 0.0, %v701
        %703 = vmatprep.mubr.bf16.mxu0 0
        %704 = vmatmul.mubr.bf16.gmra.mrb[0].mxu0 %v455
        %v705 = vpop.f32.mrb[0].mxu0
        %v706 = vadd.f32 0.0, %v705
        %v707 = vpop.f32.mrb[0].mxu0
        %v708 = vadd.f32 0.0, %v707
        %v709 = vpop.f32.mrb[0].mxu0
        %v710 = vadd.f32 0.0, %v709
        %v711 = vpop.f32.mrb[0].mxu0
        %v712 = vadd.f32 0.0, %v711
        %713 = vmatprep.mubr.bf16.mxu0 0
        %714 = vmatmul.mubr.bf16.gmra.mrb[0].mxu0 %v458
        %v715 = vpop.f32.mrb[0].mxu0
        %v716 = vadd.f32 0.0, %v715
        %v717 = vpop.f32.mrb[0].mxu0
        %v718 = vadd.f32 0.0, %v717
        %v719 = vpop.f32.mrb[0].mxu0
        %v720 = vadd.f32 0.0, %v719
        %v721 = vpop.f32.mrb[0].mxu0
        %v722 = vadd.f32 0.0, %v721
        %723 = vmatprep.mubr.bf16.mxu0 0
        %724 = vmatmul.mubr.bf16.gmra.mrb[0].mxu0 %v461
        %v725 = vpop.f32.mrb[0].mxu0
        %v726 = vadd.f32 0.0, %v725
        %v727 = vpop.f32.mrb[0].mxu0
        %v728 = vadd.f32 0.0, %v727
        %v729 = vpop.f32.mrb[0].mxu0
        %v730 = vadd.f32 0.0, %v729
        %v731 = vpop.f32.mrb[0].mxu0
        %v732 = vadd.f32 0.0, %v731
        %733 = vmatprep.mubr.bf16.mxu0 0
        %734 = vmatmul.mubr.bf16.gmra.mrb[0].mxu0 %v464
        %v735 = vpop.f32.mrb[0].mxu0
        %v736 = vadd.f32 0.0, %v735
        %v737 = vpop.f32.mrb[0].mxu0
        %v738 = vadd.f32 0.0, %v737
        %v739 = vpop.f32.mrb[0].mxu0
        %v740 = vadd.f32 0.0, %v739
        %v741 = vpop.f32.mrb[0].mxu0
        %v742 = vadd.f32 0.0, %v741
        %743 = vmatprep.mubr.bf16.mxu0 0
        %744 = vmatmul.mubr.bf16.gmra.mrb[0].mxu0 %v467
        %v745 = vpop.f32.mrb[0].mxu0
        %v746 = vadd.f32 0.0, %v745
        %v747 = vpop.f32.mrb[0].mxu0
        %v748 = vadd.f32 0.0, %v747
        %v749 = vpop.f32.mrb[0].mxu0
        %v750 = vadd.f32 0.0, %v749
        %v751 = vpop.f32.mrb[0].mxu0
        %v752 = vadd.f32 0.0, %v751
        %753 = vmatprep.mubr.bf16.mxu0 0
        %754 = vmatmul.mubr.bf16.gmra.mrb[0].mxu0 %v470
        %v755 = vpop.f32.mrb[0].mxu0
        %v756 = vadd.f32 0.0, %v755
        %v757 = vpop.f32.mrb[0].mxu0
        %v758 = vadd.f32 0.0, %v757
        %v759 = vpop.f32.mrb[0].mxu0
        %v760 = vadd.f32 0.0, %v759
        %v761 = vpop.f32.mrb[0].mxu0
        %v762 = vadd.f32 0.0, %v761
        %763 = vmatprep.mubr.bf16.mxu0 0
        %764 = vmatmul.mubr.bf16.gmra.mrb[0].mxu0 %v473
        %v765 = vpop.f32.mrb[0].mxu0
        %v766 = vadd.f32 0.0, %v765
        %v767 = vpop.f32.mrb[0].mxu0
        %v768 = vadd.f32 0.0, %v767
        %v769 = vpop.f32.mrb[0].mxu0
        %v770 = vadd.f32 0.0, %v769
        %v771 = vpop.f32.mrb[0].mxu0
        %v772 = vadd.f32 0.0, %v771
        %773 = vmatprep.mubr.bf16.mxu0 0
        %774 = vmatmul.mubr.bf16.gmra.mrb[0].mxu0 %v476
        %v775 = vpop.f32.mrb[0].mxu0
        %v776 = vadd.f32 0.0, %v775
        %v777 = vpop.f32.mrb[0].mxu0
        %v778 = vadd.f32 0.0, %v777
        %v779 = vpop.f32.mrb[0].mxu0
        %v780 = vadd.f32 0.0, %v779
        %v781 = vpop.f32.mrb[0].mxu0
        %v782 = vadd.f32 0.0, %v781
        %783 = vmatprep.mubr.bf16.mxu0 0
        %784 = vmatmul.mubr.bf16.gmra.mrb[0].mxu0 %v479
        %v785 = vpop.f32.mrb[0].mxu0
        %v786 = vadd.f32 0.0, %v785
        %v787 = vpop.f32.mrb[0].mxu0
        %v788 = vadd.f32 0.0, %v787
        %v789 = vpop.f32.mrb[0].mxu0
        %v790 = vadd.f32 0.0, %v789
        %v791 = vpop.f32.mrb[0].mxu0
        %v792 = vadd.f32 0.0, %v791
        %793 = vmatprep.mubr.bf16.mxu0 0
        %794 = vmatmul.mubr.bf16.gmra.mrb[0].mxu0 %v482
        %v795 = vpop.f32.mrb[0].mxu0
        %v796 = vadd.f32 0.0, %v795
        %v797 = vpop.f32.mrb[0].mxu0
        %v798 = vadd.f32 0.0, %v797
        %v799 = vpop.f32.mrb[0].mxu0
        %v800 = vadd.f32 0.0, %v799
        %v801 = vpop.f32.mrb[0].mxu0
        %v802 = vadd.f32 0.0, %v801
        %803 = vmatprep.mubr.bf16.mxu0 0
        %804 = vmatmul.mubr.bf16.gmra.mrb[0].mxu0 %v485
        %v805 = vpop.f32.mrb[0].mxu0
        %v806 = vadd.f32 0.0, %v805
        %v807 = vpop.f32.mrb[0].mxu0
        %v808 = vadd.f32 0.0, %v807
        %v809 = vpop.f32.mrb[0].mxu0
        %v810 = vadd.f32 0.0, %v809
        %v811 = vpop.f32.mrb[0].mxu0
        %v812 = vadd.f32 0.0, %v811
        %813 = vmatprep.mubr.bf16.mxu0 0
        %814 = vmatmul.mubr.bf16.gmra.mrb[0].mxu0 %v488
        %v815 = vpop.f32.mrb[0].mxu0
        %v816 = vadd.f32 0.0, %v815
        %v817 = vpop.f32.mrb[0].mxu0
        %v818 = vadd.f32 0.0, %v817
        %v819 = vpop.f32.mrb[0].mxu0
        %v820 = vadd.f32 0.0, %v819
        %v821 = vpop.f32.mrb[0].mxu0
        %v822 = vadd.f32 0.0, %v821
        %823 = vmatprep.mubr.bf16.mxu0 0
        %824 = vmatmul.mubr.bf16.gmra.mrb[0].mxu0 %v491
        %v825 = vpop.f32.mrb[0].mxu0
        %v826 = vadd.f32 0.0, %v825
        %v827 = vpop.f32.mrb[0].mxu0
        %v828 = vadd.f32 0.0, %v827
        %v829 = vpop.f32.mrb[0].mxu0
        %v830 = vadd.f32 0.0, %v829
        %v831 = vpop.f32.mrb[0].mxu0
        %v832 = vadd.f32 0.0, %v831
        %833 = vmatprep.mubr.bf16.mxu0 0
        %834 = vmatmul.mubr.bf16.gmra.mrb[0].mxu0 %v494
        %v835 = vpop.f32.mrb[0].mxu0
        %v836 = vadd.f32 0.0, %v835
        %v837 = vpop.f32.mrb[0].mxu0
        %v838 = vadd.f32 0.0, %v837
        %v839 = vpop.f32.mrb[0].mxu0
        %v840 = vadd.f32 0.0, %v839
        %v841 = vpop.f32.mrb[0].mxu0
        %v842 = vadd.f32 0.0, %v841
        %843 = vmatprep.mubr.bf16.mxu0 0
        %844 = vmatmul.mubr.bf16.gmra.mrb[0].mxu0 %v497
        %v845 = vpop.f32.mrb[0].mxu0
        %v846 = vadd.f32 0.0, %v845
        %v847 = vpop.f32.mrb[0].mxu0
        %v848 = vadd.f32 0.0, %v847
        %v849 = vpop.f32.mrb[0].mxu0
        %v850 = vadd.f32 0.0, %v849
        %v851 = vpop.f32.mrb[0].mxu0
        %v852 = vadd.f32 0.0, %v851
        %853 = vmatprep.mubr.bf16.mxu0 0
        %854 = vmatmul.mubr.bf16.gmra.mrb[0].mxu0 %v500
        %v855 = vpop.f32.mrb[0].mxu0
        %v856 = vadd.f32 0.0, %v855
        %v857 = vpop.f32.mrb[0].mxu0
        %v858 = vadd.f32 0.0, %v857
        %v859 = vpop.f32.mrb[0].mxu0
        %v860 = vadd.f32 0.0, %v859
        %v861 = vpop.f32.mrb[0].mxu0
        %v862 = vadd.f32 0.0, %v861
        %863 = vmatprep.mubr.bf16.mxu0 0
        %864 = vmatmul.mubr.bf16.gmra.mrb[0].mxu0 %v503
        %v865 = vpop.f32.mrb[0].mxu0
        %v866 = vadd.f32 0.0, %v865
        %v867 = vpop.f32.mrb[0].mxu0
        %v868 = vadd.f32 0.0, %v867
        %v869 = vpop.f32.mrb[0].mxu0
        %v870 = vadd.f32 0.0, %v869
        %v871 = vpop.f32.mrb[0].mxu0
        %v872 = vadd.f32 0.0, %v871
        %873 = vdwg.mxu0
        %874 = vmatprep.subr.bf16.mxu0 %v516
        %875 = vmatpush1.bf16.msra.mxu0 %v513
        %876 = vmatprep.subr.bf16.mxu0 0
        %877 = vmatpush1.bf16.msra.mxu0 0
        %878 = vmatprep.subr.bf16.mxu0 0
        %879 = vmatpush1.bf16.msra.mxu0 0
        %880 = vmatprep.subr.bf16.mxu0 0
        %881 = vmatpush1.bf16.msra.mxu0 0
        %882 = vmatprep.subr.bf16.mxu0 0
        %883 = vmatpush1.bf16.msra.mxu0 0
        %884 = vmatprep.subr.bf16.mxu0 0
        %885 = vmatpush1.bf16.msra.mxu0 0
        %886 = vmatprep.subr.bf16.mxu0 0
        %887 = vmatpush1.bf16.msra.mxu0 0
        %888 = vmatprep.subr.bf16.mxu0 0
        %889 = vmatpush1.bf16.msra.mxu0 0
        %890 = vmatprep.subr.bf16.mxu0 0
        %891 = vmatpush1.bf16.msra.mxu0 0
        %892 = vmatprep.subr.bf16.mxu0 0
        %893 = vmatpush1.bf16.msra.mxu0 0
        %894 = vmatprep.subr.bf16.mxu0 0
        %895 = vmatpush1.bf16.msra.mxu0 0
        %896 = vmatprep.subr.bf16.mxu0 0
        %897 = vmatpush1.bf16.msra.mxu0 0
        %898 = vmatprep.subr.bf16.mxu0 0
        %899 = vmatpush1.bf16.msra.mxu0 0
        %900 = vmatprep.subr.bf16.mxu0 0
        %901 = vmatpush1.bf16.msra.mxu0 0
        %902 = vmatprep.subr.bf16.mxu0 0
        %903 = vmatpush1.bf16.msra.mxu0 0
        %904 = vmatprep.subr.bf16.mxu0 0
        %905 = vmatpush1.bf16.msra.mxu0 0
        %906 = vmatprep.mubr.bf16.mxu0 0
        %907 = vmatmul.mubr.bf16.gmra.mrb[0].mxu0 %v410
        %v908 = vpop.f32.mrb[0].mxu0
        %v909 = vadd.f32 0.0, %v908
        %v910 = vpop.f32.mrb[0].mxu0
        %v911 = vadd.f32 0.0, %v910
        %v912 = vpop.f32.mrb[0].mxu0
        %v913 = vadd.f32 0.0, %v912
        %v914 = vpop.f32.mrb[0].mxu0
        %v915 = vadd.f32 0.0, %v914
        %916 = vmatprep.mubr.bf16.mxu0 0
        %917 = vmatmul.mubr.bf16.gmra.mrb[0].mxu0 %v413
        %v918 = vpop.f32.mrb[0].mxu0
        %v919 = vadd.f32 0.0, %v918
        %v920 = vpop.f32.mrb[0].mxu0
        %v921 = vadd.f32 0.0, %v920
        %v922 = vpop.f32.mrb[0].mxu0
        %v923 = vadd.f32 0.0, %v922
        %v924 = vpop.f32.mrb[0].mxu0
        %v925 = vadd.f32 0.0, %v924
        %926 = vmatprep.mubr.bf16.mxu0 0
        %927 = vmatmul.mubr.bf16.gmra.mrb[0].mxu0 %v416
        %v928 = vpop.f32.mrb[0].mxu0
        %v929 = vadd.f32 0.0, %v928
        %v930 = vpop.f32.mrb[0].mxu0
        %v931 = vadd.f32 0.0, %v930
        %v932 = vpop.f32.mrb[0].mxu0
        %v933 = vadd.f32 0.0, %v932
        %v934 = vpop.f32.mrb[0].mxu0
        %v935 = vadd.f32 0.0, %v934
        %936 = vmatprep.mubr.bf16.mxu0 0
        %937 = vmatmul.mubr.bf16.gmra.mrb[0].mxu0 %v419
        %v938 = vpop.f32.mrb[0].mxu0
        %v939 = vadd.f32 0.0, %v938
        %v940 = vpop.f32.mrb[0].mxu0
        %v941 = vadd.f32 0.0, %v940
        %v942 = vpop.f32.mrb[0].mxu0
        %v943 = vadd.f32 0.0, %v942
        %v944 = vpop.f32.mrb[0].mxu0
        %v945 = vadd.f32 0.0, %v944
        %946 = vmatprep.mubr.bf16.mxu0 0
        %947 = vmatmul.mubr.bf16.gmra.mrb[0].mxu0 %v422
        %v948 = vpop.f32.mrb[0].mxu0
        %v949 = vadd.f32 0.0, %v948
        %v950 = vpop.f32.mrb[0].mxu0
        %v951 = vadd.f32 0.0, %v950
        %v952 = vpop.f32.mrb[0].mxu0
        %v953 = vadd.f32 0.0, %v952
        %v954 = vpop.f32.mrb[0].mxu0
        %v955 = vadd.f32 0.0, %v954
        %956 = vmatprep.mubr.bf16.mxu0 0
        %957 = vmatmul.mubr.bf16.gmra.mrb[0].mxu0 %v425
        %v958 = vpop.f32.mrb[0].mxu0
        %v959 = vadd.f32 0.0, %v958
        %v960 = vpop.f32.mrb[0].mxu0
        %v961 = vadd.f32 0.0, %v960
        %v962 = vpop.f32.mrb[0].mxu0
        %v963 = vadd.f32 0.0, %v962
        %v964 = vpop.f32.mrb[0].mxu0
        %v965 = vadd.f32 0.0, %v964
        %966 = vmatprep.mubr.bf16.mxu0 0
        %967 = vmatmul.mubr.bf16.gmra.mrb[0].mxu0 %v428
        %v968 = vpop.f32.mrb[0].mxu0
        %v969 = vadd.f32 0.0, %v968
        %v970 = vpop.f32.mrb[0].mxu0
        %v971 = vadd.f32 0.0, %v970
        %v972 = vpop.f32.mrb[0].mxu0
        %v973 = vadd.f32 0.0, %v972
        %v974 = vpop.f32.mrb[0].mxu0
        %v975 = vadd.f32 0.0, %v974
        %976 = vmatprep.mubr.bf16.mxu0 0
        %977 = vmatmul.mubr.bf16.gmra.mrb[0].mxu0 %v431
        %v978 = vpop.f32.mrb[0].mxu0
        %v979 = vadd.f32 0.0, %v978
        %v980 = vpop.f32.mrb[0].mxu0
        %v981 = vadd.f32 0.0, %v980
        %v982 = vpop.f32.mrb[0].mxu0
        %v983 = vadd.f32 0.0, %v982
        %v984 = vpop.f32.mrb[0].mxu0
        %v985 = vadd.f32 0.0, %v984
        %986 = vmatprep.mubr.bf16.mxu0 0
        %987 = vmatmul.mubr.bf16.gmra.mrb[0].mxu0 %v434
        %v988 = vpop.f32.mrb[0].mxu0
        %v989 = vadd.f32 0.0, %v988
        %v990 = vpop.f32.mrb[0].mxu0
        %v991 = vadd.f32 0.0, %v990
        %v992 = vpop.f32.mrb[0].mxu0
        %v993 = vadd.f32 0.0, %v992
        %v994 = vpop.f32.mrb[0].mxu0
        %v995 = vadd.f32 0.0, %v994
        %996 = vmatprep.mubr.bf16.mxu0 0
        %997 = vmatmul.mubr.bf16.gmra.mrb[0].mxu0 %v437
        %v998 = vpop.f32.mrb[0].mxu0
        %v999 = vadd.f32 0.0, %v998
        %v1000 = vpop.f32.mrb[0].mxu0
        %v1001 = vadd.f32 0.0, %v1000
        %v1002 = vpop.f32.mrb[0].mxu0
        %v1003 = vadd.f32 0.0, %v1002
        %v1004 = vpop.f32.mrb[0].mxu0
        %v1005 = vadd.f32 0.0, %v1004
        %1006 = vmatprep.mubr.bf16.mxu0 0
        %1007 = vmatmul.mubr.bf16.gmra.mrb[0].mxu0 %v440
        %v1008 = vpop.f32.mrb[0].mxu0
        %v1009 = vadd.f32 0.0, %v1008
        %v1010 = vpop.f32.mrb[0].mxu0
        %v1011 = vadd.f32 0.0, %v1010
        %v1012 = vpop.f32.mrb[0].mxu0
        %v1013 = vadd.f32 0.0, %v1012
        %v1014 = vpop.f32.mrb[0].mxu0
        %v1015 = vadd.f32 0.0, %v1014
        %1016 = vmatprep.mubr.bf16.mxu0 0
        %1017 = vmatmul.mubr.bf16.gmra.mrb[0].mxu0 %v443
        %v1018 = vpop.f32.mrb[0].mxu0
        %v1019 = vadd.f32 0.0, %v1018
        %v1020 = vpop.f32.mrb[0].mxu0
        %v1021 = vadd.f32 0.0, %v1020
        %v1022 = vpop.f32.mrb[0].mxu0
        %v1023 = vadd.f32 0.0, %v1022
        %v1024 = vpop.f32.mrb[0].mxu0
        %v1025 = vadd.f32 0.0, %v1024
        %1026 = vmatprep.mubr.bf16.mxu0 0
        %1027 = vmatmul.mubr.bf16.gmra.mrb[0].mxu0 %v446
        %v1028 = vpop.f32.mrb[0].mxu0
        %v1029 = vadd.f32 0.0, %v1028
        %v1030 = vpop.f32.mrb[0].mxu0
        %v1031 = vadd.f32 0.0, %v1030
        %v1032 = vpop.f32.mrb[0].mxu0
        %v1033 = vadd.f32 0.0, %v1032
        %v1034 = vpop.f32.mrb[0].mxu0
        %v1035 = vadd.f32 0.0, %v1034
        %1036 = vmatprep.mubr.bf16.mxu0 0
        %1037 = vmatmul.mubr.bf16.gmra.mrb[0].mxu0 %v449
        %v1038 = vpop.f32.mrb[0].mxu0
        %v1039 = vadd.f32 0.0, %v1038
        %v1040 = vpop.f32.mrb[0].mxu0
        %v1041 = vadd.f32 0.0, %v1040
        %v1042 = vpop.f32.mrb[0].mxu0
        %v1043 = vadd.f32 0.0, %v1042
        %v1044 = vpop.f32.mrb[0].mxu0
        %v1045 = vadd.f32 0.0, %v1044
        %1046 = vmatprep.mubr.bf16.mxu0 0
        %1047 = vmatmul.mubr.bf16.gmra.mrb[0].mxu0 %v452
        %v1048 = vpop.f32.mrb[0].mxu0
        %v1049 = vadd.f32 0.0, %v1048
        %v1050 = vpop.f32.mrb[0].mxu0
        %v1051 = vadd.f32 0.0, %v1050
        %v1052 = vpop.f32.mrb[0].mxu0
        %v1053 = vadd.f32 0.0, %v1052
        %v1054 = vpop.f32.mrb[0].mxu0
        %v1055 = vadd.f32 0.0, %v1054
        %1056 = vmatprep.mubr.bf16.mxu0 0
        %1057 = vmatmul.mubr.bf16.gmra.mrb[0].mxu0 %v455
        %v1058 = vpop.f32.mrb[0].mxu0
        %v1059 = vadd.f32 0.0, %v1058
        %v1060 = vpop.f32.mrb[0].mxu0
        %v1061 = vadd.f32 0.0, %v1060
        %v1062 = vpop.f32.mrb[0].mxu0
        %v1063 = vadd.f32 0.0, %v1062
        %v1064 = vpop.f32.mrb[0].mxu0
        %v1065 = vadd.f32 0.0, %v1064
        %1066 = vmatprep.mubr.bf16.mxu0 0
        %1067 = vmatmul.mubr.bf16.gmra.mrb[0].mxu0 %v458
        %v1068 = vpop.f32.mrb[0].mxu0
        %v1069 = vadd.f32 0.0, %v1068
        %v1070 = vpop.f32.mrb[0].mxu0
        %v1071 = vadd.f32 0.0, %v1070
        %v1072 = vpop.f32.mrb[0].mxu0
        %v1073 = vadd.f32 0.0, %v1072
        %v1074 = vpop.f32.mrb[0].mxu0
        %v1075 = vadd.f32 0.0, %v1074
        %1076 = vmatprep.mubr.bf16.mxu0 0
        %1077 = vmatmul.mubr.bf16.gmra.mrb[0].mxu0 %v461
        %v1078 = vpop.f32.mrb[0].mxu0
        %v1079 = vadd.f32 0.0, %v1078
        %v1080 = vpop.f32.mrb[0].mxu0
        %v1081 = vadd.f32 0.0, %v1080
        %v1082 = vpop.f32.mrb[0].mxu0
        %v1083 = vadd.f32 0.0, %v1082
        %v1084 = vpop.f32.mrb[0].mxu0
        %v1085 = vadd.f32 0.0, %v1084
        %1086 = vmatprep.mubr.bf16.mxu0 0
        %1087 = vmatmul.mubr.bf16.gmra.mrb[0].mxu0 %v464
        %v1088 = vpop.f32.mrb[0].mxu0
        %v1089 = vadd.f32 0.0, %v1088
        %v1090 = vpop.f32.mrb[0].mxu0
        %v1091 = vadd.f32 0.0, %v1090
        %v1092 = vpop.f32.mrb[0].mxu0
        %v1093 = vadd.f32 0.0, %v1092
        %v1094 = vpop.f32.mrb[0].mxu0
        %v1095 = vadd.f32 0.0, %v1094
        %1096 = vmatprep.mubr.bf16.mxu0 0
        %1097 = vmatmul.mubr.bf16.gmra.mrb[0].mxu0 %v467
        %v1098 = vpop.f32.mrb[0].mxu0
        %v1099 = vadd.f32 0.0, %v1098
        %v1100 = vpop.f32.mrb[0].mxu0
        %v1101 = vadd.f32 0.0, %v1100
        %v1102 = vpop.f32.mrb[0].mxu0
        %v1103 = vadd.f32 0.0, %v1102
        %v1104 = vpop.f32.mrb[0].mxu0
        %v1105 = vadd.f32 0.0, %v1104
        %1106 = vmatprep.mubr.bf16.mxu0 0
        %1107 = vmatmul.mubr.bf16.gmra.mrb[0].mxu0 %v470
        %v1108 = vpop.f32.mrb[0].mxu0
        %v1109 = vadd.f32 0.0, %v1108
        %v1110 = vpop.f32.mrb[0].mxu0
        %v1111 = vadd.f32 0.0, %v1110
        %v1112 = vpop.f32.mrb[0].mxu0
        %v1113 = vadd.f32 0.0, %v1112
        %v1114 = vpop.f32.mrb[0].mxu0
        %v1115 = vadd.f32 0.0, %v1114
        %1116 = vmatprep.mubr.bf16.mxu0 0
        %1117 = vmatmul.mubr.bf16.gmra.mrb[0].mxu0 %v473
        %v1118 = vpop.f32.mrb[0].mxu0
        %v1119 = vadd.f32 0.0, %v1118
        %v1120 = vpop.f32.mrb[0].mxu0
        %v1121 = vadd.f32 0.0, %v1120
        %v1122 = vpop.f32.mrb[0].mxu0
        %v1123 = vadd.f32 0.0, %v1122
        %v1124 = vpop.f32.mrb[0].mxu0
        %v1125 = vadd.f32 0.0, %v1124
        %1126 = vmatprep.mubr.bf16.mxu0 0
        %1127 = vmatmul.mubr.bf16.gmra.mrb[0].mxu0 %v476
        %v1128 = vpop.f32.mrb[0].mxu0
        %v1129 = vadd.f32 0.0, %v1128
        %v1130 = vpop.f32.mrb[0].mxu0
        %v1131 = vadd.f32 0.0, %v1130
        %v1132 = vpop.f32.mrb[0].mxu0
        %v1133 = vadd.f32 0.0, %v1132
        %v1134 = vpop.f32.mrb[0].mxu0
        %v1135 = vadd.f32 0.0, %v1134
        %1136 = vmatprep.mubr.bf16.mxu0 0
        %1137 = vmatmul.mubr.bf16.gmra.mrb[0].mxu0 %v479
        %v1138 = vpop.f32.mrb[0].mxu0
        %v1139 = vadd.f32 0.0, %v1138
        %v1140 = vpop.f32.mrb[0].mxu0
        %v1141 = vadd.f32 0.0, %v1140
        %v1142 = vpop.f32.mrb[0].mxu0
        %v1143 = vadd.f32 0.0, %v1142
        %v1144 = vpop.f32.mrb[0].mxu0
        %v1145 = vadd.f32 0.0, %v1144
        %1146 = vmatprep.mubr.bf16.mxu0 0
        %1147 = vmatmul.mubr.bf16.gmra.mrb[0].mxu0 %v482
        %v1148 = vpop.f32.mrb[0].mxu0
        %v1149 = vadd.f32 0.0, %v1148
        %v1150 = vpop.f32.mrb[0].mxu0
        %v1151 = vadd.f32 0.0, %v1150
        %v1152 = vpop.f32.mrb[0].mxu0
        %v1153 = vadd.f32 0.0, %v1152
        %v1154 = vpop.f32.mrb[0].mxu0
        %v1155 = vadd.f32 0.0, %v1154
        %1156 = vmatprep.mubr.bf16.mxu0 0
        %1157 = vmatmul.mubr.bf16.gmra.mrb[0].mxu0 %v485
        %v1158 = vpop.f32.mrb[0].mxu0
        %v1159 = vadd.f32 0.0, %v1158
        %v1160 = vpop.f32.mrb[0].mxu0
        %v1161 = vadd.f32 0.0, %v1160
        %v1162 = vpop.f32.mrb[0].mxu0
        %v1163 = vadd.f32 0.0, %v1162
        %v1164 = vpop.f32.mrb[0].mxu0
        %v1165 = vadd.f32 0.0, %v1164
        %1166 = vmatprep.mubr.bf16.mxu0 0
        %1167 = vmatmul.mubr.bf16.gmra.mrb[0].mxu0 %v488
        %v1168 = vpop.f32.mrb[0].mxu0
        %v1169 = vadd.f32 0.0, %v1168
        %v1170 = vpop.f32.mrb[0].mxu0
        %v1171 = vadd.f32 0.0, %v1170
        %v1172 = vpop.f32.mrb[0].mxu0
        %v1173 = vadd.f32 0.0, %v1172
        %v1174 = vpop.f32.mrb[0].mxu0
        %v1175 = vadd.f32 0.0, %v1174
        %1176 = vmatprep.mubr.bf16.mxu0 0
        %1177 = vmatmul.mubr.bf16.gmra.mrb[0].mxu0 %v491
        %v1178 = vpop.f32.mrb[0].mxu0
        %v1179 = vadd.f32 0.0, %v1178
        %v1180 = vpop.f32.mrb[0].mxu0
        %v1181 = vadd.f32 0.0, %v1180
        %v1182 = vpop.f32.mrb[0].mxu0
        %v1183 = vadd.f32 0.0, %v1182
        %v1184 = vpop.f32.mrb[0].mxu0
        %v1185 = vadd.f32 0.0, %v1184
        %1186 = vmatprep.mubr.bf16.mxu0 0
        %1187 = vmatmul.mubr.bf16.gmra.mrb[0].mxu0 %v494
        %v1188 = vpop.f32.mrb[0].mxu0
        %v1189 = vadd.f32 0.0, %v1188
        %v1190 = vpop.f32.mrb[0].mxu0
        %v1191 = vadd.f32 0.0, %v1190
        %v1192 = vpop.f32.mrb[0].mxu0
        %v1193 = vadd.f32 0.0, %v1192
        %v1194 = vpop.f32.mrb[0].mxu0
        %v1195 = vadd.f32 0.0, %v1194
        %1196 = vmatprep.mubr.bf16.mxu0 0
        %1197 = vmatmul.mubr.bf16.gmra.mrb[0].mxu0 %v497
        %v1198 = vpop.f32.mrb[0].mxu0
        %v1199 = vadd.f32 0.0, %v1198
        %v1200 = vpop.f32.mrb[0].mxu0
        %v1201 = vadd.f32 0.0, %v1200
        %v1202 = vpop.f32.mrb[0].mxu0
        %v1203 = vadd.f32 0.0, %v1202
        %v1204 = vpop.f32.mrb[0].mxu0
        %v1205 = vadd.f32 0.0, %v1204
        %1206 = vmatprep.mubr.bf16.mxu0 0
        %1207 = vmatmul.mubr.bf16.gmra.mrb[0].mxu0 %v500
        %v1208 = vpop.f32.mrb[0].mxu0
        %v1209 = vadd.f32 0.0, %v1208
        %v1210 = vpop.f32.mrb[0].mxu0
        %v1211 = vadd.f32 0.0, %v1210
        %v1212 = vpop.f32.mrb[0].mxu0
        %v1213 = vadd.f32 0.0, %v1212
        %v1214 = vpop.f32.mrb[0].mxu0
        %v1215 = vadd.f32 0.0, %v1214
        %1216 = vmatprep.mubr.bf16.mxu0 0
        %1217 = vmatmul.mubr.bf16.gmra.mrb[0].mxu0 %v503
        %v1218 = vpop.f32.mrb[0].mxu0
        %v1219 = vadd.f32 0.0, %v1218
        %v1220 = vpop.f32.mrb[0].mxu0
        %v1221 = vadd.f32 0.0, %v1220
        %v1222 = vpop.f32.mrb[0].mxu0
        %v1223 = vadd.f32 0.0, %v1222
        %v1224 = vpop.f32.mrb[0].mxu0
        %v1225 = vadd.f32 0.0, %v1224
        %1226 = vdwg.mxu0
        %1227 = vmatprep.subr.bf16.mxu0 0
        %1228 = vmatpush1.bf16.msra.mxu0 %v519
        %1229 = vmatprep.subr.bf16.mxu0 0
        %1230 = vmatpush1.bf16.msra.mxu0 0
        %1231 = vmatprep.subr.bf16.mxu0 0
        %1232 = vmatpush1.bf16.msra.mxu0 0
        %1233 = vmatprep.subr.bf16.mxu0 0
        %1234 = vmatpush1.bf16.msra.mxu0 0
        %1235 = vmatprep.subr.bf16.mxu0 0
        %1236 = vmatpush1.bf16.msra.mxu0 0
        %1237 = vmatprep.subr.bf16.mxu0 0
        %1238 = vmatpush1.bf16.msra.mxu0 0
        %1239 = vmatprep.subr.bf16.mxu0 0
        %1240 = vmatpush1.bf16.msra.mxu0 0
        %1241 = vmatprep.subr.bf16.mxu0 0
        %1242 = vmatpush1.bf16.msra.mxu0 0
        %1243 = vmatprep.subr.bf16.mxu0 0
        %1244 = vmatpush1.bf16.msra.mxu0 0
        %1245 = vmatprep.subr.bf16.mxu0 0
        %1246 = vmatpush1.bf16.msra.mxu0 0
        %1247 = vmatprep.subr.bf16.mxu0 0
        %1248 = vmatpush1.bf16.msra.mxu0 0
        %1249 = vmatprep.subr.bf16.mxu0 0
        %1250 = vmatpush1.bf16.msra.mxu0 0
        %1251 = vmatprep.subr.bf16.mxu0 0
        %1252 = vmatpush1.bf16.msra.mxu0 0
        %1253 = vmatprep.subr.bf16.mxu0 0
        %1254 = vmatpush1.bf16.msra.mxu0 0
        %1255 = vmatprep.subr.bf16.mxu0 0
        %1256 = vmatpush1.bf16.msra.mxu0 0
        %1257 = vmatprep.subr.bf16.mxu0 0
        %1258 = vmatpush1.bf16.msra.mxu0 0
        %1259 = vmatprep.mubr.bf16.mxu0 0
        %1260 = vmatmul.mubr.bf16.gmra.mrb[0].mxu0 %v410
        %v1261 = vpop.f32.mrb[0].mxu0
        %v1262 = vadd.f32 0.0, %v1261
        %v1263 = vpop.f32.mrb[0].mxu0
        %v1264 = vpop.f32.mrb[0].mxu0
        %v1265 = vadd.f32 0.0, %v1264
        %v1266 = vpop.f32.mrb[0].mxu0
        %1267 = vmatprep.mubr.bf16.mxu0 0
        %1268 = vmatmul.mubr.bf16.gmra.mrb[0].mxu0 %v413
        %v1269 = vpop.f32.mrb[0].mxu0
        %v1270 = vadd.f32 0.0, %v1269
        %v1271 = vpop.f32.mrb[0].mxu0
        %v1272 = vpop.f32.mrb[0].mxu0
        %v1273 = vadd.f32 0.0, %v1272
        %v1274 = vpop.f32.mrb[0].mxu0
        %1275 = vmatprep.mubr.bf16.mxu0 0
        %1276 = vmatmul.mubr.bf16.gmra.mrb[0].mxu0 %v416
        %v1277 = vpop.f32.mrb[0].mxu0
        %v1278 = vadd.f32 0.0, %v1277
        %v1279 = vpop.f32.mrb[0].mxu0
        %v1280 = vpop.f32.mrb[0].mxu0
        %v1281 = vadd.f32 0.0, %v1280
        %v1282 = vpop.f32.mrb[0].mxu0
        %1283 = vmatprep.mubr.bf16.mxu0 0
        %1284 = vmatmul.mubr.bf16.gmra.mrb[0].mxu0 %v419
        %v1285 = vpop.f32.mrb[0].mxu0
        %v1286 = vadd.f32 0.0, %v1285
        %v1287 = vpop.f32.mrb[0].mxu0
        %v1288 = vpop.f32.mrb[0].mxu0
        %v1289 = vadd.f32 0.0, %v1288
        %v1290 = vpop.f32.mrb[0].mxu0
        %1291 = vmatprep.mubr.bf16.mxu0 0
        %1292 = vmatmul.mubr.bf16.gmra.mrb[0].mxu0 %v422
        %v1293 = vpop.f32.mrb[0].mxu0
        %v1294 = vadd.f32 0.0, %v1293
        %v1295 = vpop.f32.mrb[0].mxu0
        %v1296 = vpop.f32.mrb[0].mxu0
        %v1297 = vadd.f32 0.0, %v1296
        %v1298 = vpop.f32.mrb[0].mxu0
        %1299 = vmatprep.mubr.bf16.mxu0 0
        %1300 = vmatmul.mubr.bf16.gmra.mrb[0].mxu0 %v425
        %v1301 = vpop.f32.mrb[0].mxu0
        %v1302 = vadd.f32 0.0, %v1301
        %v1303 = vpop.f32.mrb[0].mxu0
        %v1304 = vpop.f32.mrb[0].mxu0
        %v1305 = vadd.f32 0.0, %v1304
        %v1306 = vpop.f32.mrb[0].mxu0
        %1307 = vmatprep.mubr.bf16.mxu0 0
        %1308 = vmatmul.mubr.bf16.gmra.mrb[0].mxu0 %v428
        %v1309 = vpop.f32.mrb[0].mxu0
        %v1310 = vadd.f32 0.0, %v1309
        %v1311 = vpop.f32.mrb[0].mxu0
        %v1312 = vpop.f32.mrb[0].mxu0
        %v1313 = vadd.f32 0.0, %v1312
        %v1314 = vpop.f32.mrb[0].mxu0
        %1315 = vmatprep.mubr.bf16.mxu0 0
        %1316 = vmatmul.mubr.bf16.gmra.mrb[0].mxu0 %v431
        %v1317 = vpop.f32.mrb[0].mxu0
        %v1318 = vadd.f32 0.0, %v1317
        %v1319 = vpop.f32.mrb[0].mxu0
        %v1320 = vpop.f32.mrb[0].mxu0
        %v1321 = vadd.f32 0.0, %v1320
        %v1322 = vpop.f32.mrb[0].mxu0
        %1323 = vmatprep.mubr.bf16.mxu0 0
        %1324 = vmatmul.mubr.bf16.gmra.mrb[0].mxu0 %v434
        %v1325 = vpop.f32.mrb[0].mxu0
        %v1326 = vadd.f32 0.0, %v1325
        %v1327 = vpop.f32.mrb[0].mxu0
        %v1328 = vpop.f32.mrb[0].mxu0
        %v1329 = vadd.f32 0.0, %v1328
        %v1330 = vpop.f32.mrb[0].mxu0
        %1331 = vmatprep.mubr.bf16.mxu0 0
        %1332 = vmatmul.mubr.bf16.gmra.mrb[0].mxu0 %v437
        %v1333 = vpop.f32.mrb[0].mxu0
        %v1334 = vadd.f32 0.0, %v1333
        %v1335 = vpop.f32.mrb[0].mxu0
        %v1336 = vpop.f32.mrb[0].mxu0
        %v1337 = vadd.f32 0.0, %v1336
        %v1338 = vpop.f32.mrb[0].mxu0
        %1339 = vmatprep.mubr.bf16.mxu0 0
        %1340 = vmatmul.mubr.bf16.gmra.mrb[0].mxu0 %v440
        %v1341 = vpop.f32.mrb[0].mxu0
        %v1342 = vadd.f32 0.0, %v1341
        %v1343 = vpop.f32.mrb[0].mxu0
        %v1344 = vpop.f32.mrb[0].mxu0
        %v1345 = vadd.f32 0.0, %v1344
        %v1346 = vpop.f32.mrb[0].mxu0
        %1347 = vmatprep.mubr.bf16.mxu0 0
        %1348 = vmatmul.mubr.bf16.gmra.mrb[0].mxu0 %v443
        %v1349 = vpop.f32.mrb[0].mxu0
        %v1350 = vadd.f32 0.0, %v1349
        %v1351 = vpop.f32.mrb[0].mxu0
        %v1352 = vpop.f32.mrb[0].mxu0
        %v1353 = vadd.f32 0.0, %v1352
        %v1354 = vpop.f32.mrb[0].mxu0
        %1355 = vmatprep.mubr.bf16.mxu0 0
        %1356 = vmatmul.mubr.bf16.gmra.mrb[0].mxu0 %v446
        %v1357 = vpop.f32.mrb[0].mxu0
        %v1358 = vadd.f32 0.0, %v1357
        %v1359 = vpop.f32.mrb[0].mxu0
        %v1360 = vpop.f32.mrb[0].mxu0
        %v1361 = vadd.f32 0.0, %v1360
        %v1362 = vpop.f32.mrb[0].mxu0
        %1363 = vmatprep.mubr.bf16.mxu0 0
        %1364 = vmatmul.mubr.bf16.gmra.mrb[0].mxu0 %v449
        %v1365 = vpop.f32.mrb[0].mxu0
        %v1366 = vadd.f32 0.0, %v1365
        %v1367 = vpop.f32.mrb[0].mxu0
        %v1368 = vpop.f32.mrb[0].mxu0
        %v1369 = vadd.f32 0.0, %v1368
        %v1370 = vpop.f32.mrb[0].mxu0
        %1371 = vmatprep.mubr.bf16.mxu0 0
        %1372 = vmatmul.mubr.bf16.gmra.mrb[0].mxu0 %v452
        %v1373 = vpop.f32.mrb[0].mxu0
        %v1374 = vadd.f32 0.0, %v1373
        %v1375 = vpop.f32.mrb[0].mxu0
        %v1376 = vpop.f32.mrb[0].mxu0
        %v1377 = vadd.f32 0.0, %v1376
        %v1378 = vpop.f32.mrb[0].mxu0
        %1379 = vmatprep.mubr.bf16.mxu0 0
        %1380 = vmatmul.mubr.bf16.gmra.mrb[0].mxu0 %v455
        %v1381 = vpop.f32.mrb[0].mxu0
        %v1382 = vadd.f32 0.0, %v1381
        %v1383 = vpop.f32.mrb[0].mxu0
        %v1384 = vpop.f32.mrb[0].mxu0
        %v1385 = vadd.f32 0.0, %v1384
        %v1386 = vpop.f32.mrb[0].mxu0
        %1387 = vmatprep.mubr.bf16.mxu0 0
        %1388 = vmatmul.mubr.bf16.gmra.mrb[0].mxu0 %v458
        %v1389 = vpop.f32.mrb[0].mxu0
        %v1390 = vadd.f32 0.0, %v1389
        %v1391 = vpop.f32.mrb[0].mxu0
        %v1392 = vpop.f32.mrb[0].mxu0
        %v1393 = vadd.f32 0.0, %v1392
        %v1394 = vpop.f32.mrb[0].mxu0
        %1395 = vmatprep.mubr.bf16.mxu0 0
        %1396 = vmatmul.mubr.bf16.gmra.mrb[0].mxu0 %v461
        %v1397 = vpop.f32.mrb[0].mxu0
        %v1398 = vadd.f32 0.0, %v1397
        %v1399 = vpop.f32.mrb[0].mxu0
        %v1400 = vpop.f32.mrb[0].mxu0
        %v1401 = vadd.f32 0.0, %v1400
        %v1402 = vpop.f32.mrb[0].mxu0
        %1403 = vmatprep.mubr.bf16.mxu0 0
        %1404 = vmatmul.mubr.bf16.gmra.mrb[0].mxu0 %v464
        %v1405 = vpop.f32.mrb[0].mxu0
        %v1406 = vadd.f32 0.0, %v1405
        %v1407 = vpop.f32.mrb[0].mxu0
        %v1408 = vpop.f32.mrb[0].mxu0
        %v1409 = vadd.f32 0.0, %v1408
        %v1410 = vpop.f32.mrb[0].mxu0
        %1411 = vmatprep.mubr.bf16.mxu0 0
        %1412 = vmatmul.mubr.bf16.gmra.mrb[0].mxu0 %v467
        %v1413 = vpop.f32.mrb[0].mxu0
        %v1414 = vadd.f32 0.0, %v1413
        %v1415 = vpop.f32.mrb[0].mxu0
        %v1416 = vpop.f32.mrb[0].mxu0
        %v1417 = vadd.f32 0.0, %v1416
        %v1418 = vpop.f32.mrb[0].mxu0
        %1419 = vmatprep.mubr.bf16.mxu0 0
        %1420 = vmatmul.mubr.bf16.gmra.mrb[0].mxu0 %v470
        %v1421 = vpop.f32.mrb[0].mxu0
        %v1422 = vadd.f32 0.0, %v1421
        %v1423 = vpop.f32.mrb[0].mxu0
        %v1424 = vpop.f32.mrb[0].mxu0
        %v1425 = vadd.f32 0.0, %v1424
        %v1426 = vpop.f32.mrb[0].mxu0
        %1427 = vmatprep.mubr.bf16.mxu0 0
        %1428 = vmatmul.mubr.bf16.gmra.mrb[0].mxu0 %v473
        %v1429 = vpop.f32.mrb[0].mxu0
        %v1430 = vadd.f32 0.0, %v1429
        %v1431 = vpop.f32.mrb[0].mxu0
        %v1432 = vpop.f32.mrb[0].mxu0
        %v1433 = vadd.f32 0.0, %v1432
        %v1434 = vpop.f32.mrb[0].mxu0
        %1435 = vmatprep.mubr.bf16.mxu0 0
        %1436 = vmatmul.mubr.bf16.gmra.mrb[0].mxu0 %v476
        %v1437 = vpop.f32.mrb[0].mxu0
        %v1438 = vadd.f32 0.0, %v1437
        %v1439 = vpop.f32.mrb[0].mxu0
        %v1440 = vpop.f32.mrb[0].mxu0
        %v1441 = vadd.f32 0.0, %v1440
        %v1442 = vpop.f32.mrb[0].mxu0
        %1443 = vmatprep.mubr.bf16.mxu0 0
        %1444 = vmatmul.mubr.bf16.gmra.mrb[0].mxu0 %v479
        %v1445 = vpop.f32.mrb[0].mxu0
        %v1446 = vadd.f32 0.0, %v1445
        %v1447 = vpop.f32.mrb[0].mxu0
        %v1448 = vpop.f32.mrb[0].mxu0
        %v1449 = vadd.f32 0.0, %v1448
        %v1450 = vpop.f32.mrb[0].mxu0
        %1451 = vmatprep.mubr.bf16.mxu0 0
        %1452 = vmatmul.mubr.bf16.gmra.mrb[0].mxu0 %v482
        %v1453 = vpop.f32.mrb[0].mxu0
        %v1454 = vadd.f32 0.0, %v1453
        %v1455 = vpop.f32.mrb[0].mxu0
        %v1456 = vpop.f32.mrb[0].mxu0
        %v1457 = vadd.f32 0.0, %v1456
        %v1458 = vpop.f32.mrb[0].mxu0
        %1459 = vmatprep.mubr.bf16.mxu0 0
        %1460 = vmatmul.mubr.bf16.gmra.mrb[0].mxu0 %v485
        %v1461 = vpop.f32.mrb[0].mxu0
        %v1462 = vadd.f32 0.0, %v1461
        %v1463 = vpop.f32.mrb[0].mxu0
        %v1464 = vpop.f32.mrb[0].mxu0
        %v1465 = vadd.f32 0.0, %v1464
        %v1466 = vpop.f32.mrb[0].mxu0
        %1467 = vmatprep.mubr.bf16.mxu0 0
        %1468 = vmatmul.mubr.bf16.gmra.mrb[0].mxu0 %v488
        %v1469 = vpop.f32.mrb[0].mxu0
        %v1470 = vadd.f32 0.0, %v1469
        %v1471 = vpop.f32.mrb[0].mxu0
        %v1472 = vpop.f32.mrb[0].mxu0
        %v1473 = vadd.f32 0.0, %v1472
        %v1474 = vpop.f32.mrb[0].mxu0
        %1475 = vmatprep.mubr.bf16.mxu0 0
        %1476 = vmatmul.mubr.bf16.gmra.mrb[0].mxu0 %v491
        %v1477 = vpop.f32.mrb[0].mxu0
        %v1478 = vadd.f32 0.0, %v1477
        %v1479 = vpop.f32.mrb[0].mxu0
        %v1480 = vpop.f32.mrb[0].mxu0
        %v1481 = vadd.f32 0.0, %v1480
        %v1482 = vpop.f32.mrb[0].mxu0
        %1483 = vmatprep.mubr.bf16.mxu0 0
        %1484 = vmatmul.mubr.bf16.gmra.mrb[0].mxu0 %v494
        %v1485 = vpop.f32.mrb[0].mxu0
        %v1486 = vadd.f32 0.0, %v1485
        %v1487 = vpop.f32.mrb[0].mxu0
        %v1488 = vpop.f32.mrb[0].mxu0
        %v1489 = vadd.f32 0.0, %v1488
        %v1490 = vpop.f32.mrb[0].mxu0
        %1491 = vmatprep.mubr.bf16.mxu0 0
        %1492 = vmatmul.mubr.bf16.gmra.mrb[0].mxu0 %v497
        %v1493 = vpop.f32.mrb[0].mxu0
        %v1494 = vadd.f32 0.0, %v1493
        %v1495 = vpop.f32.mrb[0].mxu0
        %v1496 = vpop.f32.mrb[0].mxu0
        %v1497 = vadd.f32 0.0, %v1496
        %v1498 = vpop.f32.mrb[0].mxu0
        %1499 = vmatprep.mubr.bf16.mxu0 0
        %1500 = vmatmul.mubr.bf16.gmra.mrb[0].mxu0 %v500
        %v1501 = vpop.f32.mrb[0].mxu0
        %v1502 = vadd.f32 0.0, %v1501
        %v1503 = vpop.f32.mrb[0].mxu0
        %v1504 = vpop.f32.mrb[0].mxu0
        %v1505 = vadd.f32 0.0, %v1504
        %v1506 = vpop.f32.mrb[0].mxu0
        %1507 = vmatprep.mubr.bf16.mxu0 0
        %1508 = vmatmul.mubr.bf16.gmra.mrb[0].mxu0 %v503
        %v1509 = vpop.f32.mrb[0].mxu0
        %v1510 = vadd.f32 0.0, %v1509
        %v1511 = vpop.f32.mrb[0].mxu0
        %v1512 = vpop.f32.mrb[0].mxu0
        %v1513 = vadd.f32 0.0, %v1512
        %v1514 = vpop.f32.mrb[0].mxu0
        %1515 = vdwg.mxu0
        %v1516 = vld [vmem:[%s5] ss:$8 sm:$0x3]
        %v1518 = vlaneseq
        %v1519 = vshrl.u32 %v1518, 7
        %v1520 = vsub.s32 0, %v1519
        %v1521 = vrot.slane %v1516, %v1520
        %v1522 = vlaneseq
        %v1523 = vshrl.u32 %v1522, 7
        %v1524 = vsub.s32 1, %v1523
        %v1525 = vrot.slane %v1516, %v1524
        %v1528 = vadd.f32 %v556, %v1521
        %v1529 = vadd.f32 %v558, %v1525
        %v1530 = vadd.f32 %v560, %v1521
        %v1531 = vadd.f32 %v562, %v1525
        %v1532 = vadd.f32 %v566, %v1521
        %v1533 = vadd.f32 %v568, %v1525
        %v1534 = vadd.f32 %v570, %v1521
        %v1535 = vadd.f32 %v572, %v1525
        %v1536 = vadd.f32 %v576, %v1521
        %v1537 = vadd.f32 %v578, %v1525
        %v1538 = vadd.f32 %v580, %v1521
        %v1539 = vadd.f32 %v582, %v1525
        %v1540 = vadd.f32 %v586, %v1521
        %v1541 = vadd.f32 %v588, %v1525
        %v1542 = vadd.f32 %v590, %v1521
        %v1543 = vadd.f32 %v592, %v1525
        %v1544 = vadd.f32 %v596, %v1521
        %v1545 = vadd.f32 %v598, %v1525
        %v1546 = vadd.f32 %v600, %v1521
        %v1547 = vadd.f32 %v602, %v1525
        %v1548 = vadd.f32 %v606, %v1521
        %v1549 = vadd.f32 %v608, %v1525
        %v1550 = vadd.f32 %v610, %v1521
        %v1551 = vadd.f32 %v612, %v1525
        %v1552 = vadd.f32 %v616, %v1521
        %v1553 = vadd.f32 %v618, %v1525
        %v1554 = vadd.f32 %v620, %v1521
        %v1555 = vadd.f32 %v622, %v1525
        %v1556 = vadd.f32 %v626, %v1521
        %v1557 = vadd.f32 %v628, %v1525
        %v1558 = vadd.f32 %v630, %v1521
        %v1559 = vadd.f32 %v632, %v1525
        %v1560 = vadd.f32 %v636, %v1521
        %v1561 = vadd.f32 %v638, %v1525
        %v1562 = vadd.f32 %v640, %v1521
        %v1563 = vadd.f32 %v642, %v1525
        %v1564 = vadd.f32 %v646, %v1521
        %v1565 = vadd.f32 %v648, %v1525
        %v1566 = vadd.f32 %v650, %v1521
        %v1567 = vadd.f32 %v652, %v1525
        %v1568 = vadd.f32 %v656, %v1521
        %v1569 = vadd.f32 %v658, %v1525
        %v1570 = vadd.f32 %v660, %v1521
        %v1571 = vadd.f32 %v662, %v1525
        %v1572 = vadd.f32 %v666, %v1521
        %v1573 = vadd.f32 %v668, %v1525
        %v1574 = vadd.f32 %v670, %v1521
        %v1575 = vadd.f32 %v672, %v1525
        %v1576 = vadd.f32 %v676, %v1521
        %v1577 = vadd.f32 %v678, %v1525
        %v1578 = vadd.f32 %v680, %v1521
        %v1579 = vadd.f32 %v682, %v1525
        %v1580 = vadd.f32 %v686, %v1521
        %v1581 = vadd.f32 %v688, %v1525
        %v1582 = vadd.f32 %v690, %v1521
        %v1583 = vadd.f32 %v692, %v1525
        %v1584 = vadd.f32 %v696, %v1521
        %v1585 = vadd.f32 %v698, %v1525
        %v1586 = vadd.f32 %v700, %v1521
        %v1587 = vadd.f32 %v702, %v1525
        %v1588 = vadd.f32 %v706, %v1521
        %v1589 = vadd.f32 %v708, %v1525
        %v1590 = vadd.f32 %v710, %v1521
        %v1591 = vadd.f32 %v712, %v1525
        %v1592 = vadd.f32 %v716, %v1521
        %v1593 = vadd.f32 %v718, %v1525
        %v1594 = vadd.f32 %v720, %v1521
        %v1595 = vadd.f32 %v722, %v1525
        %v1596 = vadd.f32 %v726, %v1521
        %v1597 = vadd.f32 %v728, %v1525
        %v1598 = vadd.f32 %v730, %v1521
        %v1599 = vadd.f32 %v732, %v1525
        %v1600 = vadd.f32 %v736, %v1521
        %v1601 = vadd.f32 %v738, %v1525
        %v1602 = vadd.f32 %v740, %v1521
        %v1603 = vadd.f32 %v742, %v1525
        %v1604 = vadd.f32 %v746, %v1521
        %v1605 = vadd.f32 %v748, %v1525
        %v1606 = vadd.f32 %v750, %v1521
        %v1607 = vadd.f32 %v752, %v1525
        %v1608 = vadd.f32 %v756, %v1521
        %v1609 = vadd.f32 %v758, %v1525
        %v1610 = vadd.f32 %v760, %v1521
        %v1611 = vadd.f32 %v762, %v1525
        %v1612 = vadd.f32 %v766, %v1521
        %v1613 = vadd.f32 %v768, %v1525
        %v1614 = vadd.f32 %v770, %v1521
        %v1615 = vadd.f32 %v772, %v1525
        %v1616 = vadd.f32 %v776, %v1521
        %v1617 = vadd.f32 %v778, %v1525
        %v1618 = vadd.f32 %v780, %v1521
        %v1619 = vadd.f32 %v782, %v1525
        %v1620 = vadd.f32 %v786, %v1521
        %v1621 = vadd.f32 %v788, %v1525
        %v1622 = vadd.f32 %v790, %v1521
        %v1623 = vadd.f32 %v792, %v1525
        %v1624 = vadd.f32 %v796, %v1521
        %v1625 = vadd.f32 %v798, %v1525
        %v1626 = vadd.f32 %v800, %v1521
        %v1627 = vadd.f32 %v802, %v1525
        %v1628 = vadd.f32 %v806, %v1521
        %v1629 = vadd.f32 %v808, %v1525
        %v1630 = vadd.f32 %v810, %v1521
        %v1631 = vadd.f32 %v812, %v1525
        %v1632 = vadd.f32 %v816, %v1521
        %v1633 = vadd.f32 %v818, %v1525
        %v1634 = vadd.f32 %v820, %v1521
        %v1635 = vadd.f32 %v822, %v1525
        %v1636 = vadd.f32 %v826, %v1521
        %v1637 = vadd.f32 %v828, %v1525
        %v1638 = vadd.f32 %v830, %v1521
        %v1639 = vadd.f32 %v832, %v1525
        %v1640 = vadd.f32 %v836, %v1521
        %v1641 = vadd.f32 %v838, %v1525
        %v1642 = vadd.f32 %v840, %v1521
        %v1643 = vadd.f32 %v842, %v1525
        %v1644 = vadd.f32 %v846, %v1521
        %v1645 = vadd.f32 %v848, %v1525
        %v1646 = vadd.f32 %v850, %v1521
        %v1647 = vadd.f32 %v852, %v1525
        %v1648 = vadd.f32 %v856, %v1521
        %v1649 = vadd.f32 %v858, %v1525
        %v1650 = vadd.f32 %v860, %v1521
        %v1651 = vadd.f32 %v862, %v1525
        %v1652 = vadd.f32 %v866, %v1521
        %v1653 = vadd.f32 %v868, %v1525
        %v1654 = vadd.f32 %v870, %v1521
        %v1655 = vadd.f32 %v872, %v1525
        %v1656 = vmax.f32 %v1528, 0.0
        %v1657 = vmax.f32 %v1529, 0.0
        %v1658 = vmax.f32 %v1530, 0.0
        %v1659 = vmax.f32 %v1531, 0.0
        %v1660 = vmax.f32 %v1532, 0.0
        %v1661 = vmax.f32 %v1533, 0.0
        %v1662 = vmax.f32 %v1534, 0.0
        %v1663 = vmax.f32 %v1535, 0.0
        %v1664 = vmax.f32 %v1536, 0.0
        %v1665 = vmax.f32 %v1537, 0.0
        %v1666 = vmax.f32 %v1538, 0.0
        %v1667 = vmax.f32 %v1539, 0.0
        %v1668 = vmax.f32 %v1540, 0.0
        %v1669 = vmax.f32 %v1541, 0.0
        %v1670 = vmax.f32 %v1542, 0.0
        %v1671 = vmax.f32 %v1543, 0.0
        %v1672 = vmax.f32 %v1544, 0.0
        %v1673 = vmax.f32 %v1545, 0.0
        %v1674 = vmax.f32 %v1546, 0.0
        %v1675 = vmax.f32 %v1547, 0.0
        %v1676 = vmax.f32 %v1548, 0.0
        %v1677 = vmax.f32 %v1549, 0.0
        %v1678 = vmax.f32 %v1550, 0.0
        %v1679 = vmax.f32 %v1551, 0.0
        %v1680 = vmax.f32 %v1552, 0.0
        %v1681 = vmax.f32 %v1553, 0.0
        %v1682 = vmax.f32 %v1554, 0.0
        %v1683 = vmax.f32 %v1555, 0.0
        %v1684 = vmax.f32 %v1556, 0.0
        %v1685 = vmax.f32 %v1557, 0.0
        %v1686 = vmax.f32 %v1558, 0.0
        %v1687 = vmax.f32 %v1559, 0.0
        %v1688 = vmax.f32 %v1560, 0.0
        %v1689 = vmax.f32 %v1561, 0.0
        %v1690 = vmax.f32 %v1562, 0.0
        %v1691 = vmax.f32 %v1563, 0.0
        %v1692 = vmax.f32 %v1564, 0.0
        %v1693 = vmax.f32 %v1565, 0.0
        %v1694 = vmax.f32 %v1566, 0.0
        %v1695 = vmax.f32 %v1567, 0.0
        %v1696 = vmax.f32 %v1568, 0.0
        %v1697 = vmax.f32 %v1569, 0.0
        %v1698 = vmax.f32 %v1570, 0.0
        %v1699 = vmax.f32 %v1571, 0.0
        %v1700 = vmax.f32 %v1572, 0.0
        %v1701 = vmax.f32 %v1573, 0.0
        %v1702 = vmax.f32 %v1574, 0.0
        %v1703 = vmax.f32 %v1575, 0.0
        %v1704 = vmax.f32 %v1576, 0.0
        %v1705 = vmax.f32 %v1577, 0.0
        %v1706 = vmax.f32 %v1578, 0.0
        %v1707 = vmax.f32 %v1579, 0.0
        %v1708 = vmax.f32 %v1580, 0.0
        %v1709 = vmax.f32 %v1581, 0.0
        %v1710 = vmax.f32 %v1582, 0.0
        %v1711 = vmax.f32 %v1583, 0.0
        %v1712 = vmax.f32 %v1584, 0.0
        %v1713 = vmax.f32 %v1585, 0.0
        %v1714 = vmax.f32 %v1586, 0.0
        %v1715 = vmax.f32 %v1587, 0.0
        %v1716 = vmax.f32 %v1588, 0.0
        %v1717 = vmax.f32 %v1589, 0.0
        %v1718 = vmax.f32 %v1590, 0.0
        %v1719 = vmax.f32 %v1591, 0.0
        %v1720 = vmax.f32 %v1592, 0.0
        %v1721 = vmax.f32 %v1593, 0.0
        %v1722 = vmax.f32 %v1594, 0.0
        %v1723 = vmax.f32 %v1595, 0.0
        %v1724 = vmax.f32 %v1596, 0.0
        %v1725 = vmax.f32 %v1597, 0.0
        %v1726 = vmax.f32 %v1598, 0.0
        %v1727 = vmax.f32 %v1599, 0.0
        %v1728 = vmax.f32 %v1600, 0.0
        %v1729 = vmax.f32 %v1601, 0.0
        %v1730 = vmax.f32 %v1602, 0.0
        %v1731 = vmax.f32 %v1603, 0.0
        %v1732 = vmax.f32 %v1604, 0.0
        %v1733 = vmax.f32 %v1605, 0.0
        %v1734 = vmax.f32 %v1606, 0.0
        %v1735 = vmax.f32 %v1607, 0.0
        %v1736 = vmax.f32 %v1608, 0.0
        %v1737 = vmax.f32 %v1609, 0.0
        %v1738 = vmax.f32 %v1610, 0.0
        %v1739 = vmax.f32 %v1611, 0.0
        %v1740 = vmax.f32 %v1612, 0.0
        %v1741 = vmax.f32 %v1613, 0.0
        %v1742 = vmax.f32 %v1614, 0.0
        %v1743 = vmax.f32 %v1615, 0.0
        %v1744 = vmax.f32 %v1616, 0.0
        %v1745 = vmax.f32 %v1617, 0.0
        %v1746 = vmax.f32 %v1618, 0.0
        %v1747 = vmax.f32 %v1619, 0.0
        %v1748 = vmax.f32 %v1620, 0.0
        %v1749 = vmax.f32 %v1621, 0.0
        %v1750 = vmax.f32 %v1622, 0.0
        %v1751 = vmax.f32 %v1623, 0.0
        %v1752 = vmax.f32 %v1624, 0.0
        %v1753 = vmax.f32 %v1625, 0.0
        %v1754 = vmax.f32 %v1626, 0.0
        %v1755 = vmax.f32 %v1627, 0.0
        %v1756 = vmax.f32 %v1628, 0.0
        %v1757 = vmax.f32 %v1629, 0.0
        %v1758 = vmax.f32 %v1630, 0.0
        %v1759 = vmax.f32 %v1631, 0.0
        %v1760 = vmax.f32 %v1632, 0.0
        %v1761 = vmax.f32 %v1633, 0.0
        %v1762 = vmax.f32 %v1634, 0.0
        %v1763 = vmax.f32 %v1635, 0.0
        %v1764 = vmax.f32 %v1636, 0.0
        %v1765 = vmax.f32 %v1637, 0.0
        %v1766 = vmax.f32 %v1638, 0.0
        %v1767 = vmax.f32 %v1639, 0.0
        %v1768 = vmax.f32 %v1640, 0.0
        %v1769 = vmax.f32 %v1641, 0.0
        %v1770 = vmax.f32 %v1642, 0.0
        %v1771 = vmax.f32 %v1643, 0.0
        %v1772 = vmax.f32 %v1644, 0.0
        %v1773 = vmax.f32 %v1645, 0.0
        %v1774 = vmax.f32 %v1646, 0.0
        %v1775 = vmax.f32 %v1647, 0.0
        %v1776 = vmax.f32 %v1648, 0.0
        %v1777 = vmax.f32 %v1649, 0.0
        %v1778 = vmax.f32 %v1650, 0.0
        %v1779 = vmax.f32 %v1651, 0.0
        %v1780 = vmax.f32 %v1652, 0.0
        %v1781 = vmax.f32 %v1653, 0.0
        %v1782 = vmax.f32 %v1654, 0.0
        %v1783 = vmax.f32 %v1655, 0.0
        %v1784 = vpack.c.bf16 %v1658, %v1656
        %v1785 = vpack.c.bf16 %v1659, %v1657
        %v1786 = vpack.c.bf16 %v1662, %v1660
        %v1787 = vpack.c.bf16 %v1663, %v1661
        %v1788 = vpack.c.bf16 %v1666, %v1664
        %v1789 = vpack.c.bf16 %v1667, %v1665
        %v1790 = vpack.c.bf16 %v1670, %v1668
        %v1791 = vpack.c.bf16 %v1671, %v1669
        %v1792 = vpack.c.bf16 %v1674, %v1672
        %v1793 = vpack.c.bf16 %v1675, %v1673
        %v1794 = vpack.c.bf16 %v1678, %v1676
        %v1795 = vpack.c.bf16 %v1679, %v1677
        %v1796 = vpack.c.bf16 %v1682, %v1680
        %v1797 = vpack.c.bf16 %v1683, %v1681
        %v1798 = vpack.c.bf16 %v1686, %v1684
        %v1799 = vpack.c.bf16 %v1687, %v1685
        %v1800 = vpack.c.bf16 %v1690, %v1688
        %v1801 = vpack.c.bf16 %v1691, %v1689
        %v1802 = vpack.c.bf16 %v1694, %v1692
        %v1803 = vpack.c.bf16 %v1695, %v1693
        %v1804 = vpack.c.bf16 %v1698, %v1696
        %v1805 = vpack.c.bf16 %v1699, %v1697
        %v1806 = vpack.c.bf16 %v1702, %v1700
        %v1807 = vpack.c.bf16 %v1703, %v1701
        %v1808 = vpack.c.bf16 %v1706, %v1704
        %v1809 = vpack.c.bf16 %v1707, %v1705
        %v1810 = vpack.c.bf16 %v1710, %v1708
        %v1811 = vpack.c.bf16 %v1711, %v1709
        %v1812 = vpack.c.bf16 %v1714, %v1712
        %v1813 = vpack.c.bf16 %v1715, %v1713
        %v1814 = vpack.c.bf16 %v1718, %v1716
        %v1815 = vpack.c.bf16 %v1719, %v1717
        %v1816 = vpack.c.bf16 %v1722, %v1720
        %v1817 = vpack.c.bf16 %v1723, %v1721
        %v1818 = vpack.c.bf16 %v1726, %v1724
        %v1819 = vpack.c.bf16 %v1727, %v1725
        %v1820 = vpack.c.bf16 %v1730, %v1728
        %v1821 = vpack.c.bf16 %v1731, %v1729
        %v1822 = vpack.c.bf16 %v1734, %v1732
        %v1823 = vpack.c.bf16 %v1735, %v1733
        %v1824 = vpack.c.bf16 %v1738, %v1736
        %v1825 = vpack.c.bf16 %v1739, %v1737
        %v1826 = vpack.c.bf16 %v1742, %v1740
        %v1827 = vpack.c.bf16 %v1743, %v1741
        %v1828 = vpack.c.bf16 %v1746, %v1744
        %v1829 = vpack.c.bf16 %v1747, %v1745
        %v1830 = vpack.c.bf16 %v1750, %v1748
        %v1831 = vpack.c.bf16 %v1751, %v1749
        %v1832 = vpack.c.bf16 %v1754, %v1752
        %v1833 = vpack.c.bf16 %v1755, %v1753
        %v1834 = vpack.c.bf16 %v1758, %v1756
        %v1835 = vpack.c.bf16 %v1759, %v1757
        %v1836 = vpack.c.bf16 %v1762, %v1760
        %v1837 = vpack.c.bf16 %v1763, %v1761
        %v1838 = vpack.c.bf16 %v1766, %v1764
        %v1839 = vpack.c.bf16 %v1767, %v1765
        %v1840 = vpack.c.bf16 %v1770, %v1768
        %v1841 = vpack.c.bf16 %v1771, %v1769
        %v1842 = vpack.c.bf16 %v1774, %v1772
        %v1843 = vpack.c.bf16 %v1775, %v1773
        %v1844 = vpack.c.bf16 %v1778, %v1776
        %v1845 = vpack.c.bf16 %v1779, %v1777
        %v1846 = vpack.c.bf16 %v1782, %v1780
        %v1847 = vpack.c.bf16 %v1783, %v1781
        %v1848 = vld [vmem:[#allocation2] sm:$0xff]
        %v1849 = vld [vmem:[#allocation2 + $0x8] sm:$0xff]
        %v1850 = vld [vmem:[#allocation2 + $0x10] sm:$0xff]
        %v1851 = vld [vmem:[#allocation2 + $0x18] sm:$0xff]
        %v1852 = vld [vmem:[#allocation2 + $0x20] sm:$0xff]
        %v1853 = vld [vmem:[#allocation2 + $0x28] sm:$0xff]
        %v1854 = vld [vmem:[#allocation2 + $0x30] sm:$0xff]
        %v1855 = vld [vmem:[#allocation2 + $0x38] sm:$0xff]
        %v1856 = vld [vmem:[#allocation2 + $0x40] sm:$0xff]
        %v1857 = vld [vmem:[#allocation2 + $0x48] sm:$0xff]
        %v1858 = vld [vmem:[#allocation2 + $0x50] sm:$0xff]
        %v1859 = vld [vmem:[#allocation2 + $0x58] sm:$0xff]
        %v1860 = vld [vmem:[#allocation2 + $0x60] sm:$0xff]
        %v1861 = vld [vmem:[#allocation2 + $0x68] sm:$0xff]
        %v1862 = vld [vmem:[#allocation2 + $0x70] sm:$0xff]
        %v1863 = vld [vmem:[#allocation2 + $0x78] sm:$0xff]
        %v1864 = vld [vmem:[#allocation2 + $0x80] sm:$0xff]
        %v1865 = vld [vmem:[#allocation2 + $0x88] sm:$0xff]
        %v1866 = vld [vmem:[#allocation2 + $0x90] sm:$0xff]
        %v1867 = vld [vmem:[#allocation2 + $0x98] sm:$0xff]
        %v1868 = vld [vmem:[#allocation2 + $0xa0] sm:$0xff]
        %v1869 = vld [vmem:[#allocation2 + $0xa8] sm:$0xff]
        %v1870 = vld [vmem:[#allocation2 + $0xb0] sm:$0xff]
        %v1871 = vld [vmem:[#allocation2 + $0xb8] sm:$0xff]
        %v1872 = vld [vmem:[#allocation2 + $0xc0] sm:$0xff]
        %v1873 = vld [vmem:[#allocation2 + $0xc8] sm:$0xff]
        %v1874 = vld [vmem:[#allocation2 + $0xd0] sm:$0xff]
        %v1875 = vld [vmem:[#allocation2 + $0xd8] sm:$0xff]
        %v1876 = vld [vmem:[#allocation2 + $0xe0] sm:$0xff]
        %v1877 = vld [vmem:[#allocation2 + $0xe8] sm:$0xff]
        %v1878 = vld [vmem:[#allocation2 + $0xf0] sm:$0xff]
        %v1879 = vld [vmem:[#allocation2 + $0xf8] sm:$0xff]
        %s1880 = scalar_lea.vmem %s5, 1
        %v1881 = vld [vmem:[%s1880] ss:$8 sm:$0x3]
        %v1883 = vlaneseq
        %v1884 = vshrl.u32 %v1883, 7
        %v1885 = vsub.s32 0, %v1884
        %v1886 = vrot.slane %v1881, %v1885
        %v1887 = vlaneseq
        %v1888 = vshrl.u32 %v1887, 7
        %v1889 = vsub.s32 1, %v1888
        %v1890 = vrot.slane %v1881, %v1889
        %v1925 = vunpack.c.l.b16 %v1848
        %v1926 = vunpack.c.h.b16 %v1848
        %v1927 = vunpack.c.l.b16 %v1849
        %v1928 = vunpack.c.h.b16 %v1849
        %v1929 = vunpack.c.l.b16 %v1850
        %v1930 = vunpack.c.h.b16 %v1850
        %v1931 = vunpack.c.l.b16 %v1851
        %v1932 = vunpack.c.h.b16 %v1851
        %v1933 = vunpack.c.l.b16 %v1852
        %v1934 = vunpack.c.h.b16 %v1852
        %v1935 = vunpack.c.l.b16 %v1853
        %v1936 = vunpack.c.h.b16 %v1853
        %v1937 = vunpack.c.l.b16 %v1854
        %v1938 = vunpack.c.h.b16 %v1854
        %v1939 = vunpack.c.l.b16 %v1855
        %v1940 = vunpack.c.h.b16 %v1855
        %v1941 = vunpack.c.l.b16 %v1856
        %v1942 = vunpack.c.h.b16 %v1856
        %v1943 = vunpack.c.l.b16 %v1857
        %v1944 = vunpack.c.h.b16 %v1857
        %v1945 = vunpack.c.l.b16 %v1858
        %v1946 = vunpack.c.h.b16 %v1858
        %v1947 = vunpack.c.l.b16 %v1859
        %v1948 = vunpack.c.h.b16 %v1859
        %v1949 = vunpack.c.l.b16 %v1860
        %v1950 = vunpack.c.h.b16 %v1860
        %v1951 = vunpack.c.l.b16 %v1861
        %v1952 = vunpack.c.h.b16 %v1861
        %v1953 = vunpack.c.l.b16 %v1862
        %v1954 = vunpack.c.h.b16 %v1862
        %v1955 = vunpack.c.l.b16 %v1863
        %v1956 = vunpack.c.h.b16 %v1863
        %v1957 = vunpack.c.l.b16 %v1864
        %v1958 = vunpack.c.h.b16 %v1864
        %v1959 = vunpack.c.l.b16 %v1865
        %v1960 = vunpack.c.h.b16 %v1865
        %v1961 = vunpack.c.l.b16 %v1866
        %v1962 = vunpack.c.h.b16 %v1866
        %v1963 = vunpack.c.l.b16 %v1867
        %v1964 = vunpack.c.h.b16 %v1867
        %v1965 = vunpack.c.l.b16 %v1868
        %v1966 = vunpack.c.h.b16 %v1868
        %v1967 = vunpack.c.l.b16 %v1869
        %v1968 = vunpack.c.h.b16 %v1869
        %v1969 = vunpack.c.l.b16 %v1870
        %v1970 = vunpack.c.h.b16 %v1870
        %v1971 = vunpack.c.l.b16 %v1871
        %v1972 = vunpack.c.h.b16 %v1871
        %v1973 = vunpack.c.l.b16 %v1872
        %v1974 = vunpack.c.h.b16 %v1872
        %v1975 = vunpack.c.l.b16 %v1873
        %v1976 = vunpack.c.h.b16 %v1873
        %v1977 = vunpack.c.l.b16 %v1874
        %v1978 = vunpack.c.h.b16 %v1874
        %v1979 = vunpack.c.l.b16 %v1875
        %v1980 = vunpack.c.h.b16 %v1875
        %v1981 = vunpack.c.l.b16 %v1876
        %v1982 = vunpack.c.h.b16 %v1876
        %v1983 = vunpack.c.l.b16 %v1877
        %v1984 = vunpack.c.h.b16 %v1877
        %v1985 = vunpack.c.l.b16 %v1878
        %v1986 = vunpack.c.h.b16 %v1878
        %v1987 = vunpack.c.l.b16 %v1879
        %v1988 = vunpack.c.h.b16 %v1879
        %v1989 = vpack.c.b16 %v1927, %v1925
        %v1990 = vpack.c.b16 %v1928, %v1926
        %v1991 = vpack.c.b16 %v1931, %v1929
        %v1992 = vpack.c.b16 %v1932, %v1930
        %v1993 = vpack.c.b16 %v1935, %v1933
        %v1994 = vpack.c.b16 %v1936, %v1934
        %v1995 = vpack.c.b16 %v1939, %v1937
        %v1996 = vpack.c.b16 %v1940, %v1938
        %v1997 = vpack.c.b16 %v1943, %v1941
        %v1998 = vpack.c.b16 %v1944, %v1942
        %v1999 = vpack.c.b16 %v1947, %v1945
        %v2000 = vpack.c.b16 %v1948, %v1946
        %v2001 = vpack.c.b16 %v1951, %v1949
        %v2002 = vpack.c.b16 %v1952, %v1950
        %v2003 = vpack.c.b16 %v1955, %v1953
        %v2004 = vpack.c.b16 %v1956, %v1954
        %v2005 = vpack.c.b16 %v1959, %v1957
        %v2006 = vpack.c.b16 %v1960, %v1958
        %v2007 = vpack.c.b16 %v1963, %v1961
        %v2008 = vpack.c.b16 %v1964, %v1962
        %v2009 = vpack.c.b16 %v1967, %v1965
        %v2010 = vpack.c.b16 %v1968, %v1966
        %v2011 = vpack.c.b16 %v1971, %v1969
        %v2012 = vpack.c.b16 %v1972, %v1970
        %v2013 = vpack.c.b16 %v1975, %v1973
        %v2014 = vpack.c.b16 %v1976, %v1974
        %v2015 = vpack.c.b16 %v1979, %v1977
        %v2016 = vpack.c.b16 %v1980, %v1978
        %v2017 = vpack.c.b16 %v1983, %v1981
        %v2018 = vpack.c.b16 %v1984, %v1982
        %v2019 = vpack.c.b16 %v1987, %v1985
        %v2020 = vpack.c.b16 %v1988, %v1986
        %2053 = vmatprep.subr.bf16.mxu0 %v1990
        %2054 = vmatpush1.bf16.msra.mxu0 %v1989
        %2055 = vmatprep.subr.bf16.mxu0 %v1992
        %2056 = vmatpush1.bf16.msra.mxu0 %v1991
        %2057 = vmatprep.subr.bf16.mxu0 %v1994
        %2058 = vmatpush1.bf16.msra.mxu0 %v1993
        %2059 = vmatprep.subr.bf16.mxu0 %v1996
        %2060 = vmatpush1.bf16.msra.mxu0 %v1995
        %2061 = vmatprep.subr.bf16.mxu0 %v1998
        %2062 = vmatpush1.bf16.msra.mxu0 %v1997
        %2063 = vmatprep.subr.bf16.mxu0 %v2000
        %2064 = vmatpush1.bf16.msra.mxu0 %v1999
        %2065 = vmatprep.subr.bf16.mxu0 %v2002
        %2066 = vmatpush1.bf16.msra.mxu0 %v2001
        %2067 = vmatprep.subr.bf16.mxu0 %v2004
        %2068 = vmatpush1.bf16.msra.mxu0 %v2003
        %2069 = vmatprep.subr.bf16.mxu0 %v2006
        %2070 = vmatpush1.bf16.msra.mxu0 %v2005
        %2071 = vmatprep.subr.bf16.mxu0 %v2008
        %2072 = vmatpush1.bf16.msra.mxu0 %v2007
        %2073 = vmatprep.subr.bf16.mxu0 %v2010
        %2074 = vmatpush1.bf16.msra.mxu0 %v2009
        %2075 = vmatprep.subr.bf16.mxu0 %v2012
        %2076 = vmatpush1.bf16.msra.mxu0 %v2011
        %2077 = vmatprep.subr.bf16.mxu0 %v2014
        %2078 = vmatpush1.bf16.msra.mxu0 %v2013
        %2079 = vmatprep.subr.bf16.mxu0 %v2016
        %2080 = vmatpush1.bf16.msra.mxu0 %v2015
        %2081 = vmatprep.subr.bf16.mxu0 %v2018
        %2082 = vmatpush1.bf16.msra.mxu0 %v2017
        %2083 = vmatprep.subr.bf16.mxu0 %v2020
        %2084 = vmatpush1.bf16.msra.mxu0 %v2019
        %2085 = vmatprep.mubr.bf16.mxu0 %v1785
        %2086 = vmatmul.mubr.bf16.gmra.mrb[0].mxu0 %v1784
        %v2087 = vpop.f32.mrb[0].mxu0
        %v2088 = vadd.f32 %v1886, %v2087
        %v2089 = vpop.f32.mrb[0].mxu0
        %v2090 = vadd.f32 %v1890, %v2089
        %v2091 = vpop.f32.mrb[0].mxu0
        %v2092 = vadd.f32 %v1886, %v2091
        %v2093 = vpop.f32.mrb[0].mxu0
        %v2094 = vadd.f32 %v1890, %v2093
        %2095 = vmatprep.mubr.bf16.mxu0 %v1787
        %2096 = vmatmul.mubr.bf16.gmra.mrb[0].mxu0 %v1786
        %v2097 = vpop.f32.mrb[0].mxu0
        %v2098 = vadd.f32 %v1886, %v2097
        %v2099 = vpop.f32.mrb[0].mxu0
        %v2100 = vadd.f32 %v1890, %v2099
        %v2101 = vpop.f32.mrb[0].mxu0
        %v2102 = vadd.f32 %v1886, %v2101
        %v2103 = vpop.f32.mrb[0].mxu0
        %v2104 = vadd.f32 %v1890, %v2103
        %2105 = vmatprep.mubr.bf16.mxu0 %v1789
        %2106 = vmatmul.mubr.bf16.gmra.mrb[0].mxu0 %v1788
        %v2107 = vpop.f32.mrb[0].mxu0
        %v2108 = vadd.f32 %v1886, %v2107
        %v2109 = vpop.f32.mrb[0].mxu0
        %v2110 = vadd.f32 %v1890, %v2109
        %v2111 = vpop.f32.mrb[0].mxu0
        %v2112 = vadd.f32 %v1886, %v2111
        %v2113 = vpop.f32.mrb[0].mxu0
        %v2114 = vadd.f32 %v1890, %v2113
        %2115 = vmatprep.mubr.bf16.mxu0 %v1791
        %2116 = vmatmul.mubr.bf16.gmra.mrb[0].mxu0 %v1790
        %v2117 = vpop.f32.mrb[0].mxu0
        %v2118 = vadd.f32 %v1886, %v2117
        %v2119 = vpop.f32.mrb[0].mxu0
        %v2120 = vadd.f32 %v1890, %v2119
        %v2121 = vpop.f32.mrb[0].mxu0
        %v2122 = vadd.f32 %v1886, %v2121
        %v2123 = vpop.f32.mrb[0].mxu0
        %v2124 = vadd.f32 %v1890, %v2123
        %2125 = vmatprep.mubr.bf16.mxu0 %v1793
        %2126 = vmatmul.mubr.bf16.gmra.mrb[0].mxu0 %v1792
        %v2127 = vpop.f32.mrb[0].mxu0
        %v2128 = vadd.f32 %v1886, %v2127
        %v2129 = vpop.f32.mrb[0].mxu0
        %v2130 = vadd.f32 %v1890, %v2129
        %v2131 = vpop.f32.mrb[0].mxu0
        %v2132 = vadd.f32 %v1886, %v2131
        %v2133 = vpop.f32.mrb[0].mxu0
        %v2134 = vadd.f32 %v1890, %v2133
        %2135 = vmatprep.mubr.bf16.mxu0 %v1795
        %2136 = vmatmul.mubr.bf16.gmra.mrb[0].mxu0 %v1794
        %v2137 = vpop.f32.mrb[0].mxu0
        %v2138 = vadd.f32 %v1886, %v2137
        %v2139 = vpop.f32.mrb[0].mxu0
        %v2140 = vadd.f32 %v1890, %v2139
        %v2141 = vpop.f32.mrb[0].mxu0
        %v2142 = vadd.f32 %v1886, %v2141
        %v2143 = vpop.f32.mrb[0].mxu0
        %v2144 = vadd.f32 %v1890, %v2143
        %2145 = vmatprep.mubr.bf16.mxu0 %v1797
        %2146 = vmatmul.mubr.bf16.gmra.mrb[0].mxu0 %v1796
        %v2147 = vpop.f32.mrb[0].mxu0
        %v2148 = vadd.f32 %v1886, %v2147
        %v2149 = vpop.f32.mrb[0].mxu0
        %v2150 = vadd.f32 %v1890, %v2149
        %v2151 = vpop.f32.mrb[0].mxu0
        %v2152 = vadd.f32 %v1886, %v2151
        %v2153 = vpop.f32.mrb[0].mxu0
        %v2154 = vadd.f32 %v1890, %v2153
        %2155 = vmatprep.mubr.bf16.mxu0 %v1799
        %2156 = vmatmul.mubr.bf16.gmra.mrb[0].mxu0 %v1798
        %v2157 = vpop.f32.mrb[0].mxu0
        %v2158 = vadd.f32 %v1886, %v2157
        %v2159 = vpop.f32.mrb[0].mxu0
        %v2160 = vadd.f32 %v1890, %v2159
        %v2161 = vpop.f32.mrb[0].mxu0
        %v2162 = vadd.f32 %v1886, %v2161
        %v2163 = vpop.f32.mrb[0].mxu0
        %v2164 = vadd.f32 %v1890, %v2163
        %2165 = vmatprep.mubr.bf16.mxu0 %v1801
        %2166 = vmatmul.mubr.bf16.gmra.mrb[0].mxu0 %v1800
        %v2167 = vpop.f32.mrb[0].mxu0
        %v2168 = vadd.f32 %v1886, %v2167
        %v2169 = vpop.f32.mrb[0].mxu0
        %v2170 = vadd.f32 %v1890, %v2169
        %v2171 = vpop.f32.mrb[0].mxu0
        %v2172 = vadd.f32 %v1886, %v2171
        %v2173 = vpop.f32.mrb[0].mxu0
        %v2174 = vadd.f32 %v1890, %v2173
        %2175 = vmatprep.mubr.bf16.mxu0 %v1803
        %2176 = vmatmul.mubr.bf16.gmra.mrb[0].mxu0 %v1802
        %v2177 = vpop.f32.mrb[0].mxu0
        %v2178 = vadd.f32 %v1886, %v2177
        %v2179 = vpop.f32.mrb[0].mxu0
        %v2180 = vadd.f32 %v1890, %v2179
        %v2181 = vpop.f32.mrb[0].mxu0
        %v2182 = vadd.f32 %v1886, %v2181
        %v2183 = vpop.f32.mrb[0].mxu0
        %v2184 = vadd.f32 %v1890, %v2183
        %2185 = vmatprep.mubr.bf16.mxu0 %v1805
        %2186 = vmatmul.mubr.bf16.gmra.mrb[0].mxu0 %v1804
        %v2187 = vpop.f32.mrb[0].mxu0
        %v2188 = vadd.f32 %v1886, %v2187
        %v2189 = vpop.f32.mrb[0].mxu0
        %v2190 = vadd.f32 %v1890, %v2189
        %v2191 = vpop.f32.mrb[0].mxu0
        %v2192 = vadd.f32 %v1886, %v2191
        %v2193 = vpop.f32.mrb[0].mxu0
        %v2194 = vadd.f32 %v1890, %v2193
        %2195 = vmatprep.mubr.bf16.mxu0 %v1807
        %2196 = vmatmul.mubr.bf16.gmra.mrb[0].mxu0 %v1806
        %v2197 = vpop.f32.mrb[0].mxu0
        %v2198 = vadd.f32 %v1886, %v2197
        %v2199 = vpop.f32.mrb[0].mxu0
        %v2200 = vadd.f32 %v1890, %v2199
        %v2201 = vpop.f32.mrb[0].mxu0
        %v2202 = vadd.f32 %v1886, %v2201
        %v2203 = vpop.f32.mrb[0].mxu0
        %v2204 = vadd.f32 %v1890, %v2203
        %2205 = vmatprep.mubr.bf16.mxu0 %v1809
        %2206 = vmatmul.mubr.bf16.gmra.mrb[0].mxu0 %v1808
        %v2207 = vpop.f32.mrb[0].mxu0
        %v2208 = vadd.f32 %v1886, %v2207
        %v2209 = vpop.f32.mrb[0].mxu0
        %v2210 = vadd.f32 %v1890, %v2209
        %v2211 = vpop.f32.mrb[0].mxu0
        %v2212 = vadd.f32 %v1886, %v2211
        %v2213 = vpop.f32.mrb[0].mxu0
        %v2214 = vadd.f32 %v1890, %v2213
        %2215 = vmatprep.mubr.bf16.mxu0 %v1811
        %2216 = vmatmul.mubr.bf16.gmra.mrb[0].mxu0 %v1810
        %v2217 = vpop.f32.mrb[0].mxu0
        %v2218 = vadd.f32 %v1886, %v2217
        %v2219 = vpop.f32.mrb[0].mxu0
        %v2220 = vadd.f32 %v1890, %v2219
        %v2221 = vpop.f32.mrb[0].mxu0
        %v2222 = vadd.f32 %v1886, %v2221
        %v2223 = vpop.f32.mrb[0].mxu0
        %v2224 = vadd.f32 %v1890, %v2223
        %2225 = vmatprep.mubr.bf16.mxu0 %v1813
        %2226 = vmatmul.mubr.bf16.gmra.mrb[0].mxu0 %v1812
        %v2227 = vpop.f32.mrb[0].mxu0
        %v2228 = vadd.f32 %v1886, %v2227
        %v2229 = vpop.f32.mrb[0].mxu0
        %v2230 = vadd.f32 %v1890, %v2229
        %v2231 = vpop.f32.mrb[0].mxu0
        %v2232 = vadd.f32 %v1886, %v2231
        %v2233 = vpop.f32.mrb[0].mxu0
        %v2234 = vadd.f32 %v1890, %v2233
        %2235 = vmatprep.mubr.bf16.mxu0 %v1815
        %2236 = vmatmul.mubr.bf16.gmra.mrb[0].mxu0 %v1814
        %v2237 = vpop.f32.mrb[0].mxu0
        %v2238 = vadd.f32 %v1886, %v2237
        %v2239 = vpop.f32.mrb[0].mxu0
        %v2240 = vadd.f32 %v1890, %v2239
        %v2241 = vpop.f32.mrb[0].mxu0
        %v2242 = vadd.f32 %v1886, %v2241
        %v2243 = vpop.f32.mrb[0].mxu0
        %v2244 = vadd.f32 %v1890, %v2243
        %2245 = vmatprep.mubr.bf16.mxu0 %v1817
        %2246 = vmatmul.mubr.bf16.gmra.mrb[0].mxu0 %v1816
        %v2247 = vpop.f32.mrb[0].mxu0
        %v2248 = vadd.f32 %v1886, %v2247
        %v2249 = vpop.f32.mrb[0].mxu0
        %v2250 = vadd.f32 %v1890, %v2249
        %v2251 = vpop.f32.mrb[0].mxu0
        %v2252 = vadd.f32 %v1886, %v2251
        %v2253 = vpop.f32.mrb[0].mxu0
        %v2254 = vadd.f32 %v1890, %v2253
        %2255 = vmatprep.mubr.bf16.mxu0 %v1819
        %2256 = vmatmul.mubr.bf16.gmra.mrb[0].mxu0 %v1818
        %v2257 = vpop.f32.mrb[0].mxu0
        %v2258 = vadd.f32 %v1886, %v2257
        %v2259 = vpop.f32.mrb[0].mxu0
        %v2260 = vadd.f32 %v1890, %v2259
        %v2261 = vpop.f32.mrb[0].mxu0
        %v2262 = vadd.f32 %v1886, %v2261
        %v2263 = vpop.f32.mrb[0].mxu0
        %v2264 = vadd.f32 %v1890, %v2263
        %2265 = vmatprep.mubr.bf16.mxu0 %v1821
        %2266 = vmatmul.mubr.bf16.gmra.mrb[0].mxu0 %v1820
        %v2267 = vpop.f32.mrb[0].mxu0
        %v2268 = vadd.f32 %v1886, %v2267
        %v2269 = vpop.f32.mrb[0].mxu0
        %v2270 = vadd.f32 %v1890, %v2269
        %v2271 = vpop.f32.mrb[0].mxu0
        %v2272 = vadd.f32 %v1886, %v2271
        %v2273 = vpop.f32.mrb[0].mxu0
        %v2274 = vadd.f32 %v1890, %v2273
        %2275 = vmatprep.mubr.bf16.mxu0 %v1823
        %2276 = vmatmul.mubr.bf16.gmra.mrb[0].mxu0 %v1822
        %v2277 = vpop.f32.mrb[0].mxu0
        %v2278 = vadd.f32 %v1886, %v2277
        %v2279 = vpop.f32.mrb[0].mxu0
        %v2280 = vadd.f32 %v1890, %v2279
        %v2281 = vpop.f32.mrb[0].mxu0
        %v2282 = vadd.f32 %v1886, %v2281
        %v2283 = vpop.f32.mrb[0].mxu0
        %v2284 = vadd.f32 %v1890, %v2283
        %2285 = vmatprep.mubr.bf16.mxu0 %v1825
        %2286 = vmatmul.mubr.bf16.gmra.mrb[0].mxu0 %v1824
        %v2287 = vpop.f32.mrb[0].mxu0
        %v2288 = vadd.f32 %v1886, %v2287
        %v2289 = vpop.f32.mrb[0].mxu0
        %v2290 = vadd.f32 %v1890, %v2289
        %v2291 = vpop.f32.mrb[0].mxu0
        %v2292 = vadd.f32 %v1886, %v2291
        %v2293 = vpop.f32.mrb[0].mxu0
        %v2294 = vadd.f32 %v1890, %v2293
        %2295 = vmatprep.mubr.bf16.mxu0 %v1827
        %2296 = vmatmul.mubr.bf16.gmra.mrb[0].mxu0 %v1826
        %v2297 = vpop.f32.mrb[0].mxu0
        %v2298 = vadd.f32 %v1886, %v2297
        %v2299 = vpop.f32.mrb[0].mxu0
        %v2300 = vadd.f32 %v1890, %v2299
        %v2301 = vpop.f32.mrb[0].mxu0
        %v2302 = vadd.f32 %v1886, %v2301
        %v2303 = vpop.f32.mrb[0].mxu0
        %v2304 = vadd.f32 %v1890, %v2303
        %2305 = vmatprep.mubr.bf16.mxu0 %v1829
        %2306 = vmatmul.mubr.bf16.gmra.mrb[0].mxu0 %v1828
        %v2307 = vpop.f32.mrb[0].mxu0
        %v2308 = vadd.f32 %v1886, %v2307
        %v2309 = vpop.f32.mrb[0].mxu0
        %v2310 = vadd.f32 %v1890, %v2309
        %v2311 = vpop.f32.mrb[0].mxu0
        %v2312 = vadd.f32 %v1886, %v2311
        %v2313 = vpop.f32.mrb[0].mxu0
        %v2314 = vadd.f32 %v1890, %v2313
        %2315 = vmatprep.mubr.bf16.mxu0 %v1831
        %2316 = vmatmul.mubr.bf16.gmra.mrb[0].mxu0 %v1830
        %v2317 = vpop.f32.mrb[0].mxu0
        %v2318 = vadd.f32 %v1886, %v2317
        %v2319 = vpop.f32.mrb[0].mxu0
        %v2320 = vadd.f32 %v1890, %v2319
        %v2321 = vpop.f32.mrb[0].mxu0
        %v2322 = vadd.f32 %v1886, %v2321
        %v2323 = vpop.f32.mrb[0].mxu0
        %v2324 = vadd.f32 %v1890, %v2323
        %2325 = vmatprep.mubr.bf16.mxu0 %v1833
        %2326 = vmatmul.mubr.bf16.gmra.mrb[0].mxu0 %v1832
        %v2327 = vpop.f32.mrb[0].mxu0
        %v2328 = vadd.f32 %v1886, %v2327
        %v2329 = vpop.f32.mrb[0].mxu0
        %v2330 = vadd.f32 %v1890, %v2329
        %v2331 = vpop.f32.mrb[0].mxu0
        %v2332 = vadd.f32 %v1886, %v2331
        %v2333 = vpop.f32.mrb[0].mxu0
        %v2334 = vadd.f32 %v1890, %v2333
        %2335 = vmatprep.mubr.bf16.mxu0 %v1835
        %2336 = vmatmul.mubr.bf16.gmra.mrb[0].mxu0 %v1834
        %v2337 = vpop.f32.mrb[0].mxu0
        %v2338 = vadd.f32 %v1886, %v2337
        %v2339 = vpop.f32.mrb[0].mxu0
        %v2340 = vadd.f32 %v1890, %v2339
        %v2341 = vpop.f32.mrb[0].mxu0
        %v2342 = vadd.f32 %v1886, %v2341
        %v2343 = vpop.f32.mrb[0].mxu0
        %v2344 = vadd.f32 %v1890, %v2343
        %2345 = vmatprep.mubr.bf16.mxu0 %v1837
        %2346 = vmatmul.mubr.bf16.gmra.mrb[0].mxu0 %v1836
        %v2347 = vpop.f32.mrb[0].mxu0
        %v2348 = vadd.f32 %v1886, %v2347
        %v2349 = vpop.f32.mrb[0].mxu0
        %v2350 = vadd.f32 %v1890, %v2349
        %v2351 = vpop.f32.mrb[0].mxu0
        %v2352 = vadd.f32 %v1886, %v2351
        %v2353 = vpop.f32.mrb[0].mxu0
        %v2354 = vadd.f32 %v1890, %v2353
        %2355 = vmatprep.mubr.bf16.mxu0 %v1839
        %2356 = vmatmul.mubr.bf16.gmra.mrb[0].mxu0 %v1838
        %v2357 = vpop.f32.mrb[0].mxu0
        %v2358 = vadd.f32 %v1886, %v2357
        %v2359 = vpop.f32.mrb[0].mxu0
        %v2360 = vadd.f32 %v1890, %v2359
        %v2361 = vpop.f32.mrb[0].mxu0
        %v2362 = vadd.f32 %v1886, %v2361
        %v2363 = vpop.f32.mrb[0].mxu0
        %v2364 = vadd.f32 %v1890, %v2363
        %2365 = vmatprep.mubr.bf16.mxu0 %v1841
        %2366 = vmatmul.mubr.bf16.gmra.mrb[0].mxu0 %v1840
        %v2367 = vpop.f32.mrb[0].mxu0
        %v2368 = vadd.f32 %v1886, %v2367
        %v2369 = vpop.f32.mrb[0].mxu0
        %v2370 = vadd.f32 %v1890, %v2369
        %v2371 = vpop.f32.mrb[0].mxu0
        %v2372 = vadd.f32 %v1886, %v2371
        %v2373 = vpop.f32.mrb[0].mxu0
        %v2374 = vadd.f32 %v1890, %v2373
        %2375 = vmatprep.mubr.bf16.mxu0 %v1843
        %2376 = vmatmul.mubr.bf16.gmra.mrb[0].mxu0 %v1842
        %v2377 = vpop.f32.mrb[0].mxu0
        %v2378 = vadd.f32 %v1886, %v2377
        %v2379 = vpop.f32.mrb[0].mxu0
        %v2380 = vadd.f32 %v1890, %v2379
        %v2381 = vpop.f32.mrb[0].mxu0
        %v2382 = vadd.f32 %v1886, %v2381
        %v2383 = vpop.f32.mrb[0].mxu0
        %v2384 = vadd.f32 %v1890, %v2383
        %2385 = vmatprep.mubr.bf16.mxu0 %v1845
        %2386 = vmatmul.mubr.bf16.gmra.mrb[0].mxu0 %v1844
        %v2387 = vpop.f32.mrb[0].mxu0
        %v2388 = vadd.f32 %v1886, %v2387
        %v2389 = vpop.f32.mrb[0].mxu0
        %v2390 = vadd.f32 %v1890, %v2389
        %v2391 = vpop.f32.mrb[0].mxu0
        %v2392 = vadd.f32 %v1886, %v2391
        %v2393 = vpop.f32.mrb[0].mxu0
        %v2394 = vadd.f32 %v1890, %v2393
        %2395 = vmatprep.mubr.bf16.mxu0 %v1847
        %2396 = vmatmul.mubr.bf16.gmra.mrb[0].mxu0 %v1846
        %v2397 = vpop.f32.mrb[0].mxu0
        %v2398 = vadd.f32 %v1886, %v2397
        %v2399 = vpop.f32.mrb[0].mxu0
        %v2400 = vadd.f32 %v1890, %v2399
        %v2401 = vpop.f32.mrb[0].mxu0
        %v2402 = vadd.f32 %v1886, %v2401
        %v2403 = vpop.f32.mrb[0].mxu0
        %v2404 = vadd.f32 %v1890, %v2403
        %2405 = vdwg.mxu0
        %v2406 = vmax.f32 %v2088, 0.0
        %v2407 = vmax.f32 %v2090, 0.0
        %v2408 = vmax.f32 %v2092, 0.0
        %v2409 = vmax.f32 %v2094, 0.0
        %v2410 = vmax.f32 %v2098, 0.0
        %v2411 = vmax.f32 %v2100, 0.0
        %v2412 = vmax.f32 %v2102, 0.0
        %v2413 = vmax.f32 %v2104, 0.0
        %v2414 = vmax.f32 %v2108, 0.0
        %v2415 = vmax.f32 %v2110, 0.0
        %v2416 = vmax.f32 %v2112, 0.0
        %v2417 = vmax.f32 %v2114, 0.0
        %v2418 = vmax.f32 %v2118, 0.0
        %v2419 = vmax.f32 %v2120, 0.0
        %v2420 = vmax.f32 %v2122, 0.0
        %v2421 = vmax.f32 %v2124, 0.0
        %v2422 = vmax.f32 %v2128, 0.0
        %v2423 = vmax.f32 %v2130, 0.0
        %v2424 = vmax.f32 %v2132, 0.0
        %v2425 = vmax.f32 %v2134, 0.0
        %v2426 = vmax.f32 %v2138, 0.0
        %v2427 = vmax.f32 %v2140, 0.0
        %v2428 = vmax.f32 %v2142, 0.0
        %v2429 = vmax.f32 %v2144, 0.0
        %v2430 = vmax.f32 %v2148, 0.0
        %v2431 = vmax.f32 %v2150, 0.0
        %v2432 = vmax.f32 %v2152, 0.0
        %v2433 = vmax.f32 %v2154, 0.0
        %v2434 = vmax.f32 %v2158, 0.0
        %v2435 = vmax.f32 %v2160, 0.0
        %v2436 = vmax.f32 %v2162, 0.0
        %v2437 = vmax.f32 %v2164, 0.0
        %v2438 = vmax.f32 %v2168, 0.0
        %v2439 = vmax.f32 %v2170, 0.0
        %v2440 = vmax.f32 %v2172, 0.0
        %v2441 = vmax.f32 %v2174, 0.0
        %v2442 = vmax.f32 %v2178, 0.0
        %v2443 = vmax.f32 %v2180, 0.0
        %v2444 = vmax.f32 %v2182, 0.0
        %v2445 = vmax.f32 %v2184, 0.0
        %v2446 = vmax.f32 %v2188, 0.0
        %v2447 = vmax.f32 %v2190, 0.0
        %v2448 = vmax.f32 %v2192, 0.0
        %v2449 = vmax.f32 %v2194, 0.0
        %v2450 = vmax.f32 %v2198, 0.0
        %v2451 = vmax.f32 %v2200, 0.0
        %v2452 = vmax.f32 %v2202, 0.0
        %v2453 = vmax.f32 %v2204, 0.0
        %v2454 = vmax.f32 %v2208, 0.0
        %v2455 = vmax.f32 %v2210, 0.0
        %v2456 = vmax.f32 %v2212, 0.0
        %v2457 = vmax.f32 %v2214, 0.0
        %v2458 = vmax.f32 %v2218, 0.0
        %v2459 = vmax.f32 %v2220, 0.0
        %v2460 = vmax.f32 %v2222, 0.0
        %v2461 = vmax.f32 %v2224, 0.0
        %v2462 = vmax.f32 %v2228, 0.0
        %v2463 = vmax.f32 %v2230, 0.0
        %v2464 = vmax.f32 %v2232, 0.0
        %v2465 = vmax.f32 %v2234, 0.0
        %v2466 = vmax.f32 %v2238, 0.0
        %v2467 = vmax.f32 %v2240, 0.0
        %v2468 = vmax.f32 %v2242, 0.0
        %v2469 = vmax.f32 %v2244, 0.0
        %v2470 = vmax.f32 %v2248, 0.0
        %v2471 = vmax.f32 %v2250, 0.0
        %v2472 = vmax.f32 %v2252, 0.0
        %v2473 = vmax.f32 %v2254, 0.0
        %v2474 = vmax.f32 %v2258, 0.0
        %v2475 = vmax.f32 %v2260, 0.0
        %v2476 = vmax.f32 %v2262, 0.0
        %v2477 = vmax.f32 %v2264, 0.0
        %v2478 = vmax.f32 %v2268, 0.0
        %v2479 = vmax.f32 %v2270, 0.0
        %v2480 = vmax.f32 %v2272, 0.0
        %v2481 = vmax.f32 %v2274, 0.0
        %v2482 = vmax.f32 %v2278, 0.0
        %v2483 = vmax.f32 %v2280, 0.0
        %v2484 = vmax.f32 %v2282, 0.0
        %v2485 = vmax.f32 %v2284, 0.0
        %v2486 = vmax.f32 %v2288, 0.0
        %v2487 = vmax.f32 %v2290, 0.0
        %v2488 = vmax.f32 %v2292, 0.0
        %v2489 = vmax.f32 %v2294, 0.0
        %v2490 = vmax.f32 %v2298, 0.0
        %v2491 = vmax.f32 %v2300, 0.0
        %v2492 = vmax.f32 %v2302, 0.0
        %v2493 = vmax.f32 %v2304, 0.0
        %v2494 = vmax.f32 %v2308, 0.0
        %v2495 = vmax.f32 %v2310, 0.0
        %v2496 = vmax.f32 %v2312, 0.0
        %v2497 = vmax.f32 %v2314, 0.0
        %v2498 = vmax.f32 %v2318, 0.0
        %v2499 = vmax.f32 %v2320, 0.0
        %v2500 = vmax.f32 %v2322, 0.0
        %v2501 = vmax.f32 %v2324, 0.0
        %v2502 = vmax.f32 %v2328, 0.0
        %v2503 = vmax.f32 %v2330, 0.0
        %v2504 = vmax.f32 %v2332, 0.0
        %v2505 = vmax.f32 %v2334, 0.0
        %v2506 = vmax.f32 %v2338, 0.0
        %v2507 = vmax.f32 %v2340, 0.0
        %v2508 = vmax.f32 %v2342, 0.0
        %v2509 = vmax.f32 %v2344, 0.0
        %v2510 = vmax.f32 %v2348, 0.0
        %v2511 = vmax.f32 %v2350, 0.0
        %v2512 = vmax.f32 %v2352, 0.0
        %v2513 = vmax.f32 %v2354, 0.0
        %v2514 = vmax.f32 %v2358, 0.0
        %v2515 = vmax.f32 %v2360, 0.0
        %v2516 = vmax.f32 %v2362, 0.0
        %v2517 = vmax.f32 %v2364, 0.0
        %v2518 = vmax.f32 %v2368, 0.0
        %v2519 = vmax.f32 %v2370, 0.0
        %v2520 = vmax.f32 %v2372, 0.0
        %v2521 = vmax.f32 %v2374, 0.0
        %v2522 = vmax.f32 %v2378, 0.0
        %v2523 = vmax.f32 %v2380, 0.0
        %v2524 = vmax.f32 %v2382, 0.0
        %v2525 = vmax.f32 %v2384, 0.0
        %v2526 = vmax.f32 %v2388, 0.0
        %v2527 = vmax.f32 %v2390, 0.0
        %v2528 = vmax.f32 %v2392, 0.0
        %v2529 = vmax.f32 %v2394, 0.0
        %v2530 = vmax.f32 %v2398, 0.0
        %v2531 = vmax.f32 %v2400, 0.0
        %v2532 = vmax.f32 %v2402, 0.0
        %v2533 = vmax.f32 %v2404, 0.0
        %v2534 = vpack.c.bf16 %v2408, %v2406
        %v2535 = vpack.c.bf16 %v2409, %v2407
        %v2536 = vpack.c.bf16 %v2412, %v2410
        %v2537 = vpack.c.bf16 %v2413, %v2411
        %v2538 = vpack.c.bf16 %v2416, %v2414
        %v2539 = vpack.c.bf16 %v2417, %v2415
        %v2540 = vpack.c.bf16 %v2420, %v2418
        %v2541 = vpack.c.bf16 %v2421, %v2419
        %v2542 = vpack.c.bf16 %v2424, %v2422
        %v2543 = vpack.c.bf16 %v2425, %v2423
        %v2544 = vpack.c.bf16 %v2428, %v2426
        %v2545 = vpack.c.bf16 %v2429, %v2427
        %v2546 = vpack.c.bf16 %v2432, %v2430
        %v2547 = vpack.c.bf16 %v2433, %v2431
        %v2548 = vpack.c.bf16 %v2436, %v2434
        %v2549 = vpack.c.bf16 %v2437, %v2435
        %v2550 = vpack.c.bf16 %v2440, %v2438
        %v2551 = vpack.c.bf16 %v2441, %v2439
        %v2552 = vpack.c.bf16 %v2444, %v2442
        %v2553 = vpack.c.bf16 %v2445, %v2443
        %v2554 = vpack.c.bf16 %v2448, %v2446
        %v2555 = vpack.c.bf16 %v2449, %v2447
        %v2556 = vpack.c.bf16 %v2452, %v2450
        %v2557 = vpack.c.bf16 %v2453, %v2451
        %v2558 = vpack.c.bf16 %v2456, %v2454
        %v2559 = vpack.c.bf16 %v2457, %v2455
        %v2560 = vpack.c.bf16 %v2460, %v2458
        %v2561 = vpack.c.bf16 %v2461, %v2459
        %v2562 = vpack.c.bf16 %v2464, %v2462
        %v2563 = vpack.c.bf16 %v2465, %v2463
        %v2564 = vpack.c.bf16 %v2468, %v2466
        %v2565 = vpack.c.bf16 %v2469, %v2467
        %v2566 = vpack.c.bf16 %v2472, %v2470
        %v2567 = vpack.c.bf16 %v2473, %v2471
        %v2568 = vpack.c.bf16 %v2476, %v2474
        %v2569 = vpack.c.bf16 %v2477, %v2475
        %v2570 = vpack.c.bf16 %v2480, %v2478
        %v2571 = vpack.c.bf16 %v2481, %v2479
        %v2572 = vpack.c.bf16 %v2484, %v2482
        %v2573 = vpack.c.bf16 %v2485, %v2483
        %v2574 = vpack.c.bf16 %v2488, %v2486
        %v2575 = vpack.c.bf16 %v2489, %v2487
        %v2576 = vpack.c.bf16 %v2492, %v2490
        %v2577 = vpack.c.bf16 %v2493, %v2491
        %v2578 = vpack.c.bf16 %v2496, %v2494
        %v2579 = vpack.c.bf16 %v2497, %v2495
        %v2580 = vpack.c.bf16 %v2500, %v2498
        %v2581 = vpack.c.bf16 %v2501, %v2499
        %v2582 = vpack.c.bf16 %v2504, %v2502
        %v2583 = vpack.c.bf16 %v2505, %v2503
        %v2584 = vpack.c.bf16 %v2508, %v2506
        %v2585 = vpack.c.bf16 %v2509, %v2507
        %v2586 = vpack.c.bf16 %v2512, %v2510
        %v2587 = vpack.c.bf16 %v2513, %v2511
        %v2588 = vpack.c.bf16 %v2516, %v2514
        %v2589 = vpack.c.bf16 %v2517, %v2515
        %v2590 = vpack.c.bf16 %v2520, %v2518
        %v2591 = vpack.c.bf16 %v2521, %v2519
        %v2592 = vpack.c.bf16 %v2524, %v2522
        %v2593 = vpack.c.bf16 %v2525, %v2523
        %v2594 = vpack.c.bf16 %v2528, %v2526
        %v2595 = vpack.c.bf16 %v2529, %v2527
        %v2596 = vpack.c.bf16 %v2532, %v2530
        %v2597 = vpack.c.bf16 %v2533, %v2531
        %s2598 = scalar_lea.vmem [#allocation2], 256
        %v2599 = vld [vmem:[%s2598] sm:$0xff]
        %v2600 = vld [vmem:[%s2598 + $0x8] sm:$0xff]
        %v2601 = vld [vmem:[%s2598 + $0x10] sm:$0xff]
        %v2602 = vld [vmem:[%s2598 + $0x18] sm:$0xff]
        %v2603 = vld [vmem:[%s2598 + $0x20] sm:$0xff]
        %v2604 = vld [vmem:[%s2598 + $0x28] sm:$0xff]
        %v2605 = vld [vmem:[%s2598 + $0x30] sm:$0xff]
        %v2606 = vld [vmem:[%s2598 + $0x38] sm:$0xff]
        %v2607 = vld [vmem:[%s2598 + $0x40] sm:$0xff]
        %v2608 = vld [vmem:[%s2598 + $0x48] sm:$0xff]
        %v2609 = vld [vmem:[%s2598 + $0x50] sm:$0xff]
        %v2610 = vld [vmem:[%s2598 + $0x58] sm:$0xff]
        %v2611 = vld [vmem:[%s2598 + $0x60] sm:$0xff]
        %v2612 = vld [vmem:[%s2598 + $0x68] sm:$0xff]
        %v2613 = vld [vmem:[%s2598 + $0x70] sm:$0xff]
        %v2614 = vld [vmem:[%s2598 + $0x78] sm:$0xff]
        %v2615 = vld [vmem:[%s2598 + $0x80] sm:$0xff]
        %v2616 = vld [vmem:[%s2598 + $0x88] sm:$0xff]
        %v2617 = vld [vmem:[%s2598 + $0x90] sm:$0xff]
        %v2618 = vld [vmem:[%s2598 + $0x98] sm:$0xff]
        %v2619 = vld [vmem:[%s2598 + $0xa0] sm:$0xff]
        %v2620 = vld [vmem:[%s2598 + $0xa8] sm:$0xff]
        %v2621 = vld [vmem:[%s2598 + $0xb0] sm:$0xff]
        %v2622 = vld [vmem:[%s2598 + $0xb8] sm:$0xff]
        %v2623 = vld [vmem:[%s2598 + $0xc0] sm:$0xff]
        %v2624 = vld [vmem:[%s2598 + $0xc8] sm:$0xff]
        %v2625 = vld [vmem:[%s2598 + $0xd0] sm:$0xff]
        %v2626 = vld [vmem:[%s2598 + $0xd8] sm:$0xff]
        %v2627 = vld [vmem:[%s2598 + $0xe0] sm:$0xff]
        %v2628 = vld [vmem:[%s2598 + $0xe8] sm:$0xff]
        %v2629 = vld [vmem:[%s2598 + $0xf0] sm:$0xff]
        %v2630 = vld [vmem:[%s2598 + $0xf8] sm:$0xff]
        %s2631 = scalar_lea.vmem %s5, 2
        %v2632 = vld [vmem:[%s2631] ss:$8 sm:$0x3]
        %v2634 = vlaneseq
        %v2635 = vshrl.u32 %v2634, 7
        %v2636 = vsub.s32 0, %v2635
        %v2637 = vrot.slane %v2632, %v2636
        %v2638 = vlaneseq
        %v2639 = vshrl.u32 %v2638, 7
        %v2640 = vsub.s32 1, %v2639
        %v2641 = vrot.slane %v2632, %v2640
        %v2676 = vunpack.c.l.b16 %v2599
        %v2677 = vunpack.c.h.b16 %v2599
        %v2678 = vunpack.c.l.b16 %v2600
        %v2679 = vunpack.c.h.b16 %v2600
        %v2680 = vunpack.c.l.b16 %v2601
        %v2681 = vunpack.c.h.b16 %v2601
        %v2682 = vunpack.c.l.b16 %v2602
        %v2683 = vunpack.c.h.b16 %v2602
        %v2684 = vunpack.c.l.b16 %v2603
        %v2685 = vunpack.c.h.b16 %v2603
        %v2686 = vunpack.c.l.b16 %v2604
        %v2687 = vunpack.c.h.b16 %v2604
        %v2688 = vunpack.c.l.b16 %v2605
        %v2689 = vunpack.c.h.b16 %v2605
        %v2690 = vunpack.c.l.b16 %v2606
        %v2691 = vunpack.c.h.b16 %v2606
        %v2692 = vunpack.c.l.b16 %v2607
        %v2693 = vunpack.c.h.b16 %v2607
        %v2694 = vunpack.c.l.b16 %v2608
        %v2695 = vunpack.c.h.b16 %v2608
        %v2696 = vunpack.c.l.b16 %v2609
        %v2697 = vunpack.c.h.b16 %v2609
        %v2698 = vunpack.c.l.b16 %v2610
        %v2699 = vunpack.c.h.b16 %v2610
        %v2700 = vunpack.c.l.b16 %v2611
        %v2701 = vunpack.c.h.b16 %v2611
        %v2702 = vunpack.c.l.b16 %v2612
        %v2703 = vunpack.c.h.b16 %v2612
        %v2704 = vunpack.c.l.b16 %v2613
        %v2705 = vunpack.c.h.b16 %v2613
        %v2706 = vunpack.c.l.b16 %v2614
        %v2707 = vunpack.c.h.b16 %v2614
        %v2708 = vunpack.c.l.b16 %v2615
        %v2709 = vunpack.c.h.b16 %v2615
        %v2710 = vunpack.c.l.b16 %v2616
        %v2711 = vunpack.c.h.b16 %v2616
        %v2712 = vunpack.c.l.b16 %v2617
        %v2713 = vunpack.c.h.b16 %v2617
        %v2714 = vunpack.c.l.b16 %v2618
        %v2715 = vunpack.c.h.b16 %v2618
        %v2716 = vunpack.c.l.b16 %v2619
        %v2717 = vunpack.c.h.b16 %v2619
        %v2718 = vunpack.c.l.b16 %v2620
        %v2719 = vunpack.c.h.b16 %v2620
        %v2720 = vunpack.c.l.b16 %v2621
        %v2721 = vunpack.c.h.b16 %v2621
        %v2722 = vunpack.c.l.b16 %v2622
        %v2723 = vunpack.c.h.b16 %v2622
        %v2724 = vunpack.c.l.b16 %v2623
        %v2725 = vunpack.c.h.b16 %v2623
        %v2726 = vunpack.c.l.b16 %v2624
        %v2727 = vunpack.c.h.b16 %v2624
        %v2728 = vunpack.c.l.b16 %v2625
        %v2729 = vunpack.c.h.b16 %v2625
        %v2730 = vunpack.c.l.b16 %v2626
        %v2731 = vunpack.c.h.b16 %v2626
        %v2732 = vunpack.c.l.b16 %v2627
        %v2733 = vunpack.c.h.b16 %v2627
        %v2734 = vunpack.c.l.b16 %v2628
        %v2735 = vunpack.c.h.b16 %v2628
        %v2736 = vunpack.c.l.b16 %v2629
        %v2737 = vunpack.c.h.b16 %v2629
        %v2738 = vunpack.c.l.b16 %v2630
        %v2739 = vunpack.c.h.b16 %v2630
        %v2740 = vpack.c.b16 %v2678, %v2676
        %v2741 = vpack.c.b16 %v2679, %v2677
        %v2742 = vpack.c.b16 %v2682, %v2680
        %v2743 = vpack.c.b16 %v2683, %v2681
        %v2744 = vpack.c.b16 %v2686, %v2684
        %v2745 = vpack.c.b16 %v2687, %v2685
        %v2746 = vpack.c.b16 %v2690, %v2688
        %v2747 = vpack.c.b16 %v2691, %v2689
        %v2748 = vpack.c.b16 %v2694, %v2692
        %v2749 = vpack.c.b16 %v2695, %v2693
        %v2750 = vpack.c.b16 %v2698, %v2696
        %v2751 = vpack.c.b16 %v2699, %v2697
        %v2752 = vpack.c.b16 %v2702, %v2700
        %v2753 = vpack.c.b16 %v2703, %v2701
        %v2754 = vpack.c.b16 %v2706, %v2704
        %v2755 = vpack.c.b16 %v2707, %v2705
        %v2756 = vpack.c.b16 %v2710, %v2708
        %v2757 = vpack.c.b16 %v2711, %v2709
        %v2758 = vpack.c.b16 %v2714, %v2712
        %v2759 = vpack.c.b16 %v2715, %v2713
        %v2760 = vpack.c.b16 %v2718, %v2716
        %v2761 = vpack.c.b16 %v2719, %v2717
        %v2762 = vpack.c.b16 %v2722, %v2720
        %v2763 = vpack.c.b16 %v2723, %v2721
        %v2764 = vpack.c.b16 %v2726, %v2724
        %v2765 = vpack.c.b16 %v2727, %v2725
        %v2766 = vpack.c.b16 %v2730, %v2728
        %v2767 = vpack.c.b16 %v2731, %v2729
        %v2768 = vpack.c.b16 %v2734, %v2732
        %v2769 = vpack.c.b16 %v2735, %v2733
        %v2770 = vpack.c.b16 %v2738, %v2736
        %v2771 = vpack.c.b16 %v2739, %v2737
        %2804 = vmatprep.subr.bf16.mxu0 %v2741
        %2805 = vmatpush1.bf16.msra.mxu0 %v2740
        %2806 = vmatprep.subr.bf16.mxu0 %v2743
        %2807 = vmatpush1.bf16.msra.mxu0 %v2742
        %2808 = vmatprep.subr.bf16.mxu0 %v2745
        %2809 = vmatpush1.bf16.msra.mxu0 %v2744
        %2810 = vmatprep.subr.bf16.mxu0 %v2747
        %2811 = vmatpush1.bf16.msra.mxu0 %v2746
        %2812 = vmatprep.subr.bf16.mxu0 %v2749
        %2813 = vmatpush1.bf16.msra.mxu0 %v2748
        %2814 = vmatprep.subr.bf16.mxu0 %v2751
        %2815 = vmatpush1.bf16.msra.mxu0 %v2750
        %2816 = vmatprep.subr.bf16.mxu0 %v2753
        %2817 = vmatpush1.bf16.msra.mxu0 %v2752
        %2818 = vmatprep.subr.bf16.mxu0 %v2755
        %2819 = vmatpush1.bf16.msra.mxu0 %v2754
        %2820 = vmatprep.subr.bf16.mxu0 %v2757
        %2821 = vmatpush1.bf16.msra.mxu0 %v2756
        %2822 = vmatprep.subr.bf16.mxu0 %v2759
        %2823 = vmatpush1.bf16.msra.mxu0 %v2758
        %2824 = vmatprep.subr.bf16.mxu0 %v2761
        %2825 = vmatpush1.bf16.msra.mxu0 %v2760
        %2826 = vmatprep.subr.bf16.mxu0 %v2763
        %2827 = vmatpush1.bf16.msra.mxu0 %v2762
        %2828 = vmatprep.subr.bf16.mxu0 %v2765
        %2829 = vmatpush1.bf16.msra.mxu0 %v2764
        %2830 = vmatprep.subr.bf16.mxu0 %v2767
        %2831 = vmatpush1.bf16.msra.mxu0 %v2766
        %2832 = vmatprep.subr.bf16.mxu0 %v2769
        %2833 = vmatpush1.bf16.msra.mxu0 %v2768
        %2834 = vmatprep.subr.bf16.mxu0 %v2771
        %2835 = vmatpush1.bf16.msra.mxu0 %v2770
        %2836 = vmatprep.mubr.bf16.mxu0 %v2535
        %2837 = vmatmul.mubr.bf16.gmra.mrb[0].mxu0 %v2534
        %v2838 = vpop.f32.mrb[0].mxu0
        %v2839 = vadd.f32 %v2637, %v2838
        %v2840 = vpop.f32.mrb[0].mxu0
        %v2841 = vadd.f32 %v2641, %v2840
        %v2842 = vpop.f32.mrb[0].mxu0
        %v2843 = vadd.f32 %v2637, %v2842
        %v2844 = vpop.f32.mrb[0].mxu0
        %v2845 = vadd.f32 %v2641, %v2844
        %2846 = vmatprep.mubr.bf16.mxu0 %v2537
        %2847 = vmatmul.mubr.bf16.gmra.mrb[0].mxu0 %v2536
        %v2848 = vpop.f32.mrb[0].mxu0
        %v2849 = vadd.f32 %v2637, %v2848
        %v2850 = vpop.f32.mrb[0].mxu0
        %v2851 = vadd.f32 %v2641, %v2850
        %v2852 = vpop.f32.mrb[0].mxu0
        %v2853 = vadd.f32 %v2637, %v2852
        %v2854 = vpop.f32.mrb[0].mxu0
        %v2855 = vadd.f32 %v2641, %v2854
        %2856 = vmatprep.mubr.bf16.mxu0 %v2539
        %2857 = vmatmul.mubr.bf16.gmra.mrb[0].mxu0 %v2538
        %v2858 = vpop.f32.mrb[0].mxu0
        %v2859 = vadd.f32 %v2637, %v2858
        %v2860 = vpop.f32.mrb[0].mxu0
        %v2861 = vadd.f32 %v2641, %v2860
        %v2862 = vpop.f32.mrb[0].mxu0
        %v2863 = vadd.f32 %v2637, %v2862
        %v2864 = vpop.f32.mrb[0].mxu0
        %v2865 = vadd.f32 %v2641, %v2864
        %2866 = vmatprep.mubr.bf16.mxu0 %v2541
        %2867 = vmatmul.mubr.bf16.gmra.mrb[0].mxu0 %v2540
        %v2868 = vpop.f32.mrb[0].mxu0
        %v2869 = vadd.f32 %v2637, %v2868
        %v2870 = vpop.f32.mrb[0].mxu0
        %v2871 = vadd.f32 %v2641, %v2870
        %v2872 = vpop.f32.mrb[0].mxu0
        %v2873 = vadd.f32 %v2637, %v2872
        %v2874 = vpop.f32.mrb[0].mxu0
        %v2875 = vadd.f32 %v2641, %v2874
        %2876 = vmatprep.mubr.bf16.mxu0 %v2543
        %2877 = vmatmul.mubr.bf16.gmra.mrb[0].mxu0 %v2542
        %v2878 = vpop.f32.mrb[0].mxu0
        %v2879 = vadd.f32 %v2637, %v2878
        %v2880 = vpop.f32.mrb[0].mxu0
        %v2881 = vadd.f32 %v2641, %v2880
        %v2882 = vpop.f32.mrb[0].mxu0
        %v2883 = vadd.f32 %v2637, %v2882
        %v2884 = vpop.f32.mrb[0].mxu0
        %v2885 = vadd.f32 %v2641, %v2884
        %2886 = vmatprep.mubr.bf16.mxu0 %v2545
        %2887 = vmatmul.mubr.bf16.gmra.mrb[0].mxu0 %v2544
        %v2888 = vpop.f32.mrb[0].mxu0
        %v2889 = vadd.f32 %v2637, %v2888
        %v2890 = vpop.f32.mrb[0].mxu0
        %v2891 = vadd.f32 %v2641, %v2890
        %v2892 = vpop.f32.mrb[0].mxu0
        %v2893 = vadd.f32 %v2637, %v2892
        %v2894 = vpop.f32.mrb[0].mxu0
        %v2895 = vadd.f32 %v2641, %v2894
        %2896 = vmatprep.mubr.bf16.mxu0 %v2547
        %2897 = vmatmul.mubr.bf16.gmra.mrb[0].mxu0 %v2546
        %v2898 = vpop.f32.mrb[0].mxu0
        %v2899 = vadd.f32 %v2637, %v2898
        %v2900 = vpop.f32.mrb[0].mxu0
        %v2901 = vadd.f32 %v2641, %v2900
        %v2902 = vpop.f32.mrb[0].mxu0
        %v2903 = vadd.f32 %v2637, %v2902
        %v2904 = vpop.f32.mrb[0].mxu0
        %v2905 = vadd.f32 %v2641, %v2904
        %2906 = vmatprep.mubr.bf16.mxu0 %v2549
        %2907 = vmatmul.mubr.bf16.gmra.mrb[0].mxu0 %v2548
        %v2908 = vpop.f32.mrb[0].mxu0
        %v2909 = vadd.f32 %v2637, %v2908
        %v2910 = vpop.f32.mrb[0].mxu0
        %v2911 = vadd.f32 %v2641, %v2910
        %v2912 = vpop.f32.mrb[0].mxu0
        %v2913 = vadd.f32 %v2637, %v2912
        %v2914 = vpop.f32.mrb[0].mxu0
        %v2915 = vadd.f32 %v2641, %v2914
        %2916 = vmatprep.mubr.bf16.mxu0 %v2551
        %2917 = vmatmul.mubr.bf16.gmra.mrb[0].mxu0 %v2550
        %v2918 = vpop.f32.mrb[0].mxu0
        %v2919 = vadd.f32 %v2637, %v2918
        %v2920 = vpop.f32.mrb[0].mxu0
        %v2921 = vadd.f32 %v2641, %v2920
        %v2922 = vpop.f32.mrb[0].mxu0
        %v2923 = vadd.f32 %v2637, %v2922
        %v2924 = vpop.f32.mrb[0].mxu0
        %v2925 = vadd.f32 %v2641, %v2924
        %2926 = vmatprep.mubr.bf16.mxu0 %v2553
        %2927 = vmatmul.mubr.bf16.gmra.mrb[0].mxu0 %v2552
        %v2928 = vpop.f32.mrb[0].mxu0
        %v2929 = vadd.f32 %v2637, %v2928
        %v2930 = vpop.f32.mrb[0].mxu0
        %v2931 = vadd.f32 %v2641, %v2930
        %v2932 = vpop.f32.mrb[0].mxu0
        %v2933 = vadd.f32 %v2637, %v2932
        %v2934 = vpop.f32.mrb[0].mxu0
        %v2935 = vadd.f32 %v2641, %v2934
        %2936 = vmatprep.mubr.bf16.mxu0 %v2555
        %2937 = vmatmul.mubr.bf16.gmra.mrb[0].mxu0 %v2554
        %v2938 = vpop.f32.mrb[0].mxu0
        %v2939 = vadd.f32 %v2637, %v2938
        %v2940 = vpop.f32.mrb[0].mxu0
        %v2941 = vadd.f32 %v2641, %v2940
        %v2942 = vpop.f32.mrb[0].mxu0
        %v2943 = vadd.f32 %v2637, %v2942
        %v2944 = vpop.f32.mrb[0].mxu0
        %v2945 = vadd.f32 %v2641, %v2944
        %2946 = vmatprep.mubr.bf16.mxu0 %v2557
        %2947 = vmatmul.mubr.bf16.gmra.mrb[0].mxu0 %v2556
        %v2948 = vpop.f32.mrb[0].mxu0
        %v2949 = vadd.f32 %v2637, %v2948
        %v2950 = vpop.f32.mrb[0].mxu0
        %v2951 = vadd.f32 %v2641, %v2950
        %v2952 = vpop.f32.mrb[0].mxu0
        %v2953 = vadd.f32 %v2637, %v2952
        %v2954 = vpop.f32.mrb[0].mxu0
        %v2955 = vadd.f32 %v2641, %v2954
        %2956 = vmatprep.mubr.bf16.mxu0 %v2559
        %2957 = vmatmul.mubr.bf16.gmra.mrb[0].mxu0 %v2558
        %v2958 = vpop.f32.mrb[0].mxu0
        %v2959 = vadd.f32 %v2637, %v2958
        %v2960 = vpop.f32.mrb[0].mxu0
        %v2961 = vadd.f32 %v2641, %v2960
        %v2962 = vpop.f32.mrb[0].mxu0
        %v2963 = vadd.f32 %v2637, %v2962
        %v2964 = vpop.f32.mrb[0].mxu0
        %v2965 = vadd.f32 %v2641, %v2964
        %2966 = vmatprep.mubr.bf16.mxu0 %v2561
        %2967 = vmatmul.mubr.bf16.gmra.mrb[0].mxu0 %v2560
        %v2968 = vpop.f32.mrb[0].mxu0
        %v2969 = vadd.f32 %v2637, %v2968
        %v2970 = vpop.f32.mrb[0].mxu0
        %v2971 = vadd.f32 %v2641, %v2970
        %v2972 = vpop.f32.mrb[0].mxu0
        %v2973 = vadd.f32 %v2637, %v2972
        %v2974 = vpop.f32.mrb[0].mxu0
        %v2975 = vadd.f32 %v2641, %v2974
        %2976 = vmatprep.mubr.bf16.mxu0 %v2563
        %2977 = vmatmul.mubr.bf16.gmra.mrb[0].mxu0 %v2562
        %v2978 = vpop.f32.mrb[0].mxu0
        %v2979 = vadd.f32 %v2637, %v2978
        %v2980 = vpop.f32.mrb[0].mxu0
        %v2981 = vadd.f32 %v2641, %v2980
        %v2982 = vpop.f32.mrb[0].mxu0
        %v2983 = vadd.f32 %v2637, %v2982
        %v2984 = vpop.f32.mrb[0].mxu0
        %v2985 = vadd.f32 %v2641, %v2984
        %2986 = vmatprep.mubr.bf16.mxu0 %v2565
        %2987 = vmatmul.mubr.bf16.gmra.mrb[0].mxu0 %v2564
        %v2988 = vpop.f32.mrb[0].mxu0
        %v2989 = vadd.f32 %v2637, %v2988
        %v2990 = vpop.f32.mrb[0].mxu0
        %v2991 = vadd.f32 %v2641, %v2990
        %v2992 = vpop.f32.mrb[0].mxu0
        %v2993 = vadd.f32 %v2637, %v2992
        %v2994 = vpop.f32.mrb[0].mxu0
        %v2995 = vadd.f32 %v2641, %v2994
        %2996 = vmatprep.mubr.bf16.mxu0 %v2567
        %2997 = vmatmul.mubr.bf16.gmra.mrb[0].mxu0 %v2566
        %v2998 = vpop.f32.mrb[0].mxu0
        %v2999 = vadd.f32 %v2637, %v2998
        %v3000 = vpop.f32.mrb[0].mxu0
        %v3001 = vadd.f32 %v2641, %v3000
        %v3002 = vpop.f32.mrb[0].mxu0
        %v3003 = vadd.f32 %v2637, %v3002
        %v3004 = vpop.f32.mrb[0].mxu0
        %v3005 = vadd.f32 %v2641, %v3004
        %3006 = vmatprep.mubr.bf16.mxu0 %v2569
        %3007 = vmatmul.mubr.bf16.gmra.mrb[0].mxu0 %v2568
        %v3008 = vpop.f32.mrb[0].mxu0
        %v3009 = vadd.f32 %v2637, %v3008
        %v3010 = vpop.f32.mrb[0].mxu0
        %v3011 = vadd.f32 %v2641, %v3010
        %v3012 = vpop.f32.mrb[0].mxu0
        %v3013 = vadd.f32 %v2637, %v3012
        %v3014 = vpop.f32.mrb[0].mxu0
        %v3015 = vadd.f32 %v2641, %v3014
        %3016 = vmatprep.mubr.bf16.mxu0 %v2571
        %3017 = vmatmul.mubr.bf16.gmra.mrb[0].mxu0 %v2570
        %v3018 = vpop.f32.mrb[0].mxu0
        %v3019 = vadd.f32 %v2637, %v3018
        %v3020 = vpop.f32.mrb[0].mxu0
        %v3021 = vadd.f32 %v2641, %v3020
        %v3022 = vpop.f32.mrb[0].mxu0
        %v3023 = vadd.f32 %v2637, %v3022
        %v3024 = vpop.f32.mrb[0].mxu0
        %v3025 = vadd.f32 %v2641, %v3024
        %3026 = vmatprep.mubr.bf16.mxu0 %v2573
        %3027 = vmatmul.mubr.bf16.gmra.mrb[0].mxu0 %v2572
        %v3028 = vpop.f32.mrb[0].mxu0
        %v3029 = vadd.f32 %v2637, %v3028
        %v3030 = vpop.f32.mrb[0].mxu0
        %v3031 = vadd.f32 %v2641, %v3030
        %v3032 = vpop.f32.mrb[0].mxu0
        %v3033 = vadd.f32 %v2637, %v3032
        %v3034 = vpop.f32.mrb[0].mxu0
        %v3035 = vadd.f32 %v2641, %v3034
        %3036 = vmatprep.mubr.bf16.mxu0 %v2575
        %3037 = vmatmul.mubr.bf16.gmra.mrb[0].mxu0 %v2574
        %v3038 = vpop.f32.mrb[0].mxu0
        %v3039 = vadd.f32 %v2637, %v3038
        %v3040 = vpop.f32.mrb[0].mxu0
        %v3041 = vadd.f32 %v2641, %v3040
        %v3042 = vpop.f32.mrb[0].mxu0
        %v3043 = vadd.f32 %v2637, %v3042
        %v3044 = vpop.f32.mrb[0].mxu0
        %v3045 = vadd.f32 %v2641, %v3044
        %3046 = vmatprep.mubr.bf16.mxu0 %v2577
        %3047 = vmatmul.mubr.bf16.gmra.mrb[0].mxu0 %v2576
        %v3048 = vpop.f32.mrb[0].mxu0
        %v3049 = vadd.f32 %v2637, %v3048
        %v3050 = vpop.f32.mrb[0].mxu0
        %v3051 = vadd.f32 %v2641, %v3050
        %v3052 = vpop.f32.mrb[0].mxu0
        %v3053 = vadd.f32 %v2637, %v3052
        %v3054 = vpop.f32.mrb[0].mxu0
        %v3055 = vadd.f32 %v2641, %v3054
        %3056 = vmatprep.mubr.bf16.mxu0 %v2579
        %3057 = vmatmul.mubr.bf16.gmra.mrb[0].mxu0 %v2578
        %v3058 = vpop.f32.mrb[0].mxu0
        %v3059 = vadd.f32 %v2637, %v3058
        %v3060 = vpop.f32.mrb[0].mxu0
        %v3061 = vadd.f32 %v2641, %v3060
        %v3062 = vpop.f32.mrb[0].mxu0
        %v3063 = vadd.f32 %v2637, %v3062
        %v3064 = vpop.f32.mrb[0].mxu0
        %v3065 = vadd.f32 %v2641, %v3064
        %3066 = vmatprep.mubr.bf16.mxu0 %v2581
        %3067 = vmatmul.mubr.bf16.gmra.mrb[0].mxu0 %v2580
        %v3068 = vpop.f32.mrb[0].mxu0
        %v3069 = vadd.f32 %v2637, %v3068
        %v3070 = vpop.f32.mrb[0].mxu0
        %v3071 = vadd.f32 %v2641, %v3070
        %v3072 = vpop.f32.mrb[0].mxu0
        %v3073 = vadd.f32 %v2637, %v3072
        %v3074 = vpop.f32.mrb[0].mxu0
        %v3075 = vadd.f32 %v2641, %v3074
        %3076 = vmatprep.mubr.bf16.mxu0 %v2583
        %3077 = vmatmul.mubr.bf16.gmra.mrb[0].mxu0 %v2582
        %v3078 = vpop.f32.mrb[0].mxu0
        %v3079 = vadd.f32 %v2637, %v3078
        %v3080 = vpop.f32.mrb[0].mxu0
        %v3081 = vadd.f32 %v2641, %v3080
        %v3082 = vpop.f32.mrb[0].mxu0
        %v3083 = vadd.f32 %v2637, %v3082
        %v3084 = vpop.f32.mrb[0].mxu0
        %v3085 = vadd.f32 %v2641, %v3084
        %3086 = vmatprep.mubr.bf16.mxu0 %v2585
        %3087 = vmatmul.mubr.bf16.gmra.mrb[0].mxu0 %v2584
        %v3088 = vpop.f32.mrb[0].mxu0
        %v3089 = vadd.f32 %v2637, %v3088
        %v3090 = vpop.f32.mrb[0].mxu0
        %v3091 = vadd.f32 %v2641, %v3090
        %v3092 = vpop.f32.mrb[0].mxu0
        %v3093 = vadd.f32 %v2637, %v3092
        %v3094 = vpop.f32.mrb[0].mxu0
        %v3095 = vadd.f32 %v2641, %v3094
        %3096 = vmatprep.mubr.bf16.mxu0 %v2587
        %3097 = vmatmul.mubr.bf16.gmra.mrb[0].mxu0 %v2586
        %v3098 = vpop.f32.mrb[0].mxu0
        %v3099 = vadd.f32 %v2637, %v3098
        %v3100 = vpop.f32.mrb[0].mxu0
        %v3101 = vadd.f32 %v2641, %v3100
        %v3102 = vpop.f32.mrb[0].mxu0
        %v3103 = vadd.f32 %v2637, %v3102
        %v3104 = vpop.f32.mrb[0].mxu0
        %v3105 = vadd.f32 %v2641, %v3104
        %3106 = vmatprep.mubr.bf16.mxu0 %v2589
        %3107 = vmatmul.mubr.bf16.gmra.mrb[0].mxu0 %v2588
        %v3108 = vpop.f32.mrb[0].mxu0
        %v3109 = vadd.f32 %v2637, %v3108
        %v3110 = vpop.f32.mrb[0].mxu0
        %v3111 = vadd.f32 %v2641, %v3110
        %v3112 = vpop.f32.mrb[0].mxu0
        %v3113 = vadd.f32 %v2637, %v3112
        %v3114 = vpop.f32.mrb[0].mxu0
        %v3115 = vadd.f32 %v2641, %v3114
        %3116 = vmatprep.mubr.bf16.mxu0 %v2591
        %3117 = vmatmul.mubr.bf16.gmra.mrb[0].mxu0 %v2590
        %v3118 = vpop.f32.mrb[0].mxu0
        %v3119 = vadd.f32 %v2637, %v3118
        %v3120 = vpop.f32.mrb[0].mxu0
        %v3121 = vadd.f32 %v2641, %v3120
        %v3122 = vpop.f32.mrb[0].mxu0
        %v3123 = vadd.f32 %v2637, %v3122
        %v3124 = vpop.f32.mrb[0].mxu0
        %v3125 = vadd.f32 %v2641, %v3124
        %3126 = vmatprep.mubr.bf16.mxu0 %v2593
        %3127 = vmatmul.mubr.bf16.gmra.mrb[0].mxu0 %v2592
        %v3128 = vpop.f32.mrb[0].mxu0
        %v3129 = vadd.f32 %v2637, %v3128
        %v3130 = vpop.f32.mrb[0].mxu0
        %v3131 = vadd.f32 %v2641, %v3130
        %v3132 = vpop.f32.mrb[0].mxu0
        %v3133 = vadd.f32 %v2637, %v3132
        %v3134 = vpop.f32.mrb[0].mxu0
        %v3135 = vadd.f32 %v2641, %v3134
        %3136 = vmatprep.mubr.bf16.mxu0 %v2595
        %3137 = vmatmul.mubr.bf16.gmra.mrb[0].mxu0 %v2594
        %v3138 = vpop.f32.mrb[0].mxu0
        %v3139 = vadd.f32 %v2637, %v3138
        %v3140 = vpop.f32.mrb[0].mxu0
        %v3141 = vadd.f32 %v2641, %v3140
        %v3142 = vpop.f32.mrb[0].mxu0
        %v3143 = vadd.f32 %v2637, %v3142
        %v3144 = vpop.f32.mrb[0].mxu0
        %v3145 = vadd.f32 %v2641, %v3144
        %3146 = vmatprep.mubr.bf16.mxu0 %v2597
        %3147 = vmatmul.mubr.bf16.gmra.mrb[0].mxu0 %v2596
        %v3148 = vpop.f32.mrb[0].mxu0
        %v3149 = vadd.f32 %v2637, %v3148
        %v3150 = vpop.f32.mrb[0].mxu0
        %v3151 = vadd.f32 %v2641, %v3150
        %v3152 = vpop.f32.mrb[0].mxu0
        %v3153 = vadd.f32 %v2637, %v3152
        %v3154 = vpop.f32.mrb[0].mxu0
        %v3155 = vadd.f32 %v2641, %v3154
        %3156 = vdwg.mxu0
        %v3157 = vmax.f32 %v2839, 0.0
        %v3158 = vmax.f32 %v2841, 0.0
        %v3159 = vmax.f32 %v2843, 0.0
        %v3160 = vmax.f32 %v2845, 0.0
        %v3161 = vmax.f32 %v2849, 0.0
        %v3162 = vmax.f32 %v2851, 0.0
        %v3163 = vmax.f32 %v2853, 0.0
        %v3164 = vmax.f32 %v2855, 0.0
        %v3165 = vmax.f32 %v2859, 0.0
        %v3166 = vmax.f32 %v2861, 0.0
        %v3167 = vmax.f32 %v2863, 0.0
        %v3168 = vmax.f32 %v2865, 0.0
        %v3169 = vmax.f32 %v2869, 0.0
        %v3170 = vmax.f32 %v2871, 0.0
        %v3171 = vmax.f32 %v2873, 0.0
        %v3172 = vmax.f32 %v2875, 0.0
        %v3173 = vmax.f32 %v2879, 0.0
        %v3174 = vmax.f32 %v2881, 0.0
        %v3175 = vmax.f32 %v2883, 0.0
        %v3176 = vmax.f32 %v2885, 0.0
        %v3177 = vmax.f32 %v2889, 0.0
        %v3178 = vmax.f32 %v2891, 0.0
        %v3179 = vmax.f32 %v2893, 0.0
        %v3180 = vmax.f32 %v2895, 0.0
        %v3181 = vmax.f32 %v2899, 0.0
        %v3182 = vmax.f32 %v2901, 0.0
        %v3183 = vmax.f32 %v2903, 0.0
        %v3184 = vmax.f32 %v2905, 0.0
        %v3185 = vmax.f32 %v2909, 0.0
        %v3186 = vmax.f32 %v2911, 0.0
        %v3187 = vmax.f32 %v2913, 0.0
        %v3188 = vmax.f32 %v2915, 0.0
        %v3189 = vmax.f32 %v2919, 0.0
        %v3190 = vmax.f32 %v2921, 0.0
        %v3191 = vmax.f32 %v2923, 0.0
        %v3192 = vmax.f32 %v2925, 0.0
        %v3193 = vmax.f32 %v2929, 0.0
        %v3194 = vmax.f32 %v2931, 0.0
        %v3195 = vmax.f32 %v2933, 0.0
        %v3196 = vmax.f32 %v2935, 0.0
        %v3197 = vmax.f32 %v2939, 0.0
        %v3198 = vmax.f32 %v2941, 0.0
        %v3199 = vmax.f32 %v2943, 0.0
        %v3200 = vmax.f32 %v2945, 0.0
        %v3201 = vmax.f32 %v2949, 0.0
        %v3202 = vmax.f32 %v2951, 0.0
        %v3203 = vmax.f32 %v2953, 0.0
        %v3204 = vmax.f32 %v2955, 0.0
        %v3205 = vmax.f32 %v2959, 0.0
        %v3206 = vmax.f32 %v2961, 0.0
        %v3207 = vmax.f32 %v2963, 0.0
        %v3208 = vmax.f32 %v2965, 0.0
        %v3209 = vmax.f32 %v2969, 0.0
        %v3210 = vmax.f32 %v2971, 0.0
        %v3211 = vmax.f32 %v2973, 0.0
        %v3212 = vmax.f32 %v2975, 0.0
        %v3213 = vmax.f32 %v2979, 0.0
        %v3214 = vmax.f32 %v2981, 0.0
        %v3215 = vmax.f32 %v2983, 0.0
        %v3216 = vmax.f32 %v2985, 0.0
        %v3217 = vmax.f32 %v2989, 0.0
        %v3218 = vmax.f32 %v2991, 0.0
        %v3219 = vmax.f32 %v2993, 0.0
        %v3220 = vmax.f32 %v2995, 0.0
        %v3221 = vmax.f32 %v2999, 0.0
        %v3222 = vmax.f32 %v3001, 0.0
        %v3223 = vmax.f32 %v3003, 0.0
        %v3224 = vmax.f32 %v3005, 0.0
        %v3225 = vmax.f32 %v3009, 0.0
        %v3226 = vmax.f32 %v3011, 0.0
        %v3227 = vmax.f32 %v3013, 0.0
        %v3228 = vmax.f32 %v3015, 0.0
        %v3229 = vmax.f32 %v3019, 0.0
        %v3230 = vmax.f32 %v3021, 0.0
        %v3231 = vmax.f32 %v3023, 0.0
        %v3232 = vmax.f32 %v3025, 0.0
        %v3233 = vmax.f32 %v3029, 0.0
        %v3234 = vmax.f32 %v3031, 0.0
        %v3235 = vmax.f32 %v3033, 0.0
        %v3236 = vmax.f32 %v3035, 0.0
        %v3237 = vmax.f32 %v3039, 0.0
        %v3238 = vmax.f32 %v3041, 0.0
        %v3239 = vmax.f32 %v3043, 0.0
        %v3240 = vmax.f32 %v3045, 0.0
        %v3241 = vmax.f32 %v3049, 0.0
        %v3242 = vmax.f32 %v3051, 0.0
        %v3243 = vmax.f32 %v3053, 0.0
        %v3244 = vmax.f32 %v3055, 0.0
        %v3245 = vmax.f32 %v3059, 0.0
        %v3246 = vmax.f32 %v3061, 0.0
        %v3247 = vmax.f32 %v3063, 0.0
        %v3248 = vmax.f32 %v3065, 0.0
        %v3249 = vmax.f32 %v3069, 0.0
        %v3250 = vmax.f32 %v3071, 0.0
        %v3251 = vmax.f32 %v3073, 0.0
        %v3252 = vmax.f32 %v3075, 0.0
        %v3253 = vmax.f32 %v3079, 0.0
        %v3254 = vmax.f32 %v3081, 0.0
        %v3255 = vmax.f32 %v3083, 0.0
        %v3256 = vmax.f32 %v3085, 0.0
        %v3257 = vmax.f32 %v3089, 0.0
        %v3258 = vmax.f32 %v3091, 0.0
        %v3259 = vmax.f32 %v3093, 0.0
        %v3260 = vmax.f32 %v3095, 0.0
        %v3261 = vmax.f32 %v3099, 0.0
        %v3262 = vmax.f32 %v3101, 0.0
        %v3263 = vmax.f32 %v3103, 0.0
        %v3264 = vmax.f32 %v3105, 0.0
        %v3265 = vmax.f32 %v3109, 0.0
        %v3266 = vmax.f32 %v3111, 0.0
        %v3267 = vmax.f32 %v3113, 0.0
        %v3268 = vmax.f32 %v3115, 0.0
        %v3269 = vmax.f32 %v3119, 0.0
        %v3270 = vmax.f32 %v3121, 0.0
        %v3271 = vmax.f32 %v3123, 0.0
        %v3272 = vmax.f32 %v3125, 0.0
        %v3273 = vmax.f32 %v3129, 0.0
        %v3274 = vmax.f32 %v3131, 0.0
        %v3275 = vmax.f32 %v3133, 0.0
        %v3276 = vmax.f32 %v3135, 0.0
        %v3277 = vmax.f32 %v3139, 0.0
        %v3278 = vmax.f32 %v3141, 0.0
        %v3279 = vmax.f32 %v3143, 0.0
        %v3280 = vmax.f32 %v3145, 0.0
        %v3281 = vmax.f32 %v3149, 0.0
        %v3282 = vmax.f32 %v3151, 0.0
        %v3283 = vmax.f32 %v3153, 0.0
        %v3284 = vmax.f32 %v3155, 0.0
        %v3285 = vpack.c.bf16 %v3159, %v3157
        %v3286 = vpack.c.bf16 %v3160, %v3158
        %v3287 = vpack.c.bf16 %v3163, %v3161
        %v3288 = vpack.c.bf16 %v3164, %v3162
        %v3289 = vpack.c.bf16 %v3167, %v3165
        %v3290 = vpack.c.bf16 %v3168, %v3166
        %v3291 = vpack.c.bf16 %v3171, %v3169
        %v3292 = vpack.c.bf16 %v3172, %v3170
        %v3293 = vpack.c.bf16 %v3175, %v3173
        %v3294 = vpack.c.bf16 %v3176, %v3174
        %v3295 = vpack.c.bf16 %v3179, %v3177
        %v3296 = vpack.c.bf16 %v3180, %v3178
        %v3297 = vpack.c.bf16 %v3183, %v3181
        %v3298 = vpack.c.bf16 %v3184, %v3182
        %v3299 = vpack.c.bf16 %v3187, %v3185
        %v3300 = vpack.c.bf16 %v3188, %v3186
        %v3301 = vpack.c.bf16 %v3191, %v3189
        %v3302 = vpack.c.bf16 %v3192, %v3190
        %v3303 = vpack.c.bf16 %v3195, %v3193
        %v3304 = vpack.c.bf16 %v3196, %v3194
        %v3305 = vpack.c.bf16 %v3199, %v3197
        %v3306 = vpack.c.bf16 %v3200, %v3198
        %v3307 = vpack.c.bf16 %v3203, %v3201
        %v3308 = vpack.c.bf16 %v3204, %v3202
        %v3309 = vpack.c.bf16 %v3207, %v3205
        %v3310 = vpack.c.bf16 %v3208, %v3206
        %v3311 = vpack.c.bf16 %v3211, %v3209
        %v3312 = vpack.c.bf16 %v3212, %v3210
        %v3313 = vpack.c.bf16 %v3215, %v3213
        %v3314 = vpack.c.bf16 %v3216, %v3214
        %v3315 = vpack.c.bf16 %v3219, %v3217
        %v3316 = vpack.c.bf16 %v3220, %v3218
        %v3317 = vpack.c.bf16 %v3223, %v3221
        %v3318 = vpack.c.bf16 %v3224, %v3222
        %v3319 = vpack.c.bf16 %v3227, %v3225
        %v3320 = vpack.c.bf16 %v3228, %v3226
        %v3321 = vpack.c.bf16 %v3231, %v3229
        %v3322 = vpack.c.bf16 %v3232, %v3230
        %v3323 = vpack.c.bf16 %v3235, %v3233
        %v3324 = vpack.c.bf16 %v3236, %v3234
        %v3325 = vpack.c.bf16 %v3239, %v3237
        %v3326 = vpack.c.bf16 %v3240, %v3238
        %v3327 = vpack.c.bf16 %v3243, %v3241
        %v3328 = vpack.c.bf16 %v3244, %v3242
        %v3329 = vpack.c.bf16 %v3247, %v3245
        %v3330 = vpack.c.bf16 %v3248, %v3246
        %v3331 = vpack.c.bf16 %v3251, %v3249
        %v3332 = vpack.c.bf16 %v3252, %v3250
        %v3333 = vpack.c.bf16 %v3255, %v3253
        %v3334 = vpack.c.bf16 %v3256, %v3254
        %v3335 = vpack.c.bf16 %v3259, %v3257
        %v3336 = vpack.c.bf16 %v3260, %v3258
        %v3337 = vpack.c.bf16 %v3263, %v3261
        %v3338 = vpack.c.bf16 %v3264, %v3262
        %v3339 = vpack.c.bf16 %v3267, %v3265
        %v3340 = vpack.c.bf16 %v3268, %v3266
        %v3341 = vpack.c.bf16 %v3271, %v3269
        %v3342 = vpack.c.bf16 %v3272, %v3270
        %v3343 = vpack.c.bf16 %v3275, %v3273
        %v3344 = vpack.c.bf16 %v3276, %v3274
        %v3345 = vpack.c.bf16 %v3279, %v3277
        %v3346 = vpack.c.bf16 %v3280, %v3278
        %v3347 = vpack.c.bf16 %v3283, %v3281
        %v3348 = vpack.c.bf16 %v3284, %v3282
        %s3349 = scalar_lea.vmem [#allocation2], 512
        %v3350 = vld [vmem:[%s3349] sm:$0xff]
        %v3351 = vld [vmem:[%s3349 + $0x8] sm:$0xff]
        %v3352 = vld [vmem:[%s3349 + $0x10] sm:$0xff]
        %v3353 = vld [vmem:[%s3349 + $0x18] sm:$0xff]
        %v3354 = vld [vmem:[%s3349 + $0x20] sm:$0xff]
        %v3355 = vld [vmem:[%s3349 + $0x28] sm:$0xff]
        %v3356 = vld [vmem:[%s3349 + $0x30] sm:$0xff]
        %v3357 = vld [vmem:[%s3349 + $0x38] sm:$0xff]
        %v3358 = vld [vmem:[%s3349 + $0x40] sm:$0xff]
        %v3359 = vld [vmem:[%s3349 + $0x48] sm:$0xff]
        %v3360 = vld [vmem:[%s3349 + $0x50] sm:$0xff]
        %v3361 = vld [vmem:[%s3349 + $0x58] sm:$0xff]
        %v3362 = vld [vmem:[%s3349 + $0x60] sm:$0xff]
        %v3363 = vld [vmem:[%s3349 + $0x68] sm:$0xff]
        %v3364 = vld [vmem:[%s3349 + $0x70] sm:$0xff]
        %v3365 = vld [vmem:[%s3349 + $0x78] sm:$0xff]
        %v3366 = vld [vmem:[%s3349 + $0x80] sm:$0xff]
        %v3367 = vld [vmem:[%s3349 + $0x88] sm:$0xff]
        %v3368 = vld [vmem:[%s3349 + $0x90] sm:$0xff]
        %v3369 = vld [vmem:[%s3349 + $0x98] sm:$0xff]
        %v3370 = vld [vmem:[%s3349 + $0xa0] sm:$0xff]
        %v3371 = vld [vmem:[%s3349 + $0xa8] sm:$0xff]
        %v3372 = vld [vmem:[%s3349 + $0xb0] sm:$0xff]
        %v3373 = vld [vmem:[%s3349 + $0xb8] sm:$0xff]
        %v3374 = vld [vmem:[%s3349 + $0xc0] sm:$0xff]
        %v3375 = vld [vmem:[%s3349 + $0xc8] sm:$0xff]
        %v3376 = vld [vmem:[%s3349 + $0xd0] sm:$0xff]
        %v3377 = vld [vmem:[%s3349 + $0xd8] sm:$0xff]
        %v3378 = vld [vmem:[%s3349 + $0xe0] sm:$0xff]
        %v3379 = vld [vmem:[%s3349 + $0xe8] sm:$0xff]
        %v3380 = vld [vmem:[%s3349 + $0xf0] sm:$0xff]
        %v3381 = vld [vmem:[%s3349 + $0xf8] sm:$0xff]
        %s3382 = scalar_lea.vmem %s5, 3
        %v3383 = vld [vmem:[%s3382] ss:$8 sm:$0x3]
        %v3385 = vlaneseq
        %v3386 = vshrl.u32 %v3385, 7
        %v3387 = vsub.s32 0, %v3386
        %v3388 = vrot.slane %v3383, %v3387
        %v3389 = vlaneseq
        %v3390 = vshrl.u32 %v3389, 7
        %v3391 = vsub.s32 1, %v3390
        %v3392 = vrot.slane %v3383, %v3391
        %v3427 = vunpack.c.l.b16 %v3350
        %v3428 = vunpack.c.h.b16 %v3350
        %v3429 = vunpack.c.l.b16 %v3351
        %v3430 = vunpack.c.h.b16 %v3351
        %v3431 = vunpack.c.l.b16 %v3352
        %v3432 = vunpack.c.h.b16 %v3352
        %v3433 = vunpack.c.l.b16 %v3353
        %v3434 = vunpack.c.h.b16 %v3353
        %v3435 = vunpack.c.l.b16 %v3354
        %v3436 = vunpack.c.h.b16 %v3354
        %v3437 = vunpack.c.l.b16 %v3355
        %v3438 = vunpack.c.h.b16 %v3355
        %v3439 = vunpack.c.l.b16 %v3356
        %v3440 = vunpack.c.h.b16 %v3356
        %v3441 = vunpack.c.l.b16 %v3357
        %v3442 = vunpack.c.h.b16 %v3357
        %v3443 = vunpack.c.l.b16 %v3358
        %v3444 = vunpack.c.h.b16 %v3358
        %v3445 = vunpack.c.l.b16 %v3359
        %v3446 = vunpack.c.h.b16 %v3359
        %v3447 = vunpack.c.l.b16 %v3360
        %v3448 = vunpack.c.h.b16 %v3360
        %v3449 = vunpack.c.l.b16 %v3361
        %v3450 = vunpack.c.h.b16 %v3361
        %v3451 = vunpack.c.l.b16 %v3362
        %v3452 = vunpack.c.h.b16 %v3362
        %v3453 = vunpack.c.l.b16 %v3363
        %v3454 = vunpack.c.h.b16 %v3363
        %v3455 = vunpack.c.l.b16 %v3364
        %v3456 = vunpack.c.h.b16 %v3364
        %v3457 = vunpack.c.l.b16 %v3365
        %v3458 = vunpack.c.h.b16 %v3365
        %v3459 = vunpack.c.l.b16 %v3366
        %v3460 = vunpack.c.h.b16 %v3366
        %v3461 = vunpack.c.l.b16 %v3367
        %v3462 = vunpack.c.h.b16 %v3367
        %v3463 = vunpack.c.l.b16 %v3368
        %v3464 = vunpack.c.h.b16 %v3368
        %v3465 = vunpack.c.l.b16 %v3369
        %v3466 = vunpack.c.h.b16 %v3369
        %v3467 = vunpack.c.l.b16 %v3370
        %v3468 = vunpack.c.h.b16 %v3370
        %v3469 = vunpack.c.l.b16 %v3371
        %v3470 = vunpack.c.h.b16 %v3371
        %v3471 = vunpack.c.l.b16 %v3372
        %v3472 = vunpack.c.h.b16 %v3372
        %v3473 = vunpack.c.l.b16 %v3373
        %v3474 = vunpack.c.h.b16 %v3373
        %v3475 = vunpack.c.l.b16 %v3374
        %v3476 = vunpack.c.h.b16 %v3374
        %v3477 = vunpack.c.l.b16 %v3375
        %v3478 = vunpack.c.h.b16 %v3375
        %v3479 = vunpack.c.l.b16 %v3376
        %v3480 = vunpack.c.h.b16 %v3376
        %v3481 = vunpack.c.l.b16 %v3377
        %v3482 = vunpack.c.h.b16 %v3377
        %v3483 = vunpack.c.l.b16 %v3378
        %v3484 = vunpack.c.h.b16 %v3378
        %v3485 = vunpack.c.l.b16 %v3379
        %v3486 = vunpack.c.h.b16 %v3379
        %v3487 = vunpack.c.l.b16 %v3380
        %v3488 = vunpack.c.h.b16 %v3380
        %v3489 = vunpack.c.l.b16 %v3381
        %v3490 = vunpack.c.h.b16 %v3381
        %v3491 = vpack.c.b16 %v3429, %v3427
        %v3492 = vpack.c.b16 %v3430, %v3428
        %v3493 = vpack.c.b16 %v3433, %v3431
        %v3494 = vpack.c.b16 %v3434, %v3432
        %v3495 = vpack.c.b16 %v3437, %v3435
        %v3496 = vpack.c.b16 %v3438, %v3436
        %v3497 = vpack.c.b16 %v3441, %v3439
        %v3498 = vpack.c.b16 %v3442, %v3440
        %v3499 = vpack.c.b16 %v3445, %v3443
        %v3500 = vpack.c.b16 %v3446, %v3444
        %v3501 = vpack.c.b16 %v3449, %v3447
        %v3502 = vpack.c.b16 %v3450, %v3448
        %v3503 = vpack.c.b16 %v3453, %v3451
        %v3504 = vpack.c.b16 %v3454, %v3452
        %v3505 = vpack.c.b16 %v3457, %v3455
        %v3506 = vpack.c.b16 %v3458, %v3456
        %v3507 = vpack.c.b16 %v3461, %v3459
        %v3508 = vpack.c.b16 %v3462, %v3460
        %v3509 = vpack.c.b16 %v3465, %v3463
        %v3510 = vpack.c.b16 %v3466, %v3464
        %v3511 = vpack.c.b16 %v3469, %v3467
        %v3512 = vpack.c.b16 %v3470, %v3468
        %v3513 = vpack.c.b16 %v3473, %v3471
        %v3514 = vpack.c.b16 %v3474, %v3472
        %v3515 = vpack.c.b16 %v3477, %v3475
        %v3516 = vpack.c.b16 %v3478, %v3476
        %v3517 = vpack.c.b16 %v3481, %v3479
        %v3518 = vpack.c.b16 %v3482, %v3480
        %v3519 = vpack.c.b16 %v3485, %v3483
        %v3520 = vpack.c.b16 %v3486, %v3484
        %v3521 = vpack.c.b16 %v3489, %v3487
        %v3522 = vpack.c.b16 %v3490, %v3488
        %3555 = vmatprep.subr.bf16.mxu0 %v3492
        %3556 = vmatpush1.bf16.msra.mxu0 %v3491
        %3557 = vmatprep.subr.bf16.mxu0 %v3494
        %3558 = vmatpush1.bf16.msra.mxu0 %v3493
        %3559 = vmatprep.subr.bf16.mxu0 %v3496
        %3560 = vmatpush1.bf16.msra.mxu0 %v3495
        %3561 = vmatprep.subr.bf16.mxu0 %v3498
        %3562 = vmatpush1.bf16.msra.mxu0 %v3497
        %3563 = vmatprep.subr.bf16.mxu0 %v3500
        %3564 = vmatpush1.bf16.msra.mxu0 %v3499
        %3565 = vmatprep.subr.bf16.mxu0 %v3502
        %3566 = vmatpush1.bf16.msra.mxu0 %v3501
        %3567 = vmatprep.subr.bf16.mxu0 %v3504
        %3568 = vmatpush1.bf16.msra.mxu0 %v3503
        %3569 = vmatprep.subr.bf16.mxu0 %v3506
        %3570 = vmatpush1.bf16.msra.mxu0 %v3505
        %3571 = vmatprep.subr.bf16.mxu0 %v3508
        %3572 = vmatpush1.bf16.msra.mxu0 %v3507
        %3573 = vmatprep.subr.bf16.mxu0 %v3510
        %3574 = vmatpush1.bf16.msra.mxu0 %v3509
        %3575 = vmatprep.subr.bf16.mxu0 %v3512
        %3576 = vmatpush1.bf16.msra.mxu0 %v3511
        %3577 = vmatprep.subr.bf16.mxu0 %v3514
        %3578 = vmatpush1.bf16.msra.mxu0 %v3513
        %3579 = vmatprep.subr.bf16.mxu0 %v3516
        %3580 = vmatpush1.bf16.msra.mxu0 %v3515
        %3581 = vmatprep.subr.bf16.mxu0 %v3518
        %3582 = vmatpush1.bf16.msra.mxu0 %v3517
        %3583 = vmatprep.subr.bf16.mxu0 %v3520
        %3584 = vmatpush1.bf16.msra.mxu0 %v3519
        %3585 = vmatprep.subr.bf16.mxu0 %v3522
        %3586 = vmatpush1.bf16.msra.mxu0 %v3521
        %3587 = vmatprep.mubr.bf16.mxu0 %v3286
        %3588 = vmatmul.mubr.bf16.gmra.mrb[0].mxu0 %v3285
        %v3589 = vpop.f32.mrb[0].mxu0
        %v3590 = vadd.f32 %v3388, %v3589
        %v3591 = vpop.f32.mrb[0].mxu0
        %v3592 = vadd.f32 %v3392, %v3591
        %v3593 = vpop.f32.mrb[0].mxu0
        %v3594 = vadd.f32 %v3388, %v3593
        %v3595 = vpop.f32.mrb[0].mxu0
        %v3596 = vadd.f32 %v3392, %v3595
        %3597 = vmatprep.mubr.bf16.mxu0 %v3288
        %3598 = vmatmul.mubr.bf16.gmra.mrb[0].mxu0 %v3287
        %v3599 = vpop.f32.mrb[0].mxu0
        %v3600 = vadd.f32 %v3388, %v3599
        %v3601 = vpop.f32.mrb[0].mxu0
        %v3602 = vadd.f32 %v3392, %v3601
        %v3603 = vpop.f32.mrb[0].mxu0
        %v3604 = vadd.f32 %v3388, %v3603
        %v3605 = vpop.f32.mrb[0].mxu0
        %v3606 = vadd.f32 %v3392, %v3605
        %3607 = vmatprep.mubr.bf16.mxu0 %v3290
        %3608 = vmatmul.mubr.bf16.gmra.mrb[0].mxu0 %v3289
        %v3609 = vpop.f32.mrb[0].mxu0
        %v3610 = vadd.f32 %v3388, %v3609
        %v3611 = vpop.f32.mrb[0].mxu0
        %v3612 = vadd.f32 %v3392, %v3611
        %v3613 = vpop.f32.mrb[0].mxu0
        %v3614 = vadd.f32 %v3388, %v3613
        %v3615 = vpop.f32.mrb[0].mxu0
        %v3616 = vadd.f32 %v3392, %v3615
        %3617 = vmatprep.mubr.bf16.mxu0 %v3292
        %3618 = vmatmul.mubr.bf16.gmra.mrb[0].mxu0 %v3291
        %v3619 = vpop.f32.mrb[0].mxu0
        %v3620 = vadd.f32 %v3388, %v3619
        %v3621 = vpop.f32.mrb[0].mxu0
        %v3622 = vadd.f32 %v3392, %v3621
        %v3623 = vpop.f32.mrb[0].mxu0
        %v3624 = vadd.f32 %v3388, %v3623
        %v3625 = vpop.f32.mrb[0].mxu0
        %v3626 = vadd.f32 %v3392, %v3625
        %3627 = vmatprep.mubr.bf16.mxu0 %v3294
        %3628 = vmatmul.mubr.bf16.gmra.mrb[0].mxu0 %v3293
        %v3629 = vpop.f32.mrb[0].mxu0
        %v3630 = vadd.f32 %v3388, %v3629
        %v3631 = vpop.f32.mrb[0].mxu0
        %v3632 = vadd.f32 %v3392, %v3631
        %v3633 = vpop.f32.mrb[0].mxu0
        %v3634 = vadd.f32 %v3388, %v3633
        %v3635 = vpop.f32.mrb[0].mxu0
        %v3636 = vadd.f32 %v3392, %v3635
        %3637 = vmatprep.mubr.bf16.mxu0 %v3296
        %3638 = vmatmul.mubr.bf16.gmra.mrb[0].mxu0 %v3295
        %v3639 = vpop.f32.mrb[0].mxu0
        %v3640 = vadd.f32 %v3388, %v3639
        %v3641 = vpop.f32.mrb[0].mxu0
        %v3642 = vadd.f32 %v3392, %v3641
        %v3643 = vpop.f32.mrb[0].mxu0
        %v3644 = vadd.f32 %v3388, %v3643
        %v3645 = vpop.f32.mrb[0].mxu0
        %v3646 = vadd.f32 %v3392, %v3645
        %3647 = vmatprep.mubr.bf16.mxu0 %v3298
        %3648 = vmatmul.mubr.bf16.gmra.mrb[0].mxu0 %v3297
        %v3649 = vpop.f32.mrb[0].mxu0
        %v3650 = vadd.f32 %v3388, %v3649
        %v3651 = vpop.f32.mrb[0].mxu0
        %v3652 = vadd.f32 %v3392, %v3651
        %v3653 = vpop.f32.mrb[0].mxu0
        %v3654 = vadd.f32 %v3388, %v3653
        %v3655 = vpop.f32.mrb[0].mxu0
        %v3656 = vadd.f32 %v3392, %v3655
        %3657 = vmatprep.mubr.bf16.mxu0 %v3300
        %3658 = vmatmul.mubr.bf16.gmra.mrb[0].mxu0 %v3299
        %v3659 = vpop.f32.mrb[0].mxu0
        %v3660 = vadd.f32 %v3388, %v3659
        %v3661 = vpop.f32.mrb[0].mxu0
        %v3662 = vadd.f32 %v3392, %v3661
        %v3663 = vpop.f32.mrb[0].mxu0
        %v3664 = vadd.f32 %v3388, %v3663
        %v3665 = vpop.f32.mrb[0].mxu0
        %v3666 = vadd.f32 %v3392, %v3665
        %3667 = vmatprep.mubr.bf16.mxu0 %v3302
        %3668 = vmatmul.mubr.bf16.gmra.mrb[0].mxu0 %v3301
        %v3669 = vpop.f32.mrb[0].mxu0
        %v3670 = vadd.f32 %v3388, %v3669
        %v3671 = vpop.f32.mrb[0].mxu0
        %v3672 = vadd.f32 %v3392, %v3671
        %v3673 = vpop.f32.mrb[0].mxu0
        %v3674 = vadd.f32 %v3388, %v3673
        %v3675 = vpop.f32.mrb[0].mxu0
        %v3676 = vadd.f32 %v3392, %v3675
        %3677 = vmatprep.mubr.bf16.mxu0 %v3304
        %3678 = vmatmul.mubr.bf16.gmra.mrb[0].mxu0 %v3303
        %v3679 = vpop.f32.mrb[0].mxu0
        %v3680 = vadd.f32 %v3388, %v3679
        %v3681 = vpop.f32.mrb[0].mxu0
        %v3682 = vadd.f32 %v3392, %v3681
        %v3683 = vpop.f32.mrb[0].mxu0
        %v3684 = vadd.f32 %v3388, %v3683
        %v3685 = vpop.f32.mrb[0].mxu0
        %v3686 = vadd.f32 %v3392, %v3685
        %3687 = vmatprep.mubr.bf16.mxu0 %v3306
        %3688 = vmatmul.mubr.bf16.gmra.mrb[0].mxu0 %v3305
        %v3689 = vpop.f32.mrb[0].mxu0
        %v3690 = vadd.f32 %v3388, %v3689
        %v3691 = vpop.f32.mrb[0].mxu0
        %v3692 = vadd.f32 %v3392, %v3691
        %v3693 = vpop.f32.mrb[0].mxu0
        %v3694 = vadd.f32 %v3388, %v3693
        %v3695 = vpop.f32.mrb[0].mxu0
        %v3696 = vadd.f32 %v3392, %v3695
        %3697 = vmatprep.mubr.bf16.mxu0 %v3308
        %3698 = vmatmul.mubr.bf16.gmra.mrb[0].mxu0 %v3307
        %v3699 = vpop.f32.mrb[0].mxu0
        %v3700 = vadd.f32 %v3388, %v3699
        %v3701 = vpop.f32.mrb[0].mxu0
        %v3702 = vadd.f32 %v3392, %v3701
        %v3703 = vpop.f32.mrb[0].mxu0
        %v3704 = vadd.f32 %v3388, %v3703
        %v3705 = vpop.f32.mrb[0].mxu0
        %v3706 = vadd.f32 %v3392, %v3705
        %3707 = vmatprep.mubr.bf16.mxu0 %v3310
        %3708 = vmatmul.mubr.bf16.gmra.mrb[0].mxu0 %v3309
        %v3709 = vpop.f32.mrb[0].mxu0
        %v3710 = vadd.f32 %v3388, %v3709
        %v3711 = vpop.f32.mrb[0].mxu0
        %v3712 = vadd.f32 %v3392, %v3711
        %v3713 = vpop.f32.mrb[0].mxu0
        %v3714 = vadd.f32 %v3388, %v3713
        %v3715 = vpop.f32.mrb[0].mxu0
        %v3716 = vadd.f32 %v3392, %v3715
        %3717 = vmatprep.mubr.bf16.mxu0 %v3312
        %3718 = vmatmul.mubr.bf16.gmra.mrb[0].mxu0 %v3311
        %v3719 = vpop.f32.mrb[0].mxu0
        %v3720 = vadd.f32 %v3388, %v3719
        %v3721 = vpop.f32.mrb[0].mxu0
        %v3722 = vadd.f32 %v3392, %v3721
        %v3723 = vpop.f32.mrb[0].mxu0
        %v3724 = vadd.f32 %v3388, %v3723
        %v3725 = vpop.f32.mrb[0].mxu0
        %v3726 = vadd.f32 %v3392, %v3725
        %3727 = vmatprep.mubr.bf16.mxu0 %v3314
        %3728 = vmatmul.mubr.bf16.gmra.mrb[0].mxu0 %v3313
        %v3729 = vpop.f32.mrb[0].mxu0
        %v3730 = vadd.f32 %v3388, %v3729
        %v3731 = vpop.f32.mrb[0].mxu0
        %v3732 = vadd.f32 %v3392, %v3731
        %v3733 = vpop.f32.mrb[0].mxu0
        %v3734 = vadd.f32 %v3388, %v3733
        %v3735 = vpop.f32.mrb[0].mxu0
        %v3736 = vadd.f32 %v3392, %v3735
        %3737 = vmatprep.mubr.bf16.mxu0 %v3316
        %3738 = vmatmul.mubr.bf16.gmra.mrb[0].mxu0 %v3315
        %v3739 = vpop.f32.mrb[0].mxu0
        %v3740 = vadd.f32 %v3388, %v3739
        %v3741 = vpop.f32.mrb[0].mxu0
        %v3742 = vadd.f32 %v3392, %v3741
        %v3743 = vpop.f32.mrb[0].mxu0
        %v3744 = vadd.f32 %v3388, %v3743
        %v3745 = vpop.f32.mrb[0].mxu0
        %v3746 = vadd.f32 %v3392, %v3745
        %3747 = vmatprep.mubr.bf16.mxu0 %v3318
        %3748 = vmatmul.mubr.bf16.gmra.mrb[0].mxu0 %v3317
        %v3749 = vpop.f32.mrb[0].mxu0
        %v3750 = vadd.f32 %v3388, %v3749
        %v3751 = vpop.f32.mrb[0].mxu0
        %v3752 = vadd.f32 %v3392, %v3751
        %v3753 = vpop.f32.mrb[0].mxu0
        %v3754 = vadd.f32 %v3388, %v3753
        %v3755 = vpop.f32.mrb[0].mxu0
        %v3756 = vadd.f32 %v3392, %v3755
        %3757 = vmatprep.mubr.bf16.mxu0 %v3320
        %3758 = vmatmul.mubr.bf16.gmra.mrb[0].mxu0 %v3319
        %v3759 = vpop.f32.mrb[0].mxu0
        %v3760 = vadd.f32 %v3388, %v3759
        %v3761 = vpop.f32.mrb[0].mxu0
        %v3762 = vadd.f32 %v3392, %v3761
        %v3763 = vpop.f32.mrb[0].mxu0
        %v3764 = vadd.f32 %v3388, %v3763
        %v3765 = vpop.f32.mrb[0].mxu0
        %v3766 = vadd.f32 %v3392, %v3765
        %3767 = vmatprep.mubr.bf16.mxu0 %v3322
        %3768 = vmatmul.mubr.bf16.gmra.mrb[0].mxu0 %v3321
        %v3769 = vpop.f32.mrb[0].mxu0
        %v3770 = vadd.f32 %v3388, %v3769
        %v3771 = vpop.f32.mrb[0].mxu0
        %v3772 = vadd.f32 %v3392, %v3771
        %v3773 = vpop.f32.mrb[0].mxu0
        %v3774 = vadd.f32 %v3388, %v3773
        %v3775 = vpop.f32.mrb[0].mxu0
        %v3776 = vadd.f32 %v3392, %v3775
        %3777 = vmatprep.mubr.bf16.mxu0 %v3324
        %3778 = vmatmul.mubr.bf16.gmra.mrb[0].mxu0 %v3323
        %v3779 = vpop.f32.mrb[0].mxu0
        %v3780 = vadd.f32 %v3388, %v3779
        %v3781 = vpop.f32.mrb[0].mxu0
        %v3782 = vadd.f32 %v3392, %v3781
        %v3783 = vpop.f32.mrb[0].mxu0
        %v3784 = vadd.f32 %v3388, %v3783
        %v3785 = vpop.f32.mrb[0].mxu0
        %v3786 = vadd.f32 %v3392, %v3785
        %3787 = vmatprep.mubr.bf16.mxu0 %v3326
        %3788 = vmatmul.mubr.bf16.gmra.mrb[0].mxu0 %v3325
        %v3789 = vpop.f32.mrb[0].mxu0
        %v3790 = vadd.f32 %v3388, %v3789
        %v3791 = vpop.f32.mrb[0].mxu0
        %v3792 = vadd.f32 %v3392, %v3791
        %v3793 = vpop.f32.mrb[0].mxu0
        %v3794 = vadd.f32 %v3388, %v3793
        %v3795 = vpop.f32.mrb[0].mxu0
        %v3796 = vadd.f32 %v3392, %v3795
        %3797 = vmatprep.mubr.bf16.mxu0 %v3328
        %3798 = vmatmul.mubr.bf16.gmra.mrb[0].mxu0 %v3327
        %v3799 = vpop.f32.mrb[0].mxu0
        %v3800 = vadd.f32 %v3388, %v3799
        %v3801 = vpop.f32.mrb[0].mxu0
        %v3802 = vadd.f32 %v3392, %v3801
        %v3803 = vpop.f32.mrb[0].mxu0
        %v3804 = vadd.f32 %v3388, %v3803
        %v3805 = vpop.f32.mrb[0].mxu0
        %v3806 = vadd.f32 %v3392, %v3805
        %3807 = vmatprep.mubr.bf16.mxu0 %v3330
        %3808 = vmatmul.mubr.bf16.gmra.mrb[0].mxu0 %v3329
        %v3809 = vpop.f32.mrb[0].mxu0
        %v3810 = vadd.f32 %v3388, %v3809
        %v3811 = vpop.f32.mrb[0].mxu0
        %v3812 = vadd.f32 %v3392, %v3811
        %v3813 = vpop.f32.mrb[0].mxu0
        %v3814 = vadd.f32 %v3388, %v3813
        %v3815 = vpop.f32.mrb[0].mxu0
        %v3816 = vadd.f32 %v3392, %v3815
        %3817 = vmatprep.mubr.bf16.mxu0 %v3332
        %3818 = vmatmul.mubr.bf16.gmra.mrb[0].mxu0 %v3331
        %v3819 = vpop.f32.mrb[0].mxu0
        %v3820 = vadd.f32 %v3388, %v3819
        %v3821 = vpop.f32.mrb[0].mxu0
        %v3822 = vadd.f32 %v3392, %v3821
        %v3823 = vpop.f32.mrb[0].mxu0
        %v3824 = vadd.f32 %v3388, %v3823
        %v3825 = vpop.f32.mrb[0].mxu0
        %v3826 = vadd.f32 %v3392, %v3825
        %3827 = vmatprep.mubr.bf16.mxu0 %v3334
        %3828 = vmatmul.mubr.bf16.gmra.mrb[0].mxu0 %v3333
        %v3829 = vpop.f32.mrb[0].mxu0
        %v3830 = vadd.f32 %v3388, %v3829
        %v3831 = vpop.f32.mrb[0].mxu0
        %v3832 = vadd.f32 %v3392, %v3831
        %v3833 = vpop.f32.mrb[0].mxu0
        %v3834 = vadd.f32 %v3388, %v3833
        %v3835 = vpop.f32.mrb[0].mxu0
        %v3836 = vadd.f32 %v3392, %v3835
        %3837 = vmatprep.mubr.bf16.mxu0 %v3336
        %3838 = vmatmul.mubr.bf16.gmra.mrb[0].mxu0 %v3335
        %v3839 = vpop.f32.mrb[0].mxu0
        %v3840 = vadd.f32 %v3388, %v3839
        %v3841 = vpop.f32.mrb[0].mxu0
        %v3842 = vadd.f32 %v3392, %v3841
        %v3843 = vpop.f32.mrb[0].mxu0
        %v3844 = vadd.f32 %v3388, %v3843
        %v3845 = vpop.f32.mrb[0].mxu0
        %v3846 = vadd.f32 %v3392, %v3845
        %3847 = vmatprep.mubr.bf16.mxu0 %v3338
        %3848 = vmatmul.mubr.bf16.gmra.mrb[0].mxu0 %v3337
        %v3849 = vpop.f32.mrb[0].mxu0
        %v3850 = vadd.f32 %v3388, %v3849
        %v3851 = vpop.f32.mrb[0].mxu0
        %v3852 = vadd.f32 %v3392, %v3851
        %v3853 = vpop.f32.mrb[0].mxu0
        %v3854 = vadd.f32 %v3388, %v3853
        %v3855 = vpop.f32.mrb[0].mxu0
        %v3856 = vadd.f32 %v3392, %v3855
        %3857 = vmatprep.mubr.bf16.mxu0 %v3340
        %3858 = vmatmul.mubr.bf16.gmra.mrb[0].mxu0 %v3339
        %v3859 = vpop.f32.mrb[0].mxu0
        %v3860 = vadd.f32 %v3388, %v3859
        %v3861 = vpop.f32.mrb[0].mxu0
        %v3862 = vadd.f32 %v3392, %v3861
        %v3863 = vpop.f32.mrb[0].mxu0
        %v3864 = vadd.f32 %v3388, %v3863
        %v3865 = vpop.f32.mrb[0].mxu0
        %v3866 = vadd.f32 %v3392, %v3865
        %3867 = vmatprep.mubr.bf16.mxu0 %v3342
        %3868 = vmatmul.mubr.bf16.gmra.mrb[0].mxu0 %v3341
        %v3869 = vpop.f32.mrb[0].mxu0
        %v3870 = vadd.f32 %v3388, %v3869
        %v3871 = vpop.f32.mrb[0].mxu0
        %v3872 = vadd.f32 %v3392, %v3871
        %v3873 = vpop.f32.mrb[0].mxu0
        %v3874 = vadd.f32 %v3388, %v3873
        %v3875 = vpop.f32.mrb[0].mxu0
        %v3876 = vadd.f32 %v3392, %v3875
        %3877 = vmatprep.mubr.bf16.mxu0 %v3344
        %3878 = vmatmul.mubr.bf16.gmra.mrb[0].mxu0 %v3343
        %v3879 = vpop.f32.mrb[0].mxu0
        %v3880 = vadd.f32 %v3388, %v3879
        %v3881 = vpop.f32.mrb[0].mxu0
        %v3882 = vadd.f32 %v3392, %v3881
        %v3883 = vpop.f32.mrb[0].mxu0
        %v3884 = vadd.f32 %v3388, %v3883
        %v3885 = vpop.f32.mrb[0].mxu0
        %v3886 = vadd.f32 %v3392, %v3885
        %3887 = vmatprep.mubr.bf16.mxu0 %v3346
        %3888 = vmatmul.mubr.bf16.gmra.mrb[0].mxu0 %v3345
        %v3889 = vpop.f32.mrb[0].mxu0
        %v3890 = vadd.f32 %v3388, %v3889
        %v3891 = vpop.f32.mrb[0].mxu0
        %v3892 = vadd.f32 %v3392, %v3891
        %v3893 = vpop.f32.mrb[0].mxu0
        %v3894 = vadd.f32 %v3388, %v3893
        %v3895 = vpop.f32.mrb[0].mxu0
        %v3896 = vadd.f32 %v3392, %v3895
        %3897 = vmatprep.mubr.bf16.mxu0 %v3348
        %3898 = vmatmul.mubr.bf16.gmra.mrb[0].mxu0 %v3347
        %v3899 = vpop.f32.mrb[0].mxu0
        %v3900 = vadd.f32 %v3388, %v3899
        %v3901 = vpop.f32.mrb[0].mxu0
        %v3902 = vadd.f32 %v3392, %v3901
        %v3903 = vpop.f32.mrb[0].mxu0
        %v3904 = vadd.f32 %v3388, %v3903
        %v3905 = vpop.f32.mrb[0].mxu0
        %v3906 = vadd.f32 %v3392, %v3905
        %3907 = vdwg.mxu0
        %v3908 = vmax.f32 %v3590, 0.0
        %v3909 = vmax.f32 %v3592, 0.0
        %v3910 = vmax.f32 %v3594, 0.0
        %v3911 = vmax.f32 %v3596, 0.0
        %v3912 = vmax.f32 %v3600, 0.0
        %v3913 = vmax.f32 %v3602, 0.0
        %v3914 = vmax.f32 %v3604, 0.0
        %v3915 = vmax.f32 %v3606, 0.0
        %v3916 = vmax.f32 %v3610, 0.0
        %v3917 = vmax.f32 %v3612, 0.0
        %v3918 = vmax.f32 %v3614, 0.0
        %v3919 = vmax.f32 %v3616, 0.0
        %v3920 = vmax.f32 %v3620, 0.0
        %v3921 = vmax.f32 %v3622, 0.0
        %v3922 = vmax.f32 %v3624, 0.0
        %v3923 = vmax.f32 %v3626, 0.0
        %v3924 = vmax.f32 %v3630, 0.0
        %v3925 = vmax.f32 %v3632, 0.0
        %v3926 = vmax.f32 %v3634, 0.0
        %v3927 = vmax.f32 %v3636, 0.0
        %v3928 = vmax.f32 %v3640, 0.0
        %v3929 = vmax.f32 %v3642, 0.0
        %v3930 = vmax.f32 %v3644, 0.0
        %v3931 = vmax.f32 %v3646, 0.0
        %v3932 = vmax.f32 %v3650, 0.0
        %v3933 = vmax.f32 %v3652, 0.0
        %v3934 = vmax.f32 %v3654, 0.0
        %v3935 = vmax.f32 %v3656, 0.0
        %v3936 = vmax.f32 %v3660, 0.0
        %v3937 = vmax.f32 %v3662, 0.0
        %v3938 = vmax.f32 %v3664, 0.0
        %v3939 = vmax.f32 %v3666, 0.0
        %v3940 = vmax.f32 %v3670, 0.0
        %v3941 = vmax.f32 %v3672, 0.0
        %v3942 = vmax.f32 %v3674, 0.0
        %v3943 = vmax.f32 %v3676, 0.0
        %v3944 = vmax.f32 %v3680, 0.0
        %v3945 = vmax.f32 %v3682, 0.0
        %v3946 = vmax.f32 %v3684, 0.0
        %v3947 = vmax.f32 %v3686, 0.0
        %v3948 = vmax.f32 %v3690, 0.0
        %v3949 = vmax.f32 %v3692, 0.0
        %v3950 = vmax.f32 %v3694, 0.0
        %v3951 = vmax.f32 %v3696, 0.0
        %v3952 = vmax.f32 %v3700, 0.0
        %v3953 = vmax.f32 %v3702, 0.0
        %v3954 = vmax.f32 %v3704, 0.0
        %v3955 = vmax.f32 %v3706, 0.0
        %v3956 = vmax.f32 %v3710, 0.0
        %v3957 = vmax.f32 %v3712, 0.0
        %v3958 = vmax.f32 %v3714, 0.0
        %v3959 = vmax.f32 %v3716, 0.0
        %v3960 = vmax.f32 %v3720, 0.0
        %v3961 = vmax.f32 %v3722, 0.0
        %v3962 = vmax.f32 %v3724, 0.0
        %v3963 = vmax.f32 %v3726, 0.0
        %v3964 = vmax.f32 %v3730, 0.0
        %v3965 = vmax.f32 %v3732, 0.0
        %v3966 = vmax.f32 %v3734, 0.0
        %v3967 = vmax.f32 %v3736, 0.0
        %v3968 = vmax.f32 %v3740, 0.0
        %v3969 = vmax.f32 %v3742, 0.0
        %v3970 = vmax.f32 %v3744, 0.0
        %v3971 = vmax.f32 %v3746, 0.0
        %v3972 = vmax.f32 %v3750, 0.0
        %v3973 = vmax.f32 %v3752, 0.0
        %v3974 = vmax.f32 %v3754, 0.0
        %v3975 = vmax.f32 %v3756, 0.0
        %v3976 = vmax.f32 %v3760, 0.0
        %v3977 = vmax.f32 %v3762, 0.0
        %v3978 = vmax.f32 %v3764, 0.0
        %v3979 = vmax.f32 %v3766, 0.0
        %v3980 = vmax.f32 %v3770, 0.0
        %v3981 = vmax.f32 %v3772, 0.0
        %v3982 = vmax.f32 %v3774, 0.0
        %v3983 = vmax.f32 %v3776, 0.0
        %v3984 = vmax.f32 %v3780, 0.0
        %v3985 = vmax.f32 %v3782, 0.0
        %v3986 = vmax.f32 %v3784, 0.0
        %v3987 = vmax.f32 %v3786, 0.0
        %v3988 = vmax.f32 %v3790, 0.0
        %v3989 = vmax.f32 %v3792, 0.0
        %v3990 = vmax.f32 %v3794, 0.0
        %v3991 = vmax.f32 %v3796, 0.0
        %v3992 = vmax.f32 %v3800, 0.0
        %v3993 = vmax.f32 %v3802, 0.0
        %v3994 = vmax.f32 %v3804, 0.0
        %v3995 = vmax.f32 %v3806, 0.0
        %v3996 = vmax.f32 %v3810, 0.0
        %v3997 = vmax.f32 %v3812, 0.0
        %v3998 = vmax.f32 %v3814, 0.0
        %v3999 = vmax.f32 %v3816, 0.0
        %v4000 = vmax.f32 %v3820, 0.0
        %v4001 = vmax.f32 %v3822, 0.0
        %v4002 = vmax.f32 %v3824, 0.0
        %v4003 = vmax.f32 %v3826, 0.0
        %v4004 = vmax.f32 %v3830, 0.0
        %v4005 = vmax.f32 %v3832, 0.0
        %v4006 = vmax.f32 %v3834, 0.0
        %v4007 = vmax.f32 %v3836, 0.0
        %v4008 = vmax.f32 %v3840, 0.0
        %v4009 = vmax.f32 %v3842, 0.0
        %v4010 = vmax.f32 %v3844, 0.0
        %v4011 = vmax.f32 %v3846, 0.0
        %v4012 = vmax.f32 %v3850, 0.0
        %v4013 = vmax.f32 %v3852, 0.0
        %v4014 = vmax.f32 %v3854, 0.0
        %v4015 = vmax.f32 %v3856, 0.0
        %v4016 = vmax.f32 %v3860, 0.0
        %v4017 = vmax.f32 %v3862, 0.0
        %v4018 = vmax.f32 %v3864, 0.0
        %v4019 = vmax.f32 %v3866, 0.0
        %v4020 = vmax.f32 %v3870, 0.0
        %v4021 = vmax.f32 %v3872, 0.0
        %v4022 = vmax.f32 %v3874, 0.0
        %v4023 = vmax.f32 %v3876, 0.0
        %v4024 = vmax.f32 %v3880, 0.0
        %v4025 = vmax.f32 %v3882, 0.0
        %v4026 = vmax.f32 %v3884, 0.0
        %v4027 = vmax.f32 %v3886, 0.0
        %v4028 = vmax.f32 %v3890, 0.0
        %v4029 = vmax.f32 %v3892, 0.0
        %v4030 = vmax.f32 %v3894, 0.0
        %v4031 = vmax.f32 %v3896, 0.0
        %v4032 = vmax.f32 %v3900, 0.0
        %v4033 = vmax.f32 %v3902, 0.0
        %v4034 = vmax.f32 %v3904, 0.0
        %v4035 = vmax.f32 %v3906, 0.0
        %v4036 = vpack.c.bf16 %v3910, %v3908
        %v4037 = vpack.c.bf16 %v3911, %v3909
        %v4038 = vpack.c.bf16 %v3914, %v3912
        %v4039 = vpack.c.bf16 %v3915, %v3913
        %v4040 = vpack.c.bf16 %v3918, %v3916
        %v4041 = vpack.c.bf16 %v3919, %v3917
        %v4042 = vpack.c.bf16 %v3922, %v3920
        %v4043 = vpack.c.bf16 %v3923, %v3921
        %v4044 = vpack.c.bf16 %v3926, %v3924
        %v4045 = vpack.c.bf16 %v3927, %v3925
        %v4046 = vpack.c.bf16 %v3930, %v3928
        %v4047 = vpack.c.bf16 %v3931, %v3929
        %v4048 = vpack.c.bf16 %v3934, %v3932
        %v4049 = vpack.c.bf16 %v3935, %v3933
        %v4050 = vpack.c.bf16 %v3938, %v3936
        %v4051 = vpack.c.bf16 %v3939, %v3937
        %v4052 = vpack.c.bf16 %v3942, %v3940
        %v4053 = vpack.c.bf16 %v3943, %v3941
        %v4054 = vpack.c.bf16 %v3946, %v3944
        %v4055 = vpack.c.bf16 %v3947, %v3945
        %v4056 = vpack.c.bf16 %v3950, %v3948
        %v4057 = vpack.c.bf16 %v3951, %v3949
        %v4058 = vpack.c.bf16 %v3954, %v3952
        %v4059 = vpack.c.bf16 %v3955, %v3953
        %v4060 = vpack.c.bf16 %v3958, %v3956
        %v4061 = vpack.c.bf16 %v3959, %v3957
        %v4062 = vpack.c.bf16 %v3962, %v3960
        %v4063 = vpack.c.bf16 %v3963, %v3961
        %v4064 = vpack.c.bf16 %v3966, %v3964
        %v4065 = vpack.c.bf16 %v3967, %v3965
        %v4066 = vpack.c.bf16 %v3970, %v3968
        %v4067 = vpack.c.bf16 %v3971, %v3969
        %v4068 = vpack.c.bf16 %v3974, %v3972
        %v4069 = vpack.c.bf16 %v3975, %v3973
        %v4070 = vpack.c.bf16 %v3978, %v3976
        %v4071 = vpack.c.bf16 %v3979, %v3977
        %v4072 = vpack.c.bf16 %v3982, %v3980
        %v4073 = vpack.c.bf16 %v3983, %v3981
        %v4074 = vpack.c.bf16 %v3986, %v3984
        %v4075 = vpack.c.bf16 %v3987, %v3985
        %v4076 = vpack.c.bf16 %v3990, %v3988
        %v4077 = vpack.c.bf16 %v3991, %v3989
        %v4078 = vpack.c.bf16 %v3994, %v3992
        %v4079 = vpack.c.bf16 %v3995, %v3993
        %v4080 = vpack.c.bf16 %v3998, %v3996
        %v4081 = vpack.c.bf16 %v3999, %v3997
        %v4082 = vpack.c.bf16 %v4002, %v4000
        %v4083 = vpack.c.bf16 %v4003, %v4001
        %v4084 = vpack.c.bf16 %v4006, %v4004
        %v4085 = vpack.c.bf16 %v4007, %v4005
        %v4086 = vpack.c.bf16 %v4010, %v4008
        %v4087 = vpack.c.bf16 %v4011, %v4009
        %v4088 = vpack.c.bf16 %v4014, %v4012
        %v4089 = vpack.c.bf16 %v4015, %v4013
        %v4090 = vpack.c.bf16 %v4018, %v4016
        %v4091 = vpack.c.bf16 %v4019, %v4017
        %v4092 = vpack.c.bf16 %v4022, %v4020
        %v4093 = vpack.c.bf16 %v4023, %v4021
        %v4094 = vpack.c.bf16 %v4026, %v4024
        %v4095 = vpack.c.bf16 %v4027, %v4025
        %v4096 = vpack.c.bf16 %v4030, %v4028
        %v4097 = vpack.c.bf16 %v4031, %v4029
        %v4098 = vpack.c.bf16 %v4034, %v4032
        %v4099 = vpack.c.bf16 %v4035, %v4033
        %s4100 = scalar_lea.vmem [#allocation2], 768
        %v4101 = vld [vmem:[%s4100] sm:$0xff]
        %v4102 = vld [vmem:[%s4100 + $0x8] sm:$0xff]
        %v4103 = vld [vmem:[%s4100 + $0x10] sm:$0xff]
        %v4104 = vld [vmem:[%s4100 + $0x18] sm:$0xff]
        %v4105 = vld [vmem:[%s4100 + $0x20] sm:$0xff]
        %v4106 = vld [vmem:[%s4100 + $0x28] sm:$0xff]
        %v4107 = vld [vmem:[%s4100 + $0x30] sm:$0xff]
        %v4108 = vld [vmem:[%s4100 + $0x38] sm:$0xff]
        %v4109 = vld [vmem:[%s4100 + $0x40] sm:$0xff]
        %v4110 = vld [vmem:[%s4100 + $0x48] sm:$0xff]
        %v4111 = vld [vmem:[%s4100 + $0x50] sm:$0xff]
        %v4112 = vld [vmem:[%s4100 + $0x58] sm:$0xff]
        %v4113 = vld [vmem:[%s4100 + $0x60] sm:$0xff]
        %v4114 = vld [vmem:[%s4100 + $0x68] sm:$0xff]
        %v4115 = vld [vmem:[%s4100 + $0x70] sm:$0xff]
        %v4116 = vld [vmem:[%s4100 + $0x78] sm:$0xff]
        %v4117 = vld [vmem:[%s4100 + $0x80] sm:$0xff]
        %v4118 = vld [vmem:[%s4100 + $0x88] sm:$0xff]
        %v4119 = vld [vmem:[%s4100 + $0x90] sm:$0xff]
        %v4120 = vld [vmem:[%s4100 + $0x98] sm:$0xff]
        %v4121 = vld [vmem:[%s4100 + $0xa0] sm:$0xff]
        %v4122 = vld [vmem:[%s4100 + $0xa8] sm:$0xff]
        %v4123 = vld [vmem:[%s4100 + $0xb0] sm:$0xff]
        %v4124 = vld [vmem:[%s4100 + $0xb8] sm:$0xff]
        %v4125 = vld [vmem:[%s4100 + $0xc0] sm:$0xff]
        %v4126 = vld [vmem:[%s4100 + $0xc8] sm:$0xff]
        %v4127 = vld [vmem:[%s4100 + $0xd0] sm:$0xff]
        %v4128 = vld [vmem:[%s4100 + $0xd8] sm:$0xff]
        %v4129 = vld [vmem:[%s4100 + $0xe0] sm:$0xff]
        %v4130 = vld [vmem:[%s4100 + $0xe8] sm:$0xff]
        %v4131 = vld [vmem:[%s4100 + $0xf0] sm:$0xff]
        %v4132 = vld [vmem:[%s4100 + $0xf8] sm:$0xff]
        %s4133 = scalar_lea.vmem %s5, 4
        %v4134 = vld [vmem:[%s4133] ss:$8 sm:$0x3]
        %v4136 = vlaneseq
        %v4137 = vshrl.u32 %v4136, 7
        %v4138 = vsub.s32 0, %v4137
        %v4139 = vrot.slane %v4134, %v4138
        %v4140 = vlaneseq
        %v4141 = vshrl.u32 %v4140, 7
        %v4142 = vsub.s32 1, %v4141
        %v4143 = vrot.slane %v4134, %v4142
        %v4178 = vunpack.c.l.b16 %v4101
        %v4179 = vunpack.c.h.b16 %v4101
        %v4180 = vunpack.c.l.b16 %v4102
        %v4181 = vunpack.c.h.b16 %v4102
        %v4182 = vunpack.c.l.b16 %v4103
        %v4183 = vunpack.c.h.b16 %v4103
        %v4184 = vunpack.c.l.b16 %v4104
        %v4185 = vunpack.c.h.b16 %v4104
        %v4186 = vunpack.c.l.b16 %v4105
        %v4187 = vunpack.c.h.b16 %v4105
        %v4188 = vunpack.c.l.b16 %v4106
        %v4189 = vunpack.c.h.b16 %v4106
        %v4190 = vunpack.c.l.b16 %v4107
        %v4191 = vunpack.c.h.b16 %v4107
        %v4192 = vunpack.c.l.b16 %v4108
        %v4193 = vunpack.c.h.b16 %v4108
        %v4194 = vunpack.c.l.b16 %v4109
        %v4195 = vunpack.c.h.b16 %v4109
        %v4196 = vunpack.c.l.b16 %v4110
        %v4197 = vunpack.c.h.b16 %v4110
        %v4198 = vunpack.c.l.b16 %v4111
        %v4199 = vunpack.c.h.b16 %v4111
        %v4200 = vunpack.c.l.b16 %v4112
        %v4201 = vunpack.c.h.b16 %v4112
        %v4202 = vunpack.c.l.b16 %v4113
        %v4203 = vunpack.c.h.b16 %v4113
        %v4204 = vunpack.c.l.b16 %v4114
        %v4205 = vunpack.c.h.b16 %v4114
        %v4206 = vunpack.c.l.b16 %v4115
        %v4207 = vunpack.c.h.b16 %v4115
        %v4208 = vunpack.c.l.b16 %v4116
        %v4209 = vunpack.c.h.b16 %v4116
        %v4210 = vunpack.c.l.b16 %v4117
        %v4211 = vunpack.c.h.b16 %v4117
        %v4212 = vunpack.c.l.b16 %v4118
        %v4213 = vunpack.c.h.b16 %v4118
        %v4214 = vunpack.c.l.b16 %v4119
        %v4215 = vunpack.c.h.b16 %v4119
        %v4216 = vunpack.c.l.b16 %v4120
        %v4217 = vunpack.c.h.b16 %v4120
        %v4218 = vunpack.c.l.b16 %v4121
        %v4219 = vunpack.c.h.b16 %v4121
        %v4220 = vunpack.c.l.b16 %v4122
        %v4221 = vunpack.c.h.b16 %v4122
        %v4222 = vunpack.c.l.b16 %v4123
        %v4223 = vunpack.c.h.b16 %v4123
        %v4224 = vunpack.c.l.b16 %v4124
        %v4225 = vunpack.c.h.b16 %v4124
        %v4226 = vunpack.c.l.b16 %v4125
        %v4227 = vunpack.c.h.b16 %v4125
        %v4228 = vunpack.c.l.b16 %v4126
        %v4229 = vunpack.c.h.b16 %v4126
        %v4230 = vunpack.c.l.b16 %v4127
        %v4231 = vunpack.c.h.b16 %v4127
        %v4232 = vunpack.c.l.b16 %v4128
        %v4233 = vunpack.c.h.b16 %v4128
        %v4234 = vunpack.c.l.b16 %v4129
        %v4235 = vunpack.c.h.b16 %v4129
        %v4236 = vunpack.c.l.b16 %v4130
        %v4237 = vunpack.c.h.b16 %v4130
        %v4238 = vunpack.c.l.b16 %v4131
        %v4239 = vunpack.c.h.b16 %v4131
        %v4240 = vunpack.c.l.b16 %v4132
        %v4241 = vunpack.c.h.b16 %v4132
        %v4242 = vpack.c.b16 %v4180, %v4178
        %v4243 = vpack.c.b16 %v4181, %v4179
        %v4244 = vpack.c.b16 %v4184, %v4182
        %v4245 = vpack.c.b16 %v4185, %v4183
        %v4246 = vpack.c.b16 %v4188, %v4186
        %v4247 = vpack.c.b16 %v4189, %v4187
        %v4248 = vpack.c.b16 %v4192, %v4190
        %v4249 = vpack.c.b16 %v4193, %v4191
        %v4250 = vpack.c.b16 %v4196, %v4194
        %v4251 = vpack.c.b16 %v4197, %v4195
        %v4252 = vpack.c.b16 %v4200, %v4198
        %v4253 = vpack.c.b16 %v4201, %v4199
        %v4254 = vpack.c.b16 %v4204, %v4202
        %v4255 = vpack.c.b16 %v4205, %v4203
        %v4256 = vpack.c.b16 %v4208, %v4206
        %v4257 = vpack.c.b16 %v4209, %v4207
        %v4258 = vpack.c.b16 %v4212, %v4210
        %v4259 = vpack.c.b16 %v4213, %v4211
        %v4260 = vpack.c.b16 %v4216, %v4214
        %v4261 = vpack.c.b16 %v4217, %v4215
        %v4262 = vpack.c.b16 %v4220, %v4218
        %v4263 = vpack.c.b16 %v4221, %v4219
        %v4264 = vpack.c.b16 %v4224, %v4222
        %v4265 = vpack.c.b16 %v4225, %v4223
        %v4266 = vpack.c.b16 %v4228, %v4226
        %v4267 = vpack.c.b16 %v4229, %v4227
        %v4268 = vpack.c.b16 %v4232, %v4230
        %v4269 = vpack.c.b16 %v4233, %v4231
        %v4270 = vpack.c.b16 %v4236, %v4234
        %v4271 = vpack.c.b16 %v4237, %v4235
        %v4272 = vpack.c.b16 %v4240, %v4238
        %v4273 = vpack.c.b16 %v4241, %v4239
        %4306 = vmatprep.subr.bf16.mxu0 %v4243
        %4307 = vmatpush1.bf16.msra.mxu0 %v4242
        %4308 = vmatprep.subr.bf16.mxu0 %v4245
        %4309 = vmatpush1.bf16.msra.mxu0 %v4244
        %4310 = vmatprep.subr.bf16.mxu0 %v4247
        %4311 = vmatpush1.bf16.msra.mxu0 %v4246
        %4312 = vmatprep.subr.bf16.mxu0 %v4249
        %4313 = vmatpush1.bf16.msra.mxu0 %v4248
        %4314 = vmatprep.subr.bf16.mxu0 %v4251
        %4315 = vmatpush1.bf16.msra.mxu0 %v4250
        %4316 = vmatprep.subr.bf16.mxu0 %v4253
        %4317 = vmatpush1.bf16.msra.mxu0 %v4252
        %4318 = vmatprep.subr.bf16.mxu0 %v4255
        %4319 = vmatpush1.bf16.msra.mxu0 %v4254
        %4320 = vmatprep.subr.bf16.mxu0 %v4257
        %4321 = vmatpush1.bf16.msra.mxu0 %v4256
        %4322 = vmatprep.subr.bf16.mxu0 %v4259
        %4323 = vmatpush1.bf16.msra.mxu0 %v4258
        %4324 = vmatprep.subr.bf16.mxu0 %v4261
        %4325 = vmatpush1.bf16.msra.mxu0 %v4260
        %4326 = vmatprep.subr.bf16.mxu0 %v4263
        %4327 = vmatpush1.bf16.msra.mxu0 %v4262
        %4328 = vmatprep.subr.bf16.mxu0 %v4265
        %4329 = vmatpush1.bf16.msra.mxu0 %v4264
        %4330 = vmatprep.subr.bf16.mxu0 %v4267
        %4331 = vmatpush1.bf16.msra.mxu0 %v4266
        %4332 = vmatprep.subr.bf16.mxu0 %v4269
        %4333 = vmatpush1.bf16.msra.mxu0 %v4268
        %4334 = vmatprep.subr.bf16.mxu0 %v4271
        %4335 = vmatpush1.bf16.msra.mxu0 %v4270
        %4336 = vmatprep.subr.bf16.mxu0 %v4273
        %4337 = vmatpush1.bf16.msra.mxu0 %v4272
        %4338 = vmatprep.mubr.bf16.mxu0 %v4037
        %4339 = vmatmul.mubr.bf16.gmra.mrb[0].mxu0 %v4036
        %v4340 = vpop.f32.mrb[0].mxu0
        %v4341 = vadd.f32 %v4139, %v4340
        %v4342 = vpop.f32.mrb[0].mxu0
        %v4343 = vadd.f32 %v4143, %v4342
        %v4344 = vpop.f32.mrb[0].mxu0
        %v4345 = vadd.f32 %v4139, %v4344
        %v4346 = vpop.f32.mrb[0].mxu0
        %v4347 = vadd.f32 %v4143, %v4346
        %4348 = vmatprep.mubr.bf16.mxu0 %v4039
        %4349 = vmatmul.mubr.bf16.gmra.mrb[0].mxu0 %v4038
        %v4350 = vpop.f32.mrb[0].mxu0
        %v4351 = vadd.f32 %v4139, %v4350
        %v4352 = vpop.f32.mrb[0].mxu0
        %v4353 = vadd.f32 %v4143, %v4352
        %v4354 = vpop.f32.mrb[0].mxu0
        %v4355 = vadd.f32 %v4139, %v4354
        %v4356 = vpop.f32.mrb[0].mxu0
        %v4357 = vadd.f32 %v4143, %v4356
        %4358 = vmatprep.mubr.bf16.mxu0 %v4041
        %4359 = vmatmul.mubr.bf16.gmra.mrb[0].mxu0 %v4040
        %v4360 = vpop.f32.mrb[0].mxu0
        %v4361 = vadd.f32 %v4139, %v4360
        %v4362 = vpop.f32.mrb[0].mxu0
        %v4363 = vadd.f32 %v4143, %v4362
        %v4364 = vpop.f32.mrb[0].mxu0
        %v4365 = vadd.f32 %v4139, %v4364
        %v4366 = vpop.f32.mrb[0].mxu0
        %v4367 = vadd.f32 %v4143, %v4366
        %4368 = vmatprep.mubr.bf16.mxu0 %v4043
        %4369 = vmatmul.mubr.bf16.gmra.mrb[0].mxu0 %v4042
        %v4370 = vpop.f32.mrb[0].mxu0
        %v4371 = vadd.f32 %v4139, %v4370
        %v4372 = vpop.f32.mrb[0].mxu0
        %v4373 = vadd.f32 %v4143, %v4372
        %v4374 = vpop.f32.mrb[0].mxu0
        %v4375 = vadd.f32 %v4139, %v4374
        %v4376 = vpop.f32.mrb[0].mxu0
        %v4377 = vadd.f32 %v4143, %v4376
        %4378 = vmatprep.mubr.bf16.mxu0 %v4045
        %4379 = vmatmul.mubr.bf16.gmra.mrb[0].mxu0 %v4044
        %v4380 = vpop.f32.mrb[0].mxu0
        %v4381 = vadd.f32 %v4139, %v4380
        %v4382 = vpop.f32.mrb[0].mxu0
        %v4383 = vadd.f32 %v4143, %v4382
        %v4384 = vpop.f32.mrb[0].mxu0
        %v4385 = vadd.f32 %v4139, %v4384
        %v4386 = vpop.f32.mrb[0].mxu0
        %v4387 = vadd.f32 %v4143, %v4386
        %4388 = vmatprep.mubr.bf16.mxu0 %v4047
        %4389 = vmatmul.mubr.bf16.gmra.mrb[0].mxu0 %v4046
        %v4390 = vpop.f32.mrb[0].mxu0
        %v4391 = vadd.f32 %v4139, %v4390
        %v4392 = vpop.f32.mrb[0].mxu0
        %v4393 = vadd.f32 %v4143, %v4392
        %v4394 = vpop.f32.mrb[0].mxu0
        %v4395 = vadd.f32 %v4139, %v4394
        %v4396 = vpop.f32.mrb[0].mxu0
        %v4397 = vadd.f32 %v4143, %v4396
        %4398 = vmatprep.mubr.bf16.mxu0 %v4049
        %4399 = vmatmul.mubr.bf16.gmra.mrb[0].mxu0 %v4048
        %v4400 = vpop.f32.mrb[0].mxu0
        %v4401 = vadd.f32 %v4139, %v4400
        %v4402 = vpop.f32.mrb[0].mxu0
        %v4403 = vadd.f32 %v4143, %v4402
        %v4404 = vpop.f32.mrb[0].mxu0
        %v4405 = vadd.f32 %v4139, %v4404
        %v4406 = vpop.f32.mrb[0].mxu0
        %v4407 = vadd.f32 %v4143, %v4406
        %4408 = vmatprep.mubr.bf16.mxu0 %v4051
        %4409 = vmatmul.mubr.bf16.gmra.mrb[0].mxu0 %v4050
        %v4410 = vpop.f32.mrb[0].mxu0
        %v4411 = vadd.f32 %v4139, %v4410
        %v4412 = vpop.f32.mrb[0].mxu0
        %v4413 = vadd.f32 %v4143, %v4412
        %v4414 = vpop.f32.mrb[0].mxu0
        %v4415 = vadd.f32 %v4139, %v4414
        %v4416 = vpop.f32.mrb[0].mxu0
        %v4417 = vadd.f32 %v4143, %v4416
        %4418 = vmatprep.mubr.bf16.mxu0 %v4053
        %4419 = vmatmul.mubr.bf16.gmra.mrb[0].mxu0 %v4052
        %v4420 = vpop.f32.mrb[0].mxu0
        %v4421 = vadd.f32 %v4139, %v4420
        %v4422 = vpop.f32.mrb[0].mxu0
        %v4423 = vadd.f32 %v4143, %v4422
        %v4424 = vpop.f32.mrb[0].mxu0
        %v4425 = vadd.f32 %v4139, %v4424
        %v4426 = vpop.f32.mrb[0].mxu0
        %v4427 = vadd.f32 %v4143, %v4426
        %4428 = vmatprep.mubr.bf16.mxu0 %v4055
        %4429 = vmatmul.mubr.bf16.gmra.mrb[0].mxu0 %v4054
        %v4430 = vpop.f32.mrb[0].mxu0
        %v4431 = vadd.f32 %v4139, %v4430
        %v4432 = vpop.f32.mrb[0].mxu0
        %v4433 = vadd.f32 %v4143, %v4432
        %v4434 = vpop.f32.mrb[0].mxu0
        %v4435 = vadd.f32 %v4139, %v4434
        %v4436 = vpop.f32.mrb[0].mxu0
        %v4437 = vadd.f32 %v4143, %v4436
        %4438 = vmatprep.mubr.bf16.mxu0 %v4057
        %4439 = vmatmul.mubr.bf16.gmra.mrb[0].mxu0 %v4056
        %v4440 = vpop.f32.mrb[0].mxu0
        %v4441 = vadd.f32 %v4139, %v4440
        %v4442 = vpop.f32.mrb[0].mxu0
        %v4443 = vadd.f32 %v4143, %v4442
        %v4444 = vpop.f32.mrb[0].mxu0
        %v4445 = vadd.f32 %v4139, %v4444
        %v4446 = vpop.f32.mrb[0].mxu0
        %v4447 = vadd.f32 %v4143, %v4446
        %4448 = vmatprep.mubr.bf16.mxu0 %v4059
        %4449 = vmatmul.mubr.bf16.gmra.mrb[0].mxu0 %v4058
        %v4450 = vpop.f32.mrb[0].mxu0
        %v4451 = vadd.f32 %v4139, %v4450
        %v4452 = vpop.f32.mrb[0].mxu0
        %v4453 = vadd.f32 %v4143, %v4452
        %v4454 = vpop.f32.mrb[0].mxu0
        %v4455 = vadd.f32 %v4139, %v4454
        %v4456 = vpop.f32.mrb[0].mxu0
        %v4457 = vadd.f32 %v4143, %v4456
        %4458 = vmatprep.mubr.bf16.mxu0 %v4061
        %4459 = vmatmul.mubr.bf16.gmra.mrb[0].mxu0 %v4060
        %v4460 = vpop.f32.mrb[0].mxu0
        %v4461 = vadd.f32 %v4139, %v4460
        %v4462 = vpop.f32.mrb[0].mxu0
        %v4463 = vadd.f32 %v4143, %v4462
        %v4464 = vpop.f32.mrb[0].mxu0
        %v4465 = vadd.f32 %v4139, %v4464
        %v4466 = vpop.f32.mrb[0].mxu0
        %v4467 = vadd.f32 %v4143, %v4466
        %4468 = vmatprep.mubr.bf16.mxu0 %v4063
        %4469 = vmatmul.mubr.bf16.gmra.mrb[0].mxu0 %v4062
        %v4470 = vpop.f32.mrb[0].mxu0
        %v4471 = vadd.f32 %v4139, %v4470
        %v4472 = vpop.f32.mrb[0].mxu0
        %v4473 = vadd.f32 %v4143, %v4472
        %v4474 = vpop.f32.mrb[0].mxu0
        %v4475 = vadd.f32 %v4139, %v4474
        %v4476 = vpop.f32.mrb[0].mxu0
        %v4477 = vadd.f32 %v4143, %v4476
        %4478 = vmatprep.mubr.bf16.mxu0 %v4065
        %4479 = vmatmul.mubr.bf16.gmra.mrb[0].mxu0 %v4064
        %v4480 = vpop.f32.mrb[0].mxu0
        %v4481 = vadd.f32 %v4139, %v4480
        %v4482 = vpop.f32.mrb[0].mxu0
        %v4483 = vadd.f32 %v4143, %v4482
        %v4484 = vpop.f32.mrb[0].mxu0
        %v4485 = vadd.f32 %v4139, %v4484
        %v4486 = vpop.f32.mrb[0].mxu0
        %v4487 = vadd.f32 %v4143, %v4486
        %4488 = vmatprep.mubr.bf16.mxu0 %v4067
        %4489 = vmatmul.mubr.bf16.gmra.mrb[0].mxu0 %v4066
        %v4490 = vpop.f32.mrb[0].mxu0
        %v4491 = vadd.f32 %v4139, %v4490
        %v4492 = vpop.f32.mrb[0].mxu0
        %v4493 = vadd.f32 %v4143, %v4492
        %v4494 = vpop.f32.mrb[0].mxu0
        %v4495 = vadd.f32 %v4139, %v4494
        %v4496 = vpop.f32.mrb[0].mxu0
        %v4497 = vadd.f32 %v4143, %v4496
        %4498 = vmatprep.mubr.bf16.mxu0 %v4069
        %4499 = vmatmul.mubr.bf16.gmra.mrb[0].mxu0 %v4068
        %v4500 = vpop.f32.mrb[0].mxu0
        %v4501 = vadd.f32 %v4139, %v4500
        %v4502 = vpop.f32.mrb[0].mxu0
        %v4503 = vadd.f32 %v4143, %v4502
        %v4504 = vpop.f32.mrb[0].mxu0
        %v4505 = vadd.f32 %v4139, %v4504
        %v4506 = vpop.f32.mrb[0].mxu0
        %v4507 = vadd.f32 %v4143, %v4506
        %4508 = vmatprep.mubr.bf16.mxu0 %v4071
        %4509 = vmatmul.mubr.bf16.gmra.mrb[0].mxu0 %v4070
        %v4510 = vpop.f32.mrb[0].mxu0
        %v4511 = vadd.f32 %v4139, %v4510
        %v4512 = vpop.f32.mrb[0].mxu0
        %v4513 = vadd.f32 %v4143, %v4512
        %v4514 = vpop.f32.mrb[0].mxu0
        %v4515 = vadd.f32 %v4139, %v4514
        %v4516 = vpop.f32.mrb[0].mxu0
        %v4517 = vadd.f32 %v4143, %v4516
        %4518 = vmatprep.mubr.bf16.mxu0 %v4073
        %4519 = vmatmul.mubr.bf16.gmra.mrb[0].mxu0 %v4072
        %v4520 = vpop.f32.mrb[0].mxu0
        %v4521 = vadd.f32 %v4139, %v4520
        %v4522 = vpop.f32.mrb[0].mxu0
        %v4523 = vadd.f32 %v4143, %v4522
        %v4524 = vpop.f32.mrb[0].mxu0
        %v4525 = vadd.f32 %v4139, %v4524
        %v4526 = vpop.f32.mrb[0].mxu0
        %v4527 = vadd.f32 %v4143, %v4526
        %4528 = vmatprep.mubr.bf16.mxu0 %v4075
        %4529 = vmatmul.mubr.bf16.gmra.mrb[0].mxu0 %v4074
        %v4530 = vpop.f32.mrb[0].mxu0
        %v4531 = vadd.f32 %v4139, %v4530
        %v4532 = vpop.f32.mrb[0].mxu0
        %v4533 = vadd.f32 %v4143, %v4532
        %v4534 = vpop.f32.mrb[0].mxu0
        %v4535 = vadd.f32 %v4139, %v4534
        %v4536 = vpop.f32.mrb[0].mxu0
        %v4537 = vadd.f32 %v4143, %v4536
        %4538 = vmatprep.mubr.bf16.mxu0 %v4077
        %4539 = vmatmul.mubr.bf16.gmra.mrb[0].mxu0 %v4076
        %v4540 = vpop.f32.mrb[0].mxu0
        %v4541 = vadd.f32 %v4139, %v4540
        %v4542 = vpop.f32.mrb[0].mxu0
        %v4543 = vadd.f32 %v4143, %v4542
        %v4544 = vpop.f32.mrb[0].mxu0
        %v4545 = vadd.f32 %v4139, %v4544
        %v4546 = vpop.f32.mrb[0].mxu0
        %v4547 = vadd.f32 %v4143, %v4546
        %4548 = vmatprep.mubr.bf16.mxu0 %v4079
        %4549 = vmatmul.mubr.bf16.gmra.mrb[0].mxu0 %v4078
        %v4550 = vpop.f32.mrb[0].mxu0
        %v4551 = vadd.f32 %v4139, %v4550
        %v4552 = vpop.f32.mrb[0].mxu0
        %v4553 = vadd.f32 %v4143, %v4552
        %v4554 = vpop.f32.mrb[0].mxu0
        %v4555 = vadd.f32 %v4139, %v4554
        %v4556 = vpop.f32.mrb[0].mxu0
        %v4557 = vadd.f32 %v4143, %v4556
        %4558 = vmatprep.mubr.bf16.mxu0 %v4081
        %4559 = vmatmul.mubr.bf16.gmra.mrb[0].mxu0 %v4080
        %v4560 = vpop.f32.mrb[0].mxu0
        %v4561 = vadd.f32 %v4139, %v4560
        %v4562 = vpop.f32.mrb[0].mxu0
        %v4563 = vadd.f32 %v4143, %v4562
        %v4564 = vpop.f32.mrb[0].mxu0
        %v4565 = vadd.f32 %v4139, %v4564
        %v4566 = vpop.f32.mrb[0].mxu0
        %v4567 = vadd.f32 %v4143, %v4566
        %4568 = vmatprep.mubr.bf16.mxu0 %v4083
        %4569 = vmatmul.mubr.bf16.gmra.mrb[0].mxu0 %v4082
        %v4570 = vpop.f32.mrb[0].mxu0
        %v4571 = vadd.f32 %v4139, %v4570
        %v4572 = vpop.f32.mrb[0].mxu0
        %v4573 = vadd.f32 %v4143, %v4572
        %v4574 = vpop.f32.mrb[0].mxu0
        %v4575 = vadd.f32 %v4139, %v4574
        %v4576 = vpop.f32.mrb[0].mxu0
        %v4577 = vadd.f32 %v4143, %v4576
        %4578 = vmatprep.mubr.bf16.mxu0 %v4085
        %4579 = vmatmul.mubr.bf16.gmra.mrb[0].mxu0 %v4084
        %v4580 = vpop.f32.mrb[0].mxu0
        %v4581 = vadd.f32 %v4139, %v4580
        %v4582 = vpop.f32.mrb[0].mxu0
        %v4583 = vadd.f32 %v4143, %v4582
        %v4584 = vpop.f32.mrb[0].mxu0
        %v4585 = vadd.f32 %v4139, %v4584
        %v4586 = vpop.f32.mrb[0].mxu0
        %v4587 = vadd.f32 %v4143, %v4586
        %4588 = vmatprep.mubr.bf16.mxu0 %v4087
        %4589 = vmatmul.mubr.bf16.gmra.mrb[0].mxu0 %v4086
        %v4590 = vpop.f32.mrb[0].mxu0
        %v4591 = vadd.f32 %v4139, %v4590
        %v4592 = vpop.f32.mrb[0].mxu0
        %v4593 = vadd.f32 %v4143, %v4592
        %v4594 = vpop.f32.mrb[0].mxu0
        %v4595 = vadd.f32 %v4139, %v4594
        %v4596 = vpop.f32.mrb[0].mxu0
        %v4597 = vadd.f32 %v4143, %v4596
        %4598 = vmatprep.mubr.bf16.mxu0 %v4089
        %4599 = vmatmul.mubr.bf16.gmra.mrb[0].mxu0 %v4088
        %v4600 = vpop.f32.mrb[0].mxu0
        %v4601 = vadd.f32 %v4139, %v4600
        %v4602 = vpop.f32.mrb[0].mxu0
        %v4603 = vadd.f32 %v4143, %v4602
        %v4604 = vpop.f32.mrb[0].mxu0
        %v4605 = vadd.f32 %v4139, %v4604
        %v4606 = vpop.f32.mrb[0].mxu0
        %v4607 = vadd.f32 %v4143, %v4606
        %4608 = vmatprep.mubr.bf16.mxu0 %v4091
        %4609 = vmatmul.mubr.bf16.gmra.mrb[0].mxu0 %v4090
        %v4610 = vpop.f32.mrb[0].mxu0
        %v4611 = vadd.f32 %v4139, %v4610
        %v4612 = vpop.f32.mrb[0].mxu0
        %v4613 = vadd.f32 %v4143, %v4612
        %v4614 = vpop.f32.mrb[0].mxu0
        %v4615 = vadd.f32 %v4139, %v4614
        %v4616 = vpop.f32.mrb[0].mxu0
        %v4617 = vadd.f32 %v4143, %v4616
        %4618 = vmatprep.mubr.bf16.mxu0 %v4093
        %4619 = vmatmul.mubr.bf16.gmra.mrb[0].mxu0 %v4092
        %v4620 = vpop.f32.mrb[0].mxu0
        %v4621 = vadd.f32 %v4139, %v4620
        %v4622 = vpop.f32.mrb[0].mxu0
        %v4623 = vadd.f32 %v4143, %v4622
        %v4624 = vpop.f32.mrb[0].mxu0
        %v4625 = vadd.f32 %v4139, %v4624
        %v4626 = vpop.f32.mrb[0].mxu0
        %v4627 = vadd.f32 %v4143, %v4626
        %4628 = vmatprep.mubr.bf16.mxu0 %v4095
        %4629 = vmatmul.mubr.bf16.gmra.mrb[0].mxu0 %v4094
        %v4630 = vpop.f32.mrb[0].mxu0
        %v4631 = vadd.f32 %v4139, %v4630
        %v4632 = vpop.f32.mrb[0].mxu0
        %v4633 = vadd.f32 %v4143, %v4632
        %v4634 = vpop.f32.mrb[0].mxu0
        %v4635 = vadd.f32 %v4139, %v4634
        %v4636 = vpop.f32.mrb[0].mxu0
        %v4637 = vadd.f32 %v4143, %v4636
        %4638 = vmatprep.mubr.bf16.mxu0 %v4097
        %4639 = vmatmul.mubr.bf16.gmra.mrb[0].mxu0 %v4096
        %v4640 = vpop.f32.mrb[0].mxu0
        %v4641 = vadd.f32 %v4139, %v4640
        %v4642 = vpop.f32.mrb[0].mxu0
        %v4643 = vadd.f32 %v4143, %v4642
        %v4644 = vpop.f32.mrb[0].mxu0
        %v4645 = vadd.f32 %v4139, %v4644
        %v4646 = vpop.f32.mrb[0].mxu0
        %v4647 = vadd.f32 %v4143, %v4646
        %4648 = vmatprep.mubr.bf16.mxu0 %v4099
        %4649 = vmatmul.mubr.bf16.gmra.mrb[0].mxu0 %v4098
        %v4650 = vpop.f32.mrb[0].mxu0
        %v4651 = vadd.f32 %v4139, %v4650
        %v4652 = vpop.f32.mrb[0].mxu0
        %v4653 = vadd.f32 %v4143, %v4652
        %v4654 = vpop.f32.mrb[0].mxu0
        %v4655 = vadd.f32 %v4139, %v4654
        %v4656 = vpop.f32.mrb[0].mxu0
        %v4657 = vadd.f32 %v4143, %v4656
        %4658 = vdwg.mxu0
        %v4659 = vmax.f32 %v4341, 0.0
        %v4660 = vmax.f32 %v4343, 0.0
        %v4661 = vmax.f32 %v4345, 0.0
        %v4662 = vmax.f32 %v4347, 0.0
        %v4663 = vmax.f32 %v4351, 0.0
        %v4664 = vmax.f32 %v4353, 0.0
        %v4665 = vmax.f32 %v4355, 0.0
        %v4666 = vmax.f32 %v4357, 0.0
        %v4667 = vmax.f32 %v4361, 0.0
        %v4668 = vmax.f32 %v4363, 0.0
        %v4669 = vmax.f32 %v4365, 0.0
        %v4670 = vmax.f32 %v4367, 0.0
        %v4671 = vmax.f32 %v4371, 0.0
        %v4672 = vmax.f32 %v4373, 0.0
        %v4673 = vmax.f32 %v4375, 0.0
        %v4674 = vmax.f32 %v4377, 0.0
        %v4675 = vmax.f32 %v4381, 0.0
        %v4676 = vmax.f32 %v4383, 0.0
        %v4677 = vmax.f32 %v4385, 0.0
        %v4678 = vmax.f32 %v4387, 0.0
        %v4679 = vmax.f32 %v4391, 0.0
        %v4680 = vmax.f32 %v4393, 0.0
        %v4681 = vmax.f32 %v4395, 0.0
        %v4682 = vmax.f32 %v4397, 0.0
        %v4683 = vmax.f32 %v4401, 0.0
        %v4684 = vmax.f32 %v4403, 0.0
        %v4685 = vmax.f32 %v4405, 0.0
        %v4686 = vmax.f32 %v4407, 0.0
        %v4687 = vmax.f32 %v4411, 0.0
        %v4688 = vmax.f32 %v4413, 0.0
        %v4689 = vmax.f32 %v4415, 0.0
        %v4690 = vmax.f32 %v4417, 0.0
        %v4691 = vmax.f32 %v4421, 0.0
        %v4692 = vmax.f32 %v4423, 0.0
        %v4693 = vmax.f32 %v4425, 0.0
        %v4694 = vmax.f32 %v4427, 0.0
        %v4695 = vmax.f32 %v4431, 0.0
        %v4696 = vmax.f32 %v4433, 0.0
        %v4697 = vmax.f32 %v4435, 0.0
        %v4698 = vmax.f32 %v4437, 0.0
        %v4699 = vmax.f32 %v4441, 0.0
        %v4700 = vmax.f32 %v4443, 0.0
        %v4701 = vmax.f32 %v4445, 0.0
        %v4702 = vmax.f32 %v4447, 0.0
        %v4703 = vmax.f32 %v4451, 0.0
        %v4704 = vmax.f32 %v4453, 0.0
        %v4705 = vmax.f32 %v4455, 0.0
        %v4706 = vmax.f32 %v4457, 0.0
        %v4707 = vmax.f32 %v4461, 0.0
        %v4708 = vmax.f32 %v4463, 0.0
        %v4709 = vmax.f32 %v4465, 0.0
        %v4710 = vmax.f32 %v4467, 0.0
        %v4711 = vmax.f32 %v4471, 0.0
        %v4712 = vmax.f32 %v4473, 0.0
        %v4713 = vmax.f32 %v4475, 0.0
        %v4714 = vmax.f32 %v4477, 0.0
        %v4715 = vmax.f32 %v4481, 0.0
        %v4716 = vmax.f32 %v4483, 0.0
        %v4717 = vmax.f32 %v4485, 0.0
        %v4718 = vmax.f32 %v4487, 0.0
        %v4719 = vmax.f32 %v4491, 0.0
        %v4720 = vmax.f32 %v4493, 0.0
        %v4721 = vmax.f32 %v4495, 0.0
        %v4722 = vmax.f32 %v4497, 0.0
        %v4723 = vmax.f32 %v4501, 0.0
        %v4724 = vmax.f32 %v4503, 0.0
        %v4725 = vmax.f32 %v4505, 0.0
        %v4726 = vmax.f32 %v4507, 0.0
        %v4727 = vmax.f32 %v4511, 0.0
        %v4728 = vmax.f32 %v4513, 0.0
        %v4729 = vmax.f32 %v4515, 0.0
        %v4730 = vmax.f32 %v4517, 0.0
        %v4731 = vmax.f32 %v4521, 0.0
        %v4732 = vmax.f32 %v4523, 0.0
        %v4733 = vmax.f32 %v4525, 0.0
        %v4734 = vmax.f32 %v4527, 0.0
        %v4735 = vmax.f32 %v4531, 0.0
        %v4736 = vmax.f32 %v4533, 0.0
        %v4737 = vmax.f32 %v4535, 0.0
        %v4738 = vmax.f32 %v4537, 0.0
        %v4739 = vmax.f32 %v4541, 0.0
        %v4740 = vmax.f32 %v4543, 0.0
        %v4741 = vmax.f32 %v4545, 0.0
        %v4742 = vmax.f32 %v4547, 0.0
        %v4743 = vmax.f32 %v4551, 0.0
        %v4744 = vmax.f32 %v4553, 0.0
        %v4745 = vmax.f32 %v4555, 0.0
        %v4746 = vmax.f32 %v4557, 0.0
        %v4747 = vmax.f32 %v4561, 0.0
        %v4748 = vmax.f32 %v4563, 0.0
        %v4749 = vmax.f32 %v4565, 0.0
        %v4750 = vmax.f32 %v4567, 0.0
        %v4751 = vmax.f32 %v4571, 0.0
        %v4752 = vmax.f32 %v4573, 0.0
        %v4753 = vmax.f32 %v4575, 0.0
        %v4754 = vmax.f32 %v4577, 0.0
        %v4755 = vmax.f32 %v4581, 0.0
        %v4756 = vmax.f32 %v4583, 0.0
        %v4757 = vmax.f32 %v4585, 0.0
        %v4758 = vmax.f32 %v4587, 0.0
        %v4759 = vmax.f32 %v4591, 0.0
        %v4760 = vmax.f32 %v4593, 0.0
        %v4761 = vmax.f32 %v4595, 0.0
        %v4762 = vmax.f32 %v4597, 0.0
        %v4763 = vmax.f32 %v4601, 0.0
        %v4764 = vmax.f32 %v4603, 0.0
        %v4765 = vmax.f32 %v4605, 0.0
        %v4766 = vmax.f32 %v4607, 0.0
        %v4767 = vmax.f32 %v4611, 0.0
        %v4768 = vmax.f32 %v4613, 0.0
        %v4769 = vmax.f32 %v4615, 0.0
        %v4770 = vmax.f32 %v4617, 0.0
        %v4771 = vmax.f32 %v4621, 0.0
        %v4772 = vmax.f32 %v4623, 0.0
        %v4773 = vmax.f32 %v4625, 0.0
        %v4774 = vmax.f32 %v4627, 0.0
        %v4775 = vmax.f32 %v4631, 0.0
        %v4776 = vmax.f32 %v4633, 0.0
        %v4777 = vmax.f32 %v4635, 0.0
        %v4778 = vmax.f32 %v4637, 0.0
        %v4779 = vmax.f32 %v4641, 0.0
        %v4780 = vmax.f32 %v4643, 0.0
        %v4781 = vmax.f32 %v4645, 0.0
        %v4782 = vmax.f32 %v4647, 0.0
        %v4783 = vmax.f32 %v4651, 0.0
        %v4784 = vmax.f32 %v4653, 0.0
        %v4785 = vmax.f32 %v4655, 0.0
        %v4786 = vmax.f32 %v4657, 0.0
        %v4787 = vpack.c.bf16 %v4661, %v4659
        %v4788 = vpack.c.bf16 %v4662, %v4660
        %v4789 = vpack.c.bf16 %v4665, %v4663
        %v4790 = vpack.c.bf16 %v4666, %v4664
        %v4791 = vpack.c.bf16 %v4669, %v4667
        %v4792 = vpack.c.bf16 %v4670, %v4668
        %v4793 = vpack.c.bf16 %v4673, %v4671
        %v4794 = vpack.c.bf16 %v4674, %v4672
        %v4795 = vpack.c.bf16 %v4677, %v4675
        %v4796 = vpack.c.bf16 %v4678, %v4676
        %v4797 = vpack.c.bf16 %v4681, %v4679
        %v4798 = vpack.c.bf16 %v4682, %v4680
        %v4799 = vpack.c.bf16 %v4685, %v4683
        %v4800 = vpack.c.bf16 %v4686, %v4684
        %v4801 = vpack.c.bf16 %v4689, %v4687
        %v4802 = vpack.c.bf16 %v4690, %v4688
        %v4803 = vpack.c.bf16 %v4693, %v4691
        %v4804 = vpack.c.bf16 %v4694, %v4692
        %v4805 = vpack.c.bf16 %v4697, %v4695
        %v4806 = vpack.c.bf16 %v4698, %v4696
        %v4807 = vpack.c.bf16 %v4701, %v4699
        %v4808 = vpack.c.bf16 %v4702, %v4700
        %v4809 = vpack.c.bf16 %v4705, %v4703
        %v4810 = vpack.c.bf16 %v4706, %v4704
        %v4811 = vpack.c.bf16 %v4709, %v4707
        %v4812 = vpack.c.bf16 %v4710, %v4708
        %v4813 = vpack.c.bf16 %v4713, %v4711
        %v4814 = vpack.c.bf16 %v4714, %v4712
        %v4815 = vpack.c.bf16 %v4717, %v4715
        %v4816 = vpack.c.bf16 %v4718, %v4716
        %v4817 = vpack.c.bf16 %v4721, %v4719
        %v4818 = vpack.c.bf16 %v4722, %v4720
        %v4819 = vpack.c.bf16 %v4725, %v4723
        %v4820 = vpack.c.bf16 %v4726, %v4724
        %v4821 = vpack.c.bf16 %v4729, %v4727
        %v4822 = vpack.c.bf16 %v4730, %v4728
        %v4823 = vpack.c.bf16 %v4733, %v4731
        %v4824 = vpack.c.bf16 %v4734, %v4732
        %v4825 = vpack.c.bf16 %v4737, %v4735
        %v4826 = vpack.c.bf16 %v4738, %v4736
        %v4827 = vpack.c.bf16 %v4741, %v4739
        %v4828 = vpack.c.bf16 %v4742, %v4740
        %v4829 = vpack.c.bf16 %v4745, %v4743
        %v4830 = vpack.c.bf16 %v4746, %v4744
        %v4831 = vpack.c.bf16 %v4749, %v4747
        %v4832 = vpack.c.bf16 %v4750, %v4748
        %v4833 = vpack.c.bf16 %v4753, %v4751
        %v4834 = vpack.c.bf16 %v4754, %v4752
        %v4835 = vpack.c.bf16 %v4757, %v4755
        %v4836 = vpack.c.bf16 %v4758, %v4756
        %v4837 = vpack.c.bf16 %v4761, %v4759
        %v4838 = vpack.c.bf16 %v4762, %v4760
        %v4839 = vpack.c.bf16 %v4765, %v4763
        %v4840 = vpack.c.bf16 %v4766, %v4764
        %v4841 = vpack.c.bf16 %v4769, %v4767
        %v4842 = vpack.c.bf16 %v4770, %v4768
        %v4843 = vpack.c.bf16 %v4773, %v4771
        %v4844 = vpack.c.bf16 %v4774, %v4772
        %v4845 = vpack.c.bf16 %v4777, %v4775
        %v4846 = vpack.c.bf16 %v4778, %v4776
        %v4847 = vpack.c.bf16 %v4781, %v4779
        %v4848 = vpack.c.bf16 %v4782, %v4780
        %v4849 = vpack.c.bf16 %v4785, %v4783
        %v4850 = vpack.c.bf16 %v4786, %v4784
        %s4851 = scalar_lea.vmem [#allocation2], 1024
        %v4852 = vld [vmem:[%s4851] sm:$0xff]
        %v4853 = vld [vmem:[%s4851 + $0x8] sm:$0xff]
        %v4854 = vld [vmem:[%s4851 + $0x10] sm:$0xff]
        %v4855 = vld [vmem:[%s4851 + $0x18] sm:$0xff]
        %v4856 = vld [vmem:[%s4851 + $0x20] sm:$0xff]
        %v4857 = vld [vmem:[%s4851 + $0x28] sm:$0xff]
        %v4858 = vld [vmem:[%s4851 + $0x30] sm:$0xff]
        %v4859 = vld [vmem:[%s4851 + $0x38] sm:$0xff]
        %v4860 = vld [vmem:[%s4851 + $0x40] sm:$0xff]
        %v4861 = vld [vmem:[%s4851 + $0x48] sm:$0xff]
        %v4862 = vld [vmem:[%s4851 + $0x50] sm:$0xff]
        %v4863 = vld [vmem:[%s4851 + $0x58] sm:$0xff]
        %v4864 = vld [vmem:[%s4851 + $0x60] sm:$0xff]
        %v4865 = vld [vmem:[%s4851 + $0x68] sm:$0xff]
        %v4866 = vld [vmem:[%s4851 + $0x70] sm:$0xff]
        %v4867 = vld [vmem:[%s4851 + $0x78] sm:$0xff]
        %v4868 = vld [vmem:[%s4851 + $0x80] sm:$0xff]
        %v4869 = vld [vmem:[%s4851 + $0x88] sm:$0xff]
        %v4870 = vld [vmem:[%s4851 + $0x90] sm:$0xff]
        %v4871 = vld [vmem:[%s4851 + $0x98] sm:$0xff]
        %v4872 = vld [vmem:[%s4851 + $0xa0] sm:$0xff]
        %v4873 = vld [vmem:[%s4851 + $0xa8] sm:$0xff]
        %v4874 = vld [vmem:[%s4851 + $0xb0] sm:$0xff]
        %v4875 = vld [vmem:[%s4851 + $0xb8] sm:$0xff]
        %v4876 = vld [vmem:[%s4851 + $0xc0] sm:$0xff]
        %v4877 = vld [vmem:[%s4851 + $0xc8] sm:$0xff]
        %v4878 = vld [vmem:[%s4851 + $0xd0] sm:$0xff]
        %v4879 = vld [vmem:[%s4851 + $0xd8] sm:$0xff]
        %v4880 = vld [vmem:[%s4851 + $0xe0] sm:$0xff]
        %v4881 = vld [vmem:[%s4851 + $0xe8] sm:$0xff]
        %v4882 = vld [vmem:[%s4851 + $0xf0] sm:$0xff]
        %v4883 = vld [vmem:[%s4851 + $0xf8] sm:$0xff]
        %v4916 = vunpack.c.l.b16 %v4852
        %v4917 = vunpack.c.h.b16 %v4852
        %v4918 = vunpack.c.l.b16 %v4853
        %v4919 = vunpack.c.h.b16 %v4853
        %v4920 = vunpack.c.l.b16 %v4854
        %v4921 = vunpack.c.h.b16 %v4854
        %v4922 = vunpack.c.l.b16 %v4855
        %v4923 = vunpack.c.h.b16 %v4855
        %v4924 = vunpack.c.l.b16 %v4856
        %v4925 = vunpack.c.h.b16 %v4856
        %v4926 = vunpack.c.l.b16 %v4857
        %v4927 = vunpack.c.h.b16 %v4857
        %v4928 = vunpack.c.l.b16 %v4858
        %v4929 = vunpack.c.h.b16 %v4858
        %v4930 = vunpack.c.l.b16 %v4859
        %v4931 = vunpack.c.h.b16 %v4859
        %v4932 = vunpack.c.l.b16 %v4860
        %v4933 = vunpack.c.h.b16 %v4860
        %v4934 = vunpack.c.l.b16 %v4861
        %v4935 = vunpack.c.h.b16 %v4861
        %v4936 = vunpack.c.l.b16 %v4862
        %v4937 = vunpack.c.h.b16 %v4862
        %v4938 = vunpack.c.l.b16 %v4863
        %v4939 = vunpack.c.h.b16 %v4863
        %v4940 = vunpack.c.l.b16 %v4864
        %v4941 = vunpack.c.h.b16 %v4864
        %v4942 = vunpack.c.l.b16 %v4865
        %v4943 = vunpack.c.h.b16 %v4865
        %v4944 = vunpack.c.l.b16 %v4866
        %v4945 = vunpack.c.h.b16 %v4866
        %v4946 = vunpack.c.l.b16 %v4867
        %v4947 = vunpack.c.h.b16 %v4867
        %v4948 = vunpack.c.l.b16 %v4868
        %v4949 = vunpack.c.h.b16 %v4868
        %v4950 = vunpack.c.l.b16 %v4869
        %v4951 = vunpack.c.h.b16 %v4869
        %v4952 = vunpack.c.l.b16 %v4870
        %v4953 = vunpack.c.h.b16 %v4870
        %v4954 = vunpack.c.l.b16 %v4871
        %v4955 = vunpack.c.h.b16 %v4871
        %v4956 = vunpack.c.l.b16 %v4872
        %v4957 = vunpack.c.h.b16 %v4872
        %v4958 = vunpack.c.l.b16 %v4873
        %v4959 = vunpack.c.h.b16 %v4873
        %v4960 = vunpack.c.l.b16 %v4874
        %v4961 = vunpack.c.h.b16 %v4874
        %v4962 = vunpack.c.l.b16 %v4875
        %v4963 = vunpack.c.h.b16 %v4875
        %v4964 = vunpack.c.l.b16 %v4876
        %v4965 = vunpack.c.h.b16 %v4876
        %v4966 = vunpack.c.l.b16 %v4877
        %v4967 = vunpack.c.h.b16 %v4877
        %v4968 = vunpack.c.l.b16 %v4878
        %v4969 = vunpack.c.h.b16 %v4878
        %v4970 = vunpack.c.l.b16 %v4879
        %v4971 = vunpack.c.h.b16 %v4879
        %v4972 = vunpack.c.l.b16 %v4880
        %v4973 = vunpack.c.h.b16 %v4880
        %v4974 = vunpack.c.l.b16 %v4881
        %v4975 = vunpack.c.h.b16 %v4881
        %v4976 = vunpack.c.l.b16 %v4882
        %v4977 = vunpack.c.h.b16 %v4882
        %v4978 = vunpack.c.l.b16 %v4883
        %v4979 = vunpack.c.h.b16 %v4883
        %v4980 = vpack.c.b16 %v4918, %v4916
        %v4981 = vpack.c.b16 %v4919, %v4917
        %v4982 = vpack.c.b16 %v4922, %v4920
        %v4983 = vpack.c.b16 %v4923, %v4921
        %v4984 = vpack.c.b16 %v4926, %v4924
        %v4985 = vpack.c.b16 %v4927, %v4925
        %v4986 = vpack.c.b16 %v4930, %v4928
        %v4987 = vpack.c.b16 %v4931, %v4929
        %v4988 = vpack.c.b16 %v4934, %v4932
        %v4989 = vpack.c.b16 %v4935, %v4933
        %v4990 = vpack.c.b16 %v4938, %v4936
        %v4991 = vpack.c.b16 %v4939, %v4937
        %v4992 = vpack.c.b16 %v4942, %v4940
        %v4993 = vpack.c.b16 %v4943, %v4941
        %v4994 = vpack.c.b16 %v4946, %v4944
        %v4995 = vpack.c.b16 %v4947, %v4945
        %v4996 = vpack.c.b16 %v4950, %v4948
        %v4997 = vpack.c.b16 %v4951, %v4949
        %v4998 = vpack.c.b16 %v4954, %v4952
        %v4999 = vpack.c.b16 %v4955, %v4953
        %v5000 = vpack.c.b16 %v4958, %v4956
        %v5001 = vpack.c.b16 %v4959, %v4957
        %v5002 = vpack.c.b16 %v4962, %v4960
        %v5003 = vpack.c.b16 %v4963, %v4961
        %v5004 = vpack.c.b16 %v4966, %v4964
        %v5005 = vpack.c.b16 %v4967, %v4965
        %v5006 = vpack.c.b16 %v4970, %v4968
        %v5007 = vpack.c.b16 %v4971, %v4969
        %v5008 = vpack.c.b16 %v4974, %v4972
        %v5009 = vpack.c.b16 %v4975, %v4973
        %v5010 = vpack.c.b16 %v4978, %v4976
        %v5011 = vpack.c.b16 %v4979, %v4977
        %5044 = vmatprep.subr.bf16.mxu0 %v4981
        %5045 = vmatpush1.bf16.msra.mxu0 %v4980
        %5046 = vmatprep.subr.bf16.mxu0 %v4983
        %5047 = vmatpush1.bf16.msra.mxu0 %v4982
        %5048 = vmatprep.subr.bf16.mxu0 %v4985
        %5049 = vmatpush1.bf16.msra.mxu0 %v4984
        %5050 = vmatprep.subr.bf16.mxu0 %v4987
        %5051 = vmatpush1.bf16.msra.mxu0 %v4986
        %5052 = vmatprep.subr.bf16.mxu0 %v4989
        %5053 = vmatpush1.bf16.msra.mxu0 %v4988
        %5054 = vmatprep.subr.bf16.mxu0 %v4991
        %5055 = vmatpush1.bf16.msra.mxu0 %v4990
        %5056 = vmatprep.subr.bf16.mxu0 %v4993
        %5057 = vmatpush1.bf16.msra.mxu0 %v4992
        %5058 = vmatprep.subr.bf16.mxu0 %v4995
        %5059 = vmatpush1.bf16.msra.mxu0 %v4994
        %5060 = vmatprep.subr.bf16.mxu0 %v4997
        %5061 = vmatpush1.bf16.msra.mxu0 %v4996
        %5062 = vmatprep.subr.bf16.mxu0 %v4999
        %5063 = vmatpush1.bf16.msra.mxu0 %v4998
        %5064 = vmatprep.subr.bf16.mxu0 %v5001
        %5065 = vmatpush1.bf16.msra.mxu0 %v5000
        %5066 = vmatprep.subr.bf16.mxu0 %v5003
        %5067 = vmatpush1.bf16.msra.mxu0 %v5002
        %5068 = vmatprep.subr.bf16.mxu0 %v5005
        %5069 = vmatpush1.bf16.msra.mxu0 %v5004
        %5070 = vmatprep.subr.bf16.mxu0 %v5007
        %5071 = vmatpush1.bf16.msra.mxu0 %v5006
        %5072 = vmatprep.subr.bf16.mxu0 %v5009
        %5073 = vmatpush1.bf16.msra.mxu0 %v5008
        %5074 = vmatprep.subr.bf16.mxu0 %v5011
        %5075 = vmatpush1.bf16.msra.mxu0 %v5010
        %5076 = vmatprep.mubr.bf16.mxu0 %v4788
        %5077 = vmatmul.mubr.bf16.gmra.mrb[0].mxu0 %v4787
        %v5078 = vpop.f32.mrb[0].mxu0
        %v5079 = vadd.f32 %v909, %v5078
        %v5080 = vpop.f32.mrb[0].mxu0
        %v5081 = vadd.f32 %v911, %v5080
        %v5082 = vpop.f32.mrb[0].mxu0
        %v5083 = vadd.f32 %v913, %v5082
        %v5084 = vpop.f32.mrb[0].mxu0
        %v5085 = vadd.f32 %v915, %v5084
        %5086 = vmatprep.mubr.bf16.mxu0 %v4790
        %5087 = vmatmul.mubr.bf16.gmra.mrb[0].mxu0 %v4789
        %v5088 = vpop.f32.mrb[0].mxu0
        %v5089 = vadd.f32 %v919, %v5088
        %v5090 = vpop.f32.mrb[0].mxu0
        %v5091 = vadd.f32 %v921, %v5090
        %v5092 = vpop.f32.mrb[0].mxu0
        %v5093 = vadd.f32 %v923, %v5092
        %v5094 = vpop.f32.mrb[0].mxu0
        %v5095 = vadd.f32 %v925, %v5094
        %5096 = vmatprep.mubr.bf16.mxu0 %v4792
        %5097 = vmatmul.mubr.bf16.gmra.mrb[0].mxu0 %v4791
        %v5098 = vpop.f32.mrb[0].mxu0
        %v5099 = vadd.f32 %v929, %v5098
        %v5100 = vpop.f32.mrb[0].mxu0
        %v5101 = vadd.f32 %v931, %v5100
        %v5102 = vpop.f32.mrb[0].mxu0
        %v5103 = vadd.f32 %v933, %v5102
        %v5104 = vpop.f32.mrb[0].mxu0
        %v5105 = vadd.f32 %v935, %v5104
        %5106 = vmatprep.mubr.bf16.mxu0 %v4794
        %5107 = vmatmul.mubr.bf16.gmra.mrb[0].mxu0 %v4793
        %v5108 = vpop.f32.mrb[0].mxu0
        %v5109 = vadd.f32 %v939, %v5108
        %v5110 = vpop.f32.mrb[0].mxu0
        %v5111 = vadd.f32 %v941, %v5110
        %v5112 = vpop.f32.mrb[0].mxu0
        %v5113 = vadd.f32 %v943, %v5112
        %v5114 = vpop.f32.mrb[0].mxu0
        %v5115 = vadd.f32 %v945, %v5114
        %5116 = vmatprep.mubr.bf16.mxu0 %v4796
        %5117 = vmatmul.mubr.bf16.gmra.mrb[0].mxu0 %v4795
        %v5118 = vpop.f32.mrb[0].mxu0
        %v5119 = vadd.f32 %v949, %v5118
        %v5120 = vpop.f32.mrb[0].mxu0
        %v5121 = vadd.f32 %v951, %v5120
        %v5122 = vpop.f32.mrb[0].mxu0
        %v5123 = vadd.f32 %v953, %v5122
        %v5124 = vpop.f32.mrb[0].mxu0
        %v5125 = vadd.f32 %v955, %v5124
        %5126 = vmatprep.mubr.bf16.mxu0 %v4798
        %5127 = vmatmul.mubr.bf16.gmra.mrb[0].mxu0 %v4797
        %v5128 = vpop.f32.mrb[0].mxu0
        %v5129 = vadd.f32 %v959, %v5128
        %v5130 = vpop.f32.mrb[0].mxu0
        %v5131 = vadd.f32 %v961, %v5130
        %v5132 = vpop.f32.mrb[0].mxu0
        %v5133 = vadd.f32 %v963, %v5132
        %v5134 = vpop.f32.mrb[0].mxu0
        %v5135 = vadd.f32 %v965, %v5134
        %5136 = vmatprep.mubr.bf16.mxu0 %v4800
        %5137 = vmatmul.mubr.bf16.gmra.mrb[0].mxu0 %v4799
        %v5138 = vpop.f32.mrb[0].mxu0
        %v5139 = vadd.f32 %v969, %v5138
        %v5140 = vpop.f32.mrb[0].mxu0
        %v5141 = vadd.f32 %v971, %v5140
        %v5142 = vpop.f32.mrb[0].mxu0
        %v5143 = vadd.f32 %v973, %v5142
        %v5144 = vpop.f32.mrb[0].mxu0
        %v5145 = vadd.f32 %v975, %v5144
        %5146 = vmatprep.mubr.bf16.mxu0 %v4802
        %5147 = vmatmul.mubr.bf16.gmra.mrb[0].mxu0 %v4801
        %v5148 = vpop.f32.mrb[0].mxu0
        %v5149 = vadd.f32 %v979, %v5148
        %v5150 = vpop.f32.mrb[0].mxu0
        %v5151 = vadd.f32 %v981, %v5150
        %v5152 = vpop.f32.mrb[0].mxu0
        %v5153 = vadd.f32 %v983, %v5152
        %v5154 = vpop.f32.mrb[0].mxu0
        %v5155 = vadd.f32 %v985, %v5154
        %5156 = vmatprep.mubr.bf16.mxu0 %v4804
        %5157 = vmatmul.mubr.bf16.gmra.mrb[0].mxu0 %v4803
        %v5158 = vpop.f32.mrb[0].mxu0
        %v5159 = vadd.f32 %v989, %v5158
        %v5160 = vpop.f32.mrb[0].mxu0
        %v5161 = vadd.f32 %v991, %v5160
        %v5162 = vpop.f32.mrb[0].mxu0
        %v5163 = vadd.f32 %v993, %v5162
        %v5164 = vpop.f32.mrb[0].mxu0
        %v5165 = vadd.f32 %v995, %v5164
        %5166 = vmatprep.mubr.bf16.mxu0 %v4806
        %5167 = vmatmul.mubr.bf16.gmra.mrb[0].mxu0 %v4805
        %v5168 = vpop.f32.mrb[0].mxu0
        %v5169 = vadd.f32 %v999, %v5168
        %v5170 = vpop.f32.mrb[0].mxu0
        %v5171 = vadd.f32 %v1001, %v5170
        %v5172 = vpop.f32.mrb[0].mxu0
        %v5173 = vadd.f32 %v1003, %v5172
        %v5174 = vpop.f32.mrb[0].mxu0
        %v5175 = vadd.f32 %v1005, %v5174
        %5176 = vmatprep.mubr.bf16.mxu0 %v4808
        %5177 = vmatmul.mubr.bf16.gmra.mrb[0].mxu0 %v4807
        %v5178 = vpop.f32.mrb[0].mxu0
        %v5179 = vadd.f32 %v1009, %v5178
        %v5180 = vpop.f32.mrb[0].mxu0
        %v5181 = vadd.f32 %v1011, %v5180
        %v5182 = vpop.f32.mrb[0].mxu0
        %v5183 = vadd.f32 %v1013, %v5182
        %v5184 = vpop.f32.mrb[0].mxu0
        %v5185 = vadd.f32 %v1015, %v5184
        %5186 = vmatprep.mubr.bf16.mxu0 %v4810
        %5187 = vmatmul.mubr.bf16.gmra.mrb[0].mxu0 %v4809
        %v5188 = vpop.f32.mrb[0].mxu0
        %v5189 = vadd.f32 %v1019, %v5188
        %v5190 = vpop.f32.mrb[0].mxu0
        %v5191 = vadd.f32 %v1021, %v5190
        %v5192 = vpop.f32.mrb[0].mxu0
        %v5193 = vadd.f32 %v1023, %v5192
        %v5194 = vpop.f32.mrb[0].mxu0
        %v5195 = vadd.f32 %v1025, %v5194
        %5196 = vmatprep.mubr.bf16.mxu0 %v4812
        %5197 = vmatmul.mubr.bf16.gmra.mrb[0].mxu0 %v4811
        %v5198 = vpop.f32.mrb[0].mxu0
        %v5199 = vadd.f32 %v1029, %v5198
        %v5200 = vpop.f32.mrb[0].mxu0
        %v5201 = vadd.f32 %v1031, %v5200
        %v5202 = vpop.f32.mrb[0].mxu0
        %v5203 = vadd.f32 %v1033, %v5202
        %v5204 = vpop.f32.mrb[0].mxu0
        %v5205 = vadd.f32 %v1035, %v5204
        %5206 = vmatprep.mubr.bf16.mxu0 %v4814
        %5207 = vmatmul.mubr.bf16.gmra.mrb[0].mxu0 %v4813
        %v5208 = vpop.f32.mrb[0].mxu0
        %v5209 = vadd.f32 %v1039, %v5208
        %v5210 = vpop.f32.mrb[0].mxu0
        %v5211 = vadd.f32 %v1041, %v5210
        %v5212 = vpop.f32.mrb[0].mxu0
        %v5213 = vadd.f32 %v1043, %v5212
        %v5214 = vpop.f32.mrb[0].mxu0
        %v5215 = vadd.f32 %v1045, %v5214
        %5216 = vmatprep.mubr.bf16.mxu0 %v4816
        %5217 = vmatmul.mubr.bf16.gmra.mrb[0].mxu0 %v4815
        %v5218 = vpop.f32.mrb[0].mxu0
        %v5219 = vadd.f32 %v1049, %v5218
        %v5220 = vpop.f32.mrb[0].mxu0
        %v5221 = vadd.f32 %v1051, %v5220
        %v5222 = vpop.f32.mrb[0].mxu0
        %v5223 = vadd.f32 %v1053, %v5222
        %v5224 = vpop.f32.mrb[0].mxu0
        %v5225 = vadd.f32 %v1055, %v5224
        %5226 = vmatprep.mubr.bf16.mxu0 %v4818
        %5227 = vmatmul.mubr.bf16.gmra.mrb[0].mxu0 %v4817
        %v5228 = vpop.f32.mrb[0].mxu0
        %v5229 = vadd.f32 %v1059, %v5228
        %v5230 = vpop.f32.mrb[0].mxu0
        %v5231 = vadd.f32 %v1061, %v5230
        %v5232 = vpop.f32.mrb[0].mxu0
        %v5233 = vadd.f32 %v1063, %v5232
        %v5234 = vpop.f32.mrb[0].mxu0
        %v5235 = vadd.f32 %v1065, %v5234
        %5236 = vmatprep.mubr.bf16.mxu0 %v4820
        %5237 = vmatmul.mubr.bf16.gmra.mrb[0].mxu0 %v4819
        %v5238 = vpop.f32.mrb[0].mxu0
        %v5239 = vadd.f32 %v1069, %v5238
        %v5240 = vpop.f32.mrb[0].mxu0
        %v5241 = vadd.f32 %v1071, %v5240
        %v5242 = vpop.f32.mrb[0].mxu0
        %v5243 = vadd.f32 %v1073, %v5242
        %v5244 = vpop.f32.mrb[0].mxu0
        %v5245 = vadd.f32 %v1075, %v5244
        %5246 = vmatprep.mubr.bf16.mxu0 %v4822
        %5247 = vmatmul.mubr.bf16.gmra.mrb[0].mxu0 %v4821
        %v5248 = vpop.f32.mrb[0].mxu0
        %v5249 = vadd.f32 %v1079, %v5248
        %v5250 = vpop.f32.mrb[0].mxu0
        %v5251 = vadd.f32 %v1081, %v5250
        %v5252 = vpop.f32.mrb[0].mxu0
        %v5253 = vadd.f32 %v1083, %v5252
        %v5254 = vpop.f32.mrb[0].mxu0
        %v5255 = vadd.f32 %v1085, %v5254
        %5256 = vmatprep.mubr.bf16.mxu0 %v4824
        %5257 = vmatmul.mubr.bf16.gmra.mrb[0].mxu0 %v4823
        %v5258 = vpop.f32.mrb[0].mxu0
        %v5259 = vadd.f32 %v1089, %v5258
        %v5260 = vpop.f32.mrb[0].mxu0
        %v5261 = vadd.f32 %v1091, %v5260
        %v5262 = vpop.f32.mrb[0].mxu0
        %v5263 = vadd.f32 %v1093, %v5262
        %v5264 = vpop.f32.mrb[0].mxu0
        %v5265 = vadd.f32 %v1095, %v5264
        %5266 = vmatprep.mubr.bf16.mxu0 %v4826
        %5267 = vmatmul.mubr.bf16.gmra.mrb[0].mxu0 %v4825
        %v5268 = vpop.f32.mrb[0].mxu0
        %v5269 = vadd.f32 %v1099, %v5268
        %v5270 = vpop.f32.mrb[0].mxu0
        %v5271 = vadd.f32 %v1101, %v5270
        %v5272 = vpop.f32.mrb[0].mxu0
        %v5273 = vadd.f32 %v1103, %v5272
        %v5274 = vpop.f32.mrb[0].mxu0
        %v5275 = vadd.f32 %v1105, %v5274
        %5276 = vmatprep.mubr.bf16.mxu0 %v4828
        %5277 = vmatmul.mubr.bf16.gmra.mrb[0].mxu0 %v4827
        %v5278 = vpop.f32.mrb[0].mxu0
        %v5279 = vadd.f32 %v1109, %v5278
        %v5280 = vpop.f32.mrb[0].mxu0
        %v5281 = vadd.f32 %v1111, %v5280
        %v5282 = vpop.f32.mrb[0].mxu0
        %v5283 = vadd.f32 %v1113, %v5282
        %v5284 = vpop.f32.mrb[0].mxu0
        %v5285 = vadd.f32 %v1115, %v5284
        %5286 = vmatprep.mubr.bf16.mxu0 %v4830
        %5287 = vmatmul.mubr.bf16.gmra.mrb[0].mxu0 %v4829
        %v5288 = vpop.f32.mrb[0].mxu0
        %v5289 = vadd.f32 %v1119, %v5288
        %v5290 = vpop.f32.mrb[0].mxu0
        %v5291 = vadd.f32 %v1121, %v5290
        %v5292 = vpop.f32.mrb[0].mxu0
        %v5293 = vadd.f32 %v1123, %v5292
        %v5294 = vpop.f32.mrb[0].mxu0
        %v5295 = vadd.f32 %v1125, %v5294
        %5296 = vmatprep.mubr.bf16.mxu0 %v4832
        %5297 = vmatmul.mubr.bf16.gmra.mrb[0].mxu0 %v4831
        %v5298 = vpop.f32.mrb[0].mxu0
        %v5299 = vadd.f32 %v1129, %v5298
        %v5300 = vpop.f32.mrb[0].mxu0
        %v5301 = vadd.f32 %v1131, %v5300
        %v5302 = vpop.f32.mrb[0].mxu0
        %v5303 = vadd.f32 %v1133, %v5302
        %v5304 = vpop.f32.mrb[0].mxu0
        %v5305 = vadd.f32 %v1135, %v5304
        %5306 = vmatprep.mubr.bf16.mxu0 %v4834
        %5307 = vmatmul.mubr.bf16.gmra.mrb[0].mxu0 %v4833
        %v5308 = vpop.f32.mrb[0].mxu0
        %v5309 = vadd.f32 %v1139, %v5308
        %v5310 = vpop.f32.mrb[0].mxu0
        %v5311 = vadd.f32 %v1141, %v5310
        %v5312 = vpop.f32.mrb[0].mxu0
        %v5313 = vadd.f32 %v1143, %v5312
        %v5314 = vpop.f32.mrb[0].mxu0
        %v5315 = vadd.f32 %v1145, %v5314
        %5316 = vmatprep.mubr.bf16.mxu0 %v4836
        %5317 = vmatmul.mubr.bf16.gmra.mrb[0].mxu0 %v4835
        %v5318 = vpop.f32.mrb[0].mxu0
        %v5319 = vadd.f32 %v1149, %v5318
        %v5320 = vpop.f32.mrb[0].mxu0
        %v5321 = vadd.f32 %v1151, %v5320
        %v5322 = vpop.f32.mrb[0].mxu0
        %v5323 = vadd.f32 %v1153, %v5322
        %v5324 = vpop.f32.mrb[0].mxu0
        %v5325 = vadd.f32 %v1155, %v5324
        %5326 = vmatprep.mubr.bf16.mxu0 %v4838
        %5327 = vmatmul.mubr.bf16.gmra.mrb[0].mxu0 %v4837
        %v5328 = vpop.f32.mrb[0].mxu0
        %v5329 = vadd.f32 %v1159, %v5328
        %v5330 = vpop.f32.mrb[0].mxu0
        %v5331 = vadd.f32 %v1161, %v5330
        %v5332 = vpop.f32.mrb[0].mxu0
        %v5333 = vadd.f32 %v1163, %v5332
        %v5334 = vpop.f32.mrb[0].mxu0
        %v5335 = vadd.f32 %v1165, %v5334
        %5336 = vmatprep.mubr.bf16.mxu0 %v4840
        %5337 = vmatmul.mubr.bf16.gmra.mrb[0].mxu0 %v4839
        %v5338 = vpop.f32.mrb[0].mxu0
        %v5339 = vadd.f32 %v1169, %v5338
        %v5340 = vpop.f32.mrb[0].mxu0
        %v5341 = vadd.f32 %v1171, %v5340
        %v5342 = vpop.f32.mrb[0].mxu0
        %v5343 = vadd.f32 %v1173, %v5342
        %v5344 = vpop.f32.mrb[0].mxu0
        %v5345 = vadd.f32 %v1175, %v5344
        %5346 = vmatprep.mubr.bf16.mxu0 %v4842
        %5347 = vmatmul.mubr.bf16.gmra.mrb[0].mxu0 %v4841
        %v5348 = vpop.f32.mrb[0].mxu0
        %v5349 = vadd.f32 %v1179, %v5348
        %v5350 = vpop.f32.mrb[0].mxu0
        %v5351 = vadd.f32 %v1181, %v5350
        %v5352 = vpop.f32.mrb[0].mxu0
        %v5353 = vadd.f32 %v1183, %v5352
        %v5354 = vpop.f32.mrb[0].mxu0
        %v5355 = vadd.f32 %v1185, %v5354
        %5356 = vmatprep.mubr.bf16.mxu0 %v4844
        %5357 = vmatmul.mubr.bf16.gmra.mrb[0].mxu0 %v4843
        %v5358 = vpop.f32.mrb[0].mxu0
        %v5359 = vadd.f32 %v1189, %v5358
        %v5360 = vpop.f32.mrb[0].mxu0
        %v5361 = vadd.f32 %v1191, %v5360
        %v5362 = vpop.f32.mrb[0].mxu0
        %v5363 = vadd.f32 %v1193, %v5362
        %v5364 = vpop.f32.mrb[0].mxu0
        %v5365 = vadd.f32 %v1195, %v5364
        %5366 = vmatprep.mubr.bf16.mxu0 %v4846
        %5367 = vmatmul.mubr.bf16.gmra.mrb[0].mxu0 %v4845
        %v5368 = vpop.f32.mrb[0].mxu0
        %v5369 = vadd.f32 %v1199, %v5368
        %v5370 = vpop.f32.mrb[0].mxu0
        %v5371 = vadd.f32 %v1201, %v5370
        %v5372 = vpop.f32.mrb[0].mxu0
        %v5373 = vadd.f32 %v1203, %v5372
        %v5374 = vpop.f32.mrb[0].mxu0
        %v5375 = vadd.f32 %v1205, %v5374
        %5376 = vmatprep.mubr.bf16.mxu0 %v4848
        %5377 = vmatmul.mubr.bf16.gmra.mrb[0].mxu0 %v4847
        %v5378 = vpop.f32.mrb[0].mxu0
        %v5379 = vadd.f32 %v1209, %v5378
        %v5380 = vpop.f32.mrb[0].mxu0
        %v5381 = vadd.f32 %v1211, %v5380
        %v5382 = vpop.f32.mrb[0].mxu0
        %v5383 = vadd.f32 %v1213, %v5382
        %v5384 = vpop.f32.mrb[0].mxu0
        %v5385 = vadd.f32 %v1215, %v5384
        %5386 = vmatprep.mubr.bf16.mxu0 %v4850
        %5387 = vmatmul.mubr.bf16.gmra.mrb[0].mxu0 %v4849
        %v5388 = vpop.f32.mrb[0].mxu0
        %v5389 = vadd.f32 %v1219, %v5388
        %v5390 = vpop.f32.mrb[0].mxu0
        %v5391 = vadd.f32 %v1221, %v5390
        %v5392 = vpop.f32.mrb[0].mxu0
        %v5393 = vadd.f32 %v1223, %v5392
        %v5394 = vpop.f32.mrb[0].mxu0
        %v5395 = vadd.f32 %v1225, %v5394
        %5396 = vdwg.mxu0
        %s5397 = scalar_lea.vmem %s5, 5
        %v5398 = vld [vmem:[%s5397] ss:$8 sm:$0x3]
        %v5400 = vlaneseq
        %v5401 = vshrl.u32 %v5400, 7
        %v5402 = vsub.s32 0, %v5401
        %v5403 = vrot.slane %v5398, %v5402
        %v5404 = vlaneseq
        %v5405 = vshrl.u32 %v5404, 7
        %v5406 = vsub.s32 1, %v5405
        %v5407 = vrot.slane %v5398, %v5406
        %v5410 = vadd.f32 %v5079, %v5403
        %v5411 = vadd.f32 %v5081, %v5407
        %v5412 = vadd.f32 %v5083, %v5403
        %v5413 = vadd.f32 %v5085, %v5407
        %v5414 = vadd.f32 %v5089, %v5403
        %v5415 = vadd.f32 %v5091, %v5407
        %v5416 = vadd.f32 %v5093, %v5403
        %v5417 = vadd.f32 %v5095, %v5407
        %v5418 = vadd.f32 %v5099, %v5403
        %v5419 = vadd.f32 %v5101, %v5407
        %v5420 = vadd.f32 %v5103, %v5403
        %v5421 = vadd.f32 %v5105, %v5407
        %v5422 = vadd.f32 %v5109, %v5403
        %v5423 = vadd.f32 %v5111, %v5407
        %v5424 = vadd.f32 %v5113, %v5403
        %v5425 = vadd.f32 %v5115, %v5407
        %v5426 = vadd.f32 %v5119, %v5403
        %v5427 = vadd.f32 %v5121, %v5407
        %v5428 = vadd.f32 %v5123, %v5403
        %v5429 = vadd.f32 %v5125, %v5407
        %v5430 = vadd.f32 %v5129, %v5403
        %v5431 = vadd.f32 %v5131, %v5407
        %v5432 = vadd.f32 %v5133, %v5403
        %v5433 = vadd.f32 %v5135, %v5407
        %v5434 = vadd.f32 %v5139, %v5403
        %v5435 = vadd.f32 %v5141, %v5407
        %v5436 = vadd.f32 %v5143, %v5403
        %v5437 = vadd.f32 %v5145, %v5407
        %v5438 = vadd.f32 %v5149, %v5403
        %v5439 = vadd.f32 %v5151, %v5407
        %v5440 = vadd.f32 %v5153, %v5403
        %v5441 = vadd.f32 %v5155, %v5407
        %v5442 = vadd.f32 %v5159, %v5403
        %v5443 = vadd.f32 %v5161, %v5407
        %v5444 = vadd.f32 %v5163, %v5403
        %v5445 = vadd.f32 %v5165, %v5407
        %v5446 = vadd.f32 %v5169, %v5403
        %v5447 = vadd.f32 %v5171, %v5407
        %v5448 = vadd.f32 %v5173, %v5403
        %v5449 = vadd.f32 %v5175, %v5407
        %v5450 = vadd.f32 %v5179, %v5403
        %v5451 = vadd.f32 %v5181, %v5407
        %v5452 = vadd.f32 %v5183, %v5403
        %v5453 = vadd.f32 %v5185, %v5407
        %v5454 = vadd.f32 %v5189, %v5403
        %v5455 = vadd.f32 %v5191, %v5407
        %v5456 = vadd.f32 %v5193, %v5403
        %v5457 = vadd.f32 %v5195, %v5407
        %v5458 = vadd.f32 %v5199, %v5403
        %v5459 = vadd.f32 %v5201, %v5407
        %v5460 = vadd.f32 %v5203, %v5403
        %v5461 = vadd.f32 %v5205, %v5407
        %v5462 = vadd.f32 %v5209, %v5403
        %v5463 = vadd.f32 %v5211, %v5407
        %v5464 = vadd.f32 %v5213, %v5403
        %v5465 = vadd.f32 %v5215, %v5407
        %v5466 = vadd.f32 %v5219, %v5403
        %v5467 = vadd.f32 %v5221, %v5407
        %v5468 = vadd.f32 %v5223, %v5403
        %v5469 = vadd.f32 %v5225, %v5407
        %v5470 = vadd.f32 %v5229, %v5403
        %v5471 = vadd.f32 %v5231, %v5407
        %v5472 = vadd.f32 %v5233, %v5403
        %v5473 = vadd.f32 %v5235, %v5407
        %v5474 = vadd.f32 %v5239, %v5403
        %v5475 = vadd.f32 %v5241, %v5407
        %v5476 = vadd.f32 %v5243, %v5403
        %v5477 = vadd.f32 %v5245, %v5407
        %v5478 = vadd.f32 %v5249, %v5403
        %v5479 = vadd.f32 %v5251, %v5407
        %v5480 = vadd.f32 %v5253, %v5403
        %v5481 = vadd.f32 %v5255, %v5407
        %v5482 = vadd.f32 %v5259, %v5403
        %v5483 = vadd.f32 %v5261, %v5407
        %v5484 = vadd.f32 %v5263, %v5403
        %v5485 = vadd.f32 %v5265, %v5407
        %v5486 = vadd.f32 %v5269, %v5403
        %v5487 = vadd.f32 %v5271, %v5407
        %v5488 = vadd.f32 %v5273, %v5403
        %v5489 = vadd.f32 %v5275, %v5407
        %v5490 = vadd.f32 %v5279, %v5403
        %v5491 = vadd.f32 %v5281, %v5407
        %v5492 = vadd.f32 %v5283, %v5403
        %v5493 = vadd.f32 %v5285, %v5407
        %v5494 = vadd.f32 %v5289, %v5403
        %v5495 = vadd.f32 %v5291, %v5407
        %v5496 = vadd.f32 %v5293, %v5403
        %v5497 = vadd.f32 %v5295, %v5407
        %v5498 = vadd.f32 %v5299, %v5403
        %v5499 = vadd.f32 %v5301, %v5407
        %v5500 = vadd.f32 %v5303, %v5403
        %v5501 = vadd.f32 %v5305, %v5407
        %v5502 = vadd.f32 %v5309, %v5403
        %v5503 = vadd.f32 %v5311, %v5407
        %v5504 = vadd.f32 %v5313, %v5403
        %v5505 = vadd.f32 %v5315, %v5407
        %v5506 = vadd.f32 %v5319, %v5403
        %v5507 = vadd.f32 %v5321, %v5407
        %v5508 = vadd.f32 %v5323, %v5403
        %v5509 = vadd.f32 %v5325, %v5407
        %v5510 = vadd.f32 %v5329, %v5403
        %v5511 = vadd.f32 %v5331, %v5407
        %v5512 = vadd.f32 %v5333, %v5403
        %v5513 = vadd.f32 %v5335, %v5407
        %v5514 = vadd.f32 %v5339, %v5403
        %v5515 = vadd.f32 %v5341, %v5407
        %v5516 = vadd.f32 %v5343, %v5403
        %v5517 = vadd.f32 %v5345, %v5407
        %v5518 = vadd.f32 %v5349, %v5403
        %v5519 = vadd.f32 %v5351, %v5407
        %v5520 = vadd.f32 %v5353, %v5403
        %v5521 = vadd.f32 %v5355, %v5407
        %v5522 = vadd.f32 %v5359, %v5403
        %v5523 = vadd.f32 %v5361, %v5407
        %v5524 = vadd.f32 %v5363, %v5403
        %v5525 = vadd.f32 %v5365, %v5407
        %v5526 = vadd.f32 %v5369, %v5403
        %v5527 = vadd.f32 %v5371, %v5407
        %v5528 = vadd.f32 %v5373, %v5403
        %v5529 = vadd.f32 %v5375, %v5407
        %v5530 = vadd.f32 %v5379, %v5403
        %v5531 = vadd.f32 %v5381, %v5407
        %v5532 = vadd.f32 %v5383, %v5403
        %v5533 = vadd.f32 %v5385, %v5407
        %v5534 = vadd.f32 %v5389, %v5403
        %v5535 = vadd.f32 %v5391, %v5407
        %v5536 = vadd.f32 %v5393, %v5403
        %v5537 = vadd.f32 %v5395, %v5407
        %v5538 = vmax.f32 %v5410, 0.0
        %v5539 = vmax.f32 %v5411, 0.0
        %v5540 = vmax.f32 %v5412, 0.0
        %v5541 = vmax.f32 %v5413, 0.0
        %v5542 = vmax.f32 %v5414, 0.0
        %v5543 = vmax.f32 %v5415, 0.0
        %v5544 = vmax.f32 %v5416, 0.0
        %v5545 = vmax.f32 %v5417, 0.0
        %v5546 = vmax.f32 %v5418, 0.0
        %v5547 = vmax.f32 %v5419, 0.0
        %v5548 = vmax.f32 %v5420, 0.0
        %v5549 = vmax.f32 %v5421, 0.0
        %v5550 = vmax.f32 %v5422, 0.0
        %v5551 = vmax.f32 %v5423, 0.0
        %v5552 = vmax.f32 %v5424, 0.0
        %v5553 = vmax.f32 %v5425, 0.0
        %v5554 = vmax.f32 %v5426, 0.0
        %v5555 = vmax.f32 %v5427, 0.0
        %v5556 = vmax.f32 %v5428, 0.0
        %v5557 = vmax.f32 %v5429, 0.0
        %v5558 = vmax.f32 %v5430, 0.0
        %v5559 = vmax.f32 %v5431, 0.0
        %v5560 = vmax.f32 %v5432, 0.0
        %v5561 = vmax.f32 %v5433, 0.0
        %v5562 = vmax.f32 %v5434, 0.0
        %v5563 = vmax.f32 %v5435, 0.0
        %v5564 = vmax.f32 %v5436, 0.0
        %v5565 = vmax.f32 %v5437, 0.0
        %v5566 = vmax.f32 %v5438, 0.0
        %v5567 = vmax.f32 %v5439, 0.0
        %v5568 = vmax.f32 %v5440, 0.0
        %v5569 = vmax.f32 %v5441, 0.0
        %v5570 = vmax.f32 %v5442, 0.0
        %v5571 = vmax.f32 %v5443, 0.0
        %v5572 = vmax.f32 %v5444, 0.0
        %v5573 = vmax.f32 %v5445, 0.0
        %v5574 = vmax.f32 %v5446, 0.0
        %v5575 = vmax.f32 %v5447, 0.0
        %v5576 = vmax.f32 %v5448, 0.0
        %v5577 = vmax.f32 %v5449, 0.0
        %v5578 = vmax.f32 %v5450, 0.0
        %v5579 = vmax.f32 %v5451, 0.0
        %v5580 = vmax.f32 %v5452, 0.0
        %v5581 = vmax.f32 %v5453, 0.0
        %v5582 = vmax.f32 %v5454, 0.0
        %v5583 = vmax.f32 %v5455, 0.0
        %v5584 = vmax.f32 %v5456, 0.0
        %v5585 = vmax.f32 %v5457, 0.0
        %v5586 = vmax.f32 %v5458, 0.0
        %v5587 = vmax.f32 %v5459, 0.0
        %v5588 = vmax.f32 %v5460, 0.0
        %v5589 = vmax.f32 %v5461, 0.0
        %v5590 = vmax.f32 %v5462, 0.0
        %v5591 = vmax.f32 %v5463, 0.0
        %v5592 = vmax.f32 %v5464, 0.0
        %v5593 = vmax.f32 %v5465, 0.0
        %v5594 = vmax.f32 %v5466, 0.0
        %v5595 = vmax.f32 %v5467, 0.0
        %v5596 = vmax.f32 %v5468, 0.0
        %v5597 = vmax.f32 %v5469, 0.0
        %v5598 = vmax.f32 %v5470, 0.0
        %v5599 = vmax.f32 %v5471, 0.0
        %v5600 = vmax.f32 %v5472, 0.0
        %v5601 = vmax.f32 %v5473, 0.0
        %v5602 = vmax.f32 %v5474, 0.0
        %v5603 = vmax.f32 %v5475, 0.0
        %v5604 = vmax.f32 %v5476, 0.0
        %v5605 = vmax.f32 %v5477, 0.0
        %v5606 = vmax.f32 %v5478, 0.0
        %v5607 = vmax.f32 %v5479, 0.0
        %v5608 = vmax.f32 %v5480, 0.0
        %v5609 = vmax.f32 %v5481, 0.0
        %v5610 = vmax.f32 %v5482, 0.0
        %v5611 = vmax.f32 %v5483, 0.0
        %v5612 = vmax.f32 %v5484, 0.0
        %v5613 = vmax.f32 %v5485, 0.0
        %v5614 = vmax.f32 %v5486, 0.0
        %v5615 = vmax.f32 %v5487, 0.0
        %v5616 = vmax.f32 %v5488, 0.0
        %v5617 = vmax.f32 %v5489, 0.0
        %v5618 = vmax.f32 %v5490, 0.0
        %v5619 = vmax.f32 %v5491, 0.0
        %v5620 = vmax.f32 %v5492, 0.0
        %v5621 = vmax.f32 %v5493, 0.0
        %v5622 = vmax.f32 %v5494, 0.0
        %v5623 = vmax.f32 %v5495, 0.0
        %v5624 = vmax.f32 %v5496, 0.0
        %v5625 = vmax.f32 %v5497, 0.0
        %v5626 = vmax.f32 %v5498, 0.0
        %v5627 = vmax.f32 %v5499, 0.0
        %v5628 = vmax.f32 %v5500, 0.0
        %v5629 = vmax.f32 %v5501, 0.0
        %v5630 = vmax.f32 %v5502, 0.0
        %v5631 = vmax.f32 %v5503, 0.0
        %v5632 = vmax.f32 %v5504, 0.0
        %v5633 = vmax.f32 %v5505, 0.0
        %v5634 = vmax.f32 %v5506, 0.0
        %v5635 = vmax.f32 %v5507, 0.0
        %v5636 = vmax.f32 %v5508, 0.0
        %v5637 = vmax.f32 %v5509, 0.0
        %v5638 = vmax.f32 %v5510, 0.0
        %v5639 = vmax.f32 %v5511, 0.0
        %v5640 = vmax.f32 %v5512, 0.0
        %v5641 = vmax.f32 %v5513, 0.0
        %v5642 = vmax.f32 %v5514, 0.0
        %v5643 = vmax.f32 %v5515, 0.0
        %v5644 = vmax.f32 %v5516, 0.0
        %v5645 = vmax.f32 %v5517, 0.0
        %v5646 = vmax.f32 %v5518, 0.0
        %v5647 = vmax.f32 %v5519, 0.0
        %v5648 = vmax.f32 %v5520, 0.0
        %v5649 = vmax.f32 %v5521, 0.0
        %v5650 = vmax.f32 %v5522, 0.0
        %v5651 = vmax.f32 %v5523, 0.0
        %v5652 = vmax.f32 %v5524, 0.0
        %v5653 = vmax.f32 %v5525, 0.0
        %v5654 = vmax.f32 %v5526, 0.0
        %v5655 = vmax.f32 %v5527, 0.0
        %v5656 = vmax.f32 %v5528, 0.0
        %v5657 = vmax.f32 %v5529, 0.0
        %v5658 = vmax.f32 %v5530, 0.0
        %v5659 = vmax.f32 %v5531, 0.0
        %v5660 = vmax.f32 %v5532, 0.0
        %v5661 = vmax.f32 %v5533, 0.0
        %v5662 = vmax.f32 %v5534, 0.0
        %v5663 = vmax.f32 %v5535, 0.0
        %v5664 = vmax.f32 %v5536, 0.0
        %v5665 = vmax.f32 %v5537, 0.0
        %v5666 = vpack.c.bf16 %v5540, %v5538
        %v5667 = vpack.c.bf16 %v5541, %v5539
        %v5668 = vpack.c.bf16 %v5544, %v5542
        %v5669 = vpack.c.bf16 %v5545, %v5543
        %v5670 = vpack.c.bf16 %v5548, %v5546
        %v5671 = vpack.c.bf16 %v5549, %v5547
        %v5672 = vpack.c.bf16 %v5552, %v5550
        %v5673 = vpack.c.bf16 %v5553, %v5551
        %v5674 = vpack.c.bf16 %v5556, %v5554
        %v5675 = vpack.c.bf16 %v5557, %v5555
        %v5676 = vpack.c.bf16 %v5560, %v5558
        %v5677 = vpack.c.bf16 %v5561, %v5559
        %v5678 = vpack.c.bf16 %v5564, %v5562
        %v5679 = vpack.c.bf16 %v5565, %v5563
        %v5680 = vpack.c.bf16 %v5568, %v5566
        %v5681 = vpack.c.bf16 %v5569, %v5567
        %v5682 = vpack.c.bf16 %v5572, %v5570
        %v5683 = vpack.c.bf16 %v5573, %v5571
        %v5684 = vpack.c.bf16 %v5576, %v5574
        %v5685 = vpack.c.bf16 %v5577, %v5575
        %v5686 = vpack.c.bf16 %v5580, %v5578
        %v5687 = vpack.c.bf16 %v5581, %v5579
        %v5688 = vpack.c.bf16 %v5584, %v5582
        %v5689 = vpack.c.bf16 %v5585, %v5583
        %v5690 = vpack.c.bf16 %v5588, %v5586
        %v5691 = vpack.c.bf16 %v5589, %v5587
        %v5692 = vpack.c.bf16 %v5592, %v5590
        %v5693 = vpack.c.bf16 %v5593, %v5591
        %v5694 = vpack.c.bf16 %v5596, %v5594
        %v5695 = vpack.c.bf16 %v5597, %v5595
        %v5696 = vpack.c.bf16 %v5600, %v5598
        %v5697 = vpack.c.bf16 %v5601, %v5599
        %v5698 = vpack.c.bf16 %v5604, %v5602
        %v5699 = vpack.c.bf16 %v5605, %v5603
        %v5700 = vpack.c.bf16 %v5608, %v5606
        %v5701 = vpack.c.bf16 %v5609, %v5607
        %v5702 = vpack.c.bf16 %v5612, %v5610
        %v5703 = vpack.c.bf16 %v5613, %v5611
        %v5704 = vpack.c.bf16 %v5616, %v5614
        %v5705 = vpack.c.bf16 %v5617, %v5615
        %v5706 = vpack.c.bf16 %v5620, %v5618
        %v5707 = vpack.c.bf16 %v5621, %v5619
        %v5708 = vpack.c.bf16 %v5624, %v5622
        %v5709 = vpack.c.bf16 %v5625, %v5623
        %v5710 = vpack.c.bf16 %v5628, %v5626
        %v5711 = vpack.c.bf16 %v5629, %v5627
        %v5712 = vpack.c.bf16 %v5632, %v5630
        %v5713 = vpack.c.bf16 %v5633, %v5631
        %v5714 = vpack.c.bf16 %v5636, %v5634
        %v5715 = vpack.c.bf16 %v5637, %v5635
        %v5716 = vpack.c.bf16 %v5640, %v5638
        %v5717 = vpack.c.bf16 %v5641, %v5639
        %v5718 = vpack.c.bf16 %v5644, %v5642
        %v5719 = vpack.c.bf16 %v5645, %v5643
        %v5720 = vpack.c.bf16 %v5648, %v5646
        %v5721 = vpack.c.bf16 %v5649, %v5647
        %v5722 = vpack.c.bf16 %v5652, %v5650
        %v5723 = vpack.c.bf16 %v5653, %v5651
        %v5724 = vpack.c.bf16 %v5656, %v5654
        %v5725 = vpack.c.bf16 %v5657, %v5655
        %v5726 = vpack.c.bf16 %v5660, %v5658
        %v5727 = vpack.c.bf16 %v5661, %v5659
        %v5728 = vpack.c.bf16 %v5664, %v5662
        %v5729 = vpack.c.bf16 %v5665, %v5663
        %s5730 = scalar_lea.vmem [#allocation2], 1280
        %v5731 = vld [vmem:[%s5730] sm:$0xff]
        %v5732 = vld [vmem:[%s5730 + $0x8] sm:$0xff]
        %v5733 = vld [vmem:[%s5730 + $0x10] sm:$0xff]
        %v5734 = vld [vmem:[%s5730 + $0x18] sm:$0xff]
        %v5735 = vld [vmem:[%s5730 + $0x20] sm:$0xff]
        %v5736 = vld [vmem:[%s5730 + $0x28] sm:$0xff]
        %v5737 = vld [vmem:[%s5730 + $0x30] sm:$0xff]
        %v5738 = vld [vmem:[%s5730 + $0x38] sm:$0xff]
        %v5739 = vld [vmem:[%s5730 + $0x40] sm:$0xff]
        %v5740 = vld [vmem:[%s5730 + $0x48] sm:$0xff]
        %v5741 = vld [vmem:[%s5730 + $0x50] sm:$0xff]
        %v5742 = vld [vmem:[%s5730 + $0x58] sm:$0xff]
        %v5743 = vld [vmem:[%s5730 + $0x60] sm:$0xff]
        %v5744 = vld [vmem:[%s5730 + $0x68] sm:$0xff]
        %v5745 = vld [vmem:[%s5730 + $0x70] sm:$0xff]
        %v5746 = vld [vmem:[%s5730 + $0x78] sm:$0xff]
        %v5747 = vld [vmem:[%s5730 + $0x80] sm:$0xff]
        %v5748 = vld [vmem:[%s5730 + $0x88] sm:$0xff]
        %v5749 = vld [vmem:[%s5730 + $0x90] sm:$0xff]
        %v5750 = vld [vmem:[%s5730 + $0x98] sm:$0xff]
        %v5751 = vld [vmem:[%s5730 + $0xa0] sm:$0xff]
        %v5752 = vld [vmem:[%s5730 + $0xa8] sm:$0xff]
        %v5753 = vld [vmem:[%s5730 + $0xb0] sm:$0xff]
        %v5754 = vld [vmem:[%s5730 + $0xb8] sm:$0xff]
        %v5755 = vld [vmem:[%s5730 + $0xc0] sm:$0xff]
        %v5756 = vld [vmem:[%s5730 + $0xc8] sm:$0xff]
        %v5757 = vld [vmem:[%s5730 + $0xd0] sm:$0xff]
        %v5758 = vld [vmem:[%s5730 + $0xd8] sm:$0xff]
        %v5759 = vld [vmem:[%s5730 + $0xe0] sm:$0xff]
        %v5760 = vld [vmem:[%s5730 + $0xe8] sm:$0xff]
        %v5761 = vld [vmem:[%s5730 + $0xf0] sm:$0xff]
        %v5762 = vld [vmem:[%s5730 + $0xf8] sm:$0xff]
        %s5763 = scalar_lea.vmem %s5, 6
        %v5764 = vld [vmem:[%s5763] ss:$8 sm:$0x3]
        %v5766 = vlaneseq
        %v5767 = vshrl.u32 %v5766, 7
        %v5768 = vsub.s32 0, %v5767
        %v5769 = vrot.slane %v5764, %v5768
        %v5770 = vlaneseq
        %v5771 = vshrl.u32 %v5770, 7
        %v5772 = vsub.s32 1, %v5771
        %v5773 = vrot.slane %v5764, %v5772
        %v5808 = vunpack.c.l.b16 %v5731
        %v5809 = vunpack.c.h.b16 %v5731
        %v5810 = vunpack.c.l.b16 %v5732
        %v5811 = vunpack.c.h.b16 %v5732
        %v5812 = vunpack.c.l.b16 %v5733
        %v5813 = vunpack.c.h.b16 %v5733
        %v5814 = vunpack.c.l.b16 %v5734
        %v5815 = vunpack.c.h.b16 %v5734
        %v5816 = vunpack.c.l.b16 %v5735
        %v5817 = vunpack.c.h.b16 %v5735
        %v5818 = vunpack.c.l.b16 %v5736
        %v5819 = vunpack.c.h.b16 %v5736
        %v5820 = vunpack.c.l.b16 %v5737
        %v5821 = vunpack.c.h.b16 %v5737
        %v5822 = vunpack.c.l.b16 %v5738
        %v5823 = vunpack.c.h.b16 %v5738
        %v5824 = vunpack.c.l.b16 %v5739
        %v5825 = vunpack.c.h.b16 %v5739
        %v5826 = vunpack.c.l.b16 %v5740
        %v5827 = vunpack.c.h.b16 %v5740
        %v5828 = vunpack.c.l.b16 %v5741
        %v5829 = vunpack.c.h.b16 %v5741
        %v5830 = vunpack.c.l.b16 %v5742
        %v5831 = vunpack.c.h.b16 %v5742
        %v5832 = vunpack.c.l.b16 %v5743
        %v5833 = vunpack.c.h.b16 %v5743
        %v5834 = vunpack.c.l.b16 %v5744
        %v5835 = vunpack.c.h.b16 %v5744
        %v5836 = vunpack.c.l.b16 %v5745
        %v5837 = vunpack.c.h.b16 %v5745
        %v5838 = vunpack.c.l.b16 %v5746
        %v5839 = vunpack.c.h.b16 %v5746
        %v5840 = vunpack.c.l.b16 %v5747
        %v5841 = vunpack.c.h.b16 %v5747
        %v5842 = vunpack.c.l.b16 %v5748
        %v5843 = vunpack.c.h.b16 %v5748
        %v5844 = vunpack.c.l.b16 %v5749
        %v5845 = vunpack.c.h.b16 %v5749
        %v5846 = vunpack.c.l.b16 %v5750
        %v5847 = vunpack.c.h.b16 %v5750
        %v5848 = vunpack.c.l.b16 %v5751
        %v5849 = vunpack.c.h.b16 %v5751
        %v5850 = vunpack.c.l.b16 %v5752
        %v5851 = vunpack.c.h.b16 %v5752
        %v5852 = vunpack.c.l.b16 %v5753
        %v5853 = vunpack.c.h.b16 %v5753
        %v5854 = vunpack.c.l.b16 %v5754
        %v5855 = vunpack.c.h.b16 %v5754
        %v5856 = vunpack.c.l.b16 %v5755
        %v5857 = vunpack.c.h.b16 %v5755
        %v5858 = vunpack.c.l.b16 %v5756
        %v5859 = vunpack.c.h.b16 %v5756
        %v5860 = vunpack.c.l.b16 %v5757
        %v5861 = vunpack.c.h.b16 %v5757
        %v5862 = vunpack.c.l.b16 %v5758
        %v5863 = vunpack.c.h.b16 %v5758
        %v5864 = vunpack.c.l.b16 %v5759
        %v5865 = vunpack.c.h.b16 %v5759
        %v5866 = vunpack.c.l.b16 %v5760
        %v5867 = vunpack.c.h.b16 %v5760
        %v5868 = vunpack.c.l.b16 %v5761
        %v5869 = vunpack.c.h.b16 %v5761
        %v5870 = vunpack.c.l.b16 %v5762
        %v5871 = vunpack.c.h.b16 %v5762
        %v5872 = vpack.c.b16 %v5810, %v5808
        %v5873 = vpack.c.b16 %v5811, %v5809
        %v5874 = vpack.c.b16 %v5814, %v5812
        %v5875 = vpack.c.b16 %v5815, %v5813
        %v5876 = vpack.c.b16 %v5818, %v5816
        %v5877 = vpack.c.b16 %v5819, %v5817
        %v5878 = vpack.c.b16 %v5822, %v5820
        %v5879 = vpack.c.b16 %v5823, %v5821
        %v5880 = vpack.c.b16 %v5826, %v5824
        %v5881 = vpack.c.b16 %v5827, %v5825
        %v5882 = vpack.c.b16 %v5830, %v5828
        %v5883 = vpack.c.b16 %v5831, %v5829
        %v5884 = vpack.c.b16 %v5834, %v5832
        %v5885 = vpack.c.b16 %v5835, %v5833
        %v5886 = vpack.c.b16 %v5838, %v5836
        %v5887 = vpack.c.b16 %v5839, %v5837
        %v5888 = vpack.c.b16 %v5842, %v5840
        %v5889 = vpack.c.b16 %v5843, %v5841
        %v5890 = vpack.c.b16 %v5846, %v5844
        %v5891 = vpack.c.b16 %v5847, %v5845
        %v5892 = vpack.c.b16 %v5850, %v5848
        %v5893 = vpack.c.b16 %v5851, %v5849
        %v5894 = vpack.c.b16 %v5854, %v5852
        %v5895 = vpack.c.b16 %v5855, %v5853
        %v5896 = vpack.c.b16 %v5858, %v5856
        %v5897 = vpack.c.b16 %v5859, %v5857
        %v5898 = vpack.c.b16 %v5862, %v5860
        %v5899 = vpack.c.b16 %v5863, %v5861
        %v5900 = vpack.c.b16 %v5866, %v5864
        %v5901 = vpack.c.b16 %v5867, %v5865
        %v5902 = vpack.c.b16 %v5870, %v5868
        %v5903 = vpack.c.b16 %v5871, %v5869
        %5936 = vmatprep.subr.bf16.mxu0 %v5873
        %5937 = vmatpush1.bf16.msra.mxu0 %v5872
        %5938 = vmatprep.subr.bf16.mxu0 %v5875
        %5939 = vmatpush1.bf16.msra.mxu0 %v5874
        %5940 = vmatprep.subr.bf16.mxu0 %v5877
        %5941 = vmatpush1.bf16.msra.mxu0 %v5876
        %5942 = vmatprep.subr.bf16.mxu0 %v5879
        %5943 = vmatpush1.bf16.msra.mxu0 %v5878
        %5944 = vmatprep.subr.bf16.mxu0 %v5881
        %5945 = vmatpush1.bf16.msra.mxu0 %v5880
        %5946 = vmatprep.subr.bf16.mxu0 %v5883
        %5947 = vmatpush1.bf16.msra.mxu0 %v5882
        %5948 = vmatprep.subr.bf16.mxu0 %v5885
        %5949 = vmatpush1.bf16.msra.mxu0 %v5884
        %5950 = vmatprep.subr.bf16.mxu0 %v5887
        %5951 = vmatpush1.bf16.msra.mxu0 %v5886
        %5952 = vmatprep.subr.bf16.mxu0 %v5889
        %5953 = vmatpush1.bf16.msra.mxu0 %v5888
        %5954 = vmatprep.subr.bf16.mxu0 %v5891
        %5955 = vmatpush1.bf16.msra.mxu0 %v5890
        %5956 = vmatprep.subr.bf16.mxu0 %v5893
        %5957 = vmatpush1.bf16.msra.mxu0 %v5892
        %5958 = vmatprep.subr.bf16.mxu0 %v5895
        %5959 = vmatpush1.bf16.msra.mxu0 %v5894
        %5960 = vmatprep.subr.bf16.mxu0 %v5897
        %5961 = vmatpush1.bf16.msra.mxu0 %v5896
        %5962 = vmatprep.subr.bf16.mxu0 %v5899
        %5963 = vmatpush1.bf16.msra.mxu0 %v5898
        %5964 = vmatprep.subr.bf16.mxu0 %v5901
        %5965 = vmatpush1.bf16.msra.mxu0 %v5900
        %5966 = vmatprep.subr.bf16.mxu0 %v5903
        %5967 = vmatpush1.bf16.msra.mxu0 %v5902
        %5968 = vmatprep.mubr.bf16.mxu0 %v5667
        %5969 = vmatmul.mubr.bf16.gmra.mrb[0].mxu0 %v5666
        %v5970 = vpop.f32.mrb[0].mxu0
        %v5971 = vadd.f32 %v5769, %v5970
        %v5972 = vpop.f32.mrb[0].mxu0
        %v5973 = vadd.f32 %v5773, %v5972
        %v5974 = vpop.f32.mrb[0].mxu0
        %v5975 = vadd.f32 %v5769, %v5974
        %v5976 = vpop.f32.mrb[0].mxu0
        %v5977 = vadd.f32 %v5773, %v5976
        %5978 = vmatprep.mubr.bf16.mxu0 %v5669
        %5979 = vmatmul.mubr.bf16.gmra.mrb[0].mxu0 %v5668
        %v5980 = vpop.f32.mrb[0].mxu0
        %v5981 = vadd.f32 %v5769, %v5980
        %v5982 = vpop.f32.mrb[0].mxu0
        %v5983 = vadd.f32 %v5773, %v5982
        %v5984 = vpop.f32.mrb[0].mxu0
        %v5985 = vadd.f32 %v5769, %v5984
        %v5986 = vpop.f32.mrb[0].mxu0
        %v5987 = vadd.f32 %v5773, %v5986
        %5988 = vmatprep.mubr.bf16.mxu0 %v5671
        %5989 = vmatmul.mubr.bf16.gmra.mrb[0].mxu0 %v5670
        %v5990 = vpop.f32.mrb[0].mxu0
        %v5991 = vadd.f32 %v5769, %v5990
        %v5992 = vpop.f32.mrb[0].mxu0
        %v5993 = vadd.f32 %v5773, %v5992
        %v5994 = vpop.f32.mrb[0].mxu0
        %v5995 = vadd.f32 %v5769, %v5994
        %v5996 = vpop.f32.mrb[0].mxu0
        %v5997 = vadd.f32 %v5773, %v5996
        %5998 = vmatprep.mubr.bf16.mxu0 %v5673
        %5999 = vmatmul.mubr.bf16.gmra.mrb[0].mxu0 %v5672
        %v6000 = vpop.f32.mrb[0].mxu0
        %v6001 = vadd.f32 %v5769, %v6000
        %v6002 = vpop.f32.mrb[0].mxu0
        %v6003 = vadd.f32 %v5773, %v6002
        %v6004 = vpop.f32.mrb[0].mxu0
        %v6005 = vadd.f32 %v5769, %v6004
        %v6006 = vpop.f32.mrb[0].mxu0
        %v6007 = vadd.f32 %v5773, %v6006
        %6008 = vmatprep.mubr.bf16.mxu0 %v5675
        %6009 = vmatmul.mubr.bf16.gmra.mrb[0].mxu0 %v5674
        %v6010 = vpop.f32.mrb[0].mxu0
        %v6011 = vadd.f32 %v5769, %v6010
        %v6012 = vpop.f32.mrb[0].mxu0
        %v6013 = vadd.f32 %v5773, %v6012
        %v6014 = vpop.f32.mrb[0].mxu0
        %v6015 = vadd.f32 %v5769, %v6014
        %v6016 = vpop.f32.mrb[0].mxu0
        %v6017 = vadd.f32 %v5773, %v6016
        %6018 = vmatprep.mubr.bf16.mxu0 %v5677
        %6019 = vmatmul.mubr.bf16.gmra.mrb[0].mxu0 %v5676
        %v6020 = vpop.f32.mrb[0].mxu0
        %v6021 = vadd.f32 %v5769, %v6020
        %v6022 = vpop.f32.mrb[0].mxu0
        %v6023 = vadd.f32 %v5773, %v6022
        %v6024 = vpop.f32.mrb[0].mxu0
        %v6025 = vadd.f32 %v5769, %v6024
        %v6026 = vpop.f32.mrb[0].mxu0
        %v6027 = vadd.f32 %v5773, %v6026
        %6028 = vmatprep.mubr.bf16.mxu0 %v5679
        %6029 = vmatmul.mubr.bf16.gmra.mrb[0].mxu0 %v5678
        %v6030 = vpop.f32.mrb[0].mxu0
        %v6031 = vadd.f32 %v5769, %v6030
        %v6032 = vpop.f32.mrb[0].mxu0
        %v6033 = vadd.f32 %v5773, %v6032
        %v6034 = vpop.f32.mrb[0].mxu0
        %v6035 = vadd.f32 %v5769, %v6034
        %v6036 = vpop.f32.mrb[0].mxu0
        %v6037 = vadd.f32 %v5773, %v6036
        %6038 = vmatprep.mubr.bf16.mxu0 %v5681
        %6039 = vmatmul.mubr.bf16.gmra.mrb[0].mxu0 %v5680
        %v6040 = vpop.f32.mrb[0].mxu0
        %v6041 = vadd.f32 %v5769, %v6040
        %v6042 = vpop.f32.mrb[0].mxu0
        %v6043 = vadd.f32 %v5773, %v6042
        %v6044 = vpop.f32.mrb[0].mxu0
        %v6045 = vadd.f32 %v5769, %v6044
        %v6046 = vpop.f32.mrb[0].mxu0
        %v6047 = vadd.f32 %v5773, %v6046
        %6048 = vmatprep.mubr.bf16.mxu0 %v5683
        %6049 = vmatmul.mubr.bf16.gmra.mrb[0].mxu0 %v5682
        %v6050 = vpop.f32.mrb[0].mxu0
        %v6051 = vadd.f32 %v5769, %v6050
        %v6052 = vpop.f32.mrb[0].mxu0
        %v6053 = vadd.f32 %v5773, %v6052
        %v6054 = vpop.f32.mrb[0].mxu0
        %v6055 = vadd.f32 %v5769, %v6054
        %v6056 = vpop.f32.mrb[0].mxu0
        %v6057 = vadd.f32 %v5773, %v6056
        %6058 = vmatprep.mubr.bf16.mxu0 %v5685
        %6059 = vmatmul.mubr.bf16.gmra.mrb[0].mxu0 %v5684
        %v6060 = vpop.f32.mrb[0].mxu0
        %v6061 = vadd.f32 %v5769, %v6060
        %v6062 = vpop.f32.mrb[0].mxu0
        %v6063 = vadd.f32 %v5773, %v6062
        %v6064 = vpop.f32.mrb[0].mxu0
        %v6065 = vadd.f32 %v5769, %v6064
        %v6066 = vpop.f32.mrb[0].mxu0
        %v6067 = vadd.f32 %v5773, %v6066
        %6068 = vmatprep.mubr.bf16.mxu0 %v5687
        %6069 = vmatmul.mubr.bf16.gmra.mrb[0].mxu0 %v5686
        %v6070 = vpop.f32.mrb[0].mxu0
        %v6071 = vadd.f32 %v5769, %v6070
        %v6072 = vpop.f32.mrb[0].mxu0
        %v6073 = vadd.f32 %v5773, %v6072
        %v6074 = vpop.f32.mrb[0].mxu0
        %v6075 = vadd.f32 %v5769, %v6074
        %v6076 = vpop.f32.mrb[0].mxu0
        %v6077 = vadd.f32 %v5773, %v6076
        %6078 = vmatprep.mubr.bf16.mxu0 %v5689
        %6079 = vmatmul.mubr.bf16.gmra.mrb[0].mxu0 %v5688
        %v6080 = vpop.f32.mrb[0].mxu0
        %v6081 = vadd.f32 %v5769, %v6080
        %v6082 = vpop.f32.mrb[0].mxu0
        %v6083 = vadd.f32 %v5773, %v6082
        %v6084 = vpop.f32.mrb[0].mxu0
        %v6085 = vadd.f32 %v5769, %v6084
        %v6086 = vpop.f32.mrb[0].mxu0
        %v6087 = vadd.f32 %v5773, %v6086
        %6088 = vmatprep.mubr.bf16.mxu0 %v5691
        %6089 = vmatmul.mubr.bf16.gmra.mrb[0].mxu0 %v5690
        %v6090 = vpop.f32.mrb[0].mxu0
        %v6091 = vadd.f32 %v5769, %v6090
        %v6092 = vpop.f32.mrb[0].mxu0
        %v6093 = vadd.f32 %v5773, %v6092
        %v6094 = vpop.f32.mrb[0].mxu0
        %v6095 = vadd.f32 %v5769, %v6094
        %v6096 = vpop.f32.mrb[0].mxu0
        %v6097 = vadd.f32 %v5773, %v6096
        %6098 = vmatprep.mubr.bf16.mxu0 %v5693
        %6099 = vmatmul.mubr.bf16.gmra.mrb[0].mxu0 %v5692
        %v6100 = vpop.f32.mrb[0].mxu0
        %v6101 = vadd.f32 %v5769, %v6100
        %v6102 = vpop.f32.mrb[0].mxu0
        %v6103 = vadd.f32 %v5773, %v6102
        %v6104 = vpop.f32.mrb[0].mxu0
        %v6105 = vadd.f32 %v5769, %v6104
        %v6106 = vpop.f32.mrb[0].mxu0
        %v6107 = vadd.f32 %v5773, %v6106
        %6108 = vmatprep.mubr.bf16.mxu0 %v5695
        %6109 = vmatmul.mubr.bf16.gmra.mrb[0].mxu0 %v5694
        %v6110 = vpop.f32.mrb[0].mxu0
        %v6111 = vadd.f32 %v5769, %v6110
        %v6112 = vpop.f32.mrb[0].mxu0
        %v6113 = vadd.f32 %v5773, %v6112
        %v6114 = vpop.f32.mrb[0].mxu0
        %v6115 = vadd.f32 %v5769, %v6114
        %v6116 = vpop.f32.mrb[0].mxu0
        %v6117 = vadd.f32 %v5773, %v6116
        %6118 = vmatprep.mubr.bf16.mxu0 %v5697
        %6119 = vmatmul.mubr.bf16.gmra.mrb[0].mxu0 %v5696
        %v6120 = vpop.f32.mrb[0].mxu0
        %v6121 = vadd.f32 %v5769, %v6120
        %v6122 = vpop.f32.mrb[0].mxu0
        %v6123 = vadd.f32 %v5773, %v6122
        %v6124 = vpop.f32.mrb[0].mxu0
        %v6125 = vadd.f32 %v5769, %v6124
        %v6126 = vpop.f32.mrb[0].mxu0
        %v6127 = vadd.f32 %v5773, %v6126
        %6128 = vmatprep.mubr.bf16.mxu0 %v5699
        %6129 = vmatmul.mubr.bf16.gmra.mrb[0].mxu0 %v5698
        %v6130 = vpop.f32.mrb[0].mxu0
        %v6131 = vadd.f32 %v5769, %v6130
        %v6132 = vpop.f32.mrb[0].mxu0
        %v6133 = vadd.f32 %v5773, %v6132
        %v6134 = vpop.f32.mrb[0].mxu0
        %v6135 = vadd.f32 %v5769, %v6134
        %v6136 = vpop.f32.mrb[0].mxu0
        %v6137 = vadd.f32 %v5773, %v6136
        %6138 = vmatprep.mubr.bf16.mxu0 %v5701
        %6139 = vmatmul.mubr.bf16.gmra.mrb[0].mxu0 %v5700
        %v6140 = vpop.f32.mrb[0].mxu0
        %v6141 = vadd.f32 %v5769, %v6140
        %v6142 = vpop.f32.mrb[0].mxu0
        %v6143 = vadd.f32 %v5773, %v6142
        %v6144 = vpop.f32.mrb[0].mxu0
        %v6145 = vadd.f32 %v5769, %v6144
        %v6146 = vpop.f32.mrb[0].mxu0
        %v6147 = vadd.f32 %v5773, %v6146
        %6148 = vmatprep.mubr.bf16.mxu0 %v5703
        %6149 = vmatmul.mubr.bf16.gmra.mrb[0].mxu0 %v5702
        %v6150 = vpop.f32.mrb[0].mxu0
        %v6151 = vadd.f32 %v5769, %v6150
        %v6152 = vpop.f32.mrb[0].mxu0
        %v6153 = vadd.f32 %v5773, %v6152
        %v6154 = vpop.f32.mrb[0].mxu0
        %v6155 = vadd.f32 %v5769, %v6154
        %v6156 = vpop.f32.mrb[0].mxu0
        %v6157 = vadd.f32 %v5773, %v6156
        %6158 = vmatprep.mubr.bf16.mxu0 %v5705
        %6159 = vmatmul.mubr.bf16.gmra.mrb[0].mxu0 %v5704
        %v6160 = vpop.f32.mrb[0].mxu0
        %v6161 = vadd.f32 %v5769, %v6160
        %v6162 = vpop.f32.mrb[0].mxu0
        %v6163 = vadd.f32 %v5773, %v6162
        %v6164 = vpop.f32.mrb[0].mxu0
        %v6165 = vadd.f32 %v5769, %v6164
        %v6166 = vpop.f32.mrb[0].mxu0
        %v6167 = vadd.f32 %v5773, %v6166
        %6168 = vmatprep.mubr.bf16.mxu0 %v5707
        %6169 = vmatmul.mubr.bf16.gmra.mrb[0].mxu0 %v5706
        %v6170 = vpop.f32.mrb[0].mxu0
        %v6171 = vadd.f32 %v5769, %v6170
        %v6172 = vpop.f32.mrb[0].mxu0
        %v6173 = vadd.f32 %v5773, %v6172
        %v6174 = vpop.f32.mrb[0].mxu0
        %v6175 = vadd.f32 %v5769, %v6174
        %v6176 = vpop.f32.mrb[0].mxu0
        %v6177 = vadd.f32 %v5773, %v6176
        %6178 = vmatprep.mubr.bf16.mxu0 %v5709
        %6179 = vmatmul.mubr.bf16.gmra.mrb[0].mxu0 %v5708
        %v6180 = vpop.f32.mrb[0].mxu0
        %v6181 = vadd.f32 %v5769, %v6180
        %v6182 = vpop.f32.mrb[0].mxu0
        %v6183 = vadd.f32 %v5773, %v6182
        %v6184 = vpop.f32.mrb[0].mxu0
        %v6185 = vadd.f32 %v5769, %v6184
        %v6186 = vpop.f32.mrb[0].mxu0
        %v6187 = vadd.f32 %v5773, %v6186
        %6188 = vmatprep.mubr.bf16.mxu0 %v5711
        %6189 = vmatmul.mubr.bf16.gmra.mrb[0].mxu0 %v5710
        %v6190 = vpop.f32.mrb[0].mxu0
        %v6191 = vadd.f32 %v5769, %v6190
        %v6192 = vpop.f32.mrb[0].mxu0
        %v6193 = vadd.f32 %v5773, %v6192
        %v6194 = vpop.f32.mrb[0].mxu0
        %v6195 = vadd.f32 %v5769, %v6194
        %v6196 = vpop.f32.mrb[0].mxu0
        %v6197 = vadd.f32 %v5773, %v6196
        %6198 = vmatprep.mubr.bf16.mxu0 %v5713
        %6199 = vmatmul.mubr.bf16.gmra.mrb[0].mxu0 %v5712
        %v6200 = vpop.f32.mrb[0].mxu0
        %v6201 = vadd.f32 %v5769, %v6200
        %v6202 = vpop.f32.mrb[0].mxu0
        %v6203 = vadd.f32 %v5773, %v6202
        %v6204 = vpop.f32.mrb[0].mxu0
        %v6205 = vadd.f32 %v5769, %v6204
        %v6206 = vpop.f32.mrb[0].mxu0
        %v6207 = vadd.f32 %v5773, %v6206
        %6208 = vmatprep.mubr.bf16.mxu0 %v5715
        %6209 = vmatmul.mubr.bf16.gmra.mrb[0].mxu0 %v5714
        %v6210 = vpop.f32.mrb[0].mxu0
        %v6211 = vadd.f32 %v5769, %v6210
        %v6212 = vpop.f32.mrb[0].mxu0
        %v6213 = vadd.f32 %v5773, %v6212
        %v6214 = vpop.f32.mrb[0].mxu0
        %v6215 = vadd.f32 %v5769, %v6214
        %v6216 = vpop.f32.mrb[0].mxu0
        %v6217 = vadd.f32 %v5773, %v6216
        %6218 = vmatprep.mubr.bf16.mxu0 %v5717
        %6219 = vmatmul.mubr.bf16.gmra.mrb[0].mxu0 %v5716
        %v6220 = vpop.f32.mrb[0].mxu0
        %v6221 = vadd.f32 %v5769, %v6220
        %v6222 = vpop.f32.mrb[0].mxu0
        %v6223 = vadd.f32 %v5773, %v6222
        %v6224 = vpop.f32.mrb[0].mxu0
        %v6225 = vadd.f32 %v5769, %v6224
        %v6226 = vpop.f32.mrb[0].mxu0
        %v6227 = vadd.f32 %v5773, %v6226
        %6228 = vmatprep.mubr.bf16.mxu0 %v5719
        %6229 = vmatmul.mubr.bf16.gmra.mrb[0].mxu0 %v5718
        %v6230 = vpop.f32.mrb[0].mxu0
        %v6231 = vadd.f32 %v5769, %v6230
        %v6232 = vpop.f32.mrb[0].mxu0
        %v6233 = vadd.f32 %v5773, %v6232
        %v6234 = vpop.f32.mrb[0].mxu0
        %v6235 = vadd.f32 %v5769, %v6234
        %v6236 = vpop.f32.mrb[0].mxu0
        %v6237 = vadd.f32 %v5773, %v6236
        %6238 = vmatprep.mubr.bf16.mxu0 %v5721
        %6239 = vmatmul.mubr.bf16.gmra.mrb[0].mxu0 %v5720
        %v6240 = vpop.f32.mrb[0].mxu0
        %v6241 = vadd.f32 %v5769, %v6240
        %v6242 = vpop.f32.mrb[0].mxu0
        %v6243 = vadd.f32 %v5773, %v6242
        %v6244 = vpop.f32.mrb[0].mxu0
        %v6245 = vadd.f32 %v5769, %v6244
        %v6246 = vpop.f32.mrb[0].mxu0
        %v6247 = vadd.f32 %v5773, %v6246
        %6248 = vmatprep.mubr.bf16.mxu0 %v5723
        %6249 = vmatmul.mubr.bf16.gmra.mrb[0].mxu0 %v5722
        %v6250 = vpop.f32.mrb[0].mxu0
        %v6251 = vadd.f32 %v5769, %v6250
        %v6252 = vpop.f32.mrb[0].mxu0
        %v6253 = vadd.f32 %v5773, %v6252
        %v6254 = vpop.f32.mrb[0].mxu0
        %v6255 = vadd.f32 %v5769, %v6254
        %v6256 = vpop.f32.mrb[0].mxu0
        %v6257 = vadd.f32 %v5773, %v6256
        %6258 = vmatprep.mubr.bf16.mxu0 %v5725
        %6259 = vmatmul.mubr.bf16.gmra.mrb[0].mxu0 %v5724
        %v6260 = vpop.f32.mrb[0].mxu0
        %v6261 = vadd.f32 %v5769, %v6260
        %v6262 = vpop.f32.mrb[0].mxu0
        %v6263 = vadd.f32 %v5773, %v6262
        %v6264 = vpop.f32.mrb[0].mxu0
        %v6265 = vadd.f32 %v5769, %v6264
        %v6266 = vpop.f32.mrb[0].mxu0
        %v6267 = vadd.f32 %v5773, %v6266
        %6268 = vmatprep.mubr.bf16.mxu0 %v5727
        %6269 = vmatmul.mubr.bf16.gmra.mrb[0].mxu0 %v5726
        %v6270 = vpop.f32.mrb[0].mxu0
        %v6271 = vadd.f32 %v5769, %v6270
        %v6272 = vpop.f32.mrb[0].mxu0
        %v6273 = vadd.f32 %v5773, %v6272
        %v6274 = vpop.f32.mrb[0].mxu0
        %v6275 = vadd.f32 %v5769, %v6274
        %v6276 = vpop.f32.mrb[0].mxu0
        %v6277 = vadd.f32 %v5773, %v6276
        %6278 = vmatprep.mubr.bf16.mxu0 %v5729
        %6279 = vmatmul.mubr.bf16.gmra.mrb[0].mxu0 %v5728
        %v6280 = vpop.f32.mrb[0].mxu0
        %v6281 = vadd.f32 %v5769, %v6280
        %v6282 = vpop.f32.mrb[0].mxu0
        %v6283 = vadd.f32 %v5773, %v6282
        %v6284 = vpop.f32.mrb[0].mxu0
        %v6285 = vadd.f32 %v5769, %v6284
        %v6286 = vpop.f32.mrb[0].mxu0
        %v6287 = vadd.f32 %v5773, %v6286
        %6288 = vdwg.mxu0
        %v6289 = vmax.f32 %v5971, 0.0
        %v6290 = vmax.f32 %v5973, 0.0
        %v6291 = vmax.f32 %v5975, 0.0
        %v6292 = vmax.f32 %v5977, 0.0
        %v6293 = vmax.f32 %v5981, 0.0
        %v6294 = vmax.f32 %v5983, 0.0
        %v6295 = vmax.f32 %v5985, 0.0
        %v6296 = vmax.f32 %v5987, 0.0
        %v6297 = vmax.f32 %v5991, 0.0
        %v6298 = vmax.f32 %v5993, 0.0
        %v6299 = vmax.f32 %v5995, 0.0
        %v6300 = vmax.f32 %v5997, 0.0
        %v6301 = vmax.f32 %v6001, 0.0
        %v6302 = vmax.f32 %v6003, 0.0
        %v6303 = vmax.f32 %v6005, 0.0
        %v6304 = vmax.f32 %v6007, 0.0
        %v6305 = vmax.f32 %v6011, 0.0
        %v6306 = vmax.f32 %v6013, 0.0
        %v6307 = vmax.f32 %v6015, 0.0
        %v6308 = vmax.f32 %v6017, 0.0
        %v6309 = vmax.f32 %v6021, 0.0
        %v6310 = vmax.f32 %v6023, 0.0
        %v6311 = vmax.f32 %v6025, 0.0
        %v6312 = vmax.f32 %v6027, 0.0
        %v6313 = vmax.f32 %v6031, 0.0
        %v6314 = vmax.f32 %v6033, 0.0
        %v6315 = vmax.f32 %v6035, 0.0
        %v6316 = vmax.f32 %v6037, 0.0
        %v6317 = vmax.f32 %v6041, 0.0
        %v6318 = vmax.f32 %v6043, 0.0
        %v6319 = vmax.f32 %v6045, 0.0
        %v6320 = vmax.f32 %v6047, 0.0
        %v6321 = vmax.f32 %v6051, 0.0
        %v6322 = vmax.f32 %v6053, 0.0
        %v6323 = vmax.f32 %v6055, 0.0
        %v6324 = vmax.f32 %v6057, 0.0
        %v6325 = vmax.f32 %v6061, 0.0
        %v6326 = vmax.f32 %v6063, 0.0
        %v6327 = vmax.f32 %v6065, 0.0
        %v6328 = vmax.f32 %v6067, 0.0
        %v6329 = vmax.f32 %v6071, 0.0
        %v6330 = vmax.f32 %v6073, 0.0
        %v6331 = vmax.f32 %v6075, 0.0
        %v6332 = vmax.f32 %v6077, 0.0
        %v6333 = vmax.f32 %v6081, 0.0
        %v6334 = vmax.f32 %v6083, 0.0
        %v6335 = vmax.f32 %v6085, 0.0
        %v6336 = vmax.f32 %v6087, 0.0
        %v6337 = vmax.f32 %v6091, 0.0
        %v6338 = vmax.f32 %v6093, 0.0
        %v6339 = vmax.f32 %v6095, 0.0
        %v6340 = vmax.f32 %v6097, 0.0
        %v6341 = vmax.f32 %v6101, 0.0
        %v6342 = vmax.f32 %v6103, 0.0
        %v6343 = vmax.f32 %v6105, 0.0
        %v6344 = vmax.f32 %v6107, 0.0
        %v6345 = vmax.f32 %v6111, 0.0
        %v6346 = vmax.f32 %v6113, 0.0
        %v6347 = vmax.f32 %v6115, 0.0
        %v6348 = vmax.f32 %v6117, 0.0
        %v6349 = vmax.f32 %v6121, 0.0
        %v6350 = vmax.f32 %v6123, 0.0
        %v6351 = vmax.f32 %v6125, 0.0
        %v6352 = vmax.f32 %v6127, 0.0
        %v6353 = vmax.f32 %v6131, 0.0
        %v6354 = vmax.f32 %v6133, 0.0
        %v6355 = vmax.f32 %v6135, 0.0
        %v6356 = vmax.f32 %v6137, 0.0
        %v6357 = vmax.f32 %v6141, 0.0
        %v6358 = vmax.f32 %v6143, 0.0
        %v6359 = vmax.f32 %v6145, 0.0
        %v6360 = vmax.f32 %v6147, 0.0
        %v6361 = vmax.f32 %v6151, 0.0
        %v6362 = vmax.f32 %v6153, 0.0
        %v6363 = vmax.f32 %v6155, 0.0
        %v6364 = vmax.f32 %v6157, 0.0
        %v6365 = vmax.f32 %v6161, 0.0
        %v6366 = vmax.f32 %v6163, 0.0
        %v6367 = vmax.f32 %v6165, 0.0
        %v6368 = vmax.f32 %v6167, 0.0
        %v6369 = vmax.f32 %v6171, 0.0
        %v6370 = vmax.f32 %v6173, 0.0
        %v6371 = vmax.f32 %v6175, 0.0
        %v6372 = vmax.f32 %v6177, 0.0
        %v6373 = vmax.f32 %v6181, 0.0
        %v6374 = vmax.f32 %v6183, 0.0
        %v6375 = vmax.f32 %v6185, 0.0
        %v6376 = vmax.f32 %v6187, 0.0
        %v6377 = vmax.f32 %v6191, 0.0
        %v6378 = vmax.f32 %v6193, 0.0
        %v6379 = vmax.f32 %v6195, 0.0
        %v6380 = vmax.f32 %v6197, 0.0
        %v6381 = vmax.f32 %v6201, 0.0
        %v6382 = vmax.f32 %v6203, 0.0
        %v6383 = vmax.f32 %v6205, 0.0
        %v6384 = vmax.f32 %v6207, 0.0
        %v6385 = vmax.f32 %v6211, 0.0
        %v6386 = vmax.f32 %v6213, 0.0
        %v6387 = vmax.f32 %v6215, 0.0
        %v6388 = vmax.f32 %v6217, 0.0
        %v6389 = vmax.f32 %v6221, 0.0
        %v6390 = vmax.f32 %v6223, 0.0
        %v6391 = vmax.f32 %v6225, 0.0
        %v6392 = vmax.f32 %v6227, 0.0
        %v6393 = vmax.f32 %v6231, 0.0
        %v6394 = vmax.f32 %v6233, 0.0
        %v6395 = vmax.f32 %v6235, 0.0
        %v6396 = vmax.f32 %v6237, 0.0
        %v6397 = vmax.f32 %v6241, 0.0
        %v6398 = vmax.f32 %v6243, 0.0
        %v6399 = vmax.f32 %v6245, 0.0
        %v6400 = vmax.f32 %v6247, 0.0
        %v6401 = vmax.f32 %v6251, 0.0
        %v6402 = vmax.f32 %v6253, 0.0
        %v6403 = vmax.f32 %v6255, 0.0
        %v6404 = vmax.f32 %v6257, 0.0
        %v6405 = vmax.f32 %v6261, 0.0
        %v6406 = vmax.f32 %v6263, 0.0
        %v6407 = vmax.f32 %v6265, 0.0
        %v6408 = vmax.f32 %v6267, 0.0
        %v6409 = vmax.f32 %v6271, 0.0
        %v6410 = vmax.f32 %v6273, 0.0
        %v6411 = vmax.f32 %v6275, 0.0
        %v6412 = vmax.f32 %v6277, 0.0
        %v6413 = vmax.f32 %v6281, 0.0
        %v6414 = vmax.f32 %v6283, 0.0
        %v6415 = vmax.f32 %v6285, 0.0
        %v6416 = vmax.f32 %v6287, 0.0
        %v6417 = vpack.c.bf16 %v6291, %v6289
        %v6418 = vpack.c.bf16 %v6292, %v6290
        %v6419 = vpack.c.bf16 %v6295, %v6293
        %v6420 = vpack.c.bf16 %v6296, %v6294
        %v6421 = vpack.c.bf16 %v6299, %v6297
        %v6422 = vpack.c.bf16 %v6300, %v6298
        %v6423 = vpack.c.bf16 %v6303, %v6301
        %v6424 = vpack.c.bf16 %v6304, %v6302
        %v6425 = vpack.c.bf16 %v6307, %v6305
        %v6426 = vpack.c.bf16 %v6308, %v6306
        %v6427 = vpack.c.bf16 %v6311, %v6309
        %v6428 = vpack.c.bf16 %v6312, %v6310
        %v6429 = vpack.c.bf16 %v6315, %v6313
        %v6430 = vpack.c.bf16 %v6316, %v6314
        %v6431 = vpack.c.bf16 %v6319, %v6317
        %v6432 = vpack.c.bf16 %v6320, %v6318
        %v6433 = vpack.c.bf16 %v6323, %v6321
        %v6434 = vpack.c.bf16 %v6324, %v6322
        %v6435 = vpack.c.bf16 %v6327, %v6325
        %v6436 = vpack.c.bf16 %v6328, %v6326
        %v6437 = vpack.c.bf16 %v6331, %v6329
        %v6438 = vpack.c.bf16 %v6332, %v6330
        %v6439 = vpack.c.bf16 %v6335, %v6333
        %v6440 = vpack.c.bf16 %v6336, %v6334
        %v6441 = vpack.c.bf16 %v6339, %v6337
        %v6442 = vpack.c.bf16 %v6340, %v6338
        %v6443 = vpack.c.bf16 %v6343, %v6341
        %v6444 = vpack.c.bf16 %v6344, %v6342
        %v6445 = vpack.c.bf16 %v6347, %v6345
        %v6446 = vpack.c.bf16 %v6348, %v6346
        %v6447 = vpack.c.bf16 %v6351, %v6349
        %v6448 = vpack.c.bf16 %v6352, %v6350
        %v6449 = vpack.c.bf16 %v6355, %v6353
        %v6450 = vpack.c.bf16 %v6356, %v6354
        %v6451 = vpack.c.bf16 %v6359, %v6357
        %v6452 = vpack.c.bf16 %v6360, %v6358
        %v6453 = vpack.c.bf16 %v6363, %v6361
        %v6454 = vpack.c.bf16 %v6364, %v6362
        %v6455 = vpack.c.bf16 %v6367, %v6365
        %v6456 = vpack.c.bf16 %v6368, %v6366
        %v6457 = vpack.c.bf16 %v6371, %v6369
        %v6458 = vpack.c.bf16 %v6372, %v6370
        %v6459 = vpack.c.bf16 %v6375, %v6373
        %v6460 = vpack.c.bf16 %v6376, %v6374
        %v6461 = vpack.c.bf16 %v6379, %v6377
        %v6462 = vpack.c.bf16 %v6380, %v6378
        %v6463 = vpack.c.bf16 %v6383, %v6381
        %v6464 = vpack.c.bf16 %v6384, %v6382
        %v6465 = vpack.c.bf16 %v6387, %v6385
        %v6466 = vpack.c.bf16 %v6388, %v6386
        %v6467 = vpack.c.bf16 %v6391, %v6389
        %v6468 = vpack.c.bf16 %v6392, %v6390
        %v6469 = vpack.c.bf16 %v6395, %v6393
        %v6470 = vpack.c.bf16 %v6396, %v6394
        %v6471 = vpack.c.bf16 %v6399, %v6397
        %v6472 = vpack.c.bf16 %v6400, %v6398
        %v6473 = vpack.c.bf16 %v6403, %v6401
        %v6474 = vpack.c.bf16 %v6404, %v6402
        %v6475 = vpack.c.bf16 %v6407, %v6405
        %v6476 = vpack.c.bf16 %v6408, %v6406
        %v6477 = vpack.c.bf16 %v6411, %v6409
        %v6478 = vpack.c.bf16 %v6412, %v6410
        %v6479 = vpack.c.bf16 %v6415, %v6413
        %v6480 = vpack.c.bf16 %v6416, %v6414
        %s6481 = scalar_lea.vmem [#allocation2], 1536
        %v6482 = vld [vmem:[%s6481] sm:$0xff]
        %v6483 = vld [vmem:[%s6481 + $0x8] sm:$0xff]
        %v6484 = vld [vmem:[%s6481 + $0x10] sm:$0xff]
        %v6485 = vld [vmem:[%s6481 + $0x18] sm:$0xff]
        %v6486 = vld [vmem:[%s6481 + $0x20] sm:$0xff]
        %v6487 = vld [vmem:[%s6481 + $0x28] sm:$0xff]
        %v6488 = vld [vmem:[%s6481 + $0x30] sm:$0xff]
        %v6489 = vld [vmem:[%s6481 + $0x38] sm:$0xff]
        %v6490 = vld [vmem:[%s6481 + $0x40] sm:$0xff]
        %v6491 = vld [vmem:[%s6481 + $0x48] sm:$0xff]
        %v6492 = vld [vmem:[%s6481 + $0x50] sm:$0xff]
        %v6493 = vld [vmem:[%s6481 + $0x58] sm:$0xff]
        %v6494 = vld [vmem:[%s6481 + $0x60] sm:$0xff]
        %v6495 = vld [vmem:[%s6481 + $0x68] sm:$0xff]
        %v6496 = vld [vmem:[%s6481 + $0x70] sm:$0xff]
        %v6497 = vld [vmem:[%s6481 + $0x78] sm:$0xff]
        %v6498 = vld [vmem:[%s6481 + $0x80] sm:$0xff]
        %v6499 = vld [vmem:[%s6481 + $0x88] sm:$0xff]
        %v6500 = vld [vmem:[%s6481 + $0x90] sm:$0xff]
        %v6501 = vld [vmem:[%s6481 + $0x98] sm:$0xff]
        %v6502 = vld [vmem:[%s6481 + $0xa0] sm:$0xff]
        %v6503 = vld [vmem:[%s6481 + $0xa8] sm:$0xff]
        %v6504 = vld [vmem:[%s6481 + $0xb0] sm:$0xff]
        %v6505 = vld [vmem:[%s6481 + $0xb8] sm:$0xff]
        %v6506 = vld [vmem:[%s6481 + $0xc0] sm:$0xff]
        %v6507 = vld [vmem:[%s6481 + $0xc8] sm:$0xff]
        %v6508 = vld [vmem:[%s6481 + $0xd0] sm:$0xff]
        %v6509 = vld [vmem:[%s6481 + $0xd8] sm:$0xff]
        %v6510 = vld [vmem:[%s6481 + $0xe0] sm:$0xff]
        %v6511 = vld [vmem:[%s6481 + $0xe8] sm:$0xff]
        %v6512 = vld [vmem:[%s6481 + $0xf0] sm:$0xff]
        %v6513 = vld [vmem:[%s6481 + $0xf8] sm:$0xff]
        %s6514 = scalar_lea.vmem %s5, 7
        %v6515 = vld [vmem:[%s6514] ss:$8 sm:$0x3]
        %v6517 = vlaneseq
        %v6518 = vshrl.u32 %v6517, 7
        %v6519 = vsub.s32 0, %v6518
        %v6520 = vrot.slane %v6515, %v6519
        %v6521 = vlaneseq
        %v6522 = vshrl.u32 %v6521, 7
        %v6523 = vsub.s32 1, %v6522
        %v6524 = vrot.slane %v6515, %v6523
        %v6559 = vunpack.c.l.b16 %v6482
        %v6560 = vunpack.c.h.b16 %v6482
        %v6561 = vunpack.c.l.b16 %v6483
        %v6562 = vunpack.c.h.b16 %v6483
        %v6563 = vunpack.c.l.b16 %v6484
        %v6564 = vunpack.c.h.b16 %v6484
        %v6565 = vunpack.c.l.b16 %v6485
        %v6566 = vunpack.c.h.b16 %v6485
        %v6567 = vunpack.c.l.b16 %v6486
        %v6568 = vunpack.c.h.b16 %v6486
        %v6569 = vunpack.c.l.b16 %v6487
        %v6570 = vunpack.c.h.b16 %v6487
        %v6571 = vunpack.c.l.b16 %v6488
        %v6572 = vunpack.c.h.b16 %v6488
        %v6573 = vunpack.c.l.b16 %v6489
        %v6574 = vunpack.c.h.b16 %v6489
        %v6575 = vunpack.c.l.b16 %v6490
        %v6576 = vunpack.c.h.b16 %v6490
        %v6577 = vunpack.c.l.b16 %v6491
        %v6578 = vunpack.c.h.b16 %v6491
        %v6579 = vunpack.c.l.b16 %v6492
        %v6580 = vunpack.c.h.b16 %v6492
        %v6581 = vunpack.c.l.b16 %v6493
        %v6582 = vunpack.c.h.b16 %v6493
        %v6583 = vunpack.c.l.b16 %v6494
        %v6584 = vunpack.c.h.b16 %v6494
        %v6585 = vunpack.c.l.b16 %v6495
        %v6586 = vunpack.c.h.b16 %v6495
        %v6587 = vunpack.c.l.b16 %v6496
        %v6588 = vunpack.c.h.b16 %v6496
        %v6589 = vunpack.c.l.b16 %v6497
        %v6590 = vunpack.c.h.b16 %v6497
        %v6591 = vunpack.c.l.b16 %v6498
        %v6592 = vunpack.c.h.b16 %v6498
        %v6593 = vunpack.c.l.b16 %v6499
        %v6594 = vunpack.c.h.b16 %v6499
        %v6595 = vunpack.c.l.b16 %v6500
        %v6596 = vunpack.c.h.b16 %v6500
        %v6597 = vunpack.c.l.b16 %v6501
        %v6598 = vunpack.c.h.b16 %v6501
        %v6599 = vunpack.c.l.b16 %v6502
        %v6600 = vunpack.c.h.b16 %v6502
        %v6601 = vunpack.c.l.b16 %v6503
        %v6602 = vunpack.c.h.b16 %v6503
        %v6603 = vunpack.c.l.b16 %v6504
        %v6604 = vunpack.c.h.b16 %v6504
        %v6605 = vunpack.c.l.b16 %v6505
        %v6606 = vunpack.c.h.b16 %v6505
        %v6607 = vunpack.c.l.b16 %v6506
        %v6608 = vunpack.c.h.b16 %v6506
        %v6609 = vunpack.c.l.b16 %v6507
        %v6610 = vunpack.c.h.b16 %v6507
        %v6611 = vunpack.c.l.b16 %v6508
        %v6612 = vunpack.c.h.b16 %v6508
        %v6613 = vunpack.c.l.b16 %v6509
        %v6614 = vunpack.c.h.b16 %v6509
        %v6615 = vunpack.c.l.b16 %v6510
        %v6616 = vunpack.c.h.b16 %v6510
        %v6617 = vunpack.c.l.b16 %v6511
        %v6618 = vunpack.c.h.b16 %v6511
        %v6619 = vunpack.c.l.b16 %v6512
        %v6620 = vunpack.c.h.b16 %v6512
        %v6621 = vunpack.c.l.b16 %v6513
        %v6622 = vunpack.c.h.b16 %v6513
        %v6623 = vpack.c.b16 %v6561, %v6559
        %v6624 = vpack.c.b16 %v6562, %v6560
        %v6625 = vpack.c.b16 %v6565, %v6563
        %v6626 = vpack.c.b16 %v6566, %v6564
        %v6627 = vpack.c.b16 %v6569, %v6567
        %v6628 = vpack.c.b16 %v6570, %v6568
        %v6629 = vpack.c.b16 %v6573, %v6571
        %v6630 = vpack.c.b16 %v6574, %v6572
        %v6631 = vpack.c.b16 %v6577, %v6575
        %v6632 = vpack.c.b16 %v6578, %v6576
        %v6633 = vpack.c.b16 %v6581, %v6579
        %v6634 = vpack.c.b16 %v6582, %v6580
        %v6635 = vpack.c.b16 %v6585, %v6583
        %v6636 = vpack.c.b16 %v6586, %v6584
        %v6637 = vpack.c.b16 %v6589, %v6587
        %v6638 = vpack.c.b16 %v6590, %v6588
        %v6639 = vpack.c.b16 %v6593, %v6591
        %v6640 = vpack.c.b16 %v6594, %v6592
        %v6641 = vpack.c.b16 %v6597, %v6595
        %v6642 = vpack.c.b16 %v6598, %v6596
        %v6643 = vpack.c.b16 %v6601, %v6599
        %v6644 = vpack.c.b16 %v6602, %v6600
        %v6645 = vpack.c.b16 %v6605, %v6603
        %v6646 = vpack.c.b16 %v6606, %v6604
        %v6647 = vpack.c.b16 %v6609, %v6607
        %v6648 = vpack.c.b16 %v6610, %v6608
        %v6649 = vpack.c.b16 %v6613, %v6611
        %v6650 = vpack.c.b16 %v6614, %v6612
        %v6651 = vpack.c.b16 %v6617, %v6615
        %v6652 = vpack.c.b16 %v6618, %v6616
        %v6653 = vpack.c.b16 %v6621, %v6619
        %v6654 = vpack.c.b16 %v6622, %v6620
        %6687 = vmatprep.subr.bf16.mxu0 %v6624
        %6688 = vmatpush1.bf16.msra.mxu0 %v6623
        %6689 = vmatprep.subr.bf16.mxu0 %v6626
        %6690 = vmatpush1.bf16.msra.mxu0 %v6625
        %6691 = vmatprep.subr.bf16.mxu0 %v6628
        %6692 = vmatpush1.bf16.msra.mxu0 %v6627
        %6693 = vmatprep.subr.bf16.mxu0 %v6630
        %6694 = vmatpush1.bf16.msra.mxu0 %v6629
        %6695 = vmatprep.subr.bf16.mxu0 %v6632
        %6696 = vmatpush1.bf16.msra.mxu0 %v6631
        %6697 = vmatprep.subr.bf16.mxu0 %v6634
        %6698 = vmatpush1.bf16.msra.mxu0 %v6633
        %6699 = vmatprep.subr.bf16.mxu0 %v6636
        %6700 = vmatpush1.bf16.msra.mxu0 %v6635
        %6701 = vmatprep.subr.bf16.mxu0 %v6638
        %6702 = vmatpush1.bf16.msra.mxu0 %v6637
        %6703 = vmatprep.subr.bf16.mxu0 %v6640
        %6704 = vmatpush1.bf16.msra.mxu0 %v6639
        %6705 = vmatprep.subr.bf16.mxu0 %v6642
        %6706 = vmatpush1.bf16.msra.mxu0 %v6641
        %6707 = vmatprep.subr.bf16.mxu0 %v6644
        %6708 = vmatpush1.bf16.msra.mxu0 %v6643
        %6709 = vmatprep.subr.bf16.mxu0 %v6646
        %6710 = vmatpush1.bf16.msra.mxu0 %v6645
        %6711 = vmatprep.subr.bf16.mxu0 %v6648
        %6712 = vmatpush1.bf16.msra.mxu0 %v6647
        %6713 = vmatprep.subr.bf16.mxu0 %v6650
        %6714 = vmatpush1.bf16.msra.mxu0 %v6649
        %6715 = vmatprep.subr.bf16.mxu0 %v6652
        %6716 = vmatpush1.bf16.msra.mxu0 %v6651
        %6717 = vmatprep.subr.bf16.mxu0 %v6654
        %6718 = vmatpush1.bf16.msra.mxu0 %v6653
        %6719 = vmatprep.mubr.bf16.mxu0 %v6418
        %6720 = vmatmul.mubr.bf16.gmra.mrb[0].mxu0 %v6417
        %v6721 = vpop.f32.mrb[0].mxu0
        %v6722 = vadd.f32 %v6520, %v6721
        %v6723 = vpop.f32.mrb[0].mxu0
        %v6724 = vadd.f32 %v6524, %v6723
        %v6725 = vpop.f32.mrb[0].mxu0
        %v6726 = vadd.f32 %v6520, %v6725
        %v6727 = vpop.f32.mrb[0].mxu0
        %v6728 = vadd.f32 %v6524, %v6727
        %6729 = vmatprep.mubr.bf16.mxu0 %v6420
        %6730 = vmatmul.mubr.bf16.gmra.mrb[0].mxu0 %v6419
        %v6731 = vpop.f32.mrb[0].mxu0
        %v6732 = vadd.f32 %v6520, %v6731
        %v6733 = vpop.f32.mrb[0].mxu0
        %v6734 = vadd.f32 %v6524, %v6733
        %v6735 = vpop.f32.mrb[0].mxu0
        %v6736 = vadd.f32 %v6520, %v6735
        %v6737 = vpop.f32.mrb[0].mxu0
        %v6738 = vadd.f32 %v6524, %v6737
        %6739 = vmatprep.mubr.bf16.mxu0 %v6422
        %6740 = vmatmul.mubr.bf16.gmra.mrb[0].mxu0 %v6421
        %v6741 = vpop.f32.mrb[0].mxu0
        %v6742 = vadd.f32 %v6520, %v6741
        %v6743 = vpop.f32.mrb[0].mxu0
        %v6744 = vadd.f32 %v6524, %v6743
        %v6745 = vpop.f32.mrb[0].mxu0
        %v6746 = vadd.f32 %v6520, %v6745
        %v6747 = vpop.f32.mrb[0].mxu0
        %v6748 = vadd.f32 %v6524, %v6747
        %6749 = vmatprep.mubr.bf16.mxu0 %v6424
        %6750 = vmatmul.mubr.bf16.gmra.mrb[0].mxu0 %v6423
        %v6751 = vpop.f32.mrb[0].mxu0
        %v6752 = vadd.f32 %v6520, %v6751
        %v6753 = vpop.f32.mrb[0].mxu0
        %v6754 = vadd.f32 %v6524, %v6753
        %v6755 = vpop.f32.mrb[0].mxu0
        %v6756 = vadd.f32 %v6520, %v6755
        %v6757 = vpop.f32.mrb[0].mxu0
        %v6758 = vadd.f32 %v6524, %v6757
        %6759 = vmatprep.mubr.bf16.mxu0 %v6426
        %6760 = vmatmul.mubr.bf16.gmra.mrb[0].mxu0 %v6425
        %v6761 = vpop.f32.mrb[0].mxu0
        %v6762 = vadd.f32 %v6520, %v6761
        %v6763 = vpop.f32.mrb[0].mxu0
        %v6764 = vadd.f32 %v6524, %v6763
        %v6765 = vpop.f32.mrb[0].mxu0
        %v6766 = vadd.f32 %v6520, %v6765
        %v6767 = vpop.f32.mrb[0].mxu0
        %v6768 = vadd.f32 %v6524, %v6767
        %6769 = vmatprep.mubr.bf16.mxu0 %v6428
        %6770 = vmatmul.mubr.bf16.gmra.mrb[0].mxu0 %v6427
        %v6771 = vpop.f32.mrb[0].mxu0
        %v6772 = vadd.f32 %v6520, %v6771
        %v6773 = vpop.f32.mrb[0].mxu0
        %v6774 = vadd.f32 %v6524, %v6773
        %v6775 = vpop.f32.mrb[0].mxu0
        %v6776 = vadd.f32 %v6520, %v6775
        %v6777 = vpop.f32.mrb[0].mxu0
        %v6778 = vadd.f32 %v6524, %v6777
        %6779 = vmatprep.mubr.bf16.mxu0 %v6430
        %6780 = vmatmul.mubr.bf16.gmra.mrb[0].mxu0 %v6429
        %v6781 = vpop.f32.mrb[0].mxu0
        %v6782 = vadd.f32 %v6520, %v6781
        %v6783 = vpop.f32.mrb[0].mxu0
        %v6784 = vadd.f32 %v6524, %v6783
        %v6785 = vpop.f32.mrb[0].mxu0
        %v6786 = vadd.f32 %v6520, %v6785
        %v6787 = vpop.f32.mrb[0].mxu0
        %v6788 = vadd.f32 %v6524, %v6787
        %6789 = vmatprep.mubr.bf16.mxu0 %v6432
        %6790 = vmatmul.mubr.bf16.gmra.mrb[0].mxu0 %v6431
        %v6791 = vpop.f32.mrb[0].mxu0
        %v6792 = vadd.f32 %v6520, %v6791
        %v6793 = vpop.f32.mrb[0].mxu0
        %v6794 = vadd.f32 %v6524, %v6793
        %v6795 = vpop.f32.mrb[0].mxu0
        %v6796 = vadd.f32 %v6520, %v6795
        %v6797 = vpop.f32.mrb[0].mxu0
        %v6798 = vadd.f32 %v6524, %v6797
        %6799 = vmatprep.mubr.bf16.mxu0 %v6434
        %6800 = vmatmul.mubr.bf16.gmra.mrb[0].mxu0 %v6433
        %v6801 = vpop.f32.mrb[0].mxu0
        %v6802 = vadd.f32 %v6520, %v6801
        %v6803 = vpop.f32.mrb[0].mxu0
        %v6804 = vadd.f32 %v6524, %v6803
        %v6805 = vpop.f32.mrb[0].mxu0
        %v6806 = vadd.f32 %v6520, %v6805
        %v6807 = vpop.f32.mrb[0].mxu0
        %v6808 = vadd.f32 %v6524, %v6807
        %6809 = vmatprep.mubr.bf16.mxu0 %v6436
        %6810 = vmatmul.mubr.bf16.gmra.mrb[0].mxu0 %v6435
        %v6811 = vpop.f32.mrb[0].mxu0
        %v6812 = vadd.f32 %v6520, %v6811
        %v6813 = vpop.f32.mrb[0].mxu0
        %v6814 = vadd.f32 %v6524, %v6813
        %v6815 = vpop.f32.mrb[0].mxu0
        %v6816 = vadd.f32 %v6520, %v6815
        %v6817 = vpop.f32.mrb[0].mxu0
        %v6818 = vadd.f32 %v6524, %v6817
        %6819 = vmatprep.mubr.bf16.mxu0 %v6438
        %6820 = vmatmul.mubr.bf16.gmra.mrb[0].mxu0 %v6437
        %v6821 = vpop.f32.mrb[0].mxu0
        %v6822 = vadd.f32 %v6520, %v6821
        %v6823 = vpop.f32.mrb[0].mxu0
        %v6824 = vadd.f32 %v6524, %v6823
        %v6825 = vpop.f32.mrb[0].mxu0
        %v6826 = vadd.f32 %v6520, %v6825
        %v6827 = vpop.f32.mrb[0].mxu0
        %v6828 = vadd.f32 %v6524, %v6827
        %6829 = vmatprep.mubr.bf16.mxu0 %v6440
        %6830 = vmatmul.mubr.bf16.gmra.mrb[0].mxu0 %v6439
        %v6831 = vpop.f32.mrb[0].mxu0
        %v6832 = vadd.f32 %v6520, %v6831
        %v6833 = vpop.f32.mrb[0].mxu0
        %v6834 = vadd.f32 %v6524, %v6833
        %v6835 = vpop.f32.mrb[0].mxu0
        %v6836 = vadd.f32 %v6520, %v6835
        %v6837 = vpop.f32.mrb[0].mxu0
        %v6838 = vadd.f32 %v6524, %v6837
        %6839 = vmatprep.mubr.bf16.mxu0 %v6442
        %6840 = vmatmul.mubr.bf16.gmra.mrb[0].mxu0 %v6441
        %v6841 = vpop.f32.mrb[0].mxu0
        %v6842 = vadd.f32 %v6520, %v6841
        %v6843 = vpop.f32.mrb[0].mxu0
        %v6844 = vadd.f32 %v6524, %v6843
        %v6845 = vpop.f32.mrb[0].mxu0
        %v6846 = vadd.f32 %v6520, %v6845
        %v6847 = vpop.f32.mrb[0].mxu0
        %v6848 = vadd.f32 %v6524, %v6847
        %6849 = vmatprep.mubr.bf16.mxu0 %v6444
        %6850 = vmatmul.mubr.bf16.gmra.mrb[0].mxu0 %v6443
        %v6851 = vpop.f32.mrb[0].mxu0
        %v6852 = vadd.f32 %v6520, %v6851
        %v6853 = vpop.f32.mrb[0].mxu0
        %v6854 = vadd.f32 %v6524, %v6853
        %v6855 = vpop.f32.mrb[0].mxu0
        %v6856 = vadd.f32 %v6520, %v6855
        %v6857 = vpop.f32.mrb[0].mxu0
        %v6858 = vadd.f32 %v6524, %v6857
        %6859 = vmatprep.mubr.bf16.mxu0 %v6446
        %6860 = vmatmul.mubr.bf16.gmra.mrb[0].mxu0 %v6445
        %v6861 = vpop.f32.mrb[0].mxu0
        %v6862 = vadd.f32 %v6520, %v6861
        %v6863 = vpop.f32.mrb[0].mxu0
        %v6864 = vadd.f32 %v6524, %v6863
        %v6865 = vpop.f32.mrb[0].mxu0
        %v6866 = vadd.f32 %v6520, %v6865
        %v6867 = vpop.f32.mrb[0].mxu0
        %v6868 = vadd.f32 %v6524, %v6867
        %6869 = vmatprep.mubr.bf16.mxu0 %v6448
        %6870 = vmatmul.mubr.bf16.gmra.mrb[0].mxu0 %v6447
        %v6871 = vpop.f32.mrb[0].mxu0
        %v6872 = vadd.f32 %v6520, %v6871
        %v6873 = vpop.f32.mrb[0].mxu0
        %v6874 = vadd.f32 %v6524, %v6873
        %v6875 = vpop.f32.mrb[0].mxu0
        %v6876 = vadd.f32 %v6520, %v6875
        %v6877 = vpop.f32.mrb[0].mxu0
        %v6878 = vadd.f32 %v6524, %v6877
        %6879 = vmatprep.mubr.bf16.mxu0 %v6450
        %6880 = vmatmul.mubr.bf16.gmra.mrb[0].mxu0 %v6449
        %v6881 = vpop.f32.mrb[0].mxu0
        %v6882 = vadd.f32 %v6520, %v6881
        %v6883 = vpop.f32.mrb[0].mxu0
        %v6884 = vadd.f32 %v6524, %v6883
        %v6885 = vpop.f32.mrb[0].mxu0
        %v6886 = vadd.f32 %v6520, %v6885
        %v6887 = vpop.f32.mrb[0].mxu0
        %v6888 = vadd.f32 %v6524, %v6887
        %6889 = vmatprep.mubr.bf16.mxu0 %v6452
        %6890 = vmatmul.mubr.bf16.gmra.mrb[0].mxu0 %v6451
        %v6891 = vpop.f32.mrb[0].mxu0
        %v6892 = vadd.f32 %v6520, %v6891
        %v6893 = vpop.f32.mrb[0].mxu0
        %v6894 = vadd.f32 %v6524, %v6893
        %v6895 = vpop.f32.mrb[0].mxu0
        %v6896 = vadd.f32 %v6520, %v6895
        %v6897 = vpop.f32.mrb[0].mxu0
        %v6898 = vadd.f32 %v6524, %v6897
        %6899 = vmatprep.mubr.bf16.mxu0 %v6454
        %6900 = vmatmul.mubr.bf16.gmra.mrb[0].mxu0 %v6453
        %v6901 = vpop.f32.mrb[0].mxu0
        %v6902 = vadd.f32 %v6520, %v6901
        %v6903 = vpop.f32.mrb[0].mxu0
        %v6904 = vadd.f32 %v6524, %v6903
        %v6905 = vpop.f32.mrb[0].mxu0
        %v6906 = vadd.f32 %v6520, %v6905
        %v6907 = vpop.f32.mrb[0].mxu0
        %v6908 = vadd.f32 %v6524, %v6907
        %6909 = vmatprep.mubr.bf16.mxu0 %v6456
        %6910 = vmatmul.mubr.bf16.gmra.mrb[0].mxu0 %v6455
        %v6911 = vpop.f32.mrb[0].mxu0
        %v6912 = vadd.f32 %v6520, %v6911
        %v6913 = vpop.f32.mrb[0].mxu0
        %v6914 = vadd.f32 %v6524, %v6913
        %v6915 = vpop.f32.mrb[0].mxu0
        %v6916 = vadd.f32 %v6520, %v6915
        %v6917 = vpop.f32.mrb[0].mxu0
        %v6918 = vadd.f32 %v6524, %v6917
        %6919 = vmatprep.mubr.bf16.mxu0 %v6458
        %6920 = vmatmul.mubr.bf16.gmra.mrb[0].mxu0 %v6457
        %v6921 = vpop.f32.mrb[0].mxu0
        %v6922 = vadd.f32 %v6520, %v6921
        %v6923 = vpop.f32.mrb[0].mxu0
        %v6924 = vadd.f32 %v6524, %v6923
        %v6925 = vpop.f32.mrb[0].mxu0
        %v6926 = vadd.f32 %v6520, %v6925
        %v6927 = vpop.f32.mrb[0].mxu0
        %v6928 = vadd.f32 %v6524, %v6927
        %6929 = vmatprep.mubr.bf16.mxu0 %v6460
        %6930 = vmatmul.mubr.bf16.gmra.mrb[0].mxu0 %v6459
        %v6931 = vpop.f32.mrb[0].mxu0
        %v6932 = vadd.f32 %v6520, %v6931
        %v6933 = vpop.f32.mrb[0].mxu0
        %v6934 = vadd.f32 %v6524, %v6933
        %v6935 = vpop.f32.mrb[0].mxu0
        %v6936 = vadd.f32 %v6520, %v6935
        %v6937 = vpop.f32.mrb[0].mxu0
        %v6938 = vadd.f32 %v6524, %v6937
        %6939 = vmatprep.mubr.bf16.mxu0 %v6462
        %6940 = vmatmul.mubr.bf16.gmra.mrb[0].mxu0 %v6461
        %v6941 = vpop.f32.mrb[0].mxu0
        %v6942 = vadd.f32 %v6520, %v6941
        %v6943 = vpop.f32.mrb[0].mxu0
        %v6944 = vadd.f32 %v6524, %v6943
        %v6945 = vpop.f32.mrb[0].mxu0
        %v6946 = vadd.f32 %v6520, %v6945
        %v6947 = vpop.f32.mrb[0].mxu0
        %v6948 = vadd.f32 %v6524, %v6947
        %6949 = vmatprep.mubr.bf16.mxu0 %v6464
        %6950 = vmatmul.mubr.bf16.gmra.mrb[0].mxu0 %v6463
        %v6951 = vpop.f32.mrb[0].mxu0
        %v6952 = vadd.f32 %v6520, %v6951
        %v6953 = vpop.f32.mrb[0].mxu0
        %v6954 = vadd.f32 %v6524, %v6953
        %v6955 = vpop.f32.mrb[0].mxu0
        %v6956 = vadd.f32 %v6520, %v6955
        %v6957 = vpop.f32.mrb[0].mxu0
        %v6958 = vadd.f32 %v6524, %v6957
        %6959 = vmatprep.mubr.bf16.mxu0 %v6466
        %6960 = vmatmul.mubr.bf16.gmra.mrb[0].mxu0 %v6465
        %v6961 = vpop.f32.mrb[0].mxu0
        %v6962 = vadd.f32 %v6520, %v6961
        %v6963 = vpop.f32.mrb[0].mxu0
        %v6964 = vadd.f32 %v6524, %v6963
        %v6965 = vpop.f32.mrb[0].mxu0
        %v6966 = vadd.f32 %v6520, %v6965
        %v6967 = vpop.f32.mrb[0].mxu0
        %v6968 = vadd.f32 %v6524, %v6967
        %6969 = vmatprep.mubr.bf16.mxu0 %v6468
        %6970 = vmatmul.mubr.bf16.gmra.mrb[0].mxu0 %v6467
        %v6971 = vpop.f32.mrb[0].mxu0
        %v6972 = vadd.f32 %v6520, %v6971
        %v6973 = vpop.f32.mrb[0].mxu0
        %v6974 = vadd.f32 %v6524, %v6973
        %v6975 = vpop.f32.mrb[0].mxu0
        %v6976 = vadd.f32 %v6520, %v6975
        %v6977 = vpop.f32.mrb[0].mxu0
        %v6978 = vadd.f32 %v6524, %v6977
        %6979 = vmatprep.mubr.bf16.mxu0 %v6470
        %6980 = vmatmul.mubr.bf16.gmra.mrb[0].mxu0 %v6469
        %v6981 = vpop.f32.mrb[0].mxu0
        %v6982 = vadd.f32 %v6520, %v6981
        %v6983 = vpop.f32.mrb[0].mxu0
        %v6984 = vadd.f32 %v6524, %v6983
        %v6985 = vpop.f32.mrb[0].mxu0
        %v6986 = vadd.f32 %v6520, %v6985
        %v6987 = vpop.f32.mrb[0].mxu0
        %v6988 = vadd.f32 %v6524, %v6987
        %6989 = vmatprep.mubr.bf16.mxu0 %v6472
        %6990 = vmatmul.mubr.bf16.gmra.mrb[0].mxu0 %v6471
        %v6991 = vpop.f32.mrb[0].mxu0
        %v6992 = vadd.f32 %v6520, %v6991
        %v6993 = vpop.f32.mrb[0].mxu0
        %v6994 = vadd.f32 %v6524, %v6993
        %v6995 = vpop.f32.mrb[0].mxu0
        %v6996 = vadd.f32 %v6520, %v6995
        %v6997 = vpop.f32.mrb[0].mxu0
        %v6998 = vadd.f32 %v6524, %v6997
        %6999 = vmatprep.mubr.bf16.mxu0 %v6474
        %7000 = vmatmul.mubr.bf16.gmra.mrb[0].mxu0 %v6473
        %v7001 = vpop.f32.mrb[0].mxu0
        %v7002 = vadd.f32 %v6520, %v7001
        %v7003 = vpop.f32.mrb[0].mxu0
        %v7004 = vadd.f32 %v6524, %v7003
        %v7005 = vpop.f32.mrb[0].mxu0
        %v7006 = vadd.f32 %v6520, %v7005
        %v7007 = vpop.f32.mrb[0].mxu0
        %v7008 = vadd.f32 %v6524, %v7007
        %7009 = vmatprep.mubr.bf16.mxu0 %v6476
        %7010 = vmatmul.mubr.bf16.gmra.mrb[0].mxu0 %v6475
        %v7011 = vpop.f32.mrb[0].mxu0
        %v7012 = vadd.f32 %v6520, %v7011
        %v7013 = vpop.f32.mrb[0].mxu0
        %v7014 = vadd.f32 %v6524, %v7013
        %v7015 = vpop.f32.mrb[0].mxu0
        %v7016 = vadd.f32 %v6520, %v7015
        %v7017 = vpop.f32.mrb[0].mxu0
        %v7018 = vadd.f32 %v6524, %v7017
        %7019 = vmatprep.mubr.bf16.mxu0 %v6478
        %7020 = vmatmul.mubr.bf16.gmra.mrb[0].mxu0 %v6477
        %v7021 = vpop.f32.mrb[0].mxu0
        %v7022 = vadd.f32 %v6520, %v7021
        %v7023 = vpop.f32.mrb[0].mxu0
        %v7024 = vadd.f32 %v6524, %v7023
        %v7025 = vpop.f32.mrb[0].mxu0
        %v7026 = vadd.f32 %v6520, %v7025
        %v7027 = vpop.f32.mrb[0].mxu0
        %v7028 = vadd.f32 %v6524, %v7027
        %7029 = vmatprep.mubr.bf16.mxu0 %v6480
        %7030 = vmatmul.mubr.bf16.gmra.mrb[0].mxu0 %v6479
        %v7031 = vpop.f32.mrb[0].mxu0
        %v7032 = vadd.f32 %v6520, %v7031
        %v7033 = vpop.f32.mrb[0].mxu0
        %v7034 = vadd.f32 %v6524, %v7033
        %v7035 = vpop.f32.mrb[0].mxu0
        %v7036 = vadd.f32 %v6520, %v7035
        %v7037 = vpop.f32.mrb[0].mxu0
        %v7038 = vadd.f32 %v6524, %v7037
        %7039 = vdwg.mxu0
        %v7040 = vmax.f32 %v6722, 0.0
        %v7041 = vmax.f32 %v6724, 0.0
        %v7042 = vmax.f32 %v6726, 0.0
        %v7043 = vmax.f32 %v6728, 0.0
        %v7044 = vmax.f32 %v6732, 0.0
        %v7045 = vmax.f32 %v6734, 0.0
        %v7046 = vmax.f32 %v6736, 0.0
        %v7047 = vmax.f32 %v6738, 0.0
        %v7048 = vmax.f32 %v6742, 0.0
        %v7049 = vmax.f32 %v6744, 0.0
        %v7050 = vmax.f32 %v6746, 0.0
        %v7051 = vmax.f32 %v6748, 0.0
        %v7052 = vmax.f32 %v6752, 0.0
        %v7053 = vmax.f32 %v6754, 0.0
        %v7054 = vmax.f32 %v6756, 0.0
        %v7055 = vmax.f32 %v6758, 0.0
        %v7056 = vmax.f32 %v6762, 0.0
        %v7057 = vmax.f32 %v6764, 0.0
        %v7058 = vmax.f32 %v6766, 0.0
        %v7059 = vmax.f32 %v6768, 0.0
        %v7060 = vmax.f32 %v6772, 0.0
        %v7061 = vmax.f32 %v6774, 0.0
        %v7062 = vmax.f32 %v6776, 0.0
        %v7063 = vmax.f32 %v6778, 0.0
        %v7064 = vmax.f32 %v6782, 0.0
        %v7065 = vmax.f32 %v6784, 0.0
        %v7066 = vmax.f32 %v6786, 0.0
        %v7067 = vmax.f32 %v6788, 0.0
        %v7068 = vmax.f32 %v6792, 0.0
        %v7069 = vmax.f32 %v6794, 0.0
        %v7070 = vmax.f32 %v6796, 0.0
        %v7071 = vmax.f32 %v6798, 0.0
        %v7072 = vmax.f32 %v6802, 0.0
        %v7073 = vmax.f32 %v6804, 0.0
        %v7074 = vmax.f32 %v6806, 0.0
        %v7075 = vmax.f32 %v6808, 0.0
        %v7076 = vmax.f32 %v6812, 0.0
        %v7077 = vmax.f32 %v6814, 0.0
        %v7078 = vmax.f32 %v6816, 0.0
        %v7079 = vmax.f32 %v6818, 0.0
        %v7080 = vmax.f32 %v6822, 0.0
        %v7081 = vmax.f32 %v6824, 0.0
        %v7082 = vmax.f32 %v6826, 0.0
        %v7083 = vmax.f32 %v6828, 0.0
        %v7084 = vmax.f32 %v6832, 0.0
        %v7085 = vmax.f32 %v6834, 0.0
        %v7086 = vmax.f32 %v6836, 0.0
        %v7087 = vmax.f32 %v6838, 0.0
        %v7088 = vmax.f32 %v6842, 0.0
        %v7089 = vmax.f32 %v6844, 0.0
        %v7090 = vmax.f32 %v6846, 0.0
        %v7091 = vmax.f32 %v6848, 0.0
        %v7092 = vmax.f32 %v6852, 0.0
        %v7093 = vmax.f32 %v6854, 0.0
        %v7094 = vmax.f32 %v6856, 0.0
        %v7095 = vmax.f32 %v6858, 0.0
        %v7096 = vmax.f32 %v6862, 0.0
        %v7097 = vmax.f32 %v6864, 0.0
        %v7098 = vmax.f32 %v6866, 0.0
        %v7099 = vmax.f32 %v6868, 0.0
        %v7100 = vmax.f32 %v6872, 0.0
        %v7101 = vmax.f32 %v6874, 0.0
        %v7102 = vmax.f32 %v6876, 0.0
        %v7103 = vmax.f32 %v6878, 0.0
        %v7104 = vmax.f32 %v6882, 0.0
        %v7105 = vmax.f32 %v6884, 0.0
        %v7106 = vmax.f32 %v6886, 0.0
        %v7107 = vmax.f32 %v6888, 0.0
        %v7108 = vmax.f32 %v6892, 0.0
        %v7109 = vmax.f32 %v6894, 0.0
        %v7110 = vmax.f32 %v6896, 0.0
        %v7111 = vmax.f32 %v6898, 0.0
        %v7112 = vmax.f32 %v6902, 0.0
        %v7113 = vmax.f32 %v6904, 0.0
        %v7114 = vmax.f32 %v6906, 0.0
        %v7115 = vmax.f32 %v6908, 0.0
        %v7116 = vmax.f32 %v6912, 0.0
        %v7117 = vmax.f32 %v6914, 0.0
        %v7118 = vmax.f32 %v6916, 0.0
        %v7119 = vmax.f32 %v6918, 0.0
        %v7120 = vmax.f32 %v6922, 0.0
        %v7121 = vmax.f32 %v6924, 0.0
        %v7122 = vmax.f32 %v6926, 0.0
        %v7123 = vmax.f32 %v6928, 0.0
        %v7124 = vmax.f32 %v6932, 0.0
        %v7125 = vmax.f32 %v6934, 0.0
        %v7126 = vmax.f32 %v6936, 0.0
        %v7127 = vmax.f32 %v6938, 0.0
        %v7128 = vmax.f32 %v6942, 0.0
        %v7129 = vmax.f32 %v6944, 0.0
        %v7130 = vmax.f32 %v6946, 0.0
        %v7131 = vmax.f32 %v6948, 0.0
        %v7132 = vmax.f32 %v6952, 0.0
        %v7133 = vmax.f32 %v6954, 0.0
        %v7134 = vmax.f32 %v6956, 0.0
        %v7135 = vmax.f32 %v6958, 0.0
        %v7136 = vmax.f32 %v6962, 0.0
        %v7137 = vmax.f32 %v6964, 0.0
        %v7138 = vmax.f32 %v6966, 0.0
        %v7139 = vmax.f32 %v6968, 0.0
        %v7140 = vmax.f32 %v6972, 0.0
        %v7141 = vmax.f32 %v6974, 0.0
        %v7142 = vmax.f32 %v6976, 0.0
        %v7143 = vmax.f32 %v6978, 0.0
        %v7144 = vmax.f32 %v6982, 0.0
        %v7145 = vmax.f32 %v6984, 0.0
        %v7146 = vmax.f32 %v6986, 0.0
        %v7147 = vmax.f32 %v6988, 0.0
        %v7148 = vmax.f32 %v6992, 0.0
        %v7149 = vmax.f32 %v6994, 0.0
        %v7150 = vmax.f32 %v6996, 0.0
        %v7151 = vmax.f32 %v6998, 0.0
        %v7152 = vmax.f32 %v7002, 0.0
        %v7153 = vmax.f32 %v7004, 0.0
        %v7154 = vmax.f32 %v7006, 0.0
        %v7155 = vmax.f32 %v7008, 0.0
        %v7156 = vmax.f32 %v7012, 0.0
        %v7157 = vmax.f32 %v7014, 0.0
        %v7158 = vmax.f32 %v7016, 0.0
        %v7159 = vmax.f32 %v7018, 0.0
        %v7160 = vmax.f32 %v7022, 0.0
        %v7161 = vmax.f32 %v7024, 0.0
        %v7162 = vmax.f32 %v7026, 0.0
        %v7163 = vmax.f32 %v7028, 0.0
        %v7164 = vmax.f32 %v7032, 0.0
        %v7165 = vmax.f32 %v7034, 0.0
        %v7166 = vmax.f32 %v7036, 0.0
        %v7167 = vmax.f32 %v7038, 0.0
        %v7168 = vpack.c.bf16 %v7042, %v7040
        %v7169 = vpack.c.bf16 %v7043, %v7041
        %v7170 = vpack.c.bf16 %v7046, %v7044
        %v7171 = vpack.c.bf16 %v7047, %v7045
        %v7172 = vpack.c.bf16 %v7050, %v7048
        %v7173 = vpack.c.bf16 %v7051, %v7049
        %v7174 = vpack.c.bf16 %v7054, %v7052
        %v7175 = vpack.c.bf16 %v7055, %v7053
        %v7176 = vpack.c.bf16 %v7058, %v7056
        %v7177 = vpack.c.bf16 %v7059, %v7057
        %v7178 = vpack.c.bf16 %v7062, %v7060
        %v7179 = vpack.c.bf16 %v7063, %v7061
        %v7180 = vpack.c.bf16 %v7066, %v7064
        %v7181 = vpack.c.bf16 %v7067, %v7065
        %v7182 = vpack.c.bf16 %v7070, %v7068
        %v7183 = vpack.c.bf16 %v7071, %v7069
        %v7184 = vpack.c.bf16 %v7074, %v7072
        %v7185 = vpack.c.bf16 %v7075, %v7073
        %v7186 = vpack.c.bf16 %v7078, %v7076
        %v7187 = vpack.c.bf16 %v7079, %v7077
        %v7188 = vpack.c.bf16 %v7082, %v7080
        %v7189 = vpack.c.bf16 %v7083, %v7081
        %v7190 = vpack.c.bf16 %v7086, %v7084
        %v7191 = vpack.c.bf16 %v7087, %v7085
        %v7192 = vpack.c.bf16 %v7090, %v7088
        %v7193 = vpack.c.bf16 %v7091, %v7089
        %v7194 = vpack.c.bf16 %v7094, %v7092
        %v7195 = vpack.c.bf16 %v7095, %v7093
        %v7196 = vpack.c.bf16 %v7098, %v7096
        %v7197 = vpack.c.bf16 %v7099, %v7097
        %v7198 = vpack.c.bf16 %v7102, %v7100
        %v7199 = vpack.c.bf16 %v7103, %v7101
        %v7200 = vpack.c.bf16 %v7106, %v7104
        %v7201 = vpack.c.bf16 %v7107, %v7105
        %v7202 = vpack.c.bf16 %v7110, %v7108
        %v7203 = vpack.c.bf16 %v7111, %v7109
        %v7204 = vpack.c.bf16 %v7114, %v7112
        %v7205 = vpack.c.bf16 %v7115, %v7113
        %v7206 = vpack.c.bf16 %v7118, %v7116
        %v7207 = vpack.c.bf16 %v7119, %v7117
        %v7208 = vpack.c.bf16 %v7122, %v7120
        %v7209 = vpack.c.bf16 %v7123, %v7121
        %v7210 = vpack.c.bf16 %v7126, %v7124
        %v7211 = vpack.c.bf16 %v7127, %v7125
        %v7212 = vpack.c.bf16 %v7130, %v7128
        %v7213 = vpack.c.bf16 %v7131, %v7129
        %v7214 = vpack.c.bf16 %v7134, %v7132
        %v7215 = vpack.c.bf16 %v7135, %v7133
        %v7216 = vpack.c.bf16 %v7138, %v7136
        %v7217 = vpack.c.bf16 %v7139, %v7137
        %v7218 = vpack.c.bf16 %v7142, %v7140
        %v7219 = vpack.c.bf16 %v7143, %v7141
        %v7220 = vpack.c.bf16 %v7146, %v7144
        %v7221 = vpack.c.bf16 %v7147, %v7145
        %v7222 = vpack.c.bf16 %v7150, %v7148
        %v7223 = vpack.c.bf16 %v7151, %v7149
        %v7224 = vpack.c.bf16 %v7154, %v7152
        %v7225 = vpack.c.bf16 %v7155, %v7153
        %v7226 = vpack.c.bf16 %v7158, %v7156
        %v7227 = vpack.c.bf16 %v7159, %v7157
        %v7228 = vpack.c.bf16 %v7162, %v7160
        %v7229 = vpack.c.bf16 %v7163, %v7161
        %v7230 = vpack.c.bf16 %v7166, %v7164
        %v7231 = vpack.c.bf16 %v7167, %v7165
        %v7232 = vld [vmem:[%s3] sm:$0xff]
        %v7233 = vld [vmem:[%s3 + $0x8] sm:$0xff]
        %v7234 = vld [vmem:[%s3 + $0x10] sm:$0xff]
        %v7235 = vld [vmem:[%s3 + $0x18] sm:$0xff]
        %v7236 = vld [vmem:[%s3 + $0x20] sm:$0xff]
        %v7237 = vld [vmem:[%s3 + $0x28] sm:$0xff]
        %v7238 = vld [vmem:[%s3 + $0x30] sm:$0xff]
        %v7239 = vld [vmem:[%s3 + $0x38] sm:$0xff]
        %v7240 = vld [vmem:[%s3 + $0x40] sm:$0xff]
        %v7241 = vld [vmem:[%s3 + $0x48] sm:$0xff]
        %v7242 = vld [vmem:[%s3 + $0x50] sm:$0xff]
        %v7243 = vld [vmem:[%s3 + $0x58] sm:$0xff]
        %v7244 = vld [vmem:[%s3 + $0x60] sm:$0xff]
        %v7245 = vld [vmem:[%s3 + $0x68] sm:$0xff]
        %v7246 = vld [vmem:[%s3 + $0x70] sm:$0xff]
        %v7247 = vld [vmem:[%s3 + $0x78] sm:$0xff]
        %v7248 = vld [vmem:[%s3 + $0x80] sm:$0xff]
        %v7249 = vld [vmem:[%s3 + $0x88] sm:$0xff]
        %v7250 = vld [vmem:[%s3 + $0x90] sm:$0xff]
        %v7251 = vld [vmem:[%s3 + $0x98] sm:$0xff]
        %v7252 = vld [vmem:[%s3 + $0xa0] sm:$0xff]
        %v7253 = vld [vmem:[%s3 + $0xa8] sm:$0xff]
        %v7254 = vld [vmem:[%s3 + $0xb0] sm:$0xff]
        %v7255 = vld [vmem:[%s3 + $0xb8] sm:$0xff]
        %v7256 = vld [vmem:[%s3 + $0xc0] sm:$0xff]
        %v7257 = vld [vmem:[%s3 + $0xc8] sm:$0xff]
        %v7258 = vld [vmem:[%s3 + $0xd0] sm:$0xff]
        %v7259 = vld [vmem:[%s3 + $0xd8] sm:$0xff]
        %v7260 = vld [vmem:[%s3 + $0xe0] sm:$0xff]
        %v7261 = vld [vmem:[%s3 + $0xe8] sm:$0xff]
        %v7262 = vld [vmem:[%s3 + $0xf0] sm:$0xff]
        %v7263 = vld [vmem:[%s3 + $0xf8] sm:$0xff]
        %v7296 = vunpack.c.l.b16 %v7232
        %v7297 = vunpack.c.h.b16 %v7232
        %v7298 = vunpack.c.l.b16 %v7233
        %v7299 = vunpack.c.h.b16 %v7233
        %v7300 = vunpack.c.l.b16 %v7234
        %v7301 = vunpack.c.h.b16 %v7234
        %v7302 = vunpack.c.l.b16 %v7235
        %v7303 = vunpack.c.h.b16 %v7235
        %v7304 = vunpack.c.l.b16 %v7236
        %v7305 = vunpack.c.h.b16 %v7236
        %v7306 = vunpack.c.l.b16 %v7237
        %v7307 = vunpack.c.h.b16 %v7237
        %v7308 = vunpack.c.l.b16 %v7238
        %v7309 = vunpack.c.h.b16 %v7238
        %v7310 = vunpack.c.l.b16 %v7239
        %v7311 = vunpack.c.h.b16 %v7239
        %v7312 = vunpack.c.l.b16 %v7240
        %v7313 = vunpack.c.h.b16 %v7240
        %v7314 = vunpack.c.l.b16 %v7241
        %v7315 = vunpack.c.h.b16 %v7241
        %v7316 = vunpack.c.l.b16 %v7242
        %v7317 = vunpack.c.h.b16 %v7242
        %v7318 = vunpack.c.l.b16 %v7243
        %v7319 = vunpack.c.h.b16 %v7243
        %v7320 = vunpack.c.l.b16 %v7244
        %v7321 = vunpack.c.h.b16 %v7244
        %v7322 = vunpack.c.l.b16 %v7245
        %v7323 = vunpack.c.h.b16 %v7245
        %v7324 = vunpack.c.l.b16 %v7246
        %v7325 = vunpack.c.h.b16 %v7246
        %v7326 = vunpack.c.l.b16 %v7247
        %v7327 = vunpack.c.h.b16 %v7247
        %v7328 = vunpack.c.l.b16 %v7248
        %v7329 = vunpack.c.h.b16 %v7248
        %v7330 = vunpack.c.l.b16 %v7249
        %v7331 = vunpack.c.h.b16 %v7249
        %v7332 = vunpack.c.l.b16 %v7250
        %v7333 = vunpack.c.h.b16 %v7250
        %v7334 = vunpack.c.l.b16 %v7251
        %v7335 = vunpack.c.h.b16 %v7251
        %v7336 = vunpack.c.l.b16 %v7252
        %v7337 = vunpack.c.h.b16 %v7252
        %v7338 = vunpack.c.l.b16 %v7253
        %v7339 = vunpack.c.h.b16 %v7253
        %v7340 = vunpack.c.l.b16 %v7254
        %v7341 = vunpack.c.h.b16 %v7254
        %v7342 = vunpack.c.l.b16 %v7255
        %v7343 = vunpack.c.h.b16 %v7255
        %v7344 = vunpack.c.l.b16 %v7256
        %v7345 = vunpack.c.h.b16 %v7256
        %v7346 = vunpack.c.l.b16 %v7257
        %v7347 = vunpack.c.h.b16 %v7257
        %v7348 = vunpack.c.l.b16 %v7258
        %v7349 = vunpack.c.h.b16 %v7258
        %v7350 = vunpack.c.l.b16 %v7259
        %v7351 = vunpack.c.h.b16 %v7259
        %v7352 = vunpack.c.l.b16 %v7260
        %v7353 = vunpack.c.h.b16 %v7260
        %v7354 = vunpack.c.l.b16 %v7261
        %v7355 = vunpack.c.h.b16 %v7261
        %v7356 = vunpack.c.l.b16 %v7262
        %v7357 = vunpack.c.h.b16 %v7262
        %v7358 = vunpack.c.l.b16 %v7263
        %v7359 = vunpack.c.h.b16 %v7263
        %v7360 = vpack.c.b16 %v7298, %v7296
        %v7361 = vpack.c.b16 %v7299, %v7297
        %v7362 = vpack.c.b16 %v7302, %v7300
        %v7363 = vpack.c.b16 %v7303, %v7301
        %v7364 = vpack.c.b16 %v7306, %v7304
        %v7365 = vpack.c.b16 %v7307, %v7305
        %v7366 = vpack.c.b16 %v7310, %v7308
        %v7367 = vpack.c.b16 %v7311, %v7309
        %v7368 = vpack.c.b16 %v7314, %v7312
        %v7369 = vpack.c.b16 %v7315, %v7313
        %v7370 = vpack.c.b16 %v7318, %v7316
        %v7371 = vpack.c.b16 %v7319, %v7317
        %v7372 = vpack.c.b16 %v7322, %v7320
        %v7373 = vpack.c.b16 %v7323, %v7321
        %v7374 = vpack.c.b16 %v7326, %v7324
        %v7375 = vpack.c.b16 %v7327, %v7325
        %v7376 = vpack.c.b16 %v7330, %v7328
        %v7377 = vpack.c.b16 %v7331, %v7329
        %v7378 = vpack.c.b16 %v7334, %v7332
        %v7379 = vpack.c.b16 %v7335, %v7333
        %v7380 = vpack.c.b16 %v7338, %v7336
        %v7381 = vpack.c.b16 %v7339, %v7337
        %v7382 = vpack.c.b16 %v7342, %v7340
        %v7383 = vpack.c.b16 %v7343, %v7341
        %v7384 = vpack.c.b16 %v7346, %v7344
        %v7385 = vpack.c.b16 %v7347, %v7345
        %v7386 = vpack.c.b16 %v7350, %v7348
        %v7387 = vpack.c.b16 %v7351, %v7349
        %v7388 = vpack.c.b16 %v7354, %v7352
        %v7389 = vpack.c.b16 %v7355, %v7353
        %v7390 = vpack.c.b16 %v7358, %v7356
        %v7391 = vpack.c.b16 %v7359, %v7357
        %7424 = vmatprep.subr.bf16.mxu0 %v7361
        %7425 = vmatpush1.bf16.msra.mxu0 %v7360
        %7426 = vmatprep.subr.bf16.mxu0 %v7363
        %7427 = vmatpush1.bf16.msra.mxu0 %v7362
        %7428 = vmatprep.subr.bf16.mxu0 %v7365
        %7429 = vmatpush1.bf16.msra.mxu0 %v7364
        %7430 = vmatprep.subr.bf16.mxu0 %v7367
        %7431 = vmatpush1.bf16.msra.mxu0 %v7366
        %7432 = vmatprep.subr.bf16.mxu0 %v7369
        %7433 = vmatpush1.bf16.msra.mxu0 %v7368
        %7434 = vmatprep.subr.bf16.mxu0 %v7371
        %7435 = vmatpush1.bf16.msra.mxu0 %v7370
        %7436 = vmatprep.subr.bf16.mxu0 %v7373
        %7437 = vmatpush1.bf16.msra.mxu0 %v7372
        %7438 = vmatprep.subr.bf16.mxu0 %v7375
        %7439 = vmatpush1.bf16.msra.mxu0 %v7374
        %7440 = vmatprep.subr.bf16.mxu0 %v7377
        %7441 = vmatpush1.bf16.msra.mxu0 %v7376
        %7442 = vmatprep.subr.bf16.mxu0 %v7379
        %7443 = vmatpush1.bf16.msra.mxu0 %v7378
        %7444 = vmatprep.subr.bf16.mxu0 %v7381
        %7445 = vmatpush1.bf16.msra.mxu0 %v7380
        %7446 = vmatprep.subr.bf16.mxu0 %v7383
        %7447 = vmatpush1.bf16.msra.mxu0 %v7382
        %7448 = vmatprep.subr.bf16.mxu0 %v7385
        %7449 = vmatpush1.bf16.msra.mxu0 %v7384
        %7450 = vmatprep.subr.bf16.mxu0 %v7387
        %7451 = vmatpush1.bf16.msra.mxu0 %v7386
        %7452 = vmatprep.subr.bf16.mxu0 %v7389
        %7453 = vmatpush1.bf16.msra.mxu0 %v7388
        %7454 = vmatprep.subr.bf16.mxu0 %v7391
        %7455 = vmatpush1.bf16.msra.mxu0 %v7390
        %7456 = vmatprep.mubr.bf16.mxu0 %v7169
        %7457 = vmatmul.mubr.bf16.gmra.mrb[0].mxu0 %v7168
        %v7458 = vpop.f32.mrb[0].mxu0
        %v7459 = vadd.f32 0.0, %v7458
        %v7460 = vpop.f32.mrb[0].mxu0
        %v7461 = vadd.f32 0.0, %v7460
        %v7462 = vpop.f32.mrb[0].mxu0
        %v7463 = vadd.f32 0.0, %v7462
        %v7464 = vpop.f32.mrb[0].mxu0
        %v7465 = vadd.f32 0.0, %v7464
        %7466 = vmatprep.mubr.bf16.mxu0 %v7171
        %7467 = vmatmul.mubr.bf16.gmra.mrb[0].mxu0 %v7170
        %v7468 = vpop.f32.mrb[0].mxu0
        %v7469 = vadd.f32 0.0, %v7468
        %v7470 = vpop.f32.mrb[0].mxu0
        %v7471 = vadd.f32 0.0, %v7470
        %v7472 = vpop.f32.mrb[0].mxu0
        %v7473 = vadd.f32 0.0, %v7472
        %v7474 = vpop.f32.mrb[0].mxu0
        %v7475 = vadd.f32 0.0, %v7474
        %7476 = vmatprep.mubr.bf16.mxu0 %v7173
        %7477 = vmatmul.mubr.bf16.gmra.mrb[0].mxu0 %v7172
        %v7478 = vpop.f32.mrb[0].mxu0
        %v7479 = vadd.f32 0.0, %v7478
        %v7480 = vpop.f32.mrb[0].mxu0
        %v7481 = vadd.f32 0.0, %v7480
        %v7482 = vpop.f32.mrb[0].mxu0
        %v7483 = vadd.f32 0.0, %v7482
        %v7484 = vpop.f32.mrb[0].mxu0
        %v7485 = vadd.f32 0.0, %v7484
        %7486 = vmatprep.mubr.bf16.mxu0 %v7175
        %7487 = vmatmul.mubr.bf16.gmra.mrb[0].mxu0 %v7174
        %v7488 = vpop.f32.mrb[0].mxu0
        %v7489 = vadd.f32 0.0, %v7488
        %v7490 = vpop.f32.mrb[0].mxu0
        %v7491 = vadd.f32 0.0, %v7490
        %v7492 = vpop.f32.mrb[0].mxu0
        %v7493 = vadd.f32 0.0, %v7492
        %v7494 = vpop.f32.mrb[0].mxu0
        %v7495 = vadd.f32 0.0, %v7494
        %7496 = vmatprep.mubr.bf16.mxu0 %v7177
        %7497 = vmatmul.mubr.bf16.gmra.mrb[0].mxu0 %v7176
        %v7498 = vpop.f32.mrb[0].mxu0
        %v7499 = vadd.f32 0.0, %v7498
        %v7500 = vpop.f32.mrb[0].mxu0
        %v7501 = vadd.f32 0.0, %v7500
        %v7502 = vpop.f32.mrb[0].mxu0
        %v7503 = vadd.f32 0.0, %v7502
        %v7504 = vpop.f32.mrb[0].mxu0
        %v7505 = vadd.f32 0.0, %v7504
        %7506 = vmatprep.mubr.bf16.mxu0 %v7179
        %7507 = vmatmul.mubr.bf16.gmra.mrb[0].mxu0 %v7178
        %v7508 = vpop.f32.mrb[0].mxu0
        %v7509 = vadd.f32 0.0, %v7508
        %v7510 = vpop.f32.mrb[0].mxu0
        %v7511 = vadd.f32 0.0, %v7510
        %v7512 = vpop.f32.mrb[0].mxu0
        %v7513 = vadd.f32 0.0, %v7512
        %v7514 = vpop.f32.mrb[0].mxu0
        %v7515 = vadd.f32 0.0, %v7514
        %7516 = vmatprep.mubr.bf16.mxu0 %v7181
        %7517 = vmatmul.mubr.bf16.gmra.mrb[0].mxu0 %v7180
        %v7518 = vpop.f32.mrb[0].mxu0
        %v7519 = vadd.f32 0.0, %v7518
        %v7520 = vpop.f32.mrb[0].mxu0
        %v7521 = vadd.f32 0.0, %v7520
        %v7522 = vpop.f32.mrb[0].mxu0
        %v7523 = vadd.f32 0.0, %v7522
        %v7524 = vpop.f32.mrb[0].mxu0
        %v7525 = vadd.f32 0.0, %v7524
        %7526 = vmatprep.mubr.bf16.mxu0 %v7183
        %7527 = vmatmul.mubr.bf16.gmra.mrb[0].mxu0 %v7182
        %v7528 = vpop.f32.mrb[0].mxu0
        %v7529 = vadd.f32 0.0, %v7528
        %v7530 = vpop.f32.mrb[0].mxu0
        %v7531 = vadd.f32 0.0, %v7530
        %v7532 = vpop.f32.mrb[0].mxu0
        %v7533 = vadd.f32 0.0, %v7532
        %v7534 = vpop.f32.mrb[0].mxu0
        %v7535 = vadd.f32 0.0, %v7534
        %7536 = vmatprep.mubr.bf16.mxu0 %v7185
        %7537 = vmatmul.mubr.bf16.gmra.mrb[0].mxu0 %v7184
        %v7538 = vpop.f32.mrb[0].mxu0
        %v7539 = vadd.f32 0.0, %v7538
        %v7540 = vpop.f32.mrb[0].mxu0
        %v7541 = vadd.f32 0.0, %v7540
        %v7542 = vpop.f32.mrb[0].mxu0
        %v7543 = vadd.f32 0.0, %v7542
        %v7544 = vpop.f32.mrb[0].mxu0
        %v7545 = vadd.f32 0.0, %v7544
        %7546 = vmatprep.mubr.bf16.mxu0 %v7187
        %7547 = vmatmul.mubr.bf16.gmra.mrb[0].mxu0 %v7186
        %v7548 = vpop.f32.mrb[0].mxu0
        %v7549 = vadd.f32 0.0, %v7548
        %v7550 = vpop.f32.mrb[0].mxu0
        %v7551 = vadd.f32 0.0, %v7550
        %v7552 = vpop.f32.mrb[0].mxu0
        %v7553 = vadd.f32 0.0, %v7552
        %v7554 = vpop.f32.mrb[0].mxu0
        %v7555 = vadd.f32 0.0, %v7554
        %7556 = vmatprep.mubr.bf16.mxu0 %v7189
        %7557 = vmatmul.mubr.bf16.gmra.mrb[0].mxu0 %v7188
        %v7558 = vpop.f32.mrb[0].mxu0
        %v7559 = vadd.f32 0.0, %v7558
        %v7560 = vpop.f32.mrb[0].mxu0
        %v7561 = vadd.f32 0.0, %v7560
        %v7562 = vpop.f32.mrb[0].mxu0
        %v7563 = vadd.f32 0.0, %v7562
        %v7564 = vpop.f32.mrb[0].mxu0
        %v7565 = vadd.f32 0.0, %v7564
        %7566 = vmatprep.mubr.bf16.mxu0 %v7191
        %7567 = vmatmul.mubr.bf16.gmra.mrb[0].mxu0 %v7190
        %v7568 = vpop.f32.mrb[0].mxu0
        %v7569 = vadd.f32 0.0, %v7568
        %v7570 = vpop.f32.mrb[0].mxu0
        %v7571 = vadd.f32 0.0, %v7570
        %v7572 = vpop.f32.mrb[0].mxu0
        %v7573 = vadd.f32 0.0, %v7572
        %v7574 = vpop.f32.mrb[0].mxu0
        %v7575 = vadd.f32 0.0, %v7574
        %7576 = vmatprep.mubr.bf16.mxu0 %v7193
        %7577 = vmatmul.mubr.bf16.gmra.mrb[0].mxu0 %v7192
        %v7578 = vpop.f32.mrb[0].mxu0
        %v7579 = vadd.f32 0.0, %v7578
        %v7580 = vpop.f32.mrb[0].mxu0
        %v7581 = vadd.f32 0.0, %v7580
        %v7582 = vpop.f32.mrb[0].mxu0
        %v7583 = vadd.f32 0.0, %v7582
        %v7584 = vpop.f32.mrb[0].mxu0
        %v7585 = vadd.f32 0.0, %v7584
        %7586 = vmatprep.mubr.bf16.mxu0 %v7195
        %7587 = vmatmul.mubr.bf16.gmra.mrb[0].mxu0 %v7194
        %v7588 = vpop.f32.mrb[0].mxu0
        %v7589 = vadd.f32 0.0, %v7588
        %v7590 = vpop.f32.mrb[0].mxu0
        %v7591 = vadd.f32 0.0, %v7590
        %v7592 = vpop.f32.mrb[0].mxu0
        %v7593 = vadd.f32 0.0, %v7592
        %v7594 = vpop.f32.mrb[0].mxu0
        %v7595 = vadd.f32 0.0, %v7594
        %7596 = vmatprep.mubr.bf16.mxu0 %v7197
        %7597 = vmatmul.mubr.bf16.gmra.mrb[0].mxu0 %v7196
        %v7598 = vpop.f32.mrb[0].mxu0
        %v7599 = vadd.f32 0.0, %v7598
        %v7600 = vpop.f32.mrb[0].mxu0
        %v7601 = vadd.f32 0.0, %v7600
        %v7602 = vpop.f32.mrb[0].mxu0
        %v7603 = vadd.f32 0.0, %v7602
        %v7604 = vpop.f32.mrb[0].mxu0
        %v7605 = vadd.f32 0.0, %v7604
        %7606 = vmatprep.mubr.bf16.mxu0 %v7199
        %7607 = vmatmul.mubr.bf16.gmra.mrb[0].mxu0 %v7198
        %v7608 = vpop.f32.mrb[0].mxu0
        %v7609 = vadd.f32 0.0, %v7608
        %v7610 = vpop.f32.mrb[0].mxu0
        %v7611 = vadd.f32 0.0, %v7610
        %v7612 = vpop.f32.mrb[0].mxu0
        %v7613 = vadd.f32 0.0, %v7612
        %v7614 = vpop.f32.mrb[0].mxu0
        %v7615 = vadd.f32 0.0, %v7614
        %7616 = vmatprep.mubr.bf16.mxu0 %v7201
        %7617 = vmatmul.mubr.bf16.gmra.mrb[0].mxu0 %v7200
        %v7618 = vpop.f32.mrb[0].mxu0
        %v7619 = vadd.f32 0.0, %v7618
        %v7620 = vpop.f32.mrb[0].mxu0
        %v7621 = vadd.f32 0.0, %v7620
        %v7622 = vpop.f32.mrb[0].mxu0
        %v7623 = vadd.f32 0.0, %v7622
        %v7624 = vpop.f32.mrb[0].mxu0
        %v7625 = vadd.f32 0.0, %v7624
        %7626 = vmatprep.mubr.bf16.mxu0 %v7203
        %7627 = vmatmul.mubr.bf16.gmra.mrb[0].mxu0 %v7202
        %v7628 = vpop.f32.mrb[0].mxu0
        %v7629 = vadd.f32 0.0, %v7628
        %v7630 = vpop.f32.mrb[0].mxu0
        %v7631 = vadd.f32 0.0, %v7630
        %v7632 = vpop.f32.mrb[0].mxu0
        %v7633 = vadd.f32 0.0, %v7632
        %v7634 = vpop.f32.mrb[0].mxu0
        %v7635 = vadd.f32 0.0, %v7634
        %7636 = vmatprep.mubr.bf16.mxu0 %v7205
        %7637 = vmatmul.mubr.bf16.gmra.mrb[0].mxu0 %v7204
        %v7638 = vpop.f32.mrb[0].mxu0
        %v7639 = vadd.f32 0.0, %v7638
        %v7640 = vpop.f32.mrb[0].mxu0
        %v7641 = vadd.f32 0.0, %v7640
        %v7642 = vpop.f32.mrb[0].mxu0
        %v7643 = vadd.f32 0.0, %v7642
        %v7644 = vpop.f32.mrb[0].mxu0
        %v7645 = vadd.f32 0.0, %v7644
        %7646 = vmatprep.mubr.bf16.mxu0 %v7207
        %7647 = vmatmul.mubr.bf16.gmra.mrb[0].mxu0 %v7206
        %v7648 = vpop.f32.mrb[0].mxu0
        %v7649 = vadd.f32 0.0, %v7648
        %v7650 = vpop.f32.mrb[0].mxu0
        %v7651 = vadd.f32 0.0, %v7650
        %v7652 = vpop.f32.mrb[0].mxu0
        %v7653 = vadd.f32 0.0, %v7652
        %v7654 = vpop.f32.mrb[0].mxu0
        %v7655 = vadd.f32 0.0, %v7654
        %7656 = vmatprep.mubr.bf16.mxu0 %v7209
        %7657 = vmatmul.mubr.bf16.gmra.mrb[0].mxu0 %v7208
        %v7658 = vpop.f32.mrb[0].mxu0
        %v7659 = vadd.f32 0.0, %v7658
        %v7660 = vpop.f32.mrb[0].mxu0
        %v7661 = vadd.f32 0.0, %v7660
        %v7662 = vpop.f32.mrb[0].mxu0
        %v7663 = vadd.f32 0.0, %v7662
        %v7664 = vpop.f32.mrb[0].mxu0
        %v7665 = vadd.f32 0.0, %v7664
        %7666 = vmatprep.mubr.bf16.mxu0 %v7211
        %7667 = vmatmul.mubr.bf16.gmra.mrb[0].mxu0 %v7210
        %v7668 = vpop.f32.mrb[0].mxu0
        %v7669 = vadd.f32 0.0, %v7668
        %v7670 = vpop.f32.mrb[0].mxu0
        %v7671 = vadd.f32 0.0, %v7670
        %v7672 = vpop.f32.mrb[0].mxu0
        %v7673 = vadd.f32 0.0, %v7672
        %v7674 = vpop.f32.mrb[0].mxu0
        %v7675 = vadd.f32 0.0, %v7674
        %7676 = vmatprep.mubr.bf16.mxu0 %v7213
        %7677 = vmatmul.mubr.bf16.gmra.mrb[0].mxu0 %v7212
        %v7678 = vpop.f32.mrb[0].mxu0
        %v7679 = vadd.f32 0.0, %v7678
        %v7680 = vpop.f32.mrb[0].mxu0
        %v7681 = vadd.f32 0.0, %v7680
        %v7682 = vpop.f32.mrb[0].mxu0
        %v7683 = vadd.f32 0.0, %v7682
        %v7684 = vpop.f32.mrb[0].mxu0
        %v7685 = vadd.f32 0.0, %v7684
        %7686 = vmatprep.mubr.bf16.mxu0 %v7215
        %7687 = vmatmul.mubr.bf16.gmra.mrb[0].mxu0 %v7214
        %v7688 = vpop.f32.mrb[0].mxu0
        %v7689 = vadd.f32 0.0, %v7688
        %v7690 = vpop.f32.mrb[0].mxu0
        %v7691 = vadd.f32 0.0, %v7690
        %v7692 = vpop.f32.mrb[0].mxu0
        %v7693 = vadd.f32 0.0, %v7692
        %v7694 = vpop.f32.mrb[0].mxu0
        %v7695 = vadd.f32 0.0, %v7694
        %7696 = vmatprep.mubr.bf16.mxu0 %v7217
        %7697 = vmatmul.mubr.bf16.gmra.mrb[0].mxu0 %v7216
        %v7698 = vpop.f32.mrb[0].mxu0
        %v7699 = vadd.f32 0.0, %v7698
        %v7700 = vpop.f32.mrb[0].mxu0
        %v7701 = vadd.f32 0.0, %v7700
        %v7702 = vpop.f32.mrb[0].mxu0
        %v7703 = vadd.f32 0.0, %v7702
        %v7704 = vpop.f32.mrb[0].mxu0
        %v7705 = vadd.f32 0.0, %v7704
        %7706 = vmatprep.mubr.bf16.mxu0 %v7219
        %7707 = vmatmul.mubr.bf16.gmra.mrb[0].mxu0 %v7218
        %v7708 = vpop.f32.mrb[0].mxu0
        %v7709 = vadd.f32 0.0, %v7708
        %v7710 = vpop.f32.mrb[0].mxu0
        %v7711 = vadd.f32 0.0, %v7710
        %v7712 = vpop.f32.mrb[0].mxu0
        %v7713 = vadd.f32 0.0, %v7712
        %v7714 = vpop.f32.mrb[0].mxu0
        %v7715 = vadd.f32 0.0, %v7714
        %7716 = vmatprep.mubr.bf16.mxu0 %v7221
        %7717 = vmatmul.mubr.bf16.gmra.mrb[0].mxu0 %v7220
        %v7718 = vpop.f32.mrb[0].mxu0
        %v7719 = vadd.f32 0.0, %v7718
        %v7720 = vpop.f32.mrb[0].mxu0
        %v7721 = vadd.f32 0.0, %v7720
        %v7722 = vpop.f32.mrb[0].mxu0
        %v7723 = vadd.f32 0.0, %v7722
        %v7724 = vpop.f32.mrb[0].mxu0
        %v7725 = vadd.f32 0.0, %v7724
        %7726 = vmatprep.mubr.bf16.mxu0 %v7223
        %7727 = vmatmul.mubr.bf16.gmra.mrb[0].mxu0 %v7222
        %v7728 = vpop.f32.mrb[0].mxu0
        %v7729 = vadd.f32 0.0, %v7728
        %v7730 = vpop.f32.mrb[0].mxu0
        %v7731 = vadd.f32 0.0, %v7730
        %v7732 = vpop.f32.mrb[0].mxu0
        %v7733 = vadd.f32 0.0, %v7732
        %v7734 = vpop.f32.mrb[0].mxu0
        %v7735 = vadd.f32 0.0, %v7734
        %7736 = vmatprep.mubr.bf16.mxu0 %v7225
        %7737 = vmatmul.mubr.bf16.gmra.mrb[0].mxu0 %v7224
        %v7738 = vpop.f32.mrb[0].mxu0
        %v7739 = vadd.f32 0.0, %v7738
        %v7740 = vpop.f32.mrb[0].mxu0
        %v7741 = vadd.f32 0.0, %v7740
        %v7742 = vpop.f32.mrb[0].mxu0
        %v7743 = vadd.f32 0.0, %v7742
        %v7744 = vpop.f32.mrb[0].mxu0
        %v7745 = vadd.f32 0.0, %v7744
        %7746 = vmatprep.mubr.bf16.mxu0 %v7227
        %7747 = vmatmul.mubr.bf16.gmra.mrb[0].mxu0 %v7226
        %v7748 = vpop.f32.mrb[0].mxu0
        %v7749 = vadd.f32 0.0, %v7748
        %v7750 = vpop.f32.mrb[0].mxu0
        %v7751 = vadd.f32 0.0, %v7750
        %v7752 = vpop.f32.mrb[0].mxu0
        %v7753 = vadd.f32 0.0, %v7752
        %v7754 = vpop.f32.mrb[0].mxu0
        %v7755 = vadd.f32 0.0, %v7754
        %7756 = vmatprep.mubr.bf16.mxu0 %v7229
        %7757 = vmatmul.mubr.bf16.gmra.mrb[0].mxu0 %v7228
        %v7758 = vpop.f32.mrb[0].mxu0
        %v7759 = vadd.f32 0.0, %v7758
        %v7760 = vpop.f32.mrb[0].mxu0
        %v7761 = vadd.f32 0.0, %v7760
        %v7762 = vpop.f32.mrb[0].mxu0
        %v7763 = vadd.f32 0.0, %v7762
        %v7764 = vpop.f32.mrb[0].mxu0
        %v7765 = vadd.f32 0.0, %v7764
        %7766 = vmatprep.mubr.bf16.mxu0 %v7231
        %7767 = vmatmul.mubr.bf16.gmra.mrb[0].mxu0 %v7230
        %v7768 = vpop.f32.mrb[0].mxu0
        %v7769 = vadd.f32 0.0, %v7768
        %v7770 = vpop.f32.mrb[0].mxu0
        %v7771 = vadd.f32 0.0, %v7770
        %v7772 = vpop.f32.mrb[0].mxu0
        %v7773 = vadd.f32 0.0, %v7772
        %v7774 = vpop.f32.mrb[0].mxu0
        %v7775 = vadd.f32 0.0, %v7774
        %7776 = vdwg.mxu0
        %v7777 = vadd.f32 %v7459, %v1262
        %v7778 = vadd.f32 %v7463, %v1265
        %v7779 = vadd.f32 %v7469, %v1270
        %v7780 = vadd.f32 %v7473, %v1273
        %v7781 = vadd.f32 %v7479, %v1278
        %v7782 = vadd.f32 %v7483, %v1281
        %v7783 = vadd.f32 %v7489, %v1286
        %v7784 = vadd.f32 %v7493, %v1289
        %v7785 = vadd.f32 %v7499, %v1294
        %v7786 = vadd.f32 %v7503, %v1297
        %v7787 = vadd.f32 %v7509, %v1302
        %v7788 = vadd.f32 %v7513, %v1305
        %v7789 = vadd.f32 %v7519, %v1310
        %v7790 = vadd.f32 %v7523, %v1313
        %v7791 = vadd.f32 %v7529, %v1318
        %v7792 = vadd.f32 %v7533, %v1321
        %v7793 = vadd.f32 %v7539, %v1326
        %v7794 = vadd.f32 %v7543, %v1329
        %v7795 = vadd.f32 %v7549, %v1334
        %v7796 = vadd.f32 %v7553, %v1337
        %v7797 = vadd.f32 %v7559, %v1342
        %v7798 = vadd.f32 %v7563, %v1345
        %v7799 = vadd.f32 %v7569, %v1350
        %v7800 = vadd.f32 %v7573, %v1353
        %v7801 = vadd.f32 %v7579, %v1358
        %v7802 = vadd.f32 %v7583, %v1361
        %v7803 = vadd.f32 %v7589, %v1366
        %v7804 = vadd.f32 %v7593, %v1369
        %v7805 = vadd.f32 %v7599, %v1374
        %v7806 = vadd.f32 %v7603, %v1377
        %v7807 = vadd.f32 %v7609, %v1382
        %v7808 = vadd.f32 %v7613, %v1385
        %v7809 = vadd.f32 %v7619, %v1390
        %v7810 = vadd.f32 %v7623, %v1393
        %v7811 = vadd.f32 %v7629, %v1398
        %v7812 = vadd.f32 %v7633, %v1401
        %v7813 = vadd.f32 %v7639, %v1406
        %v7814 = vadd.f32 %v7643, %v1409
        %v7815 = vadd.f32 %v7649, %v1414
        %v7816 = vadd.f32 %v7653, %v1417
        %v7817 = vadd.f32 %v7659, %v1422
        %v7818 = vadd.f32 %v7663, %v1425
        %v7819 = vadd.f32 %v7669, %v1430
        %v7820 = vadd.f32 %v7673, %v1433
        %v7821 = vadd.f32 %v7679, %v1438
        %v7822 = vadd.f32 %v7683, %v1441
        %v7823 = vadd.f32 %v7689, %v1446
        %v7824 = vadd.f32 %v7693, %v1449
        %v7825 = vadd.f32 %v7699, %v1454
        %v7826 = vadd.f32 %v7703, %v1457
        %v7827 = vadd.f32 %v7709, %v1462
        %v7828 = vadd.f32 %v7713, %v1465
        %v7829 = vadd.f32 %v7719, %v1470
        %v7830 = vadd.f32 %v7723, %v1473
        %v7831 = vadd.f32 %v7729, %v1478
        %v7832 = vadd.f32 %v7733, %v1481
        %v7833 = vadd.f32 %v7739, %v1486
        %v7834 = vadd.f32 %v7743, %v1489
        %v7835 = vadd.f32 %v7749, %v1494
        %v7836 = vadd.f32 %v7753, %v1497
        %v7837 = vadd.f32 %v7759, %v1502
        %v7838 = vadd.f32 %v7763, %v1505
        %v7839 = vadd.f32 %v7769, %v1510
        %v7840 = vadd.f32 %v7773, %v1513
        %v7841 = vld [vmem:[%s6] sm:$0x1]
        %v7842 = vlaneseq
        %v7843 = vshrl.u32 %v7842, 7
        %v7844 = vsub.s32 0, %v7843
        %v7845 = vrot.slane %v7841, %v7844
        %v7846 = vadd.f32 %v7777, %v7845
        %v7847 = vadd.f32 %v7778, %v7845
        %v7848 = vadd.f32 %v7779, %v7845
        %v7849 = vadd.f32 %v7780, %v7845
        %v7850 = vadd.f32 %v7781, %v7845
        %v7851 = vadd.f32 %v7782, %v7845
        %v7852 = vadd.f32 %v7783, %v7845
        %v7853 = vadd.f32 %v7784, %v7845
        %v7854 = vadd.f32 %v7785, %v7845
        %v7855 = vadd.f32 %v7786, %v7845
        %v7856 = vadd.f32 %v7787, %v7845
        %v7857 = vadd.f32 %v7788, %v7845
        %v7858 = vadd.f32 %v7789, %v7845
        %v7859 = vadd.f32 %v7790, %v7845
        %v7860 = vadd.f32 %v7791, %v7845
        %v7861 = vadd.f32 %v7792, %v7845
        %v7862 = vadd.f32 %v7793, %v7845
        %v7863 = vadd.f32 %v7794, %v7845
        %v7864 = vadd.f32 %v7795, %v7845
        %v7865 = vadd.f32 %v7796, %v7845
        %v7866 = vadd.f32 %v7797, %v7845
        %v7867 = vadd.f32 %v7798, %v7845
        %v7868 = vadd.f32 %v7799, %v7845
        %v7869 = vadd.f32 %v7800, %v7845
        %v7870 = vadd.f32 %v7801, %v7845
        %v7871 = vadd.f32 %v7802, %v7845
        %v7872 = vadd.f32 %v7803, %v7845
        %v7873 = vadd.f32 %v7804, %v7845
        %v7874 = vadd.f32 %v7805, %v7845
        %v7875 = vadd.f32 %v7806, %v7845
        %v7876 = vadd.f32 %v7807, %v7845
        %v7877 = vadd.f32 %v7808, %v7845
        %v7878 = vadd.f32 %v7809, %v7845
        %v7879 = vadd.f32 %v7810, %v7845
        %v7880 = vadd.f32 %v7811, %v7845
        %v7881 = vadd.f32 %v7812, %v7845
        %v7882 = vadd.f32 %v7813, %v7845
        %v7883 = vadd.f32 %v7814, %v7845
        %v7884 = vadd.f32 %v7815, %v7845
        %v7885 = vadd.f32 %v7816, %v7845
        %v7886 = vadd.f32 %v7817, %v7845
        %v7887 = vadd.f32 %v7818, %v7845
        %v7888 = vadd.f32 %v7819, %v7845
        %v7889 = vadd.f32 %v7820, %v7845
        %v7890 = vadd.f32 %v7821, %v7845
        %v7891 = vadd.f32 %v7822, %v7845
        %v7892 = vadd.f32 %v7823, %v7845
        %v7893 = vadd.f32 %v7824, %v7845
        %v7894 = vadd.f32 %v7825, %v7845
        %v7895 = vadd.f32 %v7826, %v7845
        %v7896 = vadd.f32 %v7827, %v7845
        %v7897 = vadd.f32 %v7828, %v7845
        %v7898 = vadd.f32 %v7829, %v7845
        %v7899 = vadd.f32 %v7830, %v7845
        %v7900 = vadd.f32 %v7831, %v7845
        %v7901 = vadd.f32 %v7832, %v7845
        %v7902 = vadd.f32 %v7833, %v7845
        %v7903 = vadd.f32 %v7834, %v7845
        %v7904 = vadd.f32 %v7835, %v7845
        %v7905 = vadd.f32 %v7836, %v7845
        %v7906 = vadd.f32 %v7837, %v7845
        %v7907 = vadd.f32 %v7838, %v7845
        %v7908 = vadd.f32 %v7839, %v7845
        %v7909 = vadd.f32 %v7840, %v7845
        %v7910 = vmax.f32 %v7846, 0.0
        %v7911 = vmax.f32 %v7847, 0.0
        %v7912 = vmax.f32 %v7848, 0.0
        %v7913 = vmax.f32 %v7849, 0.0
        %v7914 = vmax.f32 %v7850, 0.0
        %v7915 = vmax.f32 %v7851, 0.0
        %v7916 = vmax.f32 %v7852, 0.0
        %v7917 = vmax.f32 %v7853, 0.0
        %v7918 = vmax.f32 %v7854, 0.0
        %v7919 = vmax.f32 %v7855, 0.0
        %v7920 = vmax.f32 %v7856, 0.0
        %v7921 = vmax.f32 %v7857, 0.0
        %v7922 = vmax.f32 %v7858, 0.0
        %v7923 = vmax.f32 %v7859, 0.0
        %v7924 = vmax.f32 %v7860, 0.0
        %v7925 = vmax.f32 %v7861, 0.0
        %v7926 = vmax.f32 %v7862, 0.0
        %v7927 = vmax.f32 %v7863, 0.0
        %v7928 = vmax.f32 %v7864, 0.0
        %v7929 = vmax.f32 %v7865, 0.0
        %v7930 = vmax.f32 %v7866, 0.0
        %v7931 = vmax.f32 %v7867, 0.0
        %v7932 = vmax.f32 %v7868, 0.0
        %v7933 = vmax.f32 %v7869, 0.0
        %v7934 = vmax.f32 %v7870, 0.0
        %v7935 = vmax.f32 %v7871, 0.0
        %v7936 = vmax.f32 %v7872, 0.0
        %v7937 = vmax.f32 %v7873, 0.0
        %v7938 = vmax.f32 %v7874, 0.0
        %v7939 = vmax.f32 %v7875, 0.0
        %v7940 = vmax.f32 %v7876, 0.0
        %v7941 = vmax.f32 %v7877, 0.0
        %v7942 = vmax.f32 %v7878, 0.0
        %v7943 = vmax.f32 %v7879, 0.0
        %v7944 = vmax.f32 %v7880, 0.0
        %v7945 = vmax.f32 %v7881, 0.0
        %v7946 = vmax.f32 %v7882, 0.0
        %v7947 = vmax.f32 %v7883, 0.0
        %v7948 = vmax.f32 %v7884, 0.0
        %v7949 = vmax.f32 %v7885, 0.0
        %v7950 = vmax.f32 %v7886, 0.0
        %v7951 = vmax.f32 %v7887, 0.0
        %v7952 = vmax.f32 %v7888, 0.0
        %v7953 = vmax.f32 %v7889, 0.0
        %v7954 = vmax.f32 %v7890, 0.0
        %v7955 = vmax.f32 %v7891, 0.0
        %v7956 = vmax.f32 %v7892, 0.0
        %v7957 = vmax.f32 %v7893, 0.0
        %v7958 = vmax.f32 %v7894, 0.0
        %v7959 = vmax.f32 %v7895, 0.0
        %v7960 = vmax.f32 %v7896, 0.0
        %v7961 = vmax.f32 %v7897, 0.0
        %v7962 = vmax.f32 %v7898, 0.0
        %v7963 = vmax.f32 %v7899, 0.0
        %v7964 = vmax.f32 %v7900, 0.0
        %v7965 = vmax.f32 %v7901, 0.0
        %v7966 = vmax.f32 %v7902, 0.0
        %v7967 = vmax.f32 %v7903, 0.0
        %v7968 = vmax.f32 %v7904, 0.0
        %v7969 = vmax.f32 %v7905, 0.0
        %v7970 = vmax.f32 %v7906, 0.0
        %v7971 = vmax.f32 %v7907, 0.0
        %v7972 = vmax.f32 %v7908, 0.0
        %v7973 = vmax.f32 %v7909, 0.0
        %v7974 = vpack.c.bf16 %v7911, %v7910
        %v7975 = vpack.c.bf16 %v7913, %v7912
        %v7976 = vpack.c.bf16 %v7915, %v7914
        %v7977 = vpack.c.bf16 %v7917, %v7916
        %v7978 = vpack.c.bf16 %v7919, %v7918
        %v7979 = vpack.c.bf16 %v7921, %v7920
        %v7980 = vpack.c.bf16 %v7923, %v7922
        %v7981 = vpack.c.bf16 %v7925, %v7924
        %v7982 = vpack.c.bf16 %v7927, %v7926
        %v7983 = vpack.c.bf16 %v7929, %v7928
        %v7984 = vpack.c.bf16 %v7931, %v7930
        %v7985 = vpack.c.bf16 %v7933, %v7932
        %v7986 = vpack.c.bf16 %v7935, %v7934
        %v7987 = vpack.c.bf16 %v7937, %v7936
        %v7988 = vpack.c.bf16 %v7939, %v7938
        %v7989 = vpack.c.bf16 %v7941, %v7940
        %v7990 = vpack.c.bf16 %v7943, %v7942
        %v7991 = vpack.c.bf16 %v7945, %v7944
        %v7992 = vpack.c.bf16 %v7947, %v7946
        %v7993 = vpack.c.bf16 %v7949, %v7948
        %v7994 = vpack.c.bf16 %v7951, %v7950
        %v7995 = vpack.c.bf16 %v7953, %v7952
        %v7996 = vpack.c.bf16 %v7955, %v7954
        %v7997 = vpack.c.bf16 %v7957, %v7956
        %v7998 = vpack.c.bf16 %v7959, %v7958
        %v7999 = vpack.c.bf16 %v7961, %v7960
        %v8000 = vpack.c.bf16 %v7963, %v7962
        %v8001 = vpack.c.bf16 %v7965, %v7964
        %v8002 = vpack.c.bf16 %v7967, %v7966
        %v8003 = vpack.c.bf16 %v7969, %v7968
        %v8004 = vpack.c.bf16 %v7971, %v7970
        %v8005 = vpack.c.bf16 %v7973, %v7972
        %v8006 = vld [vmem:[%s4] sm:$0xf]
        %v8007 = vld [vmem:[%s4 + $0x4] sm:$0xf]
        %v8008 = vld [vmem:[%s4 + $0x8] sm:$0xf]
        %v8009 = vld [vmem:[%s4 + $0xc] sm:$0xf]
        %v8010 = vld [vmem:[%s4 + $0x10] sm:$0xf]
        %v8011 = vld [vmem:[%s4 + $0x14] sm:$0xf]
        %v8012 = vld [vmem:[%s4 + $0x18] sm:$0xf]
        %v8013 = vld [vmem:[%s4 + $0x1c] sm:$0xf]
        %v8014 = vld [vmem:[%s4 + $0x20] sm:$0xf]
        %v8015 = vld [vmem:[%s4 + $0x24] sm:$0xf]
        %v8016 = vld [vmem:[%s4 + $0x28] sm:$0xf]
        %v8017 = vld [vmem:[%s4 + $0x2c] sm:$0xf]
        %v8018 = vld [vmem:[%s4 + $0x30] sm:$0xf]
        %v8019 = vld [vmem:[%s4 + $0x34] sm:$0xf]
        %v8020 = vld [vmem:[%s4 + $0x38] sm:$0xf]
        %v8021 = vld [vmem:[%s4 + $0x3c] sm:$0xf]
        %v8038 = vunpack.c.l.b16 %v8006
        %v8039 = vunpack.c.l.b16 %v8007
        %v8040 = vunpack.c.l.b16 %v8008
        %v8041 = vunpack.c.l.b16 %v8009
        %v8042 = vunpack.c.l.b16 %v8010
        %v8043 = vunpack.c.l.b16 %v8011
        %v8044 = vunpack.c.l.b16 %v8012
        %v8045 = vunpack.c.l.b16 %v8013
        %v8046 = vunpack.c.l.b16 %v8014
        %v8047 = vunpack.c.l.b16 %v8015
        %v8048 = vunpack.c.l.b16 %v8016
        %v8049 = vunpack.c.l.b16 %v8017
        %v8050 = vunpack.c.l.b16 %v8018
        %v8051 = vunpack.c.l.b16 %v8019
        %v8052 = vunpack.c.l.b16 %v8020
        %v8053 = vunpack.c.l.b16 %v8021
        %v8054 = vpack.c.b16 %v8039, %v8038
        %v8055 = vpack.c.b16 %v8041, %v8040
        %v8056 = vpack.c.b16 %v8043, %v8042
        %v8057 = vpack.c.b16 %v8045, %v8044
        %v8058 = vpack.c.b16 %v8047, %v8046
        %v8059 = vpack.c.b16 %v8049, %v8048
        %v8060 = vpack.c.b16 %v8051, %v8050
        %v8061 = vpack.c.b16 %v8053, %v8052
        %8070 = vmatprep.subr.bf16.mxu0 0
        %8071 = vmatpush1.bf16.msra.mxu0 %v8054
        %8072 = vmatprep.subr.bf16.mxu0 0
        %8073 = vmatpush1.bf16.msra.mxu0 %v8055
        %8074 = vmatprep.subr.bf16.mxu0 0
        %8075 = vmatpush1.bf16.msra.mxu0 %v8056
        %8076 = vmatprep.subr.bf16.mxu0 0
        %8077 = vmatpush1.bf16.msra.mxu0 %v8057
        %8078 = vmatprep.subr.bf16.mxu0 0
        %8079 = vmatpush1.bf16.msra.mxu0 %v8058
        %8080 = vmatprep.subr.bf16.mxu0 0
        %8081 = vmatpush1.bf16.msra.mxu0 %v8059
        %8082 = vmatprep.subr.bf16.mxu0 0
        %8083 = vmatpush1.bf16.msra.mxu0 %v8060
        %8084 = vmatprep.subr.bf16.mxu0 0
        %8085 = vmatpush1.bf16.msra.mxu0 %v8061
        %8086 = vmatprep.subr.bf16.mxu0 0
        %8087 = vmatpush1.bf16.msra.mxu0 0
        %8088 = vmatprep.subr.bf16.mxu0 0
        %8089 = vmatpush1.bf16.msra.mxu0 0
        %8090 = vmatprep.subr.bf16.mxu0 0
        %8091 = vmatpush1.bf16.msra.mxu0 0
        %8092 = vmatprep.subr.bf16.mxu0 0
        %8093 = vmatpush1.bf16.msra.mxu0 0
        %8094 = vmatprep.subr.bf16.mxu0 0
        %8095 = vmatpush1.bf16.msra.mxu0 0
        %8096 = vmatprep.subr.bf16.mxu0 0
        %8097 = vmatpush1.bf16.msra.mxu0 0
        %8098 = vmatprep.subr.bf16.mxu0 0
        %8099 = vmatpush1.bf16.msra.mxu0 0
        %8100 = vmatprep.subr.bf16.mxu0 0
        %8101 = vmatpush1.bf16.msra.mxu0 0
        %8102 = vmatprep.mubr.bf16.mxu0 0
        %8103 = vmatmul.mubr.bf16.gmra.mrb[0].mxu0 %v7974
        %v8104 = vpop.f32.mrb[0].mxu0
        %v8105 = vadd.f32 %v7461, %v8104
        %v8106 = vpop.f32.mrb[0].mxu0
        %v8107 = vpop.f32.mrb[0].mxu0
        %v8108 = vadd.f32 %v7465, %v8107
        %v8109 = vpop.f32.mrb[0].mxu0
        %8110 = vmatprep.mubr.bf16.mxu0 0
        %8111 = vmatmul.mubr.bf16.gmra.mrb[0].mxu0 %v7975
        %v8112 = vpop.f32.mrb[0].mxu0
        %v8113 = vadd.f32 %v7471, %v8112
        %v8114 = vpop.f32.mrb[0].mxu0
        %v8115 = vpop.f32.mrb[0].mxu0
        %v8116 = vadd.f32 %v7475, %v8115
        %v8117 = vpop.f32.mrb[0].mxu0
        %8118 = vmatprep.mubr.bf16.mxu0 0
        %8119 = vmatmul.mubr.bf16.gmra.mrb[0].mxu0 %v7976
        %v8120 = vpop.f32.mrb[0].mxu0
        %v8121 = vadd.f32 %v7481, %v8120
        %v8122 = vpop.f32.mrb[0].mxu0
        %v8123 = vpop.f32.mrb[0].mxu0
        %v8124 = vadd.f32 %v7485, %v8123
        %v8125 = vpop.f32.mrb[0].mxu0
        %8126 = vmatprep.mubr.bf16.mxu0 0
        %8127 = vmatmul.mubr.bf16.gmra.mrb[0].mxu0 %v7977
        %v8128 = vpop.f32.mrb[0].mxu0
        %v8129 = vadd.f32 %v7491, %v8128
        %v8130 = vpop.f32.mrb[0].mxu0
        %v8131 = vpop.f32.mrb[0].mxu0
        %v8132 = vadd.f32 %v7495, %v8131
        %v8133 = vpop.f32.mrb[0].mxu0
        %8134 = vmatprep.mubr.bf16.mxu0 0
        %8135 = vmatmul.mubr.bf16.gmra.mrb[0].mxu0 %v7978
        %v8136 = vpop.f32.mrb[0].mxu0
        %v8137 = vadd.f32 %v7501, %v8136
        %v8138 = vpop.f32.mrb[0].mxu0
        %v8139 = vpop.f32.mrb[0].mxu0
        %v8140 = vadd.f32 %v7505, %v8139
        %v8141 = vpop.f32.mrb[0].mxu0
        %8142 = vmatprep.mubr.bf16.mxu0 0
        %8143 = vmatmul.mubr.bf16.gmra.mrb[0].mxu0 %v7979
        %v8144 = vpop.f32.mrb[0].mxu0
        %v8145 = vadd.f32 %v7511, %v8144
        %v8146 = vpop.f32.mrb[0].mxu0
        %v8147 = vpop.f32.mrb[0].mxu0
        %v8148 = vadd.f32 %v7515, %v8147
        %v8149 = vpop.f32.mrb[0].mxu0
        %8150 = vmatprep.mubr.bf16.mxu0 0
        %8151 = vmatmul.mubr.bf16.gmra.mrb[0].mxu0 %v7980
        %v8152 = vpop.f32.mrb[0].mxu0
        %v8153 = vadd.f32 %v7521, %v8152
        %v8154 = vpop.f32.mrb[0].mxu0
        %v8155 = vpop.f32.mrb[0].mxu0
        %v8156 = vadd.f32 %v7525, %v8155
        %v8157 = vpop.f32.mrb[0].mxu0
        %8158 = vmatprep.mubr.bf16.mxu0 0
        %8159 = vmatmul.mubr.bf16.gmra.mrb[0].mxu0 %v7981
        %v8160 = vpop.f32.mrb[0].mxu0
        %v8161 = vadd.f32 %v7531, %v8160
        %v8162 = vpop.f32.mrb[0].mxu0
        %v8163 = vpop.f32.mrb[0].mxu0
        %v8164 = vadd.f32 %v7535, %v8163
        %v8165 = vpop.f32.mrb[0].mxu0
        %8166 = vmatprep.mubr.bf16.mxu0 0
        %8167 = vmatmul.mubr.bf16.gmra.mrb[0].mxu0 %v7982
        %v8168 = vpop.f32.mrb[0].mxu0
        %v8169 = vadd.f32 %v7541, %v8168
        %v8170 = vpop.f32.mrb[0].mxu0
        %v8171 = vpop.f32.mrb[0].mxu0
        %v8172 = vadd.f32 %v7545, %v8171
        %v8173 = vpop.f32.mrb[0].mxu0
        %8174 = vmatprep.mubr.bf16.mxu0 0
        %8175 = vmatmul.mubr.bf16.gmra.mrb[0].mxu0 %v7983
        %v8176 = vpop.f32.mrb[0].mxu0
        %v8177 = vadd.f32 %v7551, %v8176
        %v8178 = vpop.f32.mrb[0].mxu0
        %v8179 = vpop.f32.mrb[0].mxu0
        %v8180 = vadd.f32 %v7555, %v8179
        %v8181 = vpop.f32.mrb[0].mxu0
        %8182 = vmatprep.mubr.bf16.mxu0 0
        %8183 = vmatmul.mubr.bf16.gmra.mrb[0].mxu0 %v7984
        %v8184 = vpop.f32.mrb[0].mxu0
        %v8185 = vadd.f32 %v7561, %v8184
        %v8186 = vpop.f32.mrb[0].mxu0
        %v8187 = vpop.f32.mrb[0].mxu0
        %v8188 = vadd.f32 %v7565, %v8187
        %v8189 = vpop.f32.mrb[0].mxu0
        %8190 = vmatprep.mubr.bf16.mxu0 0
        %8191 = vmatmul.mubr.bf16.gmra.mrb[0].mxu0 %v7985
        %v8192 = vpop.f32.mrb[0].mxu0
        %v8193 = vadd.f32 %v7571, %v8192
        %v8194 = vpop.f32.mrb[0].mxu0
        %v8195 = vpop.f32.mrb[0].mxu0
        %v8196 = vadd.f32 %v7575, %v8195
        %v8197 = vpop.f32.mrb[0].mxu0
        %8198 = vmatprep.mubr.bf16.mxu0 0
        %8199 = vmatmul.mubr.bf16.gmra.mrb[0].mxu0 %v7986
        %v8200 = vpop.f32.mrb[0].mxu0
        %v8201 = vadd.f32 %v7581, %v8200
        %v8202 = vpop.f32.mrb[0].mxu0
        %v8203 = vpop.f32.mrb[0].mxu0
        %v8204 = vadd.f32 %v7585, %v8203
        %v8205 = vpop.f32.mrb[0].mxu0
        %8206 = vmatprep.mubr.bf16.mxu0 0
        %8207 = vmatmul.mubr.bf16.gmra.mrb[0].mxu0 %v7987
        %v8208 = vpop.f32.mrb[0].mxu0
        %v8209 = vadd.f32 %v7591, %v8208
        %v8210 = vpop.f32.mrb[0].mxu0
        %v8211 = vpop.f32.mrb[0].mxu0
        %v8212 = vadd.f32 %v7595, %v8211
        %v8213 = vpop.f32.mrb[0].mxu0
        %8214 = vmatprep.mubr.bf16.mxu0 0
        %8215 = vmatmul.mubr.bf16.gmra.mrb[0].mxu0 %v7988
        %v8216 = vpop.f32.mrb[0].mxu0
        %v8217 = vadd.f32 %v7601, %v8216
        %v8218 = vpop.f32.mrb[0].mxu0
        %v8219 = vpop.f32.mrb[0].mxu0
        %v8220 = vadd.f32 %v7605, %v8219
        %v8221 = vpop.f32.mrb[0].mxu0
        %8222 = vmatprep.mubr.bf16.mxu0 0
        %8223 = vmatmul.mubr.bf16.gmra.mrb[0].mxu0 %v7989
        %v8224 = vpop.f32.mrb[0].mxu0
        %v8225 = vadd.f32 %v7611, %v8224
        %v8226 = vpop.f32.mrb[0].mxu0
        %v8227 = vpop.f32.mrb[0].mxu0
        %v8228 = vadd.f32 %v7615, %v8227
        %v8229 = vpop.f32.mrb[0].mxu0
        %8230 = vmatprep.mubr.bf16.mxu0 0
        %8231 = vmatmul.mubr.bf16.gmra.mrb[0].mxu0 %v7990
        %v8232 = vpop.f32.mrb[0].mxu0
        %v8233 = vadd.f32 %v7621, %v8232
        %v8234 = vpop.f32.mrb[0].mxu0
        %v8235 = vpop.f32.mrb[0].mxu0
        %v8236 = vadd.f32 %v7625, %v8235
        %v8237 = vpop.f32.mrb[0].mxu0
        %8238 = vmatprep.mubr.bf16.mxu0 0
        %8239 = vmatmul.mubr.bf16.gmra.mrb[0].mxu0 %v7991
        %v8240 = vpop.f32.mrb[0].mxu0
        %v8241 = vadd.f32 %v7631, %v8240
        %v8242 = vpop.f32.mrb[0].mxu0
        %v8243 = vpop.f32.mrb[0].mxu0
        %v8244 = vadd.f32 %v7635, %v8243
        %v8245 = vpop.f32.mrb[0].mxu0
        %8246 = vmatprep.mubr.bf16.mxu0 0
        %8247 = vmatmul.mubr.bf16.gmra.mrb[0].mxu0 %v7992
        %v8248 = vpop.f32.mrb[0].mxu0
        %v8249 = vadd.f32 %v7641, %v8248
        %v8250 = vpop.f32.mrb[0].mxu0
        %v8251 = vpop.f32.mrb[0].mxu0
        %v8252 = vadd.f32 %v7645, %v8251
        %v8253 = vpop.f32.mrb[0].mxu0
        %8254 = vmatprep.mubr.bf16.mxu0 0
        %8255 = vmatmul.mubr.bf16.gmra.mrb[0].mxu0 %v7993
        %v8256 = vpop.f32.mrb[0].mxu0
        %v8257 = vadd.f32 %v7651, %v8256
        %v8258 = vpop.f32.mrb[0].mxu0
        %v8259 = vpop.f32.mrb[0].mxu0
        %v8260 = vadd.f32 %v7655, %v8259
        %v8261 = vpop.f32.mrb[0].mxu0
        %8262 = vmatprep.mubr.bf16.mxu0 0
        %8263 = vmatmul.mubr.bf16.gmra.mrb[0].mxu0 %v7994
        %v8264 = vpop.f32.mrb[0].mxu0
        %v8265 = vadd.f32 %v7661, %v8264
        %v8266 = vpop.f32.mrb[0].mxu0
        %v8267 = vpop.f32.mrb[0].mxu0
        %v8268 = vadd.f32 %v7665, %v8267
        %v8269 = vpop.f32.mrb[0].mxu0
        %8270 = vmatprep.mubr.bf16.mxu0 0
        %8271 = vmatmul.mubr.bf16.gmra.mrb[0].mxu0 %v7995
        %v8272 = vpop.f32.mrb[0].mxu0
        %v8273 = vadd.f32 %v7671, %v8272
        %v8274 = vpop.f32.mrb[0].mxu0
        %v8275 = vpop.f32.mrb[0].mxu0
        %v8276 = vadd.f32 %v7675, %v8275
        %v8277 = vpop.f32.mrb[0].mxu0
        %8278 = vmatprep.mubr.bf16.mxu0 0
        %8279 = vmatmul.mubr.bf16.gmra.mrb[0].mxu0 %v7996
        %v8280 = vpop.f32.mrb[0].mxu0
        %v8281 = vadd.f32 %v7681, %v8280
        %v8282 = vpop.f32.mrb[0].mxu0
        %v8283 = vpop.f32.mrb[0].mxu0
        %v8284 = vadd.f32 %v7685, %v8283
        %v8285 = vpop.f32.mrb[0].mxu0
        %8286 = vmatprep.mubr.bf16.mxu0 0
        %8287 = vmatmul.mubr.bf16.gmra.mrb[0].mxu0 %v7997
        %v8288 = vpop.f32.mrb[0].mxu0
        %v8289 = vadd.f32 %v7691, %v8288
        %v8290 = vpop.f32.mrb[0].mxu0
        %v8291 = vpop.f32.mrb[0].mxu0
        %v8292 = vadd.f32 %v7695, %v8291
        %v8293 = vpop.f32.mrb[0].mxu0
        %8294 = vmatprep.mubr.bf16.mxu0 0
        %8295 = vmatmul.mubr.bf16.gmra.mrb[0].mxu0 %v7998
        %v8296 = vpop.f32.mrb[0].mxu0
        %v8297 = vadd.f32 %v7701, %v8296
        %v8298 = vpop.f32.mrb[0].mxu0
        %v8299 = vpop.f32.mrb[0].mxu0
        %v8300 = vadd.f32 %v7705, %v8299
        %v8301 = vpop.f32.mrb[0].mxu0
        %8302 = vmatprep.mubr.bf16.mxu0 0
        %8303 = vmatmul.mubr.bf16.gmra.mrb[0].mxu0 %v7999
        %v8304 = vpop.f32.mrb[0].mxu0
        %v8305 = vadd.f32 %v7711, %v8304
        %v8306 = vpop.f32.mrb[0].mxu0
        %v8307 = vpop.f32.mrb[0].mxu0
        %v8308 = vadd.f32 %v7715, %v8307
        %v8309 = vpop.f32.mrb[0].mxu0
        %8310 = vmatprep.mubr.bf16.mxu0 0
        %8311 = vmatmul.mubr.bf16.gmra.mrb[0].mxu0 %v8000
        %v8312 = vpop.f32.mrb[0].mxu0
        %v8313 = vadd.f32 %v7721, %v8312
        %v8314 = vpop.f32.mrb[0].mxu0
        %v8315 = vpop.f32.mrb[0].mxu0
        %v8316 = vadd.f32 %v7725, %v8315
        %v8317 = vpop.f32.mrb[0].mxu0
        %8318 = vmatprep.mubr.bf16.mxu0 0
        %8319 = vmatmul.mubr.bf16.gmra.mrb[0].mxu0 %v8001
        %v8320 = vpop.f32.mrb[0].mxu0
        %v8321 = vadd.f32 %v7731, %v8320
        %v8322 = vpop.f32.mrb[0].mxu0
        %v8323 = vpop.f32.mrb[0].mxu0
        %v8324 = vadd.f32 %v7735, %v8323
        %v8325 = vpop.f32.mrb[0].mxu0
        %8326 = vmatprep.mubr.bf16.mxu0 0
        %8327 = vmatmul.mubr.bf16.gmra.mrb[0].mxu0 %v8002
        %v8328 = vpop.f32.mrb[0].mxu0
        %v8329 = vadd.f32 %v7741, %v8328
        %v8330 = vpop.f32.mrb[0].mxu0
        %v8331 = vpop.f32.mrb[0].mxu0
        %v8332 = vadd.f32 %v7745, %v8331
        %v8333 = vpop.f32.mrb[0].mxu0
        %8334 = vmatprep.mubr.bf16.mxu0 0
        %8335 = vmatmul.mubr.bf16.gmra.mrb[0].mxu0 %v8003
        %v8336 = vpop.f32.mrb[0].mxu0
        %v8337 = vadd.f32 %v7751, %v8336
        %v8338 = vpop.f32.mrb[0].mxu0
        %v8339 = vpop.f32.mrb[0].mxu0
        %v8340 = vadd.f32 %v7755, %v8339
        %v8341 = vpop.f32.mrb[0].mxu0
        %8342 = vmatprep.mubr.bf16.mxu0 0
        %8343 = vmatmul.mubr.bf16.gmra.mrb[0].mxu0 %v8004
        %v8344 = vpop.f32.mrb[0].mxu0
        %v8345 = vadd.f32 %v7761, %v8344
        %v8346 = vpop.f32.mrb[0].mxu0
        %v8347 = vpop.f32.mrb[0].mxu0
        %v8348 = vadd.f32 %v7765, %v8347
        %v8349 = vpop.f32.mrb[0].mxu0
        %8350 = vmatprep.mubr.bf16.mxu0 0
        %8351 = vmatmul.mubr.bf16.gmra.mrb[0].mxu0 %v8005
        %v8352 = vpop.f32.mrb[0].mxu0
        %v8353 = vadd.f32 %v7771, %v8352
        %v8354 = vpop.f32.mrb[0].mxu0
        %v8355 = vpop.f32.mrb[0].mxu0
        %v8356 = vadd.f32 %v7775, %v8355
        %v8357 = vpop.f32.mrb[0].mxu0
        %8358 = vdwg.mxu0
        %v8359 = vld [vmem:[%s6 + $0x1] sm:$0x1]
        %v8360 = vlaneseq
        %v8361 = vshrl.u32 %v8360, 7
        %v8362 = vsub.s32 0, %v8361
        %v8363 = vrot.slane %v8359, %v8362
        %v8364 = vadd.f32 %v8105, %v8363
        %v8365 = vadd.f32 %v8108, %v8363
        %v8366 = vadd.f32 %v8113, %v8363
        %v8367 = vadd.f32 %v8116, %v8363
        %v8368 = vadd.f32 %v8121, %v8363
        %v8369 = vadd.f32 %v8124, %v8363
        %v8370 = vadd.f32 %v8129, %v8363
        %v8371 = vadd.f32 %v8132, %v8363
        %v8372 = vadd.f32 %v8137, %v8363
        %v8373 = vadd.f32 %v8140, %v8363
        %v8374 = vadd.f32 %v8145, %v8363
        %v8375 = vadd.f32 %v8148, %v8363
        %v8376 = vadd.f32 %v8153, %v8363
        %v8377 = vadd.f32 %v8156, %v8363
        %v8378 = vadd.f32 %v8161, %v8363
        %v8379 = vadd.f32 %v8164, %v8363
        %v8380 = vadd.f32 %v8169, %v8363
        %v8381 = vadd.f32 %v8172, %v8363
        %v8382 = vadd.f32 %v8177, %v8363
        %v8383 = vadd.f32 %v8180, %v8363
        %v8384 = vadd.f32 %v8185, %v8363
        %v8385 = vadd.f32 %v8188, %v8363
        %v8386 = vadd.f32 %v8193, %v8363
        %v8387 = vadd.f32 %v8196, %v8363
        %v8388 = vadd.f32 %v8201, %v8363
        %v8389 = vadd.f32 %v8204, %v8363
        %v8390 = vadd.f32 %v8209, %v8363
        %v8391 = vadd.f32 %v8212, %v8363
        %v8392 = vadd.f32 %v8217, %v8363
        %v8393 = vadd.f32 %v8220, %v8363
        %v8394 = vadd.f32 %v8225, %v8363
        %v8395 = vadd.f32 %v8228, %v8363
        %v8396 = vadd.f32 %v8233, %v8363
        %v8397 = vadd.f32 %v8236, %v8363
        %v8398 = vadd.f32 %v8241, %v8363
        %v8399 = vadd.f32 %v8244, %v8363
        %v8400 = vadd.f32 %v8249, %v8363
        %v8401 = vadd.f32 %v8252, %v8363
        %v8402 = vadd.f32 %v8257, %v8363
        %v8403 = vadd.f32 %v8260, %v8363
        %v8404 = vadd.f32 %v8265, %v8363
        %v8405 = vadd.f32 %v8268, %v8363
        %v8406 = vadd.f32 %v8273, %v8363
        %v8407 = vadd.f32 %v8276, %v8363
        %v8408 = vadd.f32 %v8281, %v8363
        %v8409 = vadd.f32 %v8284, %v8363
        %v8410 = vadd.f32 %v8289, %v8363
        %v8411 = vadd.f32 %v8292, %v8363
        %v8412 = vadd.f32 %v8297, %v8363
        %v8413 = vadd.f32 %v8300, %v8363
        %v8414 = vadd.f32 %v8305, %v8363
        %v8415 = vadd.f32 %v8308, %v8363
        %v8416 = vadd.f32 %v8313, %v8363
        %v8417 = vadd.f32 %v8316, %v8363
        %v8418 = vadd.f32 %v8321, %v8363
        %v8419 = vadd.f32 %v8324, %v8363
        %v8420 = vadd.f32 %v8329, %v8363
        %v8421 = vadd.f32 %v8332, %v8363
        %v8422 = vadd.f32 %v8337, %v8363
        %v8423 = vadd.f32 %v8340, %v8363
        %v8424 = vadd.f32 %v8345, %v8363
        %v8425 = vadd.f32 %v8348, %v8363
        %v8426 = vadd.f32 %v8353, %v8363
        %v8427 = vadd.f32 %v8356, %v8363
        %v8428 = vpack.c.bf16 %v8365, %v8364
        %v8429 = vpack.c.bf16 %v8367, %v8366
        %v8430 = vpack.c.bf16 %v8369, %v8368
        %v8431 = vpack.c.bf16 %v8371, %v8370
        %v8432 = vpack.c.bf16 %v8373, %v8372
        %v8433 = vpack.c.bf16 %v8375, %v8374
        %v8434 = vpack.c.bf16 %v8377, %v8376
        %v8435 = vpack.c.bf16 %v8379, %v8378
        %v8436 = vpack.c.bf16 %v8381, %v8380
        %v8437 = vpack.c.bf16 %v8383, %v8382
        %v8438 = vpack.c.bf16 %v8385, %v8384
        %v8439 = vpack.c.bf16 %v8387, %v8386
        %v8440 = vpack.c.bf16 %v8389, %v8388
        %v8441 = vpack.c.bf16 %v8391, %v8390
        %v8442 = vpack.c.bf16 %v8393, %v8392
        %v8443 = vpack.c.bf16 %v8395, %v8394
        %v8444 = vpack.c.bf16 %v8397, %v8396
        %v8445 = vpack.c.bf16 %v8399, %v8398
        %v8446 = vpack.c.bf16 %v8401, %v8400
        %v8447 = vpack.c.bf16 %v8403, %v8402
        %v8448 = vpack.c.bf16 %v8405, %v8404
        %v8449 = vpack.c.bf16 %v8407, %v8406
        %v8450 = vpack.c.bf16 %v8409, %v8408
        %v8451 = vpack.c.bf16 %v8411, %v8410
        %v8452 = vpack.c.bf16 %v8413, %v8412
        %v8453 = vpack.c.bf16 %v8415, %v8414
        %v8454 = vpack.c.bf16 %v8417, %v8416
        %v8455 = vpack.c.bf16 %v8419, %v8418
        %v8456 = vpack.c.bf16 %v8421, %v8420
        %v8457 = vpack.c.bf16 %v8423, %v8422
        %v8458 = vpack.c.bf16 %v8425, %v8424
        %v8459 = vpack.c.bf16 %v8427, %v8426
        %v8492 = vunpack.c.l.b16 %v8428
        %v8493 = vunpack.c.h.b16 %v8428
        %v8494 = vunpack.c.l.b16 %v8429
        %v8495 = vunpack.c.h.b16 %v8429
        %v8496 = vunpack.c.l.b16 %v8430
        %v8497 = vunpack.c.h.b16 %v8430
        %v8498 = vunpack.c.l.b16 %v8431
        %v8499 = vunpack.c.h.b16 %v8431
        %v8500 = vunpack.c.l.b16 %v8432
        %v8501 = vunpack.c.h.b16 %v8432
        %v8502 = vunpack.c.l.b16 %v8433
        %v8503 = vunpack.c.h.b16 %v8433
        %v8504 = vunpack.c.l.b16 %v8434
        %v8505 = vunpack.c.h.b16 %v8434
        %v8506 = vunpack.c.l.b16 %v8435
        %v8507 = vunpack.c.h.b16 %v8435
        %v8508 = vunpack.c.l.b16 %v8436
        %v8509 = vunpack.c.h.b16 %v8436
        %v8510 = vunpack.c.l.b16 %v8437
        %v8511 = vunpack.c.h.b16 %v8437
        %v8512 = vunpack.c.l.b16 %v8438
        %v8513 = vunpack.c.h.b16 %v8438
        %v8514 = vunpack.c.l.b16 %v8439
        %v8515 = vunpack.c.h.b16 %v8439
        %v8516 = vunpack.c.l.b16 %v8440
        %v8517 = vunpack.c.h.b16 %v8440
        %v8518 = vunpack.c.l.b16 %v8441
        %v8519 = vunpack.c.h.b16 %v8441
        %v8520 = vunpack.c.l.b16 %v8442
        %v8521 = vunpack.c.h.b16 %v8442
        %v8522 = vunpack.c.l.b16 %v8443
        %v8523 = vunpack.c.h.b16 %v8443
        %v8524 = vunpack.c.l.b16 %v8444
        %v8525 = vunpack.c.h.b16 %v8444
        %v8526 = vunpack.c.l.b16 %v8445
        %v8527 = vunpack.c.h.b16 %v8445
        %v8528 = vunpack.c.l.b16 %v8446
        %v8529 = vunpack.c.h.b16 %v8446
        %v8530 = vunpack.c.l.b16 %v8447
        %v8531 = vunpack.c.h.b16 %v8447
        %v8532 = vunpack.c.l.b16 %v8448
        %v8533 = vunpack.c.h.b16 %v8448
        %v8534 = vunpack.c.l.b16 %v8449
        %v8535 = vunpack.c.h.b16 %v8449
        %v8536 = vunpack.c.l.b16 %v8450
        %v8537 = vunpack.c.h.b16 %v8450
        %v8538 = vunpack.c.l.b16 %v8451
        %v8539 = vunpack.c.h.b16 %v8451
        %v8540 = vunpack.c.l.b16 %v8452
        %v8541 = vunpack.c.h.b16 %v8452
        %v8542 = vunpack.c.l.b16 %v8453
        %v8543 = vunpack.c.h.b16 %v8453
        %v8544 = vunpack.c.l.b16 %v8454
        %v8545 = vunpack.c.h.b16 %v8454
        %v8546 = vunpack.c.l.b16 %v8455
        %v8547 = vunpack.c.h.b16 %v8455
        %v8548 = vunpack.c.l.b16 %v8456
        %v8549 = vunpack.c.h.b16 %v8456
        %v8550 = vunpack.c.l.b16 %v8457
        %v8551 = vunpack.c.h.b16 %v8457
        %v8552 = vunpack.c.l.b16 %v8458
        %v8553 = vunpack.c.h.b16 %v8458
        %v8554 = vunpack.c.l.b16 %v8459
        %v8555 = vunpack.c.h.b16 %v8459
        %v8556 = vpack.c.b16 %v8492, %v8492
        %v8557 = vpack.c.b16 %v8493, %v8493
        %v8558 = vpack.c.b16 %v8494, %v8494
        %v8559 = vpack.c.b16 %v8495, %v8495
        %v8560 = vpack.c.b16 %v8496, %v8496
        %v8561 = vpack.c.b16 %v8497, %v8497
        %v8562 = vpack.c.b16 %v8498, %v8498
        %v8563 = vpack.c.b16 %v8499, %v8499
        %v8564 = vpack.c.b16 %v8500, %v8500
        %v8565 = vpack.c.b16 %v8501, %v8501
        %v8566 = vpack.c.b16 %v8502, %v8502
        %v8567 = vpack.c.b16 %v8503, %v8503
        %v8568 = vpack.c.b16 %v8504, %v8504
        %v8569 = vpack.c.b16 %v8505, %v8505
        %v8570 = vpack.c.b16 %v8506, %v8506
        %v8571 = vpack.c.b16 %v8507, %v8507
        %v8572 = vpack.c.b16 %v8508, %v8508
        %v8573 = vpack.c.b16 %v8509, %v8509
        %v8574 = vpack.c.b16 %v8510, %v8510
        %v8575 = vpack.c.b16 %v8511, %v8511
        %v8576 = vpack.c.b16 %v8512, %v8512
        %v8577 = vpack.c.b16 %v8513, %v8513
        %v8578 = vpack.c.b16 %v8514, %v8514
        %v8579 = vpack.c.b16 %v8515, %v8515
        %v8580 = vpack.c.b16 %v8516, %v8516
        %v8581 = vpack.c.b16 %v8517, %v8517
        %v8582 = vpack.c.b16 %v8518, %v8518
        %v8583 = vpack.c.b16 %v8519, %v8519
        %v8584 = vpack.c.b16 %v8520, %v8520
        %v8585 = vpack.c.b16 %v8521, %v8521
        %v8586 = vpack.c.b16 %v8522, %v8522
        %v8587 = vpack.c.b16 %v8523, %v8523
        %v8588 = vpack.c.b16 %v8524, %v8524
        %v8589 = vpack.c.b16 %v8525, %v8525
        %v8590 = vpack.c.b16 %v8526, %v8526
        %v8591 = vpack.c.b16 %v8527, %v8527
        %v8592 = vpack.c.b16 %v8528, %v8528
        %v8593 = vpack.c.b16 %v8529, %v8529
        %v8594 = vpack.c.b16 %v8530, %v8530
        %v8595 = vpack.c.b16 %v8531, %v8531
        %v8596 = vpack.c.b16 %v8532, %v8532
        %v8597 = vpack.c.b16 %v8533, %v8533
        %v8598 = vpack.c.b16 %v8534, %v8534
        %v8599 = vpack.c.b16 %v8535, %v8535
        %v8600 = vpack.c.b16 %v8536, %v8536
        %v8601 = vpack.c.b16 %v8537, %v8537
        %v8602 = vpack.c.b16 %v8538, %v8538
        %v8603 = vpack.c.b16 %v8539, %v8539
        %v8604 = vpack.c.b16 %v8540, %v8540
        %v8605 = vpack.c.b16 %v8541, %v8541
        %v8606 = vpack.c.b16 %v8542, %v8542
        %v8607 = vpack.c.b16 %v8543, %v8543
        %v8608 = vpack.c.b16 %v8544, %v8544
        %v8609 = vpack.c.b16 %v8545, %v8545
        %v8610 = vpack.c.b16 %v8546, %v8546
        %v8611 = vpack.c.b16 %v8547, %v8547
        %v8612 = vpack.c.b16 %v8548, %v8548
        %v8613 = vpack.c.b16 %v8549, %v8549
        %v8614 = vpack.c.b16 %v8550, %v8550
        %v8615 = vpack.c.b16 %v8551, %v8551
        %v8616 = vpack.c.b16 %v8552, %v8552
        %v8617 = vpack.c.b16 %v8553, %v8553
        %v8618 = vpack.c.b16 %v8554, %v8554
        %v8619 = vpack.c.b16 %v8555, %v8555
        %8684 = vst [vmem:[%s287] sm:$0xf] %v8556
        %8685 = vst [vmem:[%s287 + $0x4] sm:$0xf] %v8557
        %8686 = vst [vmem:[%s287 + $0x8] sm:$0xf] %v8558
        %8687 = vst [vmem:[%s287 + $0xc] sm:$0xf] %v8559
        %8688 = vst [vmem:[%s287 + $0x10] sm:$0xf] %v8560
        %8689 = vst [vmem:[%s287 + $0x14] sm:$0xf] %v8561
        %8690 = vst [vmem:[%s287 + $0x18] sm:$0xf] %v8562
        %8691 = vst [vmem:[%s287 + $0x1c] sm:$0xf] %v8563
        %8692 = vst [vmem:[%s287 + $0x20] sm:$0xf] %v8564
        %8693 = vst [vmem:[%s287 + $0x24] sm:$0xf] %v8565
        %8694 = vst [vmem:[%s287 + $0x28] sm:$0xf] %v8566
        %8695 = vst [vmem:[%s287 + $0x2c] sm:$0xf] %v8567
        %8696 = vst [vmem:[%s287 + $0x30] sm:$0xf] %v8568
        %8697 = vst [vmem:[%s287 + $0x34] sm:$0xf] %v8569
        %8698 = vst [vmem:[%s287 + $0x38] sm:$0xf] %v8570
        %8699 = vst [vmem:[%s287 + $0x3c] sm:$0xf] %v8571
        %8700 = vst [vmem:[%s287 + $0x40] sm:$0xf] %v8572
        %8701 = vst [vmem:[%s287 + $0x44] sm:$0xf] %v8573
        %8702 = vst [vmem:[%s287 + $0x48] sm:$0xf] %v8574
        %8703 = vst [vmem:[%s287 + $0x4c] sm:$0xf] %v8575
        %8704 = vst [vmem:[%s287 + $0x50] sm:$0xf] %v8576
        %8705 = vst [vmem:[%s287 + $0x54] sm:$0xf] %v8577
        %8706 = vst [vmem:[%s287 + $0x58] sm:$0xf] %v8578
        %8707 = vst [vmem:[%s287 + $0x5c] sm:$0xf] %v8579
        %8708 = vst [vmem:[%s287 + $0x60] sm:$0xf] %v8580
        %8709 = vst [vmem:[%s287 + $0x64] sm:$0xf] %v8581
        %8710 = vst [vmem:[%s287 + $0x68] sm:$0xf] %v8582
        %8711 = vst [vmem:[%s287 + $0x6c] sm:$0xf] %v8583
        %8712 = vst [vmem:[%s287 + $0x70] sm:$0xf] %v8584
        %8713 = vst [vmem:[%s287 + $0x74] sm:$0xf] %v8585
        %8714 = vst [vmem:[%s287 + $0x78] sm:$0xf] %v8586
        %8715 = vst [vmem:[%s287 + $0x7c] sm:$0xf] %v8587
        %8716 = vst [vmem:[%s287 + $0x80] sm:$0xf] %v8588
        %8717 = vst [vmem:[%s287 + $0x84] sm:$0xf] %v8589
        %8718 = vst [vmem:[%s287 + $0x88] sm:$0xf] %v8590
        %8719 = vst [vmem:[%s287 + $0x8c] sm:$0xf] %v8591
        %8720 = vst [vmem:[%s287 + $0x90] sm:$0xf] %v8592
        %8721 = vst [vmem:[%s287 + $0x94] sm:$0xf] %v8593
        %8722 = vst [vmem:[%s287 + $0x98] sm:$0xf] %v8594
        %8723 = vst [vmem:[%s287 + $0x9c] sm:$0xf] %v8595
        %8724 = vst [vmem:[%s287 + $0xa0] sm:$0xf] %v8596
        %8725 = vst [vmem:[%s287 + $0xa4] sm:$0xf] %v8597
        %8726 = vst [vmem:[%s287 + $0xa8] sm:$0xf] %v8598
        %8727 = vst [vmem:[%s287 + $0xac] sm:$0xf] %v8599
        %8728 = vst [vmem:[%s287 + $0xb0] sm:$0xf] %v8600
        %8729 = vst [vmem:[%s287 + $0xb4] sm:$0xf] %v8601
        %8730 = vst [vmem:[%s287 + $0xb8] sm:$0xf] %v8602
        %8731 = vst [vmem:[%s287 + $0xbc] sm:$0xf] %v8603
        %8732 = vst [vmem:[%s287 + $0xc0] sm:$0xf] %v8604
        %8733 = vst [vmem:[%s287 + $0xc4] sm:$0xf] %v8605
        %8734 = vst [vmem:[%s287 + $0xc8] sm:$0xf] %v8606
        %8735 = vst [vmem:[%s287 + $0xcc] sm:$0xf] %v8607
        %8736 = vst [vmem:[%s287 + $0xd0] sm:$0xf] %v8608
        %8737 = vst [vmem:[%s287 + $0xd4] sm:$0xf] %v8609
        %8738 = vst [vmem:[%s287 + $0xd8] sm:$0xf] %v8610
        %8739 = vst [vmem:[%s287 + $0xdc] sm:$0xf] %v8611
        %8740 = vst [vmem:[%s287 + $0xe0] sm:$0xf] %v8612
        %8741 = vst [vmem:[%s287 + $0xe4] sm:$0xf] %v8613
        %8742 = vst [vmem:[%s287 + $0xe8] sm:$0xf] %v8614
        %8743 = vst [vmem:[%s287 + $0xec] sm:$0xf] %v8615
        %8744 = vst [vmem:[%s287 + $0xf0] sm:$0xf] %v8616
        %8745 = vst [vmem:[%s287 + $0xf4] sm:$0xf] %v8617
        %8746 = vst [vmem:[%s287 + $0xf8] sm:$0xf] %v8618
        %8747 = vst [vmem:[%s287 + $0xfc] sm:$0xf] %v8619
        %s8748 = sand.u32 %s182, 1
        %s8749 = scalar_lea.sflag [#allocation4], %s8748
        %s8750 = sand.u32 %s182, 1
        %s8751 = smul.addr %s8750, 256
        %s8752 = scalar_lea.vmem [#allocation5], %s8751
        // Predicated region
        $region53: #{tpu_custom_call.1} parent=47 // pred_check
          %p8753 = pneg %p192
        $region54: #{tpu_custom_call.1} parent=47 // pred_check_branch
          %8755 = sbr.rel (%p8753) target = $region56
        $region55: #{tpu_custom_call.1} parent=47 // pred_region
          %s8756 = smul.u32 64, %s22
          %s8758 = ssub.s32 4096, 4096
          %8759 = vsyncadd %s8749, %s8758
          %s8760 = smul.addr %s8756, 64
          %s8761 = scalar_lea.hbm %s7, %s8760
          %s8762 = sshll.u32 %s8752, 4
          %s8763 = int_to_ptr.vmem [resolvable:$true] %s8762
          %8768 = dma.vmem_to_hbm [thread:$0]  %s8763, 4096, %s8761, %s8749, 64, 64, 4
        $region56: #{tpu_custom_call.1} parent=47 // pred_fallthru
          _
      $region48: #{tpu_custom_call.1} parent=5 // pred_fallthru
        _
      %p8769 = scmp.le.s32.totalorder 2, %s17
      // Predicated region
      $region57: #{tpu_custom_call.1} parent=5 // pred_check
        %p8770 = pneg %p8769
      $region58: #{tpu_custom_call.1} parent=5 // pred_check_branch
        %8772 = sbr.rel (%p8770) target = $region60
      $region59: #{tpu_custom_call.1} parent=5 // pred_region
        %s8773 = ssub.s32 %s17, 2
        // Predicated region
        $region61: #{tpu_custom_call.1} parent=59 // pred_check
          %p8774 = pneg %p198
        $region62: #{tpu_custom_call.1} parent=59 // pred_check_branch
          %8776 = sbr.rel (%p8774) target = $region64
        $region63: #{tpu_custom_call.1} parent=59 // pred_region
          %s8777 = sand.u32 %s183, 1
          %s8778 = scalar_lea.sflag [#allocation4], %s8777
          %s8779 = sand.u32 %s183, 1
          %s8780 = smul.addr %s8779, 256
          %s8781 = scalar_lea.vmem [#allocation5], %s8780
          %8782 = dma.done %s8778, 4096
        $region64: #{tpu_custom_call.1} parent=59 // pred_fallthru
          _
      $region60: #{tpu_custom_call.1} parent=5 // pred_fallthru
        _
    $region6: #{tpu_custom_call.1} parent=1 // loop_footer
      %s21 = sadd.s32 1, %s17
    $region7: #{tpu_custom_call.1} parent=1 // loop_footer_branch
      %16 = sbr.rel target = $region3
    $region8: #{tpu_custom_call.1} parent=1 // loop_exit
      _
    %8783 = vsyncpa [#allocation3], 1
    %s8784 = scalar_lea.sflag [#allocation3], 1
    %8785 = vsyncpa %s8784, 1
    %8786 = vsyncpa [#allocation4], 1
    %s8787 = scalar_lea.sflag [#allocation4], 1
    %8788 = vsyncpa %s8787, 1

</llo_original>
